<compile_context>
chip_gen: v7x
topology: tpu7x:2x2x1
jax: 0.10.0
libtpu: 0.0.40
codegen_flags: <defaults>
</compile_context>

<pallas_src>
import jax
import jax.numpy as jnp
import numpy as np
from jax.experimental import pallas as pl
from jax.experimental.pallas import tpu as pltpu

LEAKY_SLOPE = 0.2
BN_EPS = 1e-5
LANE = 128


def _round_up(x, m):
    return (x + m - 1) // m * m


# ----------------------------- Pallas kernel --------------------------------

def _fused_conv_bn_lrelu_kernel(p_ref, w_ref, g_ref, b_ref, o_ref):
    """im2col matmul (bf16 in, f32 acc) + training-mode BN + LeakyReLU(0.2).

    p_ref: (M, K) bf16 im2col patches, K ordered (kh, kw, cin)
    w_ref: (K, Cout) bf16 reshaped conv weights
    g_ref, b_ref: (1, Cout) f32 BatchNorm gamma / beta
    o_ref: (M, Cout) f32 activation output
    """
    # Conv as a single MXU matmul with f32 accumulation (conv bias omitted:
    # it is exactly cancelled by the training-mode BN mean subtraction).
    y = jnp.dot(p_ref[...], w_ref[...], preferred_element_type=jnp.float32)

    # Training-mode BatchNorm statistics over the batch*spatial (row) axis.
    mean = jnp.mean(y, axis=0, keepdims=True)
    var = jnp.mean(jnp.square(y - mean), axis=0, keepdims=True)

    scale = g_ref[...] * jax.lax.rsqrt(var + BN_EPS)
    shift = b_ref[...] - mean * scale
    z = y * scale + shift
    o_ref[...] = jnp.where(z >= 0.0, z, LEAKY_SLOPE * z)


def fused_conv_bn_lrelu(patches, w_mat, gamma, beta):
    """One pallas_call for a whole layer; everything is VMEM resident."""
    M, K = patches.shape
    Cout = w_mat.shape[1]
    return pl.pallas_call(
        _fused_conv_bn_lrelu_kernel,
        out_shape=jax.ShapeDtypeStruct((M, Cout), jnp.float32),
        grid_spec=pltpu.PrefetchScalarGridSpec(
            num_scalar_prefetch=0,
            grid=(1,),
            in_specs=[
                pl.BlockSpec((M, K), lambda i: (0, 0)),
                pl.BlockSpec((K, Cout), lambda i: (0, 0)),
                pl.BlockSpec((1, Cout), lambda i: (0, 0)),
                pl.BlockSpec((1, Cout), lambda i: (0, 0)),
            ],
            out_specs=pl.BlockSpec((M, Cout), lambda i: (0, 0)),
        ),
        compiler_params=pltpu.CompilerParams(
            dimension_semantics=("arbitrary",)),
    )(patches, w_mat, gamma, beta)


# ------------------------------- JAX glue ------------------------------------

def im2col(x_nhwc, stride):
    """3x3, pad=1 im2col.  Returns (N*Ho*Wo, 9*C) with K ordered (kh, kw, c)."""
    N, H, W, C = x_nhwc.shape
    xp = jnp.pad(x_nhwc, ((0, 0), (1, 1), (1, 1), (0, 0)))
    Ho = (H + 2 - 3) // stride + 1
    Wo = (W + 2 - 3) // stride + 1
    cols = []
    for kh in range(3):
        for kw in range(3):
            sl = xp[:, kh:kh + stride * (Ho - 1) + 1:stride,
                    kw:kw + stride * (Wo - 1) + 1:stride, :]
            cols.append(sl)
    patches = jnp.concatenate(cols, axis=-1)          # (N, Ho, Wo, 9*C)
    return patches.reshape(N * Ho * Wo, 9 * C), (N, Ho, Wo)


def conv_bn_lrelu_layer(x_nhwc, params, stride):
    w, _b, gamma, beta = params          # conv bias dropped (cancelled by BN)
    Cin_act = x_nhwc.shape[-1]           # activation may carry lane padding
    Cin, Cout = w.shape[2], w.shape[3]
    Cout_p = _round_up(Cout, LANE)

    # Zero-pad weights along Cin (to cover padded activation channels) and
    # along Cout (lane-dense output).  Padded output channels get gamma=beta=0
    # so they stay exactly zero and are inert for the next layer.
    w_p = jnp.pad(w, ((0, 0), (0, 0), (0, Cin_act - Cin), (0, Cout_p - Cout)))
    g_p = jnp.pad(gamma, (0, Cout_p - Cout)).reshape(1, Cout_p)
    b_p = jnp.pad(beta, (0, Cout_p - Cout)).reshape(1, Cout_p)

    patches, (N, Ho, Wo) = im2col(x_nhwc.astype(jnp.bfloat16), stride)
    w_mat = w_p.reshape(9 * Cin_act, Cout_p).astype(jnp.bfloat16)

    out = fused_conv_bn_lrelu(patches, w_mat, g_p, b_p)
    return out.reshape(N, Ho, Wo, Cout_p)


def init_params(key, in_channels, ngf):
    chans = [in_channels, ngf, 2 * ngf, 4 * ngf, 5 * ngf]
    params = []
    for li in range(4):
        cin, cout = chans[li], chans[li + 1]
        key, kw, kb = jax.random.split(key, 3)
        w = jax.random.normal(kw, (3, 3, cin, cout), jnp.float32) / np.sqrt(9 * cin)
        b = jax.random.normal(kb, (cout,), jnp.float32) * 0.01
        gamma = jnp.ones((cout,), jnp.float32)       # PyTorch BN init
        beta = jnp.zeros((cout,), jnp.float32)
        params.append((w, b, gamma, beta))
    return params


def sar_encoder_forward(x_nchw, params):
    bz = x_nchw.shape[0]
    x = jnp.transpose(x_nchw, (0, 2, 3, 1))          # NCHW -> NHWC
    for p, s in zip(params, (1, 2, 2, 2)):
        x = conv_bn_lrelu_layer(x, p, s)
    cout_last = params[-1][0].shape[-1]
    x = x[..., :cout_last]                           # drop lane padding (384->320)
    x = jnp.transpose(x, (0, 3, 1, 2))               # back to NCHW
    return x.reshape(bz, -1, 1280)                   # matches PyTorch reshape


def reference_forward(x_nchw, params):
    """Pure-JAX reference (f32, includes conv bias, training-mode BN)."""
    bz = x_nchw.shape[0]
    x = jnp.transpose(x_nchw, (0, 2, 3, 1))
    for (w, b, gamma, beta), s in zip(params, (1, 2, 2, 2)):
        y = jax.lax.conv_general_dilated(
            x, w, window_strides=(s, s), padding=((1, 1), (1, 1)),
            dimension_numbers=("NHWC", "HWIO", "NHWC"),
            precision=jax.lax.Precision.HIGHEST)
        y = y + b
        mean = jnp.mean(y, axis=(0, 1, 2))
        var = jnp.mean((y - mean) ** 2, axis=(0, 1, 2))
        z = (y - mean) / jnp.sqrt(var + BN_EPS) * gamma + beta
        x = jnp.where(z >= 0, z, LEAKY_SLOPE * z)
    x = jnp.transpose(x, (0, 3, 1, 2))
    return x.reshape(bz, -1, 1280)


if __name__ == "__main__":
    # Small shapes consistent with the module: ngf=64 so that
    # 5*ngf * (H/8) * (W/8) = 320 * 2 * 2 = 1280 (the hard-coded reshape).
    in_channels, ngf = 4, 64
    N, H, W = 2, 16, 16

    key = jax.random.PRNGKey(0)
    key, kx = jax.random.split(key)
    x = jax.random.normal(kx, (N, in_channels, H, W), jnp.float32)
    params = init_params(key, in_channels, ngf)

    fwd = jax.jit(sar_encoder_forward)
    out = jax.block_until_ready(fwd(x, params))
    ref = jax.block_until_ready(reference_forward(x, params))

    assert out.shape == (N, 1, 1280), out.shape
    np.testing.assert_allclose(np.asarray(out), np.asarray(ref),
                               rtol=5e-2, atol=5e-2)
    print("KERNEL_OK")
</pallas_src>

<mosaic_0001>
module attributes {stable_mosaic.version = 11 : i64} {
  func.func @_fused_conv_bn_lrelu_kernel(%arg0: i32, %arg1: memref<512x36xbf16, #tpu.memory_space<vmem>>, %arg2: memref<36x128xbf16, #tpu.memory_space<vmem>>, %arg3: memref<1x128xf32, #tpu.memory_space<vmem>>, %arg4: memref<1x128xf32, #tpu.memory_space<vmem>>, %arg5: memref<512x128xf32, #tpu.memory_space<vmem>>) attributes {dimension_semantics = [#tpu.dimension_semantics<arbitrary>], iteration_bounds = array<i64: 1>, scalar_prefetch = 0 : i64, scratch_operands = 0 : i64, tpu.core_type = #tpu.core_type<tc>, window_params = [{pipeline_mode = #tpu.pipeline_mode<synchronous>, transform_indices = @transform_0, window_bounds = array<i64: 512, 36>}, {pipeline_mode = #tpu.pipeline_mode<synchronous>, transform_indices = @transform_1, window_bounds = array<i64: 36, 128>}, {pipeline_mode = #tpu.pipeline_mode<synchronous>, transform_indices = @transform_2, window_bounds = array<i64: 1, 128>}, {pipeline_mode = #tpu.pipeline_mode<synchronous>, transform_indices = @transform_3, window_bounds = array<i64: 1, 128>}, {pipeline_mode = #tpu.pipeline_mode<synchronous>, transform_indices = @transform_4, window_bounds = array<i64: 512, 128>}]} {
    %c0 = arith.constant 0 : index
    %c0_0 = arith.constant 0 : index
    %0 = vector.load %arg1[%c0, %c0_0] : memref<512x36xbf16, #tpu.memory_space<vmem>>, vector<512x36xbf16>
    %c0_1 = arith.constant 0 : index
    %c0_2 = arith.constant 0 : index
    %1 = vector.load %arg2[%c0_1, %c0_2] : memref<36x128xbf16, #tpu.memory_space<vmem>>, vector<36x128xbf16>
    %cst = arith.constant dense<0.000000e+00> : vector<512x128xf32>
    %2 = tpu.matmul %0, %1, %cst {dimension_numbers = #tpu.dot_dimension_numbers<[1], [0], [0], [1], [0, 0, 1, 1], [], []>} : vector<512x36xbf16>, vector<36x128xbf16>, vector<512x128xf32> -> vector<512x128xf32>
    %cst_3 = arith.constant dense<0.000000e+00> : vector<128xf32>
    %3 = vector.multi_reduction <add>, %2, %cst_3 [0] : vector<512x128xf32> to vector<128xf32>
    %4 = vector.shape_cast %3 : vector<128xf32> to vector<1x128xf32>
    %cst_4 = arith.constant 5.120000e+02 : f32
    %5 = vector.broadcast %cst_4 : f32 to vector<1x128xf32>
    %6 = arith.divf %4, %5 : vector<1x128xf32>
    %7 = vector.broadcast %6 : vector<1x128xf32> to vector<512x128xf32>
    %8 = arith.subf %2, %7 : vector<512x128xf32>
    %9 = arith.mulf %8, %8 : vector<512x128xf32>
    %cst_5 = arith.constant dense<0.000000e+00> : vector<128xf32>
    %10 = vector.multi_reduction <add>, %9, %cst_5 [0] : vector<512x128xf32> to vector<128xf32>
    %11 = vector.shape_cast %10 : vector<128xf32> to vector<1x128xf32>
    %cst_6 = arith.constant 5.120000e+02 : f32
    %12 = vector.broadcast %cst_6 : f32 to vector<1x128xf32>
    %13 = arith.divf %11, %12 : vector<1x128xf32>
    %c0_7 = arith.constant 0 : index
    %c0_8 = arith.constant 0 : index
    %14 = vector.load %arg3[%c0_7, %c0_8] : memref<1x128xf32, #tpu.memory_space<vmem>>, vector<1x128xf32>
    %cst_9 = arith.constant 9.99999974E-6 : f32
    %15 = vector.broadcast %cst_9 : f32 to vector<1x128xf32>
    %16 = arith.addf %13, %15 : vector<1x128xf32>
    %17 = math.rsqrt %16 : vector<1x128xf32>
    %18 = arith.mulf %14, %17 : vector<1x128xf32>
    %c0_10 = arith.constant 0 : index
    %c0_11 = arith.constant 0 : index
    %19 = vector.load %arg4[%c0_10, %c0_11] : memref<1x128xf32, #tpu.memory_space<vmem>>, vector<1x128xf32>
    %20 = arith.mulf %6, %18 : vector<1x128xf32>
    %21 = arith.subf %19, %20 : vector<1x128xf32>
    %22 = vector.broadcast %18 : vector<1x128xf32> to vector<512x128xf32>
    %23 = arith.mulf %2, %22 : vector<512x128xf32>
    %24 = vector.broadcast %21 : vector<1x128xf32> to vector<512x128xf32>
    %25 = arith.addf %23, %24 : vector<512x128xf32>
    %cst_12 = arith.constant 0.000000e+00 : f32
    %26 = vector.broadcast %cst_12 : f32 to vector<512x128xf32>
    %27 = arith.cmpf oge, %25, %26 : vector<512x128xf32>
    %cst_13 = arith.constant 2.000000e-01 : f32
    %28 = vector.broadcast %cst_13 : f32 to vector<512x128xf32>
    %29 = arith.mulf %28, %25 : vector<512x128xf32>
    %30 = arith.select %27, %25, %29 : vector<512x128xi1>, vector<512x128xf32>
    %c0_14 = arith.constant 0 : index
    %c0_15 = arith.constant 0 : index
    %31 = vector.load %arg5[%c0_14, %c0_15] : memref<512x128xf32, #tpu.memory_space<vmem>>, vector<512x128xf32>
    tpu.vector_store %arg5[%c0_14, %c0_15], %30 {strides = array<i32>} : memref<512x128xf32, #tpu.memory_space<vmem>>, vector<512x128xf32>,
    return
  }
  func.func @transform_0(%arg0: i32) -> (i32, i32) {
    %c0_i32 = arith.constant 0 : i32
    %c0_i32_0 = arith.constant 0 : i32
    %c0_i32_1 = arith.constant 0 : i32
    return %c0_i32, %c0_i32_0 : i32, i32
  }
  func.func @transform_1(%arg0: i32) -> (i32, i32) {
    %c0_i32 = arith.constant 0 : i32
    %c0_i32_0 = arith.constant 0 : i32
    %c0_i32_1 = arith.constant 0 : i32
    return %c0_i32, %c0_i32_0 : i32, i32
  }
  func.func @transform_2(%arg0: i32) -> (i32, i32) {
    %c0_i32 = arith.constant 0 : i32
    %c0_i32_0 = arith.constant 0 : i32
    %c0_i32_1 = arith.constant 0 : i32
    return %c0_i32, %c0_i32_0 : i32, i32
  }
  func.func @transform_3(%arg0: i32) -> (i32, i32) {
    %c0_i32 = arith.constant 0 : i32
    %c0_i32_0 = arith.constant 0 : i32
    %c0_i32_1 = arith.constant 0 : i32
    return %c0_i32, %c0_i32_0 : i32, i32
  }
  func.func @transform_4(%arg0: i32) -> (i32, i32) {
    %c0_i32 = arith.constant 0 : i32
    %c0_i32_0 = arith.constant 0 : i32
    %c0_i32_1 = arith.constant 0 : i32
    return %c0_i32, %c0_i32_0 : i32, i32
  }
}

module attributes {stable_mosaic.version = 11 : i64} {
  func.func @_fused_conv_bn_lrelu_kernel(%arg0: i32, %arg1: memref<128x1152xbf16, #tpu.memory_space<vmem>>, %arg2: memref<1152x128xbf16, #tpu.memory_space<vmem>>, %arg3: memref<1x128xf32, #tpu.memory_space<vmem>>, %arg4: memref<1x128xf32, #tpu.memory_space<vmem>>, %arg5: memref<128x128xf32, #tpu.memory_space<vmem>>) attributes {dimension_semantics = [#tpu.dimension_semantics<arbitrary>], iteration_bounds = array<i64: 1>, scalar_prefetch = 0 : i64, scratch_operands = 0 : i64, tpu.core_type = #tpu.core_type<tc>, window_params = [{pipeline_mode = #tpu.pipeline_mode<synchronous>, transform_indices = @transform_0, window_bounds = array<i64: 128, 1152>}, {pipeline_mode = #tpu.pipeline_mode<synchronous>, transform_indices = @transform_1, window_bounds = array<i64: 1152, 128>}, {pipeline_mode = #tpu.pipeline_mode<synchronous>, transform_indices = @transform_2, window_bounds = array<i64: 1, 128>}, {pipeline_mode = #tpu.pipeline_mode<synchronous>, transform_indices = @transform_3, window_bounds = array<i64: 1, 128>}, {pipeline_mode = #tpu.pipeline_mode<synchronous>, transform_indices = @transform_4, window_bounds = array<i64: 128, 128>}]} {
    %c0 = arith.constant 0 : index
    %c0_0 = arith.constant 0 : index
    %0 = vector.load %arg1[%c0, %c0_0] : memref<128x1152xbf16, #tpu.memory_space<vmem>>, vector<128x1152xbf16>
    %c0_1 = arith.constant 0 : index
    %c0_2 = arith.constant 0 : index
    %1 = vector.load %arg2[%c0_1, %c0_2] : memref<1152x128xbf16, #tpu.memory_space<vmem>>, vector<1152x128xbf16>
    %cst = arith.constant dense<0.000000e+00> : vector<128x128xf32>
    %2 = tpu.matmul %0, %1, %cst {dimension_numbers = #tpu.dot_dimension_numbers<[1], [0], [0], [1], [0, 0, 1, 1], [], []>} : vector<128x1152xbf16>, vector<1152x128xbf16>, vector<128x128xf32> -> vector<128x128xf32>
    %cst_3 = arith.constant dense<0.000000e+00> : vector<128xf32>
    %3 = vector.multi_reduction <add>, %2, %cst_3 [0] : vector<128x128xf32> to vector<128xf32>
    %4 = vector.shape_cast %3 : vector<128xf32> to vector<1x128xf32>
    %cst_4 = arith.constant 1.280000e+02 : f32
    %5 = vector.broadcast %cst_4 : f32 to vector<1x128xf32>
    %6 = arith.divf %4, %5 : vector<1x128xf32>
    %7 = vector.broadcast %6 : vector<1x128xf32> to vector<128x128xf32>
    %8 = arith.subf %2, %7 : vector<128x128xf32>
    %9 = arith.mulf %8, %8 : vector<128x128xf32>
    %cst_5 = arith.constant dense<0.000000e+00> : vector<128xf32>
    %10 = vector.multi_reduction <add>, %9, %cst_5 [0] : vector<128x128xf32> to vector<128xf32>
    %11 = vector.shape_cast %10 : vector<128xf32> to vector<1x128xf32>
    %cst_6 = arith.constant 1.280000e+02 : f32
    %12 = vector.broadcast %cst_6 : f32 to vector<1x128xf32>
    %13 = arith.divf %11, %12 : vector<1x128xf32>
    %c0_7 = arith.constant 0 : index
    %c0_8 = arith.constant 0 : index
    %14 = vector.load %arg3[%c0_7, %c0_8] : memref<1x128xf32, #tpu.memory_space<vmem>>, vector<1x128xf32>
    %cst_9 = arith.constant 9.99999974E-6 : f32
    %15 = vector.broadcast %cst_9 : f32 to vector<1x128xf32>
    %16 = arith.addf %13, %15 : vector<1x128xf32>
    %17 = math.rsqrt %16 : vector<1x128xf32>
    %18 = arith.mulf %14, %17 : vector<1x128xf32>
    %c0_10 = arith.constant 0 : index
    %c0_11 = arith.constant 0 : index
    %19 = vector.load %arg4[%c0_10, %c0_11] : memref<1x128xf32, #tpu.memory_space<vmem>>, vector<1x128xf32>
    %20 = arith.mulf %6, %18 : vector<1x128xf32>
    %21 = arith.subf %19, %20 : vector<1x128xf32>
    %22 = vector.broadcast %18 : vector<1x128xf32> to vector<128x128xf32>
    %23 = arith.mulf %2, %22 : vector<128x128xf32>
    %24 = vector.broadcast %21 : vector<1x128xf32> to vector<128x128xf32>
    %25 = arith.addf %23, %24 : vector<128x128xf32>
    %cst_12 = arith.constant 0.000000e+00 : f32
    %26 = vector.broadcast %cst_12 : f32 to vector<128x128xf32>
    %27 = arith.cmpf oge, %25, %26 : vector<128x128xf32>
    %cst_13 = arith.constant 2.000000e-01 : f32
    %28 = vector.broadcast %cst_13 : f32 to vector<128x128xf32>
    %29 = arith.mulf %28, %25 : vector<128x128xf32>
    %30 = arith.select %27, %25, %29 : vector<128x128xi1>, vector<128x128xf32>
    %c0_14 = arith.constant 0 : index
    %c0_15 = arith.constant 0 : index
    %31 = vector.load %arg5[%c0_14, %c0_15] : memref<128x128xf32, #tpu.memory_space<vmem>>, vector<128x128xf32>
    tpu.vector_store %arg5[%c0_14, %c0_15], %30 {strides = array<i32>} : memref<128x128xf32, #tpu.memory_space<vmem>>, vector<128x128xf32>,
    return
  }
  func.func @transform_0(%arg0: i32) -> (i32, i32) {
    %c0_i32 = arith.constant 0 : i32
    %c0_i32_0 = arith.constant 0 : i32
    %c0_i32_1 = arith.constant 0 : i32
    return %c0_i32, %c0_i32_0 : i32, i32
  }
  func.func @transform_1(%arg0: i32) -> (i32, i32) {
    %c0_i32 = arith.constant 0 : i32
    %c0_i32_0 = arith.constant 0 : i32
    %c0_i32_1 = arith.constant 0 : i32
    return %c0_i32, %c0_i32_0 : i32, i32
  }
  func.func @transform_2(%arg0: i32) -> (i32, i32) {
    %c0_i32 = arith.constant 0 : i32
    %c0_i32_0 = arith.constant 0 : i32
    %c0_i32_1 = arith.constant 0 : i32
    return %c0_i32, %c0_i32_0 : i32, i32
  }
  func.func @transform_3(%arg0: i32) -> (i32, i32) {
    %c0_i32 = arith.constant 0 : i32
    %c0_i32_0 = arith.constant 0 : i32
    %c0_i32_1 = arith.constant 0 : i32
    return %c0_i32, %c0_i32_0 : i32, i32
  }
  func.func @transform_4(%arg0: i32) -> (i32, i32) {
    %c0_i32 = arith.constant 0 : i32
    %c0_i32_0 = arith.constant 0 : i32
    %c0_i32_1 = arith.constant 0 : i32
    return %c0_i32, %c0_i32_0 : i32, i32
  }
}

module attributes {stable_mosaic.version = 11 : i64} {
  func.func @_fused_conv_bn_lrelu_kernel(%arg0: i32, %arg1: memref<32x1152xbf16, #tpu.memory_space<vmem>>, %arg2: memref<1152x256xbf16, #tpu.memory_space<vmem>>, %arg3: memref<1x256xf32, #tpu.memory_space<vmem>>, %arg4: memref<1x256xf32, #tpu.memory_space<vmem>>, %arg5: memref<32x256xf32, #tpu.memory_space<vmem>>) attributes {dimension_semantics = [#tpu.dimension_semantics<arbitrary>], iteration_bounds = array<i64: 1>, scalar_prefetch = 0 : i64, scratch_operands = 0 : i64, tpu.core_type = #tpu.core_type<tc>, window_params = [{pipeline_mode = #tpu.pipeline_mode<synchronous>, transform_indices = @transform_0, window_bounds = array<i64: 32, 1152>}, {pipeline_mode = #tpu.pipeline_mode<synchronous>, transform_indices = @transform_1, window_bounds = array<i64: 1152, 256>}, {pipeline_mode = #tpu.pipeline_mode<synchronous>, transform_indices = @transform_2, window_bounds = array<i64: 1, 256>}, {pipeline_mode = #tpu.pipeline_mode<synchronous>, transform_indices = @transform_3, window_bounds = array<i64: 1, 256>}, {pipeline_mode = #tpu.pipeline_mode<synchronous>, transform_indices = @transform_4, window_bounds = array<i64: 32, 256>}]} {
    %c0 = arith.constant 0 : index
    %c0_0 = arith.constant 0 : index
    %0 = vector.load %arg1[%c0, %c0_0] : memref<32x1152xbf16, #tpu.memory_space<vmem>>, vector<32x1152xbf16>
    %c0_1 = arith.constant 0 : index
    %c0_2 = arith.constant 0 : index
    %1 = vector.load %arg2[%c0_1, %c0_2] : memref<1152x256xbf16, #tpu.memory_space<vmem>>, vector<1152x256xbf16>
    %cst = arith.constant dense<0.000000e+00> : vector<32x256xf32>
    %2 = tpu.matmul %0, %1, %cst {dimension_numbers = #tpu.dot_dimension_numbers<[1], [0], [0], [1], [0, 0, 1, 1], [], []>} : vector<32x1152xbf16>, vector<1152x256xbf16>, vector<32x256xf32> -> vector<32x256xf32>
    %cst_3 = arith.constant dense<0.000000e+00> : vector<256xf32>
    %3 = vector.multi_reduction <add>, %2, %cst_3 [0] : vector<32x256xf32> to vector<256xf32>
    %4 = vector.shape_cast %3 : vector<256xf32> to vector<1x256xf32>
    %cst_4 = arith.constant 3.200000e+01 : f32
    %5 = vector.broadcast %cst_4 : f32 to vector<1x256xf32>
    %6 = arith.divf %4, %5 : vector<1x256xf32>
    %7 = vector.broadcast %6 : vector<1x256xf32> to vector<32x256xf32>
    %8 = arith.subf %2, %7 : vector<32x256xf32>
    %9 = arith.mulf %8, %8 : vector<32x256xf32>
    %cst_5 = arith.constant dense<0.000000e+00> : vector<256xf32>
    %10 = vector.multi_reduction <add>, %9, %cst_5 [0] : vector<32x256xf32> to vector<256xf32>
    %11 = vector.shape_cast %10 : vector<256xf32> to vector<1x256xf32>
    %cst_6 = arith.constant 3.200000e+01 : f32
    %12 = vector.broadcast %cst_6 : f32 to vector<1x256xf32>
    %13 = arith.divf %11, %12 : vector<1x256xf32>
    %c0_7 = arith.constant 0 : index
    %c0_8 = arith.constant 0 : index
    %14 = vector.load %arg3[%c0_7, %c0_8] : memref<1x256xf32, #tpu.memory_space<vmem>>, vector<1x256xf32>
    %cst_9 = arith.constant 9.99999974E-6 : f32
    %15 = vector.broadcast %cst_9 : f32 to vector<1x256xf32>
    %16 = arith.addf %13, %15 : vector<1x256xf32>
    %17 = math.rsqrt %16 : vector<1x256xf32>
    %18 = arith.mulf %14, %17 : vector<1x256xf32>
    %c0_10 = arith.constant 0 : index
    %c0_11 = arith.constant 0 : index
    %19 = vector.load %arg4[%c0_10, %c0_11] : memref<1x256xf32, #tpu.memory_space<vmem>>, vector<1x256xf32>
    %20 = arith.mulf %6, %18 : vector<1x256xf32>
    %21 = arith.subf %19, %20 : vector<1x256xf32>
    %22 = vector.broadcast %18 : vector<1x256xf32> to vector<32x256xf32>
    %23 = arith.mulf %2, %22 : vector<32x256xf32>
    %24 = vector.broadcast %21 : vector<1x256xf32> to vector<32x256xf32>
    %25 = arith.addf %23, %24 : vector<32x256xf32>
    %cst_12 = arith.constant 0.000000e+00 : f32
    %26 = vector.broadcast %cst_12 : f32 to vector<32x256xf32>
    %27 = arith.cmpf oge, %25, %26 : vector<32x256xf32>
    %cst_13 = arith.constant 2.000000e-01 : f32
    %28 = vector.broadcast %cst_13 : f32 to vector<32x256xf32>
    %29 = arith.mulf %28, %25 : vector<32x256xf32>
    %30 = arith.select %27, %25, %29 : vector<32x256xi1>, vector<32x256xf32>
    %c0_14 = arith.constant 0 : index
    %c0_15 = arith.constant 0 : index
    %31 = vector.load %arg5[%c0_14, %c0_15] : memref<32x256xf32, #tpu.memory_space<vmem>>, vector<32x256xf32>
    tpu.vector_store %arg5[%c0_14, %c0_15], %30 {strides = array<i32>} : memref<32x256xf32, #tpu.memory_space<vmem>>, vector<32x256xf32>,
    return
  }
  func.func @transform_0(%arg0: i32) -> (i32, i32) {
    %c0_i32 = arith.constant 0 : i32
    %c0_i32_0 = arith.constant 0 : i32
    %c0_i32_1 = arith.constant 0 : i32
    return %c0_i32, %c0_i32_0 : i32, i32
  }
  func.func @transform_1(%arg0: i32) -> (i32, i32) {
    %c0_i32 = arith.constant 0 : i32
    %c0_i32_0 = arith.constant 0 : i32
    %c0_i32_1 = arith.constant 0 : i32
    return %c0_i32, %c0_i32_0 : i32, i32
  }
  func.func @transform_2(%arg0: i32) -> (i32, i32) {
    %c0_i32 = arith.constant 0 : i32
    %c0_i32_0 = arith.constant 0 : i32
    %c0_i32_1 = arith.constant 0 : i32
    return %c0_i32, %c0_i32_0 : i32, i32
  }
  func.func @transform_3(%arg0: i32) -> (i32, i32) {
    %c0_i32 = arith.constant 0 : i32
    %c0_i32_0 = arith.constant 0 : i32
    %c0_i32_1 = arith.constant 0 : i32
    return %c0_i32, %c0_i32_0 : i32, i32
  }
  func.func @transform_4(%arg0: i32) -> (i32, i32) {
    %c0_i32 = arith.constant 0 : i32
    %c0_i32_0 = arith.constant 0 : i32
    %c0_i32_1 = arith.constant 0 : i32
    return %c0_i32, %c0_i32_0 : i32, i32
  }
}

module attributes {stable_mosaic.version = 11 : i64} {
  func.func @_fused_conv_bn_lrelu_kernel(%arg0: i32, %arg1: memref<8x2304xbf16, #tpu.memory_space<vmem>>, %arg2: memref<2304x384xbf16, #tpu.memory_space<vmem>>, %arg3: memref<1x384xf32, #tpu.memory_space<vmem>>, %arg4: memref<1x384xf32, #tpu.memory_space<vmem>>, %arg5: memref<8x384xf32, #tpu.memory_space<vmem>>) attributes {dimension_semantics = [#tpu.dimension_semantics<arbitrary>], iteration_bounds = array<i64: 1>, scalar_prefetch = 0 : i64, scratch_operands = 0 : i64, tpu.core_type = #tpu.core_type<tc>, window_params = [{pipeline_mode = #tpu.pipeline_mode<synchronous>, transform_indices = @transform_0, window_bounds = array<i64: 8, 2304>}, {pipeline_mode = #tpu.pipeline_mode<synchronous>, transform_indices = @transform_1, window_bounds = array<i64: 2304, 384>}, {pipeline_mode = #tpu.pipeline_mode<synchronous>, transform_indices = @transform_2, window_bounds = array<i64: 1, 384>}, {pipeline_mode = #tpu.pipeline_mode<synchronous>, transform_indices = @transform_3, window_bounds = array<i64: 1, 384>}, {pipeline_mode = #tpu.pipeline_mode<synchronous>, transform_indices = @transform_4, window_bounds = array<i64: 8, 384>}]} {
    %c0 = arith.constant 0 : index
    %c0_0 = arith.constant 0 : index
    %0 = vector.load %arg1[%c0, %c0_0] : memref<8x2304xbf16, #tpu.memory_space<vmem>>, vector<8x2304xbf16>
    %c0_1 = arith.constant 0 : index
    %c0_2 = arith.constant 0 : index
    %1 = vector.load %arg2[%c0_1, %c0_2] : memref<2304x384xbf16, #tpu.memory_space<vmem>>, vector<2304x384xbf16>
    %cst = arith.constant dense<0.000000e+00> : vector<8x384xf32>
    %2 = tpu.matmul %0, %1, %cst {dimension_numbers = #tpu.dot_dimension_numbers<[1], [0], [0], [1], [0, 0, 1, 1], [], []>} : vector<8x2304xbf16>, vector<2304x384xbf16>, vector<8x384xf32> -> vector<8x384xf32>
    %cst_3 = arith.constant dense<0.000000e+00> : vector<384xf32>
    %3 = vector.multi_reduction <add>, %2, %cst_3 [0] : vector<8x384xf32> to vector<384xf32>
    %4 = vector.shape_cast %3 : vector<384xf32> to vector<1x384xf32>
    %cst_4 = arith.constant 8.000000e+00 : f32
    %5 = vector.broadcast %cst_4 : f32 to vector<1x384xf32>
    %6 = arith.divf %4, %5 : vector<1x384xf32>
    %7 = vector.broadcast %6 : vector<1x384xf32> to vector<8x384xf32>
    %8 = arith.subf %2, %7 : vector<8x384xf32>
    %9 = arith.mulf %8, %8 : vector<8x384xf32>
    %cst_5 = arith.constant dense<0.000000e+00> : vector<384xf32>
    %10 = vector.multi_reduction <add>, %9, %cst_5 [0] : vector<8x384xf32> to vector<384xf32>
    %11 = vector.shape_cast %10 : vector<384xf32> to vector<1x384xf32>
    %cst_6 = arith.constant 8.000000e+00 : f32
    %12 = vector.broadcast %cst_6 : f32 to vector<1x384xf32>
    %13 = arith.divf %11, %12 : vector<1x384xf32>
    %c0_7 = arith.constant 0 : index
    %c0_8 = arith.constant 0 : index
    %14 = vector.load %arg3[%c0_7, %c0_8] : memref<1x384xf32, #tpu.memory_space<vmem>>, vector<1x384xf32>
    %cst_9 = arith.constant 9.99999974E-6 : f32
    %15 = vector.broadcast %cst_9 : f32 to vector<1x384xf32>
    %16 = arith.addf %13, %15 : vector<1x384xf32>
    %17 = math.rsqrt %16 : vector<1x384xf32>
    %18 = arith.mulf %14, %17 : vector<1x384xf32>
    %c0_10 = arith.constant 0 : index
    %c0_11 = arith.constant 0 : index
    %19 = vector.load %arg4[%c0_10, %c0_11] : memref<1x384xf32, #tpu.memory_space<vmem>>, vector<1x384xf32>
    %20 = arith.mulf %6, %18 : vector<1x384xf32>
    %21 = arith.subf %19, %20 : vector<1x384xf32>
    %22 = vector.broadcast %18 : vector<1x384xf32> to vector<8x384xf32>
    %23 = arith.mulf %2, %22 : vector<8x384xf32>
    %24 = vector.broadcast %21 : vector<1x384xf32> to vector<8x384xf32>
    %25 = arith.addf %23, %24 : vector<8x384xf32>
    %cst_12 = arith.constant 0.000000e+00 : f32
    %26 = vector.broadcast %cst_12 : f32 to vector<8x384xf32>
    %27 = arith.cmpf oge, %25, %26 : vector<8x384xf32>
    %cst_13 = arith.constant 2.000000e-01 : f32
    %28 = vector.broadcast %cst_13 : f32 to vector<8x384xf32>
    %29 = arith.mulf %28, %25 : vector<8x384xf32>
    %30 = arith.select %27, %25, %29 : vector<8x384xi1>, vector<8x384xf32>
    %c0_14 = arith.constant 0 : index
    %c0_15 = arith.constant 0 : index
    %31 = vector.load %arg5[%c0_14, %c0_15] : memref<8x384xf32, #tpu.memory_space<vmem>>, vector<8x384xf32>
    tpu.vector_store %arg5[%c0_14, %c0_15], %30 {strides = array<i32>} : memref<8x384xf32, #tpu.memory_space<vmem>>, vector<8x384xf32>,
    return
  }
  func.func @transform_0(%arg0: i32) -> (i32, i32) {
    %c0_i32 = arith.constant 0 : i32
    %c0_i32_0 = arith.constant 0 : i32
    %c0_i32_1 = arith.constant 0 : i32
    return %c0_i32, %c0_i32_0 : i32, i32
  }
  func.func @transform_1(%arg0: i32) -> (i32, i32) {
    %c0_i32 = arith.constant 0 : i32
    %c0_i32_0 = arith.constant 0 : i32
    %c0_i32_1 = arith.constant 0 : i32
    return %c0_i32, %c0_i32_0 : i32, i32
  }
  func.func @transform_2(%arg0: i32) -> (i32, i32) {
    %c0_i32 = arith.constant 0 : i32
    %c0_i32_0 = arith.constant 0 : i32
    %c0_i32_1 = arith.constant 0 : i32
    return %c0_i32, %c0_i32_0 : i32, i32
  }
  func.func @transform_3(%arg0: i32) -> (i32, i32) {
    %c0_i32 = arith.constant 0 : i32
    %c0_i32_0 = arith.constant 0 : i32
    %c0_i32_1 = arith.constant 0 : i32
    return %c0_i32, %c0_i32_0 : i32, i32
  }
  func.func @transform_4(%arg0: i32) -> (i32, i32) {
    %c0_i32 = arith.constant 0 : i32
    %c0_i32_0 = arith.constant 0 : i32
    %c0_i32_1 = arith.constant 0 : i32
    return %c0_i32, %c0_i32_0 : i32, i32
  }
}

</mosaic_0001>

<llo_original>
// kernel: sar_encoder_forward.4
$region0: #{sar_encoder_forward.4}
  #allocation0 [shape = 'u32[]', space=smem, size = 0x4, offset = 0x4, fixed_abs, tag = 'smem constant byte address 0x4 - core index']
  #allocation1 [shape = 'u32[144,128]{1,0:T(1,128)}', space=vmem, size = 0x12000, scoped, tag = 'internal scratch']
  %s0 = inlined_call_operand.vmem [shape: bf16[512,36], index: 0, kind: input, shape index: {}]
  %s1 = inlined_call_operand.vmem [shape: bf16[36,128], index: 1, kind: input, shape index: {}]
  %s2 = inlined_call_operand.vmem [shape: f32[1,128], index: 2, kind: input, shape index: {}]
  %s3 = inlined_call_operand.vmem [shape: f32[1,128], index: 3, kind: input, shape index: {}]
  %s4 = inlined_call_operand.vmem [shape: f32[512,128], index: 4, kind: output, shape index: {}]
  %s5 = sld [smem:[#allocation0]]
  $region26: #{sar_encoder_forward.4} parent=0
    _
  %s7 = ssub.s32 1, %s5
  %s8 = scalar_select 0, %s7, %s5
  // Predicated region
  $region2: #{sar_encoder_forward.4} parent=0 // pred_check
    _
  $region3: #{sar_encoder_forward.4} parent=0 // pred_check_branch
    %10 = sbr.rel (0) target = $region5
  $region4: #{sar_encoder_forward.4} parent=0 // pred_region
    _
  $region5: #{sar_encoder_forward.4} parent=0 // pred_fallthru
    _
  // Predicated region
  $region6: #{sar_encoder_forward.4} parent=0 // pred_check
    _
  $region7: #{sar_encoder_forward.4} parent=0 // pred_check_branch
    %12 = sbr.rel (0) target = $region9
  $region8: #{sar_encoder_forward.4} parent=0 // pred_region
    _
  $region9: #{sar_encoder_forward.4} parent=0 // pred_fallthru
    _
  // Predicated region
  $region10: #{sar_encoder_forward.4} parent=0 // pred_check
    _
  $region11: #{sar_encoder_forward.4} parent=0 // pred_check_branch
    %14 = sbr.rel (0) target = $region13
  $region12: #{sar_encoder_forward.4} parent=0 // pred_region
    _
  $region13: #{sar_encoder_forward.4} parent=0 // pred_fallthru
    _
  // Predicated region
  $region14: #{sar_encoder_forward.4} parent=0 // pred_check
    _
  $region15: #{sar_encoder_forward.4} parent=0 // pred_check_branch
    %16 = sbr.rel (0) target = $region17
  $region16: #{sar_encoder_forward.4} parent=0 // pred_region
    _
  $region17: #{sar_encoder_forward.4} parent=0 // pred_fallthru
    _
  %v18 = vld [vmem:[%s0] sm:$0xf]
  %v19 = vld [vmem:[%s0 + $0x4] sm:$0xf]
  %v20 = vld [vmem:[%s0 + $0x8] sm:$0xf]
  %v21 = vld [vmem:[%s0 + $0xc] sm:$0xf]
  %v22 = vld [vmem:[%s0 + $0x10] sm:$0xf]
  %v23 = vld [vmem:[%s0 + $0x14] sm:$0xf]
  %v24 = vld [vmem:[%s0 + $0x18] sm:$0xf]
  %v25 = vld [vmem:[%s0 + $0x1c] sm:$0xf]
  %v26 = vld [vmem:[%s0 + $0x20] sm:$0xf]
  %v27 = vld [vmem:[%s0 + $0x24] sm:$0xf]
  %v28 = vld [vmem:[%s0 + $0x28] sm:$0xf]
  %v29 = vld [vmem:[%s0 + $0x2c] sm:$0xf]
  %v30 = vld [vmem:[%s0 + $0x30] sm:$0xf]
  %v31 = vld [vmem:[%s0 + $0x34] sm:$0xf]
  %v32 = vld [vmem:[%s0 + $0x38] sm:$0xf]
  %v33 = vld [vmem:[%s0 + $0x3c] sm:$0xf]
  %v34 = vld [vmem:[%s0 + $0x40] sm:$0xf]
  %v35 = vld [vmem:[%s0 + $0x44] sm:$0xf]
  %v36 = vld [vmem:[%s0 + $0x48] sm:$0xf]
  %v37 = vld [vmem:[%s0 + $0x4c] sm:$0xf]
  %v38 = vld [vmem:[%s0 + $0x50] sm:$0xf]
  %v39 = vld [vmem:[%s0 + $0x54] sm:$0xf]
  %v40 = vld [vmem:[%s0 + $0x58] sm:$0xf]
  %v41 = vld [vmem:[%s0 + $0x5c] sm:$0xf]
  %v42 = vld [vmem:[%s0 + $0x60] sm:$0xf]
  %v43 = vld [vmem:[%s0 + $0x64] sm:$0xf]
  %v44 = vld [vmem:[%s0 + $0x68] sm:$0xf]
  %v45 = vld [vmem:[%s0 + $0x6c] sm:$0xf]
  %v46 = vld [vmem:[%s0 + $0x70] sm:$0xf]
  %v47 = vld [vmem:[%s0 + $0x74] sm:$0xf]
  %v48 = vld [vmem:[%s0 + $0x78] sm:$0xf]
  %v49 = vld [vmem:[%s0 + $0x7c] sm:$0xf]
  %v50 = vld [vmem:[%s0 + $0x80] sm:$0xf]
  %v51 = vld [vmem:[%s0 + $0x84] sm:$0xf]
  %v52 = vld [vmem:[%s0 + $0x88] sm:$0xf]
  %v53 = vld [vmem:[%s0 + $0x8c] sm:$0xf]
  %v54 = vld [vmem:[%s0 + $0x90] sm:$0xf]
  %v55 = vld [vmem:[%s0 + $0x94] sm:$0xf]
  %v56 = vld [vmem:[%s0 + $0x98] sm:$0xf]
  %v57 = vld [vmem:[%s0 + $0x9c] sm:$0xf]
  %v58 = vld [vmem:[%s0 + $0xa0] sm:$0xf]
  %v59 = vld [vmem:[%s0 + $0xa4] sm:$0xf]
  %v60 = vld [vmem:[%s0 + $0xa8] sm:$0xf]
  %v61 = vld [vmem:[%s0 + $0xac] sm:$0xf]
  %v62 = vld [vmem:[%s0 + $0xb0] sm:$0xf]
  %v63 = vld [vmem:[%s0 + $0xb4] sm:$0xf]
  %v64 = vld [vmem:[%s0 + $0xb8] sm:$0xf]
  %v65 = vld [vmem:[%s0 + $0xbc] sm:$0xf]
  %v66 = vld [vmem:[%s0 + $0xc0] sm:$0xf]
  %v67 = vld [vmem:[%s0 + $0xc4] sm:$0xf]
  %v68 = vld [vmem:[%s0 + $0xc8] sm:$0xf]
  %v69 = vld [vmem:[%s0 + $0xcc] sm:$0xf]
  %v70 = vld [vmem:[%s0 + $0xd0] sm:$0xf]
  %v71 = vld [vmem:[%s0 + $0xd4] sm:$0xf]
  %v72 = vld [vmem:[%s0 + $0xd8] sm:$0xf]
  %v73 = vld [vmem:[%s0 + $0xdc] sm:$0xf]
  %v74 = vld [vmem:[%s0 + $0xe0] sm:$0xf]
  %v75 = vld [vmem:[%s0 + $0xe4] sm:$0xf]
  %v76 = vld [vmem:[%s0 + $0xe8] sm:$0xf]
  %v77 = vld [vmem:[%s0 + $0xec] sm:$0xf]
  %v78 = vld [vmem:[%s0 + $0xf0] sm:$0xf]
  %v79 = vld [vmem:[%s0 + $0xf4] sm:$0xf]
  %v80 = vld [vmem:[%s0 + $0xf8] sm:$0xf]
  %v81 = vld [vmem:[%s0 + $0xfc] sm:$0xf]
  %v82 = vld [vmem:[%s1] sm:$0xf]
  %v83 = vld [vmem:[%s1 + $0x4] sm:$0xf]
  %v84 = vld [vmem:[%s1 + $0x8] sm:$0xf]
  %v85 = vld [vmem:[%s1 + $0xc] sm:$0xf]
  %v86 = vld [vmem:[%s1 + $0x10] sm:$0x3]
  %v151 = vunpack.c.l.b16 %v18
  %v152 = vunpack.c.l.b16 %v19
  %v153 = vunpack.c.l.b16 %v20
  %v154 = vunpack.c.l.b16 %v21
  %v155 = vunpack.c.l.b16 %v22
  %v156 = vunpack.c.l.b16 %v23
  %v157 = vunpack.c.l.b16 %v24
  %v158 = vunpack.c.l.b16 %v25
  %v159 = vunpack.c.l.b16 %v26
  %v160 = vunpack.c.l.b16 %v27
  %v161 = vunpack.c.l.b16 %v28
  %v162 = vunpack.c.l.b16 %v29
  %v163 = vunpack.c.l.b16 %v30
  %v164 = vunpack.c.l.b16 %v31
  %v165 = vunpack.c.l.b16 %v32
  %v166 = vunpack.c.l.b16 %v33
  %v167 = vunpack.c.l.b16 %v34
  %v168 = vunpack.c.l.b16 %v35
  %v169 = vunpack.c.l.b16 %v36
  %v170 = vunpack.c.l.b16 %v37
  %v171 = vunpack.c.l.b16 %v38
  %v172 = vunpack.c.l.b16 %v39
  %v173 = vunpack.c.l.b16 %v40
  %v174 = vunpack.c.l.b16 %v41
  %v175 = vunpack.c.l.b16 %v42
  %v176 = vunpack.c.l.b16 %v43
  %v177 = vunpack.c.l.b16 %v44
  %v178 = vunpack.c.l.b16 %v45
  %v179 = vunpack.c.l.b16 %v46
  %v180 = vunpack.c.l.b16 %v47
  %v181 = vunpack.c.l.b16 %v48
  %v182 = vunpack.c.l.b16 %v49
  %v183 = vunpack.c.l.b16 %v50
  %v184 = vunpack.c.l.b16 %v51
  %v185 = vunpack.c.l.b16 %v52
  %v186 = vunpack.c.l.b16 %v53
  %v187 = vunpack.c.l.b16 %v54
  %v188 = vunpack.c.l.b16 %v55
  %v189 = vunpack.c.l.b16 %v56
  %v190 = vunpack.c.l.b16 %v57
  %v191 = vunpack.c.l.b16 %v58
  %v192 = vunpack.c.l.b16 %v59
  %v193 = vunpack.c.l.b16 %v60
  %v194 = vunpack.c.l.b16 %v61
  %v195 = vunpack.c.l.b16 %v62
  %v196 = vunpack.c.l.b16 %v63
  %v197 = vunpack.c.l.b16 %v64
  %v198 = vunpack.c.l.b16 %v65
  %v199 = vunpack.c.l.b16 %v66
  %v200 = vunpack.c.l.b16 %v67
  %v201 = vunpack.c.l.b16 %v68
  %v202 = vunpack.c.l.b16 %v69
  %v203 = vunpack.c.l.b16 %v70
  %v204 = vunpack.c.l.b16 %v71
  %v205 = vunpack.c.l.b16 %v72
  %v206 = vunpack.c.l.b16 %v73
  %v207 = vunpack.c.l.b16 %v74
  %v208 = vunpack.c.l.b16 %v75
  %v209 = vunpack.c.l.b16 %v76
  %v210 = vunpack.c.l.b16 %v77
  %v211 = vunpack.c.l.b16 %v78
  %v212 = vunpack.c.l.b16 %v79
  %v213 = vunpack.c.l.b16 %v80
  %v214 = vunpack.c.l.b16 %v81
  %v215 = vpack.c.b16 %v152, %v151
  %v216 = vpack.c.b16 %v154, %v153
  %v217 = vpack.c.b16 %v156, %v155
  %v218 = vpack.c.b16 %v158, %v157
  %v219 = vpack.c.b16 %v160, %v159
  %v220 = vpack.c.b16 %v162, %v161
  %v221 = vpack.c.b16 %v164, %v163
  %v222 = vpack.c.b16 %v166, %v165
  %v223 = vpack.c.b16 %v168, %v167
  %v224 = vpack.c.b16 %v170, %v169
  %v225 = vpack.c.b16 %v172, %v171
  %v226 = vpack.c.b16 %v174, %v173
  %v227 = vpack.c.b16 %v176, %v175
  %v228 = vpack.c.b16 %v178, %v177
  %v229 = vpack.c.b16 %v180, %v179
  %v230 = vpack.c.b16 %v182, %v181
  %v231 = vpack.c.b16 %v184, %v183
  %v232 = vpack.c.b16 %v186, %v185
  %v233 = vpack.c.b16 %v188, %v187
  %v234 = vpack.c.b16 %v190, %v189
  %v235 = vpack.c.b16 %v192, %v191
  %v236 = vpack.c.b16 %v194, %v193
  %v237 = vpack.c.b16 %v196, %v195
  %v238 = vpack.c.b16 %v198, %v197
  %v239 = vpack.c.b16 %v200, %v199
  %v240 = vpack.c.b16 %v202, %v201
  %v241 = vpack.c.b16 %v204, %v203
  %v242 = vpack.c.b16 %v206, %v205
  %v243 = vpack.c.b16 %v208, %v207
  %v244 = vpack.c.b16 %v210, %v209
  %v245 = vpack.c.b16 %v212, %v211
  %v246 = vpack.c.b16 %v214, %v213
  %v252 = vunpack.c.l.b16 %v82
  %v253 = vunpack.c.l.b16 %v83
  %v254 = vunpack.c.l.b16 %v84
  %v255 = vunpack.c.l.b16 %v85
  %v256 = vunpack.c.l.b16 %v86
  %v257 = vpack.c.b16 %v253, %v252
  %v258 = vpack.c.b16 %v255, %v254
  %v259 = vpack.c.b16 %v256, %v256
  %vm262 = vcmask 293888
  %v264 = vsel %vm262, %v215, 0
  %v267 = vsel %vm262, %v216, 0
  %v270 = vsel %vm262, %v217, 0
  %v273 = vsel %vm262, %v218, 0
  %v276 = vsel %vm262, %v219, 0
  %v279 = vsel %vm262, %v220, 0
  %v282 = vsel %vm262, %v221, 0
  %v285 = vsel %vm262, %v222, 0
  %v288 = vsel %vm262, %v223, 0
  %v291 = vsel %vm262, %v224, 0
  %v294 = vsel %vm262, %v225, 0
  %v297 = vsel %vm262, %v226, 0
  %v300 = vsel %vm262, %v227, 0
  %v303 = vsel %vm262, %v228, 0
  %v306 = vsel %vm262, %v229, 0
  %v309 = vsel %vm262, %v230, 0
  %v312 = vsel %vm262, %v231, 0
  %v315 = vsel %vm262, %v232, 0
  %v318 = vsel %vm262, %v233, 0
  %v321 = vsel %vm262, %v234, 0
  %v324 = vsel %vm262, %v235, 0
  %v327 = vsel %vm262, %v236, 0
  %v330 = vsel %vm262, %v237, 0
  %v333 = vsel %vm262, %v238, 0
  %v336 = vsel %vm262, %v239, 0
  %v339 = vsel %vm262, %v240, 0
  %v342 = vsel %vm262, %v241, 0
  %v345 = vsel %vm262, %v242, 0
  %v348 = vsel %vm262, %v243, 0
  %v351 = vsel %vm262, %v244, 0
  %v354 = vsel %vm262, %v245, 0
  %v357 = vsel %vm262, %v246, 0
  %vm359 = vcmask 1041408
  %v361 = vsel %vm359, %v259, 0
  %363 = vmatprep.subr.bf16.mxu0 0
  %364 = vmatpush1.bf16.msra.mxu0 %v257
  %365 = vmatprep.subr.bf16.mxu0 0
  %366 = vmatpush1.bf16.msra.mxu0 %v258
  %367 = vmatprep.subr.bf16.mxu0 0
  %368 = vmatpush1.bf16.msra.mxu0 %v361
  %369 = vmatprep.subr.bf16.mxu0 0
  %370 = vmatpush1.bf16.msra.mxu0 0
  %371 = vmatprep.subr.bf16.mxu0 0
  %372 = vmatpush1.bf16.msra.mxu0 0
  %373 = vmatprep.subr.bf16.mxu0 0
  %374 = vmatpush1.bf16.msra.mxu0 0
  %375 = vmatprep.subr.bf16.mxu0 0
  %376 = vmatpush1.bf16.msra.mxu0 0
  %377 = vmatprep.subr.bf16.mxu0 0
  %378 = vmatpush1.bf16.msra.mxu0 0
  %379 = vmatprep.subr.bf16.mxu0 0
  %380 = vmatpush1.bf16.msra.mxu0 0
  %381 = vmatprep.subr.bf16.mxu0 0
  %382 = vmatpush1.bf16.msra.mxu0 0
  %383 = vmatprep.subr.bf16.mxu0 0
  %384 = vmatpush1.bf16.msra.mxu0 0
  %385 = vmatprep.subr.bf16.mxu0 0
  %386 = vmatpush1.bf16.msra.mxu0 0
  %387 = vmatprep.subr.bf16.mxu0 0
  %388 = vmatpush1.bf16.msra.mxu0 0
  %389 = vmatprep.subr.bf16.mxu0 0
  %390 = vmatpush1.bf16.msra.mxu0 0
  %391 = vmatprep.subr.bf16.mxu0 0
  %392 = vmatpush1.bf16.msra.mxu0 0
  %393 = vmatprep.subr.bf16.mxu0 0
  %394 = vmatpush1.bf16.msra.mxu0 0
  %395 = vmatprep.mubr.bf16.mxu0 0
  %396 = vmatmul.mubr.bf16.gmra.mrb[0].mxu0 %v264
  %v397 = vpop.f32.mrb[0].mxu0
  %v398 = vadd.f32 0.0, %v397
  %v399 = vpop.f32.mrb[0].mxu0
  %v400 = vpop.f32.mrb[0].mxu0
  %v401 = vadd.f32 0.0, %v400
  %v402 = vpop.f32.mrb[0].mxu0
  %403 = vmatprep.mubr.bf16.mxu0 0
  %404 = vmatmul.mubr.bf16.gmra.mrb[0].mxu0 %v267
  %v405 = vpop.f32.mrb[0].mxu0
  %v406 = vadd.f32 0.0, %v405
  %v407 = vpop.f32.mrb[0].mxu0
  %v408 = vpop.f32.mrb[0].mxu0
  %v409 = vadd.f32 0.0, %v408
  %v410 = vpop.f32.mrb[0].mxu0
  %411 = vmatprep.mubr.bf16.mxu0 0
  %412 = vmatmul.mubr.bf16.gmra.mrb[0].mxu0 %v270
  %v413 = vpop.f32.mrb[0].mxu0
  %v414 = vadd.f32 0.0, %v413
  %v415 = vpop.f32.mrb[0].mxu0
  %v416 = vpop.f32.mrb[0].mxu0
  %v417 = vadd.f32 0.0, %v416
  %v418 = vpop.f32.mrb[0].mxu0
  %419 = vmatprep.mubr.bf16.mxu0 0
  %420 = vmatmul.mubr.bf16.gmra.mrb[0].mxu0 %v273
  %v421 = vpop.f32.mrb[0].mxu0
  %v422 = vadd.f32 0.0, %v421
  %v423 = vpop.f32.mrb[0].mxu0
  %v424 = vpop.f32.mrb[0].mxu0
  %v425 = vadd.f32 0.0, %v424
  %v426 = vpop.f32.mrb[0].mxu0
  %427 = vmatprep.mubr.bf16.mxu0 0
  %428 = vmatmul.mubr.bf16.gmra.mrb[0].mxu0 %v276
  %v429 = vpop.f32.mrb[0].mxu0
  %v430 = vadd.f32 0.0, %v429
  %v431 = vpop.f32.mrb[0].mxu0
  %v432 = vpop.f32.mrb[0].mxu0
  %v433 = vadd.f32 0.0, %v432
  %v434 = vpop.f32.mrb[0].mxu0
  %435 = vmatprep.mubr.bf16.mxu0 0
  %436 = vmatmul.mubr.bf16.gmra.mrb[0].mxu0 %v279
  %v437 = vpop.f32.mrb[0].mxu0
  %v438 = vadd.f32 0.0, %v437
  %v439 = vpop.f32.mrb[0].mxu0
  %v440 = vpop.f32.mrb[0].mxu0
  %v441 = vadd.f32 0.0, %v440
  %v442 = vpop.f32.mrb[0].mxu0
  %443 = vmatprep.mubr.bf16.mxu0 0
  %444 = vmatmul.mubr.bf16.gmra.mrb[0].mxu0 %v282
  %v445 = vpop.f32.mrb[0].mxu0
  %v446 = vadd.f32 0.0, %v445
  %v447 = vpop.f32.mrb[0].mxu0
  %v448 = vpop.f32.mrb[0].mxu0
  %v449 = vadd.f32 0.0, %v448
  %v450 = vpop.f32.mrb[0].mxu0
  %451 = vmatprep.mubr.bf16.mxu0 0
  %452 = vmatmul.mubr.bf16.gmra.mrb[0].mxu0 %v285
  %v453 = vpop.f32.mrb[0].mxu0
  %v454 = vadd.f32 0.0, %v453
  %v455 = vpop.f32.mrb[0].mxu0
  %v456 = vpop.f32.mrb[0].mxu0
  %v457 = vadd.f32 0.0, %v456
  %v458 = vpop.f32.mrb[0].mxu0
  %459 = vmatprep.mubr.bf16.mxu0 0
  %460 = vmatmul.mubr.bf16.gmra.mrb[0].mxu0 %v288
  %v461 = vpop.f32.mrb[0].mxu0
  %v462 = vadd.f32 0.0, %v461
  %v463 = vpop.f32.mrb[0].mxu0
  %v464 = vpop.f32.mrb[0].mxu0
  %v465 = vadd.f32 0.0, %v464
  %v466 = vpop.f32.mrb[0].mxu0
  %467 = vmatprep.mubr.bf16.mxu0 0
  %468 = vmatmul.mubr.bf16.gmra.mrb[0].mxu0 %v291
  %v469 = vpop.f32.mrb[0].mxu0
  %v470 = vadd.f32 0.0, %v469
  %v471 = vpop.f32.mrb[0].mxu0
  %v472 = vpop.f32.mrb[0].mxu0
  %v473 = vadd.f32 0.0, %v472
  %v474 = vpop.f32.mrb[0].mxu0
  %475 = vmatprep.mubr.bf16.mxu0 0
  %476 = vmatmul.mubr.bf16.gmra.mrb[0].mxu0 %v294
  %v477 = vpop.f32.mrb[0].mxu0
  %v478 = vadd.f32 0.0, %v477
  %v479 = vpop.f32.mrb[0].mxu0
  %v480 = vpop.f32.mrb[0].mxu0
  %v481 = vadd.f32 0.0, %v480
  %v482 = vpop.f32.mrb[0].mxu0
  %483 = vmatprep.mubr.bf16.mxu0 0
  %484 = vmatmul.mubr.bf16.gmra.mrb[0].mxu0 %v297
  %v485 = vpop.f32.mrb[0].mxu0
  %v486 = vadd.f32 0.0, %v485
  %v487 = vpop.f32.mrb[0].mxu0
  %v488 = vpop.f32.mrb[0].mxu0
  %v489 = vadd.f32 0.0, %v488
  %v490 = vpop.f32.mrb[0].mxu0
  %491 = vmatprep.mubr.bf16.mxu0 0
  %492 = vmatmul.mubr.bf16.gmra.mrb[0].mxu0 %v300
  %v493 = vpop.f32.mrb[0].mxu0
  %v494 = vadd.f32 0.0, %v493
  %v495 = vpop.f32.mrb[0].mxu0
  %v496 = vpop.f32.mrb[0].mxu0
  %v497 = vadd.f32 0.0, %v496
  %v498 = vpop.f32.mrb[0].mxu0
  %499 = vmatprep.mubr.bf16.mxu0 0
  %500 = vmatmul.mubr.bf16.gmra.mrb[0].mxu0 %v303
  %v501 = vpop.f32.mrb[0].mxu0
  %v502 = vadd.f32 0.0, %v501
  %v503 = vpop.f32.mrb[0].mxu0
  %v504 = vpop.f32.mrb[0].mxu0
  %v505 = vadd.f32 0.0, %v504
  %v506 = vpop.f32.mrb[0].mxu0
  %507 = vmatprep.mubr.bf16.mxu0 0
  %508 = vmatmul.mubr.bf16.gmra.mrb[0].mxu0 %v306
  %v509 = vpop.f32.mrb[0].mxu0
  %v510 = vadd.f32 0.0, %v509
  %v511 = vpop.f32.mrb[0].mxu0
  %v512 = vpop.f32.mrb[0].mxu0
  %v513 = vadd.f32 0.0, %v512
  %v514 = vpop.f32.mrb[0].mxu0
  %515 = vmatprep.mubr.bf16.mxu0 0
  %516 = vmatmul.mubr.bf16.gmra.mrb[0].mxu0 %v309
  %v517 = vpop.f32.mrb[0].mxu0
  %v518 = vadd.f32 0.0, %v517
  %v519 = vpop.f32.mrb[0].mxu0
  %v520 = vpop.f32.mrb[0].mxu0
  %v521 = vadd.f32 0.0, %v520
  %v522 = vpop.f32.mrb[0].mxu0
  %523 = vmatprep.mubr.bf16.mxu0 0
  %524 = vmatmul.mubr.bf16.gmra.mrb[0].mxu0 %v312
  %v525 = vpop.f32.mrb[0].mxu0
  %v526 = vadd.f32 0.0, %v525
  %v527 = vpop.f32.mrb[0].mxu0
  %v528 = vpop.f32.mrb[0].mxu0
  %v529 = vadd.f32 0.0, %v528
  %v530 = vpop.f32.mrb[0].mxu0
  %531 = vmatprep.mubr.bf16.mxu0 0
  %532 = vmatmul.mubr.bf16.gmra.mrb[0].mxu0 %v315
  %v533 = vpop.f32.mrb[0].mxu0
  %v534 = vadd.f32 0.0, %v533
  %v535 = vpop.f32.mrb[0].mxu0
  %v536 = vpop.f32.mrb[0].mxu0
  %v537 = vadd.f32 0.0, %v536
  %v538 = vpop.f32.mrb[0].mxu0
  %539 = vmatprep.mubr.bf16.mxu0 0
  %540 = vmatmul.mubr.bf16.gmra.mrb[0].mxu0 %v318
  %v541 = vpop.f32.mrb[0].mxu0
  %v542 = vadd.f32 0.0, %v541
  %v543 = vpop.f32.mrb[0].mxu0
  %v544 = vpop.f32.mrb[0].mxu0
  %v545 = vadd.f32 0.0, %v544
  %v546 = vpop.f32.mrb[0].mxu0
  %547 = vmatprep.mubr.bf16.mxu0 0
  %548 = vmatmul.mubr.bf16.gmra.mrb[0].mxu0 %v321
  %v549 = vpop.f32.mrb[0].mxu0
  %v550 = vadd.f32 0.0, %v549
  %v551 = vpop.f32.mrb[0].mxu0
  %v552 = vpop.f32.mrb[0].mxu0
  %v553 = vadd.f32 0.0, %v552
  %v554 = vpop.f32.mrb[0].mxu0
  %555 = vmatprep.mubr.bf16.mxu0 0
  %556 = vmatmul.mubr.bf16.gmra.mrb[0].mxu0 %v324
  %v557 = vpop.f32.mrb[0].mxu0
  %v558 = vadd.f32 0.0, %v557
  %v559 = vpop.f32.mrb[0].mxu0
  %v560 = vpop.f32.mrb[0].mxu0
  %v561 = vadd.f32 0.0, %v560
  %v562 = vpop.f32.mrb[0].mxu0
  %563 = vmatprep.mubr.bf16.mxu0 0
  %564 = vmatmul.mubr.bf16.gmra.mrb[0].mxu0 %v327
  %v565 = vpop.f32.mrb[0].mxu0
  %v566 = vadd.f32 0.0, %v565
  %v567 = vpop.f32.mrb[0].mxu0
  %v568 = vpop.f32.mrb[0].mxu0
  %v569 = vadd.f32 0.0, %v568
  %v570 = vpop.f32.mrb[0].mxu0
  %571 = vmatprep.mubr.bf16.mxu0 0
  %572 = vmatmul.mubr.bf16.gmra.mrb[0].mxu0 %v330
  %v573 = vpop.f32.mrb[0].mxu0
  %v574 = vadd.f32 0.0, %v573
  %v575 = vpop.f32.mrb[0].mxu0
  %v576 = vpop.f32.mrb[0].mxu0
  %v577 = vadd.f32 0.0, %v576
  %v578 = vpop.f32.mrb[0].mxu0
  %579 = vmatprep.mubr.bf16.mxu0 0
  %580 = vmatmul.mubr.bf16.gmra.mrb[0].mxu0 %v333
  %v581 = vpop.f32.mrb[0].mxu0
  %v582 = vadd.f32 0.0, %v581
  %v583 = vpop.f32.mrb[0].mxu0
  %v584 = vpop.f32.mrb[0].mxu0
  %v585 = vadd.f32 0.0, %v584
  %v586 = vpop.f32.mrb[0].mxu0
  %587 = vmatprep.mubr.bf16.mxu0 0
  %588 = vmatmul.mubr.bf16.gmra.mrb[0].mxu0 %v336
  %v589 = vpop.f32.mrb[0].mxu0
  %v590 = vadd.f32 0.0, %v589
  %v591 = vpop.f32.mrb[0].mxu0
  %v592 = vpop.f32.mrb[0].mxu0
  %v593 = vadd.f32 0.0, %v592
  %v594 = vpop.f32.mrb[0].mxu0
  %595 = vmatprep.mubr.bf16.mxu0 0
  %596 = vmatmul.mubr.bf16.gmra.mrb[0].mxu0 %v339
  %v597 = vpop.f32.mrb[0].mxu0
  %v598 = vadd.f32 0.0, %v597
  %v599 = vpop.f32.mrb[0].mxu0
  %v600 = vpop.f32.mrb[0].mxu0
  %v601 = vadd.f32 0.0, %v600
  %v602 = vpop.f32.mrb[0].mxu0
  %603 = vmatprep.mubr.bf16.mxu0 0
  %604 = vmatmul.mubr.bf16.gmra.mrb[0].mxu0 %v342
  %v605 = vpop.f32.mrb[0].mxu0
  %v606 = vadd.f32 0.0, %v605
  %v607 = vpop.f32.mrb[0].mxu0
  %v608 = vpop.f32.mrb[0].mxu0
  %v609 = vadd.f32 0.0, %v608
  %v610 = vpop.f32.mrb[0].mxu0
  %611 = vmatprep.mubr.bf16.mxu0 0
  %612 = vmatmul.mubr.bf16.gmra.mrb[0].mxu0 %v345
  %v613 = vpop.f32.mrb[0].mxu0
  %v614 = vadd.f32 0.0, %v613
  %v615 = vpop.f32.mrb[0].mxu0
  %v616 = vpop.f32.mrb[0].mxu0
  %v617 = vadd.f32 0.0, %v616
  %v618 = vpop.f32.mrb[0].mxu0
  %619 = vmatprep.mubr.bf16.mxu0 0
  %620 = vmatmul.mubr.bf16.gmra.mrb[0].mxu0 %v348
  %v621 = vpop.f32.mrb[0].mxu0
  %v622 = vadd.f32 0.0, %v621
  %v623 = vpop.f32.mrb[0].mxu0
  %v624 = vpop.f32.mrb[0].mxu0
  %v625 = vadd.f32 0.0, %v624
  %v626 = vpop.f32.mrb[0].mxu0
  %627 = vmatprep.mubr.bf16.mxu0 0
  %628 = vmatmul.mubr.bf16.gmra.mrb[0].mxu0 %v351
  %v629 = vpop.f32.mrb[0].mxu0
  %v630 = vadd.f32 0.0, %v629
  %v631 = vpop.f32.mrb[0].mxu0
  %v632 = vpop.f32.mrb[0].mxu0
  %v633 = vadd.f32 0.0, %v632
  %v634 = vpop.f32.mrb[0].mxu0
  %635 = vmatprep.mubr.bf16.mxu0 0
  %636 = vmatmul.mubr.bf16.gmra.mrb[0].mxu0 %v354
  %v637 = vpop.f32.mrb[0].mxu0
  %v638 = vadd.f32 0.0, %v637
  %v639 = vpop.f32.mrb[0].mxu0
  %v640 = vpop.f32.mrb[0].mxu0
  %v641 = vadd.f32 0.0, %v640
  %v642 = vpop.f32.mrb[0].mxu0
  %643 = vmatprep.mubr.bf16.mxu0 0
  %644 = vmatmul.mubr.bf16.gmra.mrb[0].mxu0 %v357
  %v645 = vpop.f32.mrb[0].mxu0
  %v646 = vadd.f32 0.0, %v645
  %v647 = vpop.f32.mrb[0].mxu0
  %v648 = vpop.f32.mrb[0].mxu0
  %v649 = vadd.f32 0.0, %v648
  %v650 = vpop.f32.mrb[0].mxu0
  %651 = vdwg.mxu0
  %v652 = vadd.f32 %v398, %v401
  %v653 = vadd.f32 %v652, %v406
  %v654 = vadd.f32 %v653, %v409
  %v655 = vadd.f32 %v654, %v414
  %v656 = vadd.f32 %v655, %v417
  %v657 = vadd.f32 %v656, %v422
  %v658 = vadd.f32 %v657, %v425
  %v659 = vadd.f32 %v658, %v430
  %v660 = vadd.f32 %v659, %v433
  %v661 = vadd.f32 %v660, %v438
  %v662 = vadd.f32 %v661, %v441
  %v663 = vadd.f32 %v662, %v446
  %v664 = vadd.f32 %v663, %v449
  %v665 = vadd.f32 %v664, %v454
  %v666 = vadd.f32 %v665, %v457
  %v667 = vadd.f32 %v666, %v462
  %v668 = vadd.f32 %v667, %v465
  %v669 = vadd.f32 %v668, %v470
  %v670 = vadd.f32 %v669, %v473
  %v671 = vadd.f32 %v670, %v478
  %v672 = vadd.f32 %v671, %v481
  %v673 = vadd.f32 %v672, %v486
  %v674 = vadd.f32 %v673, %v489
  %v675 = vadd.f32 %v674, %v494
  %v676 = vadd.f32 %v675, %v497
  %v677 = vadd.f32 %v676, %v502
  %v678 = vadd.f32 %v677, %v505
  %v679 = vadd.f32 %v678, %v510
  %v680 = vadd.f32 %v679, %v513
  %v681 = vadd.f32 %v680, %v518
  %v682 = vadd.f32 %v681, %v521
  %v683 = vadd.f32 %v682, %v526
  %v684 = vadd.f32 %v683, %v529
  %v685 = vadd.f32 %v684, %v534
  %v686 = vadd.f32 %v685, %v537
  %v687 = vadd.f32 %v686, %v542
  %v688 = vadd.f32 %v687, %v545
  %v689 = vadd.f32 %v688, %v550
  %v690 = vadd.f32 %v689, %v553
  %v691 = vadd.f32 %v690, %v558
  %v692 = vadd.f32 %v691, %v561
  %v693 = vadd.f32 %v692, %v566
  %v694 = vadd.f32 %v693, %v569
  %v695 = vadd.f32 %v694, %v574
  %v696 = vadd.f32 %v695, %v577
  %v697 = vadd.f32 %v696, %v582
  %v698 = vadd.f32 %v697, %v585
  %v699 = vadd.f32 %v698, %v590
  %v700 = vadd.f32 %v699, %v593
  %v701 = vadd.f32 %v700, %v598
  %v702 = vadd.f32 %v701, %v601
  %v703 = vadd.f32 %v702, %v606
  %v704 = vadd.f32 %v703, %v609
  %v705 = vadd.f32 %v704, %v614
  %v706 = vadd.f32 %v705, %v617
  %v707 = vadd.f32 %v706, %v622
  %v708 = vadd.f32 %v707, %v625
  %v709 = vadd.f32 %v708, %v630
  %v710 = vadd.f32 %v709, %v633
  %v711 = vadd.f32 %v710, %v638
  %v712 = vadd.f32 %v711, %v641
  %v713 = vadd.f32 %v712, %v646
  %v714 = vadd.f32 %v713, %v649
  %v715 = vrot.slane %v714, 4
  %v716 = vadd.f32 %v714, %v715
  %v717 = vrot.slane %v716, 2
  %v718 = vadd.f32 %v716, %v717
  %v719 = vrot.slane %v718, 1
  %v720 = vadd.f32 %v718, %v719
  %v721 = vrcp.pop 512.0
  %v722 = vmul.f32 %v720, %v721
  %v723 = vsub.f32 %v398, %v722
  %v724 = vsub.f32 %v401, %v722
  %v725 = vsub.f32 %v406, %v722
  %v726 = vsub.f32 %v409, %v722
  %v727 = vsub.f32 %v414, %v722
  %v728 = vsub.f32 %v417, %v722
  %v729 = vsub.f32 %v422, %v722
  %v730 = vsub.f32 %v425, %v722
  %v731 = vsub.f32 %v430, %v722
  %v732 = vsub.f32 %v433, %v722
  %v733 = vsub.f32 %v438, %v722
  %v734 = vsub.f32 %v441, %v722
  %v735 = vsub.f32 %v446, %v722
  %v736 = vsub.f32 %v449, %v722
  %v737 = vsub.f32 %v454, %v722
  %v738 = vsub.f32 %v457, %v722
  %v739 = vsub.f32 %v462, %v722
  %v740 = vsub.f32 %v465, %v722
  %v741 = vsub.f32 %v470, %v722
  %v742 = vsub.f32 %v473, %v722
  %v743 = vsub.f32 %v478, %v722
  %v744 = vsub.f32 %v481, %v722
  %v745 = vsub.f32 %v486, %v722
  %v746 = vsub.f32 %v489, %v722
  %v747 = vsub.f32 %v494, %v722
  %v748 = vsub.f32 %v497, %v722
  %v749 = vsub.f32 %v502, %v722
  %v750 = vsub.f32 %v505, %v722
  %v751 = vsub.f32 %v510, %v722
  %v752 = vsub.f32 %v513, %v722
  %v753 = vsub.f32 %v518, %v722
  %v754 = vsub.f32 %v521, %v722
  %v755 = vsub.f32 %v526, %v722
  %v756 = vsub.f32 %v529, %v722
  %v757 = vsub.f32 %v534, %v722
  %v758 = vsub.f32 %v537, %v722
  %v759 = vsub.f32 %v542, %v722
  %v760 = vsub.f32 %v545, %v722
  %v761 = vsub.f32 %v550, %v722
  %v762 = vsub.f32 %v553, %v722
  %v763 = vsub.f32 %v558, %v722
  %v764 = vsub.f32 %v561, %v722
  %v765 = vsub.f32 %v566, %v722
  %v766 = vsub.f32 %v569, %v722
  %v767 = vsub.f32 %v574, %v722
  %v768 = vsub.f32 %v577, %v722
  %v769 = vsub.f32 %v582, %v722
  %v770 = vsub.f32 %v585, %v722
  %v771 = vsub.f32 %v590, %v722
  %v772 = vsub.f32 %v593, %v722
  %v773 = vsub.f32 %v598, %v722
  %v774 = vsub.f32 %v601, %v722
  %v775 = vsub.f32 %v606, %v722
  %v776 = vsub.f32 %v609, %v722
  %v777 = vsub.f32 %v614, %v722
  %v778 = vsub.f32 %v617, %v722
  %v779 = vsub.f32 %v622, %v722
  %v780 = vsub.f32 %v625, %v722
  %v781 = vsub.f32 %v630, %v722
  %v782 = vsub.f32 %v633, %v722
  %v783 = vsub.f32 %v638, %v722
  %v784 = vsub.f32 %v641, %v722
  %v785 = vsub.f32 %v646, %v722
  %v786 = vsub.f32 %v649, %v722
  %v787 = vmul.f32 %v723, %v723
  %v788 = vmul.f32 %v724, %v724
  %v789 = vmul.f32 %v725, %v725
  %v790 = vmul.f32 %v726, %v726
  %v791 = vmul.f32 %v727, %v727
  %v792 = vmul.f32 %v728, %v728
  %v793 = vmul.f32 %v729, %v729
  %v794 = vmul.f32 %v730, %v730
  %v795 = vmul.f32 %v731, %v731
  %v796 = vmul.f32 %v732, %v732
  %v797 = vmul.f32 %v733, %v733
  %v798 = vmul.f32 %v734, %v734
  %v799 = vmul.f32 %v735, %v735
  %v800 = vmul.f32 %v736, %v736
  %v801 = vmul.f32 %v737, %v737
  %v802 = vmul.f32 %v738, %v738
  %v803 = vmul.f32 %v739, %v739
  %v804 = vmul.f32 %v740, %v740
  %v805 = vmul.f32 %v741, %v741
  %v806 = vmul.f32 %v742, %v742
  %v807 = vmul.f32 %v743, %v743
  %v808 = vmul.f32 %v744, %v744
  %v809 = vmul.f32 %v745, %v745
  %v810 = vmul.f32 %v746, %v746
  %v811 = vmul.f32 %v747, %v747
  %v812 = vmul.f32 %v748, %v748
  %v813 = vmul.f32 %v749, %v749
  %v814 = vmul.f32 %v750, %v750
  %v815 = vmul.f32 %v751, %v751
  %v816 = vmul.f32 %v752, %v752
  %v817 = vmul.f32 %v753, %v753
  %v818 = vmul.f32 %v754, %v754
  %v819 = vmul.f32 %v755, %v755
  %v820 = vmul.f32 %v756, %v756
  %v821 = vmul.f32 %v757, %v757
  %v822 = vmul.f32 %v758, %v758
  %v823 = vmul.f32 %v759, %v759
  %v824 = vmul.f32 %v760, %v760
  %v825 = vmul.f32 %v761, %v761
  %v826 = vmul.f32 %v762, %v762
  %v827 = vmul.f32 %v763, %v763
  %v828 = vmul.f32 %v764, %v764
  %v829 = vmul.f32 %v765, %v765
  %v830 = vmul.f32 %v766, %v766
  %v831 = vmul.f32 %v767, %v767
  %v832 = vmul.f32 %v768, %v768
  %v833 = vmul.f32 %v769, %v769
  %v834 = vmul.f32 %v770, %v770
  %v835 = vmul.f32 %v771, %v771
  %v836 = vmul.f32 %v772, %v772
  %v837 = vmul.f32 %v773, %v773
  %v838 = vmul.f32 %v774, %v774
  %v839 = vmul.f32 %v775, %v775
  %v840 = vmul.f32 %v776, %v776
  %v841 = vmul.f32 %v777, %v777
  %v842 = vmul.f32 %v778, %v778
  %v843 = vmul.f32 %v779, %v779
  %v844 = vmul.f32 %v780, %v780
  %v845 = vmul.f32 %v781, %v781
  %v846 = vmul.f32 %v782, %v782
  %v847 = vmul.f32 %v783, %v783
  %v848 = vmul.f32 %v784, %v784
  %v849 = vmul.f32 %v785, %v785
  %v850 = vmul.f32 %v786, %v786
  %v851 = vadd.f32 %v787, %v788
  %v852 = vadd.f32 %v851, %v789
  %v853 = vadd.f32 %v852, %v790
  %v854 = vadd.f32 %v853, %v791
  %v855 = vadd.f32 %v854, %v792
  %v856 = vadd.f32 %v855, %v793
  %v857 = vadd.f32 %v856, %v794
  %v858 = vadd.f32 %v857, %v795
  %v859 = vadd.f32 %v858, %v796
  %v860 = vadd.f32 %v859, %v797
  %v861 = vadd.f32 %v860, %v798
  %v862 = vadd.f32 %v861, %v799
  %v863 = vadd.f32 %v862, %v800
  %v864 = vadd.f32 %v863, %v801
  %v865 = vadd.f32 %v864, %v802
  %v866 = vadd.f32 %v865, %v803
  %v867 = vadd.f32 %v866, %v804
  %v868 = vadd.f32 %v867, %v805
  %v869 = vadd.f32 %v868, %v806
  %v870 = vadd.f32 %v869, %v807
  %v871 = vadd.f32 %v870, %v808
  %v872 = vadd.f32 %v871, %v809
  %v873 = vadd.f32 %v872, %v810
  %v874 = vadd.f32 %v873, %v811
  %v875 = vadd.f32 %v874, %v812
  %v876 = vadd.f32 %v875, %v813
  %v877 = vadd.f32 %v876, %v814
  %v878 = vadd.f32 %v877, %v815
  %v879 = vadd.f32 %v878, %v816
  %v880 = vadd.f32 %v879, %v817
  %v881 = vadd.f32 %v880, %v818
  %v882 = vadd.f32 %v881, %v819
  %v883 = vadd.f32 %v882, %v820
  %v884 = vadd.f32 %v883, %v821
  %v885 = vadd.f32 %v884, %v822
  %v886 = vadd.f32 %v885, %v823
  %v887 = vadd.f32 %v886, %v824
  %v888 = vadd.f32 %v887, %v825
  %v889 = vadd.f32 %v888, %v826
  %v890 = vadd.f32 %v889, %v827
  %v891 = vadd.f32 %v890, %v828
  %v892 = vadd.f32 %v891, %v829
  %v893 = vadd.f32 %v892, %v830
  %v894 = vadd.f32 %v893, %v831
  %v895 = vadd.f32 %v894, %v832
  %v896 = vadd.f32 %v895, %v833
  %v897 = vadd.f32 %v896, %v834
  %v898 = vadd.f32 %v897, %v835
  %v899 = vadd.f32 %v898, %v836
  %v900 = vadd.f32 %v899, %v837
  %v901 = vadd.f32 %v900, %v838
  %v902 = vadd.f32 %v901, %v839
  %v903 = vadd.f32 %v902, %v840
  %v904 = vadd.f32 %v903, %v841
  %v905 = vadd.f32 %v904, %v842
  %v906 = vadd.f32 %v905, %v843
  %v907 = vadd.f32 %v906, %v844
  %v908 = vadd.f32 %v907, %v845
  %v909 = vadd.f32 %v908, %v846
  %v910 = vadd.f32 %v909, %v847
  %v911 = vadd.f32 %v910, %v848
  %v912 = vadd.f32 %v911, %v849
  %v913 = vadd.f32 %v912, %v850
  %v914 = vrot.slane %v913, 4
  %v915 = vadd.f32 %v913, %v914
  %v916 = vrot.slane %v915, 2
  %v917 = vadd.f32 %v915, %v916
  %v918 = vrot.slane %v917, 1
  %v919 = vadd.f32 %v917, %v918
  %v920 = vmul.f32 %v919, %v721
  %v921 = vld [vmem:[%s2] sm:$0x1]
  %v922 = vadd.f32 %v920, 1e-05
  %v923 = vrsqrt.pop %v922
  %v924 = vmul.f32 %v921, %v923
  %v925 = vld [vmem:[%s3] sm:$0x1]
  %v926 = vmul.f32 %v722, %v924
  %v927 = vsub.f32 %v925, %v926
  %v929 = vlaneseq
  %v930 = vshrl.u32 %v929, 7
  %v931 = vsub.s32 0, %v930
  %v932 = vrot.slane %v924, %v931
  %v934 = vmul.f32 %v398, %v932
  %v935 = vmul.f32 %v401, %v932
  %v936 = vmul.f32 %v406, %v932
  %v937 = vmul.f32 %v409, %v932
  %v938 = vmul.f32 %v414, %v932
  %v939 = vmul.f32 %v417, %v932
  %v940 = vmul.f32 %v422, %v932
  %v941 = vmul.f32 %v425, %v932
  %v942 = vmul.f32 %v430, %v932
  %v943 = vmul.f32 %v433, %v932
  %v944 = vmul.f32 %v438, %v932
  %v945 = vmul.f32 %v441, %v932
  %v946 = vmul.f32 %v446, %v932
  %v947 = vmul.f32 %v449, %v932
  %v948 = vmul.f32 %v454, %v932
  %v949 = vmul.f32 %v457, %v932
  %v950 = vmul.f32 %v462, %v932
  %v951 = vmul.f32 %v465, %v932
  %v952 = vmul.f32 %v470, %v932
  %v953 = vmul.f32 %v473, %v932
  %v954 = vmul.f32 %v478, %v932
  %v955 = vmul.f32 %v481, %v932
  %v956 = vmul.f32 %v486, %v932
  %v957 = vmul.f32 %v489, %v932
  %v958 = vmul.f32 %v494, %v932
  %v959 = vmul.f32 %v497, %v932
  %v960 = vmul.f32 %v502, %v932
  %v961 = vmul.f32 %v505, %v932
  %v962 = vmul.f32 %v510, %v932
  %v963 = vmul.f32 %v513, %v932
  %v964 = vmul.f32 %v518, %v932
  %v965 = vmul.f32 %v521, %v932
  %v966 = vmul.f32 %v526, %v932
  %v967 = vmul.f32 %v529, %v932
  %v968 = vmul.f32 %v534, %v932
  %v969 = vmul.f32 %v537, %v932
  %v970 = vmul.f32 %v542, %v932
  %v971 = vmul.f32 %v545, %v932
  %v972 = vmul.f32 %v550, %v932
  %v973 = vmul.f32 %v553, %v932
  %v974 = vmul.f32 %v558, %v932
  %v975 = vmul.f32 %v561, %v932
  %v976 = vmul.f32 %v566, %v932
  %v977 = vmul.f32 %v569, %v932
  %v978 = vmul.f32 %v574, %v932
  %v979 = vmul.f32 %v577, %v932
  %v980 = vmul.f32 %v582, %v932
  %v981 = vmul.f32 %v585, %v932
  %v982 = vmul.f32 %v590, %v932
  %v983 = vmul.f32 %v593, %v932
  %v984 = vmul.f32 %v598, %v932
  %v985 = vmul.f32 %v601, %v932
  %v986 = vmul.f32 %v606, %v932
  %v987 = vmul.f32 %v609, %v932
  %v988 = vmul.f32 %v614, %v932
  %v989 = vmul.f32 %v617, %v932
  %v990 = vmul.f32 %v622, %v932
  %v991 = vmul.f32 %v625, %v932
  %v992 = vmul.f32 %v630, %v932
  %v993 = vmul.f32 %v633, %v932
  %v994 = vmul.f32 %v638, %v932
  %v995 = vmul.f32 %v641, %v932
  %v996 = vmul.f32 %v646, %v932
  %v997 = vmul.f32 %v649, %v932
  %v999 = vlaneseq
  %v1000 = vshrl.u32 %v999, 7
  %v1001 = vsub.s32 0, %v1000
  %v1002 = vrot.slane %v927, %v1001
  %v1004 = vadd.f32 %v934, %v1002
  %v1005 = vadd.f32 %v935, %v1002
  %v1006 = vadd.f32 %v936, %v1002
  %v1007 = vadd.f32 %v937, %v1002
  %v1008 = vadd.f32 %v938, %v1002
  %v1009 = vadd.f32 %v939, %v1002
  %v1010 = vadd.f32 %v940, %v1002
  %v1011 = vadd.f32 %v941, %v1002
  %v1012 = vadd.f32 %v942, %v1002
  %v1013 = vadd.f32 %v943, %v1002
  %v1014 = vadd.f32 %v944, %v1002
  %v1015 = vadd.f32 %v945, %v1002
  %v1016 = vadd.f32 %v946, %v1002
  %v1017 = vadd.f32 %v947, %v1002
  %v1018 = vadd.f32 %v948, %v1002
  %v1019 = vadd.f32 %v949, %v1002
  %v1020 = vadd.f32 %v950, %v1002
  %v1021 = vadd.f32 %v951, %v1002
  %v1022 = vadd.f32 %v952, %v1002
  %v1023 = vadd.f32 %v953, %v1002
  %v1024 = vadd.f32 %v954, %v1002
  %v1025 = vadd.f32 %v955, %v1002
  %v1026 = vadd.f32 %v956, %v1002
  %v1027 = vadd.f32 %v957, %v1002
  %v1028 = vadd.f32 %v958, %v1002
  %v1029 = vadd.f32 %v959, %v1002
  %v1030 = vadd.f32 %v960, %v1002
  %v1031 = vadd.f32 %v961, %v1002
  %v1032 = vadd.f32 %v962, %v1002
  %v1033 = vadd.f32 %v963, %v1002
  %v1034 = vadd.f32 %v964, %v1002
  %v1035 = vadd.f32 %v965, %v1002
  %v1036 = vadd.f32 %v966, %v1002
  %v1037 = vadd.f32 %v967, %v1002
  %v1038 = vadd.f32 %v968, %v1002
  %v1039 = vadd.f32 %v969, %v1002
  %v1040 = vadd.f32 %v970, %v1002
  %v1041 = vadd.f32 %v971, %v1002
  %v1042 = vadd.f32 %v972, %v1002
  %v1043 = vadd.f32 %v973, %v1002
  %v1044 = vadd.f32 %v974, %v1002
  %v1045 = vadd.f32 %v975, %v1002
  %v1046 = vadd.f32 %v976, %v1002
  %v1047 = vadd.f32 %v977, %v1002
  %v1048 = vadd.f32 %v978, %v1002
  %v1049 = vadd.f32 %v979, %v1002
  %v1050 = vadd.f32 %v980, %v1002
  %v1051 = vadd.f32 %v981, %v1002
  %v1052 = vadd.f32 %v982, %v1002
  %v1053 = vadd.f32 %v983, %v1002
  %v1054 = vadd.f32 %v984, %v1002
  %v1055 = vadd.f32 %v985, %v1002
  %v1056 = vadd.f32 %v986, %v1002
  %v1057 = vadd.f32 %v987, %v1002
  %v1058 = vadd.f32 %v988, %v1002
  %v1059 = vadd.f32 %v989, %v1002
  %v1060 = vadd.f32 %v990, %v1002
  %v1061 = vadd.f32 %v991, %v1002
  %v1062 = vadd.f32 %v992, %v1002
  %v1063 = vadd.f32 %v993, %v1002
  %v1064 = vadd.f32 %v994, %v1002
  %v1065 = vadd.f32 %v995, %v1002
  %v1066 = vadd.f32 %v996, %v1002
  %v1067 = vadd.f32 %v997, %v1002
  %vm1068 = vcmp.ge.f32.partialorder %v1004, 0.0
  %vm1069 = vcmp.ge.f32.partialorder %v1005, 0.0
  %vm1070 = vcmp.ge.f32.partialorder %v1006, 0.0
  %vm1071 = vcmp.ge.f32.partialorder %v1007, 0.0
  %vm1072 = vcmp.ge.f32.partialorder %v1008, 0.0
  %vm1073 = vcmp.ge.f32.partialorder %v1009, 0.0
  %vm1074 = vcmp.ge.f32.partialorder %v1010, 0.0
  %vm1075 = vcmp.ge.f32.partialorder %v1011, 0.0
  %vm1076 = vcmp.ge.f32.partialorder %v1012, 0.0
  %vm1077 = vcmp.ge.f32.partialorder %v1013, 0.0
  %vm1078 = vcmp.ge.f32.partialorder %v1014, 0.0
  %vm1079 = vcmp.ge.f32.partialorder %v1015, 0.0
  %vm1080 = vcmp.ge.f32.partialorder %v1016, 0.0
  %vm1081 = vcmp.ge.f32.partialorder %v1017, 0.0
  %vm1082 = vcmp.ge.f32.partialorder %v1018, 0.0
  %vm1083 = vcmp.ge.f32.partialorder %v1019, 0.0
  %vm1084 = vcmp.ge.f32.partialorder %v1020, 0.0
  %vm1085 = vcmp.ge.f32.partialorder %v1021, 0.0
  %vm1086 = vcmp.ge.f32.partialorder %v1022, 0.0
  %vm1087 = vcmp.ge.f32.partialorder %v1023, 0.0
  %vm1088 = vcmp.ge.f32.partialorder %v1024, 0.0
  %vm1089 = vcmp.ge.f32.partialorder %v1025, 0.0
  %vm1090 = vcmp.ge.f32.partialorder %v1026, 0.0
  %vm1091 = vcmp.ge.f32.partialorder %v1027, 0.0
  %vm1092 = vcmp.ge.f32.partialorder %v1028, 0.0
  %vm1093 = vcmp.ge.f32.partialorder %v1029, 0.0
  %vm1094 = vcmp.ge.f32.partialorder %v1030, 0.0
  %vm1095 = vcmp.ge.f32.partialorder %v1031, 0.0
  %vm1096 = vcmp.ge.f32.partialorder %v1032, 0.0
  %vm1097 = vcmp.ge.f32.partialorder %v1033, 0.0
  %vm1098 = vcmp.ge.f32.partialorder %v1034, 0.0
  %vm1099 = vcmp.ge.f32.partialorder %v1035, 0.0
  %vm1100 = vcmp.ge.f32.partialorder %v1036, 0.0
  %vm1101 = vcmp.ge.f32.partialorder %v1037, 0.0
  %vm1102 = vcmp.ge.f32.partialorder %v1038, 0.0
  %vm1103 = vcmp.ge.f32.partialorder %v1039, 0.0
  %vm1104 = vcmp.ge.f32.partialorder %v1040, 0.0
  %vm1105 = vcmp.ge.f32.partialorder %v1041, 0.0
  %vm1106 = vcmp.ge.f32.partialorder %v1042, 0.0
  %vm1107 = vcmp.ge.f32.partialorder %v1043, 0.0
  %vm1108 = vcmp.ge.f32.partialorder %v1044, 0.0
  %vm1109 = vcmp.ge.f32.partialorder %v1045, 0.0
  %vm1110 = vcmp.ge.f32.partialorder %v1046, 0.0
  %vm1111 = vcmp.ge.f32.partialorder %v1047, 0.0
  %vm1112 = vcmp.ge.f32.partialorder %v1048, 0.0
  %vm1113 = vcmp.ge.f32.partialorder %v1049, 0.0
  %vm1114 = vcmp.ge.f32.partialorder %v1050, 0.0
  %vm1115 = vcmp.ge.f32.partialorder %v1051, 0.0
  %vm1116 = vcmp.ge.f32.partialorder %v1052, 0.0
  %vm1117 = vcmp.ge.f32.partialorder %v1053, 0.0
  %vm1118 = vcmp.ge.f32.partialorder %v1054, 0.0
  %vm1119 = vcmp.ge.f32.partialorder %v1055, 0.0
  %vm1120 = vcmp.ge.f32.partialorder %v1056, 0.0
  %vm1121 = vcmp.ge.f32.partialorder %v1057, 0.0
  %vm1122 = vcmp.ge.f32.partialorder %v1058, 0.0
  %vm1123 = vcmp.ge.f32.partialorder %v1059, 0.0
  %vm1124 = vcmp.ge.f32.partialorder %v1060, 0.0
  %vm1125 = vcmp.ge.f32.partialorder %v1061, 0.0
  %vm1126 = vcmp.ge.f32.partialorder %v1062, 0.0
  %vm1127 = vcmp.ge.f32.partialorder %v1063, 0.0
  %vm1128 = vcmp.ge.f32.partialorder %v1064, 0.0
  %vm1129 = vcmp.ge.f32.partialorder %v1065, 0.0
  %vm1130 = vcmp.ge.f32.partialorder %v1066, 0.0
  %vm1131 = vcmp.ge.f32.partialorder %v1067, 0.0
  %v1132 = vmul.f32 %v1004, 0.2
  %v1133 = vmul.f32 %v1005, 0.2
  %v1134 = vmul.f32 %v1006, 0.2
  %v1135 = vmul.f32 %v1007, 0.2
  %v1136 = vmul.f32 %v1008, 0.2
  %v1137 = vmul.f32 %v1009, 0.2
  %v1138 = vmul.f32 %v1010, 0.2
  %v1139 = vmul.f32 %v1011, 0.2
  %v1140 = vmul.f32 %v1012, 0.2
  %v1141 = vmul.f32 %v1013, 0.2
  %v1142 = vmul.f32 %v1014, 0.2
  %v1143 = vmul.f32 %v1015, 0.2
  %v1144 = vmul.f32 %v1016, 0.2
  %v1145 = vmul.f32 %v1017, 0.2
  %v1146 = vmul.f32 %v1018, 0.2
  %v1147 = vmul.f32 %v1019, 0.2
  %v1148 = vmul.f32 %v1020, 0.2
  %v1149 = vmul.f32 %v1021, 0.2
  %v1150 = vmul.f32 %v1022, 0.2
  %v1151 = vmul.f32 %v1023, 0.2
  %v1152 = vmul.f32 %v1024, 0.2
  %v1153 = vmul.f32 %v1025, 0.2
  %v1154 = vmul.f32 %v1026, 0.2
  %v1155 = vmul.f32 %v1027, 0.2
  %v1156 = vmul.f32 %v1028, 0.2
  %v1157 = vmul.f32 %v1029, 0.2
  %v1158 = vmul.f32 %v1030, 0.2
  %v1159 = vmul.f32 %v1031, 0.2
  %v1160 = vmul.f32 %v1032, 0.2
  %v1161 = vmul.f32 %v1033, 0.2
  %v1162 = vmul.f32 %v1034, 0.2
  %v1163 = vmul.f32 %v1035, 0.2
  %v1164 = vmul.f32 %v1036, 0.2
  %v1165 = vmul.f32 %v1037, 0.2
  %v1166 = vmul.f32 %v1038, 0.2
  %v1167 = vmul.f32 %v1039, 0.2
  %v1168 = vmul.f32 %v1040, 0.2
  %v1169 = vmul.f32 %v1041, 0.2
  %v1170 = vmul.f32 %v1042, 0.2
  %v1171 = vmul.f32 %v1043, 0.2
  %v1172 = vmul.f32 %v1044, 0.2
  %v1173 = vmul.f32 %v1045, 0.2
  %v1174 = vmul.f32 %v1046, 0.2
  %v1175 = vmul.f32 %v1047, 0.2
  %v1176 = vmul.f32 %v1048, 0.2
  %v1177 = vmul.f32 %v1049, 0.2
  %v1178 = vmul.f32 %v1050, 0.2
  %v1179 = vmul.f32 %v1051, 0.2
  %v1180 = vmul.f32 %v1052, 0.2
  %v1181 = vmul.f32 %v1053, 0.2
  %v1182 = vmul.f32 %v1054, 0.2
  %v1183 = vmul.f32 %v1055, 0.2
  %v1184 = vmul.f32 %v1056, 0.2
  %v1185 = vmul.f32 %v1057, 0.2
  %v1186 = vmul.f32 %v1058, 0.2
  %v1187 = vmul.f32 %v1059, 0.2
  %v1188 = vmul.f32 %v1060, 0.2
  %v1189 = vmul.f32 %v1061, 0.2
  %v1190 = vmul.f32 %v1062, 0.2
  %v1191 = vmul.f32 %v1063, 0.2
  %v1192 = vmul.f32 %v1064, 0.2
  %v1193 = vmul.f32 %v1065, 0.2
  %v1194 = vmul.f32 %v1066, 0.2
  %v1195 = vmul.f32 %v1067, 0.2
  %v1196 = vsel %vm1068, %v1004, %v1132
  %v1197 = vsel %vm1069, %v1005, %v1133
  %v1198 = vsel %vm1070, %v1006, %v1134
  %v1199 = vsel %vm1071, %v1007, %v1135
  %v1200 = vsel %vm1072, %v1008, %v1136
  %v1201 = vsel %vm1073, %v1009, %v1137
  %v1202 = vsel %vm1074, %v1010, %v1138
  %v1203 = vsel %vm1075, %v1011, %v1139
  %v1204 = vsel %vm1076, %v1012, %v1140
  %v1205 = vsel %vm1077, %v1013, %v1141
  %v1206 = vsel %vm1078, %v1014, %v1142
  %v1207 = vsel %vm1079, %v1015, %v1143
  %v1208 = vsel %vm1080, %v1016, %v1144
  %v1209 = vsel %vm1081, %v1017, %v1145
  %v1210 = vsel %vm1082, %v1018, %v1146
  %v1211 = vsel %vm1083, %v1019, %v1147
  %v1212 = vsel %vm1084, %v1020, %v1148
  %v1213 = vsel %vm1085, %v1021, %v1149
  %v1214 = vsel %vm1086, %v1022, %v1150
  %v1215 = vsel %vm1087, %v1023, %v1151
  %v1216 = vsel %vm1088, %v1024, %v1152
  %v1217 = vsel %vm1089, %v1025, %v1153
  %v1218 = vsel %vm1090, %v1026, %v1154
  %v1219 = vsel %vm1091, %v1027, %v1155
  %v1220 = vsel %vm1092, %v1028, %v1156
  %v1221 = vsel %vm1093, %v1029, %v1157
  %v1222 = vsel %vm1094, %v1030, %v1158
  %v1223 = vsel %vm1095, %v1031, %v1159
  %v1224 = vsel %vm1096, %v1032, %v1160
  %v1225 = vsel %vm1097, %v1033, %v1161
  %v1226 = vsel %vm1098, %v1034, %v1162
  %v1227 = vsel %vm1099, %v1035, %v1163
  %v1228 = vsel %vm1100, %v1036, %v1164
  %v1229 = vsel %vm1101, %v1037, %v1165
  %v1230 = vsel %vm1102, %v1038, %v1166
  %v1231 = vsel %vm1103, %v1039, %v1167
  %v1232 = vsel %vm1104, %v1040, %v1168
  %v1233 = vsel %vm1105, %v1041, %v1169
  %v1234 = vsel %vm1106, %v1042, %v1170
  %v1235 = vsel %vm1107, %v1043, %v1171
  %v1236 = vsel %vm1108, %v1044, %v1172
  %v1237 = vsel %vm1109, %v1045, %v1173
  %v1238 = vsel %vm1110, %v1046, %v1174
  %v1239 = vsel %vm1111, %v1047, %v1175
  %v1240 = vsel %vm1112, %v1048, %v1176
  %v1241 = vsel %vm1113, %v1049, %v1177
  %v1242 = vsel %vm1114, %v1050, %v1178
  %v1243 = vsel %vm1115, %v1051, %v1179
  %v1244 = vsel %vm1116, %v1052, %v1180
  %v1245 = vsel %vm1117, %v1053, %v1181
  %v1246 = vsel %vm1118, %v1054, %v1182
  %v1247 = vsel %vm1119, %v1055, %v1183
  %v1248 = vsel %vm1120, %v1056, %v1184
  %v1249 = vsel %vm1121, %v1057, %v1185
  %v1250 = vsel %vm1122, %v1058, %v1186
  %v1251 = vsel %vm1123, %v1059, %v1187
  %v1252 = vsel %vm1124, %v1060, %v1188
  %v1253 = vsel %vm1125, %v1061, %v1189
  %v1254 = vsel %vm1126, %v1062, %v1190
  %v1255 = vsel %vm1127, %v1063, %v1191
  %v1256 = vsel %vm1128, %v1064, %v1192
  %v1257 = vsel %vm1129, %v1065, %v1193
  %v1258 = vsel %vm1130, %v1066, %v1194
  %v1259 = vsel %vm1131, %v1067, %v1195
  %1260 = vst [vmem:[%s4] sm:$0xff] %v1196
  %1261 = vst [vmem:[%s4 + $0x8] sm:$0xff] %v1197
  %1262 = vst [vmem:[%s4 + $0x10] sm:$0xff] %v1198
  %1263 = vst [vmem:[%s4 + $0x18] sm:$0xff] %v1199
  %1264 = vst [vmem:[%s4 + $0x20] sm:$0xff] %v1200
  %1265 = vst [vmem:[%s4 + $0x28] sm:$0xff] %v1201
  %1266 = vst [vmem:[%s4 + $0x30] sm:$0xff] %v1202
  %1267 = vst [vmem:[%s4 + $0x38] sm:$0xff] %v1203
  %1268 = vst [vmem:[%s4 + $0x40] sm:$0xff] %v1204
  %1269 = vst [vmem:[%s4 + $0x48] sm:$0xff] %v1205
  %1270 = vst [vmem:[%s4 + $0x50] sm:$0xff] %v1206
  %1271 = vst [vmem:[%s4 + $0x58] sm:$0xff] %v1207
  %1272 = vst [vmem:[%s4 + $0x60] sm:$0xff] %v1208
  %1273 = vst [vmem:[%s4 + $0x68] sm:$0xff] %v1209
  %1274 = vst [vmem:[%s4 + $0x70] sm:$0xff] %v1210
  %1275 = vst [vmem:[%s4 + $0x78] sm:$0xff] %v1211
  %1276 = vst [vmem:[%s4 + $0x80] sm:$0xff] %v1212
  %1277 = vst [vmem:[%s4 + $0x88] sm:$0xff] %v1213
  %1278 = vst [vmem:[%s4 + $0x90] sm:$0xff] %v1214
  %1279 = vst [vmem:[%s4 + $0x98] sm:$0xff] %v1215
  %1280 = vst [vmem:[%s4 + $0xa0] sm:$0xff] %v1216
  %1281 = vst [vmem:[%s4 + $0xa8] sm:$0xff] %v1217
  %1282 = vst [vmem:[%s4 + $0xb0] sm:$0xff] %v1218
  %1283 = vst [vmem:[%s4 + $0xb8] sm:$0xff] %v1219
  %1284 = vst [vmem:[%s4 + $0xc0] sm:$0xff] %v1220
  %1285 = vst [vmem:[%s4 + $0xc8] sm:$0xff] %v1221
  %1286 = vst [vmem:[%s4 + $0xd0] sm:$0xff] %v1222
  %1287 = vst [vmem:[%s4 + $0xd8] sm:$0xff] %v1223
  %1288 = vst [vmem:[%s4 + $0xe0] sm:$0xff] %v1224
  %1289 = vst [vmem:[%s4 + $0xe8] sm:$0xff] %v1225
  %1290 = vst [vmem:[%s4 + $0xf0] sm:$0xff] %v1226
  %1291 = vst [vmem:[%s4 + $0xf8] sm:$0xff] %v1227
  %1292 = vst [vmem:[%s4 + $0x100] sm:$0xff] %v1228
  %1293 = vst [vmem:[%s4 + $0x108] sm:$0xff] %v1229
  %1294 = vst [vmem:[%s4 + $0x110] sm:$0xff] %v1230
  %1295 = vst [vmem:[%s4 + $0x118] sm:$0xff] %v1231
  %1296 = vst [vmem:[%s4 + $0x120] sm:$0xff] %v1232
  %1297 = vst [vmem:[%s4 + $0x128] sm:$0xff] %v1233
  %1298 = vst [vmem:[%s4 + $0x130] sm:$0xff] %v1234
  %1299 = vst [vmem:[%s4 + $0x138] sm:$0xff] %v1235
  %1300 = vst [vmem:[%s4 + $0x140] sm:$0xff] %v1236
  %1301 = vst [vmem:[%s4 + $0x148] sm:$0xff] %v1237
  %1302 = vst [vmem:[%s4 + $0x150] sm:$0xff] %v1238
  %1303 = vst [vmem:[%s4 + $0x158] sm:$0xff] %v1239
  %1304 = vst [vmem:[%s4 + $0x160] sm:$0xff] %v1240
  %1305 = vst [vmem:[%s4 + $0x168] sm:$0xff] %v1241
  %1306 = vst [vmem:[%s4 + $0x170] sm:$0xff] %v1242
  %1307 = vst [vmem:[%s4 + $0x178] sm:$0xff] %v1243
  %1308 = vst [vmem:[%s4 + $0x180] sm:$0xff] %v1244
  %1309 = vst [vmem:[%s4 + $0x188] sm:$0xff] %v1245
  %1310 = vst [vmem:[%s4 + $0x190] sm:$0xff] %v1246
  %1311 = vst [vmem:[%s4 + $0x198] sm:$0xff] %v1247
  %1312 = vst [vmem:[%s4 + $0x1a0] sm:$0xff] %v1248
  %1313 = vst [vmem:[%s4 + $0x1a8] sm:$0xff] %v1249
  %1314 = vst [vmem:[%s4 + $0x1b0] sm:$0xff] %v1250
  %1315 = vst [vmem:[%s4 + $0x1b8] sm:$0xff] %v1251
  %1316 = vst [vmem:[%s4 + $0x1c0] sm:$0xff] %v1252
  %1317 = vst [vmem:[%s4 + $0x1c8] sm:$0xff] %v1253
  %1318 = vst [vmem:[%s4 + $0x1d0] sm:$0xff] %v1254
  %1319 = vst [vmem:[%s4 + $0x1d8] sm:$0xff] %v1255
  %1320 = vst [vmem:[%s4 + $0x1e0] sm:$0xff] %v1256
  %1321 = vst [vmem:[%s4 + $0x1e8] sm:$0xff] %v1257
  %1322 = vst [vmem:[%s4 + $0x1f0] sm:$0xff] %v1258
  %1323 = vst [vmem:[%s4 + $0x1f8] sm:$0xff] %v1259
  // Predicated region
  $region18: #{sar_encoder_forward.4} parent=0 // pred_check
    _
  $region19: #{sar_encoder_forward.4} parent=0 // pred_check_branch
    %1325 = sbr.rel (0) target = $region21
  $region20: #{sar_encoder_forward.4} parent=0 // pred_region
    _
  $region21: #{sar_encoder_forward.4} parent=0 // pred_fallthru
    _
  // Predicated region
  $region22: #{sar_encoder_forward.4} parent=0 // pred_check
    _
  $region23: #{sar_encoder_forward.4} parent=0 // pred_check_branch
    %1327 = sbr.rel (0) target = $region25
  $region24: #{sar_encoder_forward.4} parent=0 // pred_region
    _
  $region25: #{sar_encoder_forward.4} parent=0 // pred_fallthru
    _

// kernel: sar_encoder_forward.5
$region0: #{sar_encoder_forward.5}
  #allocation0 [shape = 'u32[]', space=smem, size = 0x4, offset = 0x4, fixed_abs, tag = 'smem constant byte address 0x4 - core index']
  #allocation1 [shape = 'u32[144,128]{1,0:T(1,128)}', space=vmem, size = 0x12000, scoped, tag = 'internal scratch']
  %s0 = inlined_call_operand.vmem [shape: bf16[128,1152], index: 0, kind: input, shape index: {}]
  %s1 = inlined_call_operand.vmem [shape: bf16[1152,128], index: 1, kind: input, shape index: {}]
  %s2 = inlined_call_operand.vmem [shape: f32[1,128], index: 2, kind: input, shape index: {}]
  %s3 = inlined_call_operand.vmem [shape: f32[1,128], index: 3, kind: input, shape index: {}]
  %s4 = inlined_call_operand.vmem [shape: f32[128,128], index: 4, kind: output, shape index: {}]
  %s5 = sld [smem:[#allocation0]]
  $region26: #{sar_encoder_forward.5} parent=0
    _
  %s7 = ssub.s32 1, %s5
  %s8 = scalar_select 0, %s7, %s5
  // Predicated region
  $region2: #{sar_encoder_forward.5} parent=0 // pred_check
    _
  $region3: #{sar_encoder_forward.5} parent=0 // pred_check_branch
    %10 = sbr.rel (0) target = $region5
  $region4: #{sar_encoder_forward.5} parent=0 // pred_region
    _
  $region5: #{sar_encoder_forward.5} parent=0 // pred_fallthru
    _
  // Predicated region
  $region6: #{sar_encoder_forward.5} parent=0 // pred_check
    _
  $region7: #{sar_encoder_forward.5} parent=0 // pred_check_branch
    %12 = sbr.rel (0) target = $region9
  $region8: #{sar_encoder_forward.5} parent=0 // pred_region
    _
  $region9: #{sar_encoder_forward.5} parent=0 // pred_fallthru
    _
  // Predicated region
  $region10: #{sar_encoder_forward.5} parent=0 // pred_check
    _
  $region11: #{sar_encoder_forward.5} parent=0 // pred_check_branch
    %14 = sbr.rel (0) target = $region13
  $region12: #{sar_encoder_forward.5} parent=0 // pred_region
    _
  $region13: #{sar_encoder_forward.5} parent=0 // pred_fallthru
    _
  // Predicated region
  $region14: #{sar_encoder_forward.5} parent=0 // pred_check
    _
  $region15: #{sar_encoder_forward.5} parent=0 // pred_check_branch
    %16 = sbr.rel (0) target = $region17
  $region16: #{sar_encoder_forward.5} parent=0 // pred_region
    _
  $region17: #{sar_encoder_forward.5} parent=0 // pred_fallthru
    _
  %v18 = vld [vmem:[%s0] sm:$0xff]
  %v19 = vld [vmem:[%s0 + $0x8] sm:$0xff]
  %v20 = vld [vmem:[%s0 + $0x10] sm:$0xff]
  %v21 = vld [vmem:[%s0 + $0x18] sm:$0xff]
  %v22 = vld [vmem:[%s0 + $0x20] sm:$0xf]
  %v23 = vld [vmem:[%s0 + $0x24] sm:$0xff]
  %v24 = vld [vmem:[%s0 + $0x2c] sm:$0xff]
  %v25 = vld [vmem:[%s0 + $0x34] sm:$0xff]
  %v26 = vld [vmem:[%s0 + $0x3c] sm:$0xff]
  %v27 = vld [vmem:[%s0 + $0x44] sm:$0xf]
  %v28 = vld [vmem:[%s0 + $0x48] sm:$0xff]
  %v29 = vld [vmem:[%s0 + $0x50] sm:$0xff]
  %v30 = vld [vmem:[%s0 + $0x58] sm:$0xff]
  %v31 = vld [vmem:[%s0 + $0x60] sm:$0xff]
  %v32 = vld [vmem:[%s0 + $0x68] sm:$0xf]
  %v33 = vld [vmem:[%s0 + $0x6c] sm:$0xff]
  %v34 = vld [vmem:[%s0 + $0x74] sm:$0xff]
  %v35 = vld [vmem:[%s0 + $0x7c] sm:$0xff]
  %v36 = vld [vmem:[%s0 + $0x84] sm:$0xff]
  %v37 = vld [vmem:[%s0 + $0x8c] sm:$0xf]
  %v38 = vld [vmem:[%s0 + $0x90] sm:$0xff]
  %v39 = vld [vmem:[%s0 + $0x98] sm:$0xff]
  %v40 = vld [vmem:[%s0 + $0xa0] sm:$0xff]
  %v41 = vld [vmem:[%s0 + $0xa8] sm:$0xff]
  %v42 = vld [vmem:[%s0 + $0xb0] sm:$0xf]
  %v43 = vld [vmem:[%s0 + $0xb4] sm:$0xff]
  %v44 = vld [vmem:[%s0 + $0xbc] sm:$0xff]
  %v45 = vld [vmem:[%s0 + $0xc4] sm:$0xff]
  %v46 = vld [vmem:[%s0 + $0xcc] sm:$0xff]
  %v47 = vld [vmem:[%s0 + $0xd4] sm:$0xf]
  %v48 = vld [vmem:[%s0 + $0xd8] sm:$0xff]
  %v49 = vld [vmem:[%s0 + $0xe0] sm:$0xff]
  %v50 = vld [vmem:[%s0 + $0xe8] sm:$0xff]
  %v51 = vld [vmem:[%s0 + $0xf0] sm:$0xff]
  %v52 = vld [vmem:[%s0 + $0xf8] sm:$0xf]
  %v53 = vld [vmem:[%s0 + $0xfc] sm:$0xff]
  %v54 = vld [vmem:[%s0 + $0x104] sm:$0xff]
  %v55 = vld [vmem:[%s0 + $0x10c] sm:$0xff]
  %v56 = vld [vmem:[%s0 + $0x114] sm:$0xff]
  %v57 = vld [vmem:[%s0 + $0x11c] sm:$0xf]
  %v58 = vld [vmem:[%s0 + $0x120] sm:$0xff]
  %v59 = vld [vmem:[%s0 + $0x128] sm:$0xff]
  %v60 = vld [vmem:[%s0 + $0x130] sm:$0xff]
  %v61 = vld [vmem:[%s0 + $0x138] sm:$0xff]
  %v62 = vld [vmem:[%s0 + $0x140] sm:$0xf]
  %v63 = vld [vmem:[%s0 + $0x144] sm:$0xff]
  %v64 = vld [vmem:[%s0 + $0x14c] sm:$0xff]
  %v65 = vld [vmem:[%s0 + $0x154] sm:$0xff]
  %v66 = vld [vmem:[%s0 + $0x15c] sm:$0xff]
  %v67 = vld [vmem:[%s0 + $0x164] sm:$0xf]
  %v68 = vld [vmem:[%s0 + $0x168] sm:$0xff]
  %v69 = vld [vmem:[%s0 + $0x170] sm:$0xff]
  %v70 = vld [vmem:[%s0 + $0x178] sm:$0xff]
  %v71 = vld [vmem:[%s0 + $0x180] sm:$0xff]
  %v72 = vld [vmem:[%s0 + $0x188] sm:$0xf]
  %v73 = vld [vmem:[%s0 + $0x18c] sm:$0xff]
  %v74 = vld [vmem:[%s0 + $0x194] sm:$0xff]
  %v75 = vld [vmem:[%s0 + $0x19c] sm:$0xff]
  %v76 = vld [vmem:[%s0 + $0x1a4] sm:$0xff]
  %v77 = vld [vmem:[%s0 + $0x1ac] sm:$0xf]
  %v78 = vld [vmem:[%s0 + $0x1b0] sm:$0xff]
  %v79 = vld [vmem:[%s0 + $0x1b8] sm:$0xff]
  %v80 = vld [vmem:[%s0 + $0x1c0] sm:$0xff]
  %v81 = vld [vmem:[%s0 + $0x1c8] sm:$0xff]
  %v82 = vld [vmem:[%s0 + $0x1d0] sm:$0xf]
  %v83 = vld [vmem:[%s0 + $0x1d4] sm:$0xff]
  %v84 = vld [vmem:[%s0 + $0x1dc] sm:$0xff]
  %v85 = vld [vmem:[%s0 + $0x1e4] sm:$0xff]
  %v86 = vld [vmem:[%s0 + $0x1ec] sm:$0xff]
  %v87 = vld [vmem:[%s0 + $0x1f4] sm:$0xf]
  %v88 = vld [vmem:[%s0 + $0x1f8] sm:$0xff]
  %v89 = vld [vmem:[%s0 + $0x200] sm:$0xff]
  %v90 = vld [vmem:[%s0 + $0x208] sm:$0xff]
  %v91 = vld [vmem:[%s0 + $0x210] sm:$0xff]
  %v92 = vld [vmem:[%s0 + $0x218] sm:$0xf]
  %v93 = vld [vmem:[%s0 + $0x21c] sm:$0xff]
  %v94 = vld [vmem:[%s0 + $0x224] sm:$0xff]
  %v95 = vld [vmem:[%s0 + $0x22c] sm:$0xff]
  %v96 = vld [vmem:[%s0 + $0x234] sm:$0xff]
  %v97 = vld [vmem:[%s0 + $0x23c] sm:$0xf]
  %v98 = vld [vmem:[%s1] sm:$0xf]
  %v99 = vld [vmem:[%s1 + $0x4] sm:$0xf]
  %v100 = vld [vmem:[%s1 + $0x8] sm:$0xf]
  %v101 = vld [vmem:[%s1 + $0xc] sm:$0xf]
  %v102 = vld [vmem:[%s1 + $0x10] sm:$0xf]
  %v103 = vld [vmem:[%s1 + $0x14] sm:$0xf]
  %v104 = vld [vmem:[%s1 + $0x18] sm:$0xf]
  %v105 = vld [vmem:[%s1 + $0x1c] sm:$0xf]
  %v106 = vld [vmem:[%s1 + $0x20] sm:$0xf]
  %v107 = vld [vmem:[%s1 + $0x24] sm:$0xf]
  %v108 = vld [vmem:[%s1 + $0x28] sm:$0xf]
  %v109 = vld [vmem:[%s1 + $0x2c] sm:$0xf]
  %v110 = vld [vmem:[%s1 + $0x30] sm:$0xf]
  %v111 = vld [vmem:[%s1 + $0x34] sm:$0xf]
  %v112 = vld [vmem:[%s1 + $0x38] sm:$0xf]
  %v113 = vld [vmem:[%s1 + $0x3c] sm:$0xf]
  %v114 = vld [vmem:[%s1 + $0x40] sm:$0xf]
  %v115 = vld [vmem:[%s1 + $0x44] sm:$0xf]
  %v116 = vld [vmem:[%s1 + $0x48] sm:$0xf]
  %v117 = vld [vmem:[%s1 + $0x4c] sm:$0xf]
  %v118 = vld [vmem:[%s1 + $0x50] sm:$0xf]
  %v119 = vld [vmem:[%s1 + $0x54] sm:$0xf]
  %v120 = vld [vmem:[%s1 + $0x58] sm:$0xf]
  %v121 = vld [vmem:[%s1 + $0x5c] sm:$0xf]
  %v122 = vld [vmem:[%s1 + $0x60] sm:$0xf]
  %v123 = vld [vmem:[%s1 + $0x64] sm:$0xf]
  %v124 = vld [vmem:[%s1 + $0x68] sm:$0xf]
  %v125 = vld [vmem:[%s1 + $0x6c] sm:$0xf]
  %v126 = vld [vmem:[%s1 + $0x70] sm:$0xf]
  %v127 = vld [vmem:[%s1 + $0x74] sm:$0xf]
  %v128 = vld [vmem:[%s1 + $0x78] sm:$0xf]
  %v129 = vld [vmem:[%s1 + $0x7c] sm:$0xf]
  %v130 = vld [vmem:[%s1 + $0x80] sm:$0xf]
  %v131 = vld [vmem:[%s1 + $0x84] sm:$0xf]
  %v132 = vld [vmem:[%s1 + $0x88] sm:$0xf]
  %v133 = vld [vmem:[%s1 + $0x8c] sm:$0xf]
  %v134 = vld [vmem:[%s1 + $0x90] sm:$0xf]
  %v135 = vld [vmem:[%s1 + $0x94] sm:$0xf]
  %v136 = vld [vmem:[%s1 + $0x98] sm:$0xf]
  %v137 = vld [vmem:[%s1 + $0x9c] sm:$0xf]
  %v138 = vld [vmem:[%s1 + $0xa0] sm:$0xf]
  %v139 = vld [vmem:[%s1 + $0xa4] sm:$0xf]
  %v140 = vld [vmem:[%s1 + $0xa8] sm:$0xf]
  %v141 = vld [vmem:[%s1 + $0xac] sm:$0xf]
  %v142 = vld [vmem:[%s1 + $0xb0] sm:$0xf]
  %v143 = vld [vmem:[%s1 + $0xb4] sm:$0xf]
  %v144 = vld [vmem:[%s1 + $0xb8] sm:$0xf]
  %v145 = vld [vmem:[%s1 + $0xbc] sm:$0xf]
  %v146 = vld [vmem:[%s1 + $0xc0] sm:$0xf]
  %v147 = vld [vmem:[%s1 + $0xc4] sm:$0xf]
  %v148 = vld [vmem:[%s1 + $0xc8] sm:$0xf]
  %v149 = vld [vmem:[%s1 + $0xcc] sm:$0xf]
  %v150 = vld [vmem:[%s1 + $0xd0] sm:$0xf]
  %v151 = vld [vmem:[%s1 + $0xd4] sm:$0xf]
  %v152 = vld [vmem:[%s1 + $0xd8] sm:$0xf]
  %v153 = vld [vmem:[%s1 + $0xdc] sm:$0xf]
  %v154 = vld [vmem:[%s1 + $0xe0] sm:$0xf]
  %v155 = vld [vmem:[%s1 + $0xe4] sm:$0xf]
  %v156 = vld [vmem:[%s1 + $0xe8] sm:$0xf]
  %v157 = vld [vmem:[%s1 + $0xec] sm:$0xf]
  %v158 = vld [vmem:[%s1 + $0xf0] sm:$0xf]
  %v159 = vld [vmem:[%s1 + $0xf4] sm:$0xf]
  %v160 = vld [vmem:[%s1 + $0xf8] sm:$0xf]
  %v161 = vld [vmem:[%s1 + $0xfc] sm:$0xf]
  %v162 = vld [vmem:[%s1 + $0x100] sm:$0xf]
  %v163 = vld [vmem:[%s1 + $0x104] sm:$0xf]
  %v164 = vld [vmem:[%s1 + $0x108] sm:$0xf]
  %v165 = vld [vmem:[%s1 + $0x10c] sm:$0xf]
  %v166 = vld [vmem:[%s1 + $0x110] sm:$0xf]
  %v167 = vld [vmem:[%s1 + $0x114] sm:$0xf]
  %v168 = vld [vmem:[%s1 + $0x118] sm:$0xf]
  %v169 = vld [vmem:[%s1 + $0x11c] sm:$0xf]
  %v170 = vld [vmem:[%s1 + $0x120] sm:$0xf]
  %v171 = vld [vmem:[%s1 + $0x124] sm:$0xf]
  %v172 = vld [vmem:[%s1 + $0x128] sm:$0xf]
  %v173 = vld [vmem:[%s1 + $0x12c] sm:$0xf]
  %v174 = vld [vmem:[%s1 + $0x130] sm:$0xf]
  %v175 = vld [vmem:[%s1 + $0x134] sm:$0xf]
  %v176 = vld [vmem:[%s1 + $0x138] sm:$0xf]
  %v177 = vld [vmem:[%s1 + $0x13c] sm:$0xf]
  %v178 = vld [vmem:[%s1 + $0x140] sm:$0xf]
  %v179 = vld [vmem:[%s1 + $0x144] sm:$0xf]
  %v180 = vld [vmem:[%s1 + $0x148] sm:$0xf]
  %v181 = vld [vmem:[%s1 + $0x14c] sm:$0xf]
  %v182 = vld [vmem:[%s1 + $0x150] sm:$0xf]
  %v183 = vld [vmem:[%s1 + $0x154] sm:$0xf]
  %v184 = vld [vmem:[%s1 + $0x158] sm:$0xf]
  %v185 = vld [vmem:[%s1 + $0x15c] sm:$0xf]
  %v186 = vld [vmem:[%s1 + $0x160] sm:$0xf]
  %v187 = vld [vmem:[%s1 + $0x164] sm:$0xf]
  %v188 = vld [vmem:[%s1 + $0x168] sm:$0xf]
  %v189 = vld [vmem:[%s1 + $0x16c] sm:$0xf]
  %v190 = vld [vmem:[%s1 + $0x170] sm:$0xf]
  %v191 = vld [vmem:[%s1 + $0x174] sm:$0xf]
  %v192 = vld [vmem:[%s1 + $0x178] sm:$0xf]
  %v193 = vld [vmem:[%s1 + $0x17c] sm:$0xf]
  %v194 = vld [vmem:[%s1 + $0x180] sm:$0xf]
  %v195 = vld [vmem:[%s1 + $0x184] sm:$0xf]
  %v196 = vld [vmem:[%s1 + $0x188] sm:$0xf]
  %v197 = vld [vmem:[%s1 + $0x18c] sm:$0xf]
  %v198 = vld [vmem:[%s1 + $0x190] sm:$0xf]
  %v199 = vld [vmem:[%s1 + $0x194] sm:$0xf]
  %v200 = vld [vmem:[%s1 + $0x198] sm:$0xf]
  %v201 = vld [vmem:[%s1 + $0x19c] sm:$0xf]
  %v202 = vld [vmem:[%s1 + $0x1a0] sm:$0xf]
  %v203 = vld [vmem:[%s1 + $0x1a4] sm:$0xf]
  %v204 = vld [vmem:[%s1 + $0x1a8] sm:$0xf]
  %v205 = vld [vmem:[%s1 + $0x1ac] sm:$0xf]
  %v206 = vld [vmem:[%s1 + $0x1b0] sm:$0xf]
  %v207 = vld [vmem:[%s1 + $0x1b4] sm:$0xf]
  %v208 = vld [vmem:[%s1 + $0x1b8] sm:$0xf]
  %v209 = vld [vmem:[%s1 + $0x1bc] sm:$0xf]
  %v210 = vld [vmem:[%s1 + $0x1c0] sm:$0xf]
  %v211 = vld [vmem:[%s1 + $0x1c4] sm:$0xf]
  %v212 = vld [vmem:[%s1 + $0x1c8] sm:$0xf]
  %v213 = vld [vmem:[%s1 + $0x1cc] sm:$0xf]
  %v214 = vld [vmem:[%s1 + $0x1d0] sm:$0xf]
  %v215 = vld [vmem:[%s1 + $0x1d4] sm:$0xf]
  %v216 = vld [vmem:[%s1 + $0x1d8] sm:$0xf]
  %v217 = vld [vmem:[%s1 + $0x1dc] sm:$0xf]
  %v218 = vld [vmem:[%s1 + $0x1e0] sm:$0xf]
  %v219 = vld [vmem:[%s1 + $0x1e4] sm:$0xf]
  %v220 = vld [vmem:[%s1 + $0x1e8] sm:$0xf]
  %v221 = vld [vmem:[%s1 + $0x1ec] sm:$0xf]
  %v222 = vld [vmem:[%s1 + $0x1f0] sm:$0xf]
  %v223 = vld [vmem:[%s1 + $0x1f4] sm:$0xf]
  %v224 = vld [vmem:[%s1 + $0x1f8] sm:$0xf]
  %v225 = vld [vmem:[%s1 + $0x1fc] sm:$0xf]
  %v226 = vld [vmem:[%s1 + $0x200] sm:$0xf]
  %v227 = vld [vmem:[%s1 + $0x204] sm:$0xf]
  %v228 = vld [vmem:[%s1 + $0x208] sm:$0xf]
  %v229 = vld [vmem:[%s1 + $0x20c] sm:$0xf]
  %v230 = vld [vmem:[%s1 + $0x210] sm:$0xf]
  %v231 = vld [vmem:[%s1 + $0x214] sm:$0xf]
  %v232 = vld [vmem:[%s1 + $0x218] sm:$0xf]
  %v233 = vld [vmem:[%s1 + $0x21c] sm:$0xf]
  %v234 = vld [vmem:[%s1 + $0x220] sm:$0xf]
  %v235 = vld [vmem:[%s1 + $0x224] sm:$0xf]
  %v236 = vld [vmem:[%s1 + $0x228] sm:$0xf]
  %v237 = vld [vmem:[%s1 + $0x22c] sm:$0xf]
  %v238 = vld [vmem:[%s1 + $0x230] sm:$0xf]
  %v239 = vld [vmem:[%s1 + $0x234] sm:$0xf]
  %v240 = vld [vmem:[%s1 + $0x238] sm:$0xf]
  %v241 = vld [vmem:[%s1 + $0x23c] sm:$0xf]
  %v322 = vunpack.c.l.b16 %v18
  %v323 = vunpack.c.h.b16 %v18
  %v324 = vunpack.c.l.b16 %v19
  %v325 = vunpack.c.h.b16 %v19
  %v326 = vunpack.c.l.b16 %v20
  %v327 = vunpack.c.h.b16 %v20
  %v328 = vunpack.c.l.b16 %v21
  %v329 = vunpack.c.h.b16 %v21
  %v330 = vunpack.c.l.b16 %v22
  %v331 = vunpack.c.l.b16 %v23
  %v332 = vunpack.c.h.b16 %v23
  %v333 = vunpack.c.l.b16 %v24
  %v334 = vunpack.c.h.b16 %v24
  %v335 = vunpack.c.l.b16 %v25
  %v336 = vunpack.c.h.b16 %v25
  %v337 = vunpack.c.l.b16 %v26
  %v338 = vunpack.c.h.b16 %v26
  %v339 = vunpack.c.l.b16 %v27
  %v340 = vunpack.c.l.b16 %v28
  %v341 = vunpack.c.h.b16 %v28
  %v342 = vunpack.c.l.b16 %v29
  %v343 = vunpack.c.h.b16 %v29
  %v344 = vunpack.c.l.b16 %v30
  %v345 = vunpack.c.h.b16 %v30
  %v346 = vunpack.c.l.b16 %v31
  %v347 = vunpack.c.h.b16 %v31
  %v348 = vunpack.c.l.b16 %v32
  %v349 = vunpack.c.l.b16 %v33
  %v350 = vunpack.c.h.b16 %v33
  %v351 = vunpack.c.l.b16 %v34
  %v352 = vunpack.c.h.b16 %v34
  %v353 = vunpack.c.l.b16 %v35
  %v354 = vunpack.c.h.b16 %v35
  %v355 = vunpack.c.l.b16 %v36
  %v356 = vunpack.c.h.b16 %v36
  %v357 = vunpack.c.l.b16 %v37
  %v358 = vunpack.c.l.b16 %v38
  %v359 = vunpack.c.h.b16 %v38
  %v360 = vunpack.c.l.b16 %v39
  %v361 = vunpack.c.h.b16 %v39
  %v362 = vunpack.c.l.b16 %v40
  %v363 = vunpack.c.h.b16 %v40
  %v364 = vunpack.c.l.b16 %v41
  %v365 = vunpack.c.h.b16 %v41
  %v366 = vunpack.c.l.b16 %v42
  %v367 = vunpack.c.l.b16 %v43
  %v368 = vunpack.c.h.b16 %v43
  %v369 = vunpack.c.l.b16 %v44
  %v370 = vunpack.c.h.b16 %v44
  %v371 = vunpack.c.l.b16 %v45
  %v372 = vunpack.c.h.b16 %v45
  %v373 = vunpack.c.l.b16 %v46
  %v374 = vunpack.c.h.b16 %v46
  %v375 = vunpack.c.l.b16 %v47
  %v376 = vunpack.c.l.b16 %v48
  %v377 = vunpack.c.h.b16 %v48
  %v378 = vunpack.c.l.b16 %v49
  %v379 = vunpack.c.h.b16 %v49
  %v380 = vunpack.c.l.b16 %v50
  %v381 = vunpack.c.h.b16 %v50
  %v382 = vunpack.c.l.b16 %v51
  %v383 = vunpack.c.h.b16 %v51
  %v384 = vunpack.c.l.b16 %v52
  %v385 = vunpack.c.l.b16 %v53
  %v386 = vunpack.c.h.b16 %v53
  %v387 = vunpack.c.l.b16 %v54
  %v388 = vunpack.c.h.b16 %v54
  %v389 = vunpack.c.l.b16 %v55
  %v390 = vunpack.c.h.b16 %v55
  %v391 = vunpack.c.l.b16 %v56
  %v392 = vunpack.c.h.b16 %v56
  %v393 = vunpack.c.l.b16 %v57
  %v394 = vunpack.c.l.b16 %v58
  %v395 = vunpack.c.h.b16 %v58
  %v396 = vunpack.c.l.b16 %v59
  %v397 = vunpack.c.h.b16 %v59
  %v398 = vunpack.c.l.b16 %v60
  %v399 = vunpack.c.h.b16 %v60
  %v400 = vunpack.c.l.b16 %v61
  %v401 = vunpack.c.h.b16 %v61
  %v402 = vunpack.c.l.b16 %v62
  %v403 = vunpack.c.l.b16 %v63
  %v404 = vunpack.c.h.b16 %v63
  %v405 = vunpack.c.l.b16 %v64
  %v406 = vunpack.c.h.b16 %v64
  %v407 = vunpack.c.l.b16 %v65
  %v408 = vunpack.c.h.b16 %v65
  %v409 = vunpack.c.l.b16 %v66
  %v410 = vunpack.c.h.b16 %v66
  %v411 = vunpack.c.l.b16 %v67
  %v412 = vunpack.c.l.b16 %v68
  %v413 = vunpack.c.h.b16 %v68
  %v414 = vunpack.c.l.b16 %v69
  %v415 = vunpack.c.h.b16 %v69
  %v416 = vunpack.c.l.b16 %v70
  %v417 = vunpack.c.h.b16 %v70
  %v418 = vunpack.c.l.b16 %v71
  %v419 = vunpack.c.h.b16 %v71
  %v420 = vunpack.c.l.b16 %v72
  %v421 = vunpack.c.l.b16 %v73
  %v422 = vunpack.c.h.b16 %v73
  %v423 = vunpack.c.l.b16 %v74
  %v424 = vunpack.c.h.b16 %v74
  %v425 = vunpack.c.l.b16 %v75
  %v426 = vunpack.c.h.b16 %v75
  %v427 = vunpack.c.l.b16 %v76
  %v428 = vunpack.c.h.b16 %v76
  %v429 = vunpack.c.l.b16 %v77
  %v430 = vunpack.c.l.b16 %v78
  %v431 = vunpack.c.h.b16 %v78
  %v432 = vunpack.c.l.b16 %v79
  %v433 = vunpack.c.h.b16 %v79
  %v434 = vunpack.c.l.b16 %v80
  %v435 = vunpack.c.h.b16 %v80
  %v436 = vunpack.c.l.b16 %v81
  %v437 = vunpack.c.h.b16 %v81
  %v438 = vunpack.c.l.b16 %v82
  %v439 = vunpack.c.l.b16 %v83
  %v440 = vunpack.c.h.b16 %v83
  %v441 = vunpack.c.l.b16 %v84
  %v442 = vunpack.c.h.b16 %v84
  %v443 = vunpack.c.l.b16 %v85
  %v444 = vunpack.c.h.b16 %v85
  %v445 = vunpack.c.l.b16 %v86
  %v446 = vunpack.c.h.b16 %v86
  %v447 = vunpack.c.l.b16 %v87
  %v448 = vunpack.c.l.b16 %v88
  %v449 = vunpack.c.h.b16 %v88
  %v450 = vunpack.c.l.b16 %v89
  %v451 = vunpack.c.h.b16 %v89
  %v452 = vunpack.c.l.b16 %v90
  %v453 = vunpack.c.h.b16 %v90
  %v454 = vunpack.c.l.b16 %v91
  %v455 = vunpack.c.h.b16 %v91
  %v456 = vunpack.c.l.b16 %v92
  %v457 = vunpack.c.l.b16 %v93
  %v458 = vunpack.c.h.b16 %v93
  %v459 = vunpack.c.l.b16 %v94
  %v460 = vunpack.c.h.b16 %v94
  %v461 = vunpack.c.l.b16 %v95
  %v462 = vunpack.c.h.b16 %v95
  %v463 = vunpack.c.l.b16 %v96
  %v464 = vunpack.c.h.b16 %v96
  %v465 = vunpack.c.l.b16 %v97
  %v466 = vpack.c.b16 %v331, %v322
  %v467 = vpack.c.b16 %v332, %v323
  %v468 = vpack.c.b16 %v333, %v324
  %v469 = vpack.c.b16 %v334, %v325
  %v470 = vpack.c.b16 %v335, %v326
  %v471 = vpack.c.b16 %v336, %v327
  %v472 = vpack.c.b16 %v337, %v328
  %v473 = vpack.c.b16 %v338, %v329
  %v474 = vpack.c.b16 %v339, %v330
  %v475 = vpack.c.b16 %v349, %v340
  %v476 = vpack.c.b16 %v350, %v341
  %v477 = vpack.c.b16 %v351, %v342
  %v478 = vpack.c.b16 %v352, %v343
  %v479 = vpack.c.b16 %v353, %v344
  %v480 = vpack.c.b16 %v354, %v345
  %v481 = vpack.c.b16 %v355, %v346
  %v482 = vpack.c.b16 %v356, %v347
  %v483 = vpack.c.b16 %v357, %v348
  %v484 = vpack.c.b16 %v367, %v358
  %v485 = vpack.c.b16 %v368, %v359
  %v486 = vpack.c.b16 %v369, %v360
  %v487 = vpack.c.b16 %v370, %v361
  %v488 = vpack.c.b16 %v371, %v362
  %v489 = vpack.c.b16 %v372, %v363
  %v490 = vpack.c.b16 %v373, %v364
  %v491 = vpack.c.b16 %v374, %v365
  %v492 = vpack.c.b16 %v375, %v366
  %v493 = vpack.c.b16 %v385, %v376
  %v494 = vpack.c.b16 %v386, %v377
  %v495 = vpack.c.b16 %v387, %v378
  %v496 = vpack.c.b16 %v388, %v379
  %v497 = vpack.c.b16 %v389, %v380
  %v498 = vpack.c.b16 %v390, %v381
  %v499 = vpack.c.b16 %v391, %v382
  %v500 = vpack.c.b16 %v392, %v383
  %v501 = vpack.c.b16 %v393, %v384
  %v502 = vpack.c.b16 %v403, %v394
  %v503 = vpack.c.b16 %v404, %v395
  %v504 = vpack.c.b16 %v405, %v396
  %v505 = vpack.c.b16 %v406, %v397
  %v506 = vpack.c.b16 %v407, %v398
  %v507 = vpack.c.b16 %v408, %v399
  %v508 = vpack.c.b16 %v409, %v400
  %v509 = vpack.c.b16 %v410, %v401
  %v510 = vpack.c.b16 %v411, %v402
  %v511 = vpack.c.b16 %v421, %v412
  %v512 = vpack.c.b16 %v422, %v413
  %v513 = vpack.c.b16 %v423, %v414
  %v514 = vpack.c.b16 %v424, %v415
  %v515 = vpack.c.b16 %v425, %v416
  %v516 = vpack.c.b16 %v426, %v417
  %v517 = vpack.c.b16 %v427, %v418
  %v518 = vpack.c.b16 %v428, %v419
  %v519 = vpack.c.b16 %v429, %v420
  %v520 = vpack.c.b16 %v439, %v430
  %v521 = vpack.c.b16 %v440, %v431
  %v522 = vpack.c.b16 %v441, %v432
  %v523 = vpack.c.b16 %v442, %v433
  %v524 = vpack.c.b16 %v443, %v434
  %v525 = vpack.c.b16 %v444, %v435
  %v526 = vpack.c.b16 %v445, %v436
  %v527 = vpack.c.b16 %v446, %v437
  %v528 = vpack.c.b16 %v447, %v438
  %v529 = vpack.c.b16 %v457, %v448
  %v530 = vpack.c.b16 %v458, %v449
  %v531 = vpack.c.b16 %v459, %v450
  %v532 = vpack.c.b16 %v460, %v451
  %v533 = vpack.c.b16 %v461, %v452
  %v534 = vpack.c.b16 %v462, %v453
  %v535 = vpack.c.b16 %v463, %v454
  %v536 = vpack.c.b16 %v464, %v455
  %v537 = vpack.c.b16 %v465, %v456
  %v754 = vunpack.c.l.b16 %v98
  %v755 = vunpack.c.l.b16 %v99
  %v756 = vunpack.c.l.b16 %v100
  %v757 = vunpack.c.l.b16 %v101
  %v758 = vunpack.c.l.b16 %v102
  %v759 = vunpack.c.l.b16 %v103
  %v760 = vunpack.c.l.b16 %v104
  %v761 = vunpack.c.l.b16 %v105
  %v762 = vunpack.c.l.b16 %v106
  %v763 = vunpack.c.l.b16 %v107
  %v764 = vunpack.c.l.b16 %v108
  %v765 = vunpack.c.l.b16 %v109
  %v766 = vunpack.c.l.b16 %v110
  %v767 = vunpack.c.l.b16 %v111
  %v768 = vunpack.c.l.b16 %v112
  %v769 = vunpack.c.l.b16 %v113
  %v770 = vunpack.c.l.b16 %v114
  %v771 = vunpack.c.l.b16 %v115
  %v772 = vunpack.c.l.b16 %v116
  %v773 = vunpack.c.l.b16 %v117
  %v774 = vunpack.c.l.b16 %v118
  %v775 = vunpack.c.l.b16 %v119
  %v776 = vunpack.c.l.b16 %v120
  %v777 = vunpack.c.l.b16 %v121
  %v778 = vunpack.c.l.b16 %v122
  %v779 = vunpack.c.l.b16 %v123
  %v780 = vunpack.c.l.b16 %v124
  %v781 = vunpack.c.l.b16 %v125
  %v782 = vunpack.c.l.b16 %v126
  %v783 = vunpack.c.l.b16 %v127
  %v784 = vunpack.c.l.b16 %v128
  %v785 = vunpack.c.l.b16 %v129
  %v786 = vunpack.c.l.b16 %v130
  %v787 = vunpack.c.l.b16 %v131
  %v788 = vunpack.c.l.b16 %v132
  %v789 = vunpack.c.l.b16 %v133
  %v790 = vunpack.c.l.b16 %v134
  %v791 = vunpack.c.l.b16 %v135
  %v792 = vunpack.c.l.b16 %v136
  %v793 = vunpack.c.l.b16 %v137
  %v794 = vunpack.c.l.b16 %v138
  %v795 = vunpack.c.l.b16 %v139
  %v796 = vunpack.c.l.b16 %v140
  %v797 = vunpack.c.l.b16 %v141
  %v798 = vunpack.c.l.b16 %v142
  %v799 = vunpack.c.l.b16 %v143
  %v800 = vunpack.c.l.b16 %v144
  %v801 = vunpack.c.l.b16 %v145
  %v802 = vunpack.c.l.b16 %v146
  %v803 = vunpack.c.l.b16 %v147
  %v804 = vunpack.c.l.b16 %v148
  %v805 = vunpack.c.l.b16 %v149
  %v806 = vunpack.c.l.b16 %v150
  %v807 = vunpack.c.l.b16 %v151
  %v808 = vunpack.c.l.b16 %v152
  %v809 = vunpack.c.l.b16 %v153
  %v810 = vunpack.c.l.b16 %v154
  %v811 = vunpack.c.l.b16 %v155
  %v812 = vunpack.c.l.b16 %v156
  %v813 = vunpack.c.l.b16 %v157
  %v814 = vunpack.c.l.b16 %v158
  %v815 = vunpack.c.l.b16 %v159
  %v816 = vunpack.c.l.b16 %v160
  %v817 = vunpack.c.l.b16 %v161
  %v818 = vunpack.c.l.b16 %v162
  %v819 = vunpack.c.l.b16 %v163
  %v820 = vunpack.c.l.b16 %v164
  %v821 = vunpack.c.l.b16 %v165
  %v822 = vunpack.c.l.b16 %v166
  %v823 = vunpack.c.l.b16 %v167
  %v824 = vunpack.c.l.b16 %v168
  %v825 = vunpack.c.l.b16 %v169
  %v826 = vunpack.c.l.b16 %v170
  %v827 = vunpack.c.l.b16 %v171
  %v828 = vunpack.c.l.b16 %v172
  %v829 = vunpack.c.l.b16 %v173
  %v830 = vunpack.c.l.b16 %v174
  %v831 = vunpack.c.l.b16 %v175
  %v832 = vunpack.c.l.b16 %v176
  %v833 = vunpack.c.l.b16 %v177
  %v834 = vunpack.c.l.b16 %v178
  %v835 = vunpack.c.l.b16 %v179
  %v836 = vunpack.c.l.b16 %v180
  %v837 = vunpack.c.l.b16 %v181
  %v838 = vunpack.c.l.b16 %v182
  %v839 = vunpack.c.l.b16 %v183
  %v840 = vunpack.c.l.b16 %v184
  %v841 = vunpack.c.l.b16 %v185
  %v842 = vunpack.c.l.b16 %v186
  %v843 = vunpack.c.l.b16 %v187
  %v844 = vunpack.c.l.b16 %v188
  %v845 = vunpack.c.l.b16 %v189
  %v846 = vunpack.c.l.b16 %v190
  %v847 = vunpack.c.l.b16 %v191
  %v848 = vunpack.c.l.b16 %v192
  %v849 = vunpack.c.l.b16 %v193
  %v850 = vunpack.c.l.b16 %v194
  %v851 = vunpack.c.l.b16 %v195
  %v852 = vunpack.c.l.b16 %v196
  %v853 = vunpack.c.l.b16 %v197
  %v854 = vunpack.c.l.b16 %v198
  %v855 = vunpack.c.l.b16 %v199
  %v856 = vunpack.c.l.b16 %v200
  %v857 = vunpack.c.l.b16 %v201
  %v858 = vunpack.c.l.b16 %v202
  %v859 = vunpack.c.l.b16 %v203
  %v860 = vunpack.c.l.b16 %v204
  %v861 = vunpack.c.l.b16 %v205
  %v862 = vunpack.c.l.b16 %v206
  %v863 = vunpack.c.l.b16 %v207
  %v864 = vunpack.c.l.b16 %v208
  %v865 = vunpack.c.l.b16 %v209
  %v866 = vunpack.c.l.b16 %v210
  %v867 = vunpack.c.l.b16 %v211
  %v868 = vunpack.c.l.b16 %v212
  %v869 = vunpack.c.l.b16 %v213
  %v870 = vunpack.c.l.b16 %v214
  %v871 = vunpack.c.l.b16 %v215
  %v872 = vunpack.c.l.b16 %v216
  %v873 = vunpack.c.l.b16 %v217
  %v874 = vunpack.c.l.b16 %v218
  %v875 = vunpack.c.l.b16 %v219
  %v876 = vunpack.c.l.b16 %v220
  %v877 = vunpack.c.l.b16 %v221
  %v878 = vunpack.c.l.b16 %v222
  %v879 = vunpack.c.l.b16 %v223
  %v880 = vunpack.c.l.b16 %v224
  %v881 = vunpack.c.l.b16 %v225
  %v882 = vunpack.c.l.b16 %v226
  %v883 = vunpack.c.l.b16 %v227
  %v884 = vunpack.c.l.b16 %v228
  %v885 = vunpack.c.l.b16 %v229
  %v886 = vunpack.c.l.b16 %v230
  %v887 = vunpack.c.l.b16 %v231
  %v888 = vunpack.c.l.b16 %v232
  %v889 = vunpack.c.l.b16 %v233
  %v890 = vunpack.c.l.b16 %v234
  %v891 = vunpack.c.l.b16 %v235
  %v892 = vunpack.c.l.b16 %v236
  %v893 = vunpack.c.l.b16 %v237
  %v894 = vunpack.c.l.b16 %v238
  %v895 = vunpack.c.l.b16 %v239
  %v896 = vunpack.c.l.b16 %v240
  %v897 = vunpack.c.l.b16 %v241
  %v898 = vpack.c.b16 %v755, %v754
  %v899 = vpack.c.b16 %v757, %v756
  %v900 = vpack.c.b16 %v759, %v758
  %v901 = vpack.c.b16 %v761, %v760
  %v902 = vpack.c.b16 %v763, %v762
  %v903 = vpack.c.b16 %v765, %v764
  %v904 = vpack.c.b16 %v767, %v766
  %v905 = vpack.c.b16 %v769, %v768
  %v906 = vpack.c.b16 %v771, %v770
  %v907 = vpack.c.b16 %v773, %v772
  %v908 = vpack.c.b16 %v775, %v774
  %v909 = vpack.c.b16 %v777, %v776
  %v910 = vpack.c.b16 %v779, %v778
  %v911 = vpack.c.b16 %v781, %v780
  %v912 = vpack.c.b16 %v783, %v782
  %v913 = vpack.c.b16 %v785, %v784
  %v914 = vpack.c.b16 %v787, %v786
  %v915 = vpack.c.b16 %v789, %v788
  %v916 = vpack.c.b16 %v791, %v790
  %v917 = vpack.c.b16 %v793, %v792
  %v918 = vpack.c.b16 %v795, %v794
  %v919 = vpack.c.b16 %v797, %v796
  %v920 = vpack.c.b16 %v799, %v798
  %v921 = vpack.c.b16 %v801, %v800
  %v922 = vpack.c.b16 %v803, %v802
  %v923 = vpack.c.b16 %v805, %v804
  %v924 = vpack.c.b16 %v807, %v806
  %v925 = vpack.c.b16 %v809, %v808
  %v926 = vpack.c.b16 %v811, %v810
  %v927 = vpack.c.b16 %v813, %v812
  %v928 = vpack.c.b16 %v815, %v814
  %v929 = vpack.c.b16 %v817, %v816
  %v930 = vpack.c.b16 %v819, %v818
  %v931 = vpack.c.b16 %v821, %v820
  %v932 = vpack.c.b16 %v823, %v822
  %v933 = vpack.c.b16 %v825, %v824
  %v934 = vpack.c.b16 %v827, %v826
  %v935 = vpack.c.b16 %v829, %v828
  %v936 = vpack.c.b16 %v831, %v830
  %v937 = vpack.c.b16 %v833, %v832
  %v938 = vpack.c.b16 %v835, %v834
  %v939 = vpack.c.b16 %v837, %v836
  %v940 = vpack.c.b16 %v839, %v838
  %v941 = vpack.c.b16 %v841, %v840
  %v942 = vpack.c.b16 %v843, %v842
  %v943 = vpack.c.b16 %v845, %v844
  %v944 = vpack.c.b16 %v847, %v846
  %v945 = vpack.c.b16 %v849, %v848
  %v946 = vpack.c.b16 %v851, %v850
  %v947 = vpack.c.b16 %v853, %v852
  %v948 = vpack.c.b16 %v855, %v854
  %v949 = vpack.c.b16 %v857, %v856
  %v950 = vpack.c.b16 %v859, %v858
  %v951 = vpack.c.b16 %v861, %v860
  %v952 = vpack.c.b16 %v863, %v862
  %v953 = vpack.c.b16 %v865, %v864
  %v954 = vpack.c.b16 %v867, %v866
  %v955 = vpack.c.b16 %v869, %v868
  %v956 = vpack.c.b16 %v871, %v870
  %v957 = vpack.c.b16 %v873, %v872
  %v958 = vpack.c.b16 %v875, %v874
  %v959 = vpack.c.b16 %v877, %v876
  %v960 = vpack.c.b16 %v879, %v878
  %v961 = vpack.c.b16 %v881, %v880
  %v962 = vpack.c.b16 %v883, %v882
  %v963 = vpack.c.b16 %v885, %v884
  %v964 = vpack.c.b16 %v887, %v886
  %v965 = vpack.c.b16 %v889, %v888
  %v966 = vpack.c.b16 %v891, %v890
  %v967 = vpack.c.b16 %v893, %v892
  %v968 = vpack.c.b16 %v895, %v894
  %v969 = vpack.c.b16 %v897, %v896
  %1042 = vmatprep.subr.bf16.mxu0 0
  %1043 = vmatpush1.bf16.msra.mxu0 %v898
  %1044 = vmatprep.subr.bf16.mxu0 0
  %1045 = vmatpush1.bf16.msra.mxu0 %v899
  %1046 = vmatprep.subr.bf16.mxu0 0
  %1047 = vmatpush1.bf16.msra.mxu0 %v900
  %1048 = vmatprep.subr.bf16.mxu0 0
  %1049 = vmatpush1.bf16.msra.mxu0 %v901
  %1050 = vmatprep.subr.bf16.mxu0 0
  %1051 = vmatpush1.bf16.msra.mxu0 %v902
  %1052 = vmatprep.subr.bf16.mxu0 0
  %1053 = vmatpush1.bf16.msra.mxu0 %v903
  %1054 = vmatprep.subr.bf16.mxu0 0
  %1055 = vmatpush1.bf16.msra.mxu0 %v904
  %1056 = vmatprep.subr.bf16.mxu0 0
  %1057 = vmatpush1.bf16.msra.mxu0 %v905
  %1058 = vmatprep.subr.bf16.mxu0 0
  %1059 = vmatpush1.bf16.msra.mxu0 %v906
  %1060 = vmatprep.subr.bf16.mxu0 0
  %1061 = vmatpush1.bf16.msra.mxu0 %v907
  %1062 = vmatprep.subr.bf16.mxu0 0
  %1063 = vmatpush1.bf16.msra.mxu0 %v908
  %1064 = vmatprep.subr.bf16.mxu0 0
  %1065 = vmatpush1.bf16.msra.mxu0 %v909
  %1066 = vmatprep.subr.bf16.mxu0 0
  %1067 = vmatpush1.bf16.msra.mxu0 %v910
  %1068 = vmatprep.subr.bf16.mxu0 0
  %1069 = vmatpush1.bf16.msra.mxu0 %v911
  %1070 = vmatprep.subr.bf16.mxu0 0
  %1071 = vmatpush1.bf16.msra.mxu0 %v912
  %1072 = vmatprep.subr.bf16.mxu0 0
  %1073 = vmatpush1.bf16.msra.mxu0 %v913
  %1074 = vmatprep.mubr.bf16.mxu0 %v467
  %1075 = vmatmul.mubr.bf16.gmra.mrb[0].mxu0 %v466
  %v1076 = vpop.f32.mrb[0].mxu0
  %v1077 = vadd.f32 0.0, %v1076
  %v1078 = vpop.f32.mrb[0].mxu0
  %v1079 = vpop.f32.mrb[0].mxu0
  %v1080 = vadd.f32 0.0, %v1079
  %v1081 = vpop.f32.mrb[0].mxu0
  %1082 = vmatprep.mubr.bf16.mxu0 %v476
  %1083 = vmatmul.mubr.bf16.gmra.mrb[0].mxu0 %v475
  %v1084 = vpop.f32.mrb[0].mxu0
  %v1085 = vadd.f32 0.0, %v1084
  %v1086 = vpop.f32.mrb[0].mxu0
  %v1087 = vpop.f32.mrb[0].mxu0
  %v1088 = vadd.f32 0.0, %v1087
  %v1089 = vpop.f32.mrb[0].mxu0
  %1090 = vmatprep.mubr.bf16.mxu0 %v485
  %1091 = vmatmul.mubr.bf16.gmra.mrb[0].mxu0 %v484
  %v1092 = vpop.f32.mrb[0].mxu0
  %v1093 = vadd.f32 0.0, %v1092
  %v1094 = vpop.f32.mrb[0].mxu0
  %v1095 = vpop.f32.mrb[0].mxu0
  %v1096 = vadd.f32 0.0, %v1095
  %v1097 = vpop.f32.mrb[0].mxu0
  %1098 = vmatprep.mubr.bf16.mxu0 %v494
  %1099 = vmatmul.mubr.bf16.gmra.mrb[0].mxu0 %v493
  %v1100 = vpop.f32.mrb[0].mxu0
  %v1101 = vadd.f32 0.0, %v1100
  %v1102 = vpop.f32.mrb[0].mxu0
  %v1103 = vpop.f32.mrb[0].mxu0
  %v1104 = vadd.f32 0.0, %v1103
  %v1105 = vpop.f32.mrb[0].mxu0
  %1106 = vmatprep.mubr.bf16.mxu0 %v503
  %1107 = vmatmul.mubr.bf16.gmra.mrb[0].mxu0 %v502
  %v1108 = vpop.f32.mrb[0].mxu0
  %v1109 = vadd.f32 0.0, %v1108
  %v1110 = vpop.f32.mrb[0].mxu0
  %v1111 = vpop.f32.mrb[0].mxu0
  %v1112 = vadd.f32 0.0, %v1111
  %v1113 = vpop.f32.mrb[0].mxu0
  %1114 = vmatprep.mubr.bf16.mxu0 %v512
  %1115 = vmatmul.mubr.bf16.gmra.mrb[0].mxu0 %v511
  %v1116 = vpop.f32.mrb[0].mxu0
  %v1117 = vadd.f32 0.0, %v1116
  %v1118 = vpop.f32.mrb[0].mxu0
  %v1119 = vpop.f32.mrb[0].mxu0
  %v1120 = vadd.f32 0.0, %v1119
  %v1121 = vpop.f32.mrb[0].mxu0
  %1122 = vmatprep.mubr.bf16.mxu0 %v521
  %1123 = vmatmul.mubr.bf16.gmra.mrb[0].mxu0 %v520
  %v1124 = vpop.f32.mrb[0].mxu0
  %v1125 = vadd.f32 0.0, %v1124
  %v1126 = vpop.f32.mrb[0].mxu0
  %v1127 = vpop.f32.mrb[0].mxu0
  %v1128 = vadd.f32 0.0, %v1127
  %v1129 = vpop.f32.mrb[0].mxu0
  %1130 = vmatprep.mubr.bf16.mxu0 %v530
  %1131 = vmatmul.mubr.bf16.gmra.mrb[0].mxu0 %v529
  %v1132 = vpop.f32.mrb[0].mxu0
  %v1133 = vadd.f32 0.0, %v1132
  %v1134 = vpop.f32.mrb[0].mxu0
  %v1135 = vpop.f32.mrb[0].mxu0
  %v1136 = vadd.f32 0.0, %v1135
  %v1137 = vpop.f32.mrb[0].mxu0
  %1138 = vdwg.mxu0
  %1139 = vmatprep.subr.bf16.mxu0 0
  %1140 = vmatpush1.bf16.msra.mxu0 %v914
  %1141 = vmatprep.subr.bf16.mxu0 0
  %1142 = vmatpush1.bf16.msra.mxu0 %v915
  %1143 = vmatprep.subr.bf16.mxu0 0
  %1144 = vmatpush1.bf16.msra.mxu0 %v916
  %1145 = vmatprep.subr.bf16.mxu0 0
  %1146 = vmatpush1.bf16.msra.mxu0 %v917
  %1147 = vmatprep.subr.bf16.mxu0 0
  %1148 = vmatpush1.bf16.msra.mxu0 %v918
  %1149 = vmatprep.subr.bf16.mxu0 0
  %1150 = vmatpush1.bf16.msra.mxu0 %v919
  %1151 = vmatprep.subr.bf16.mxu0 0
  %1152 = vmatpush1.bf16.msra.mxu0 %v920
  %1153 = vmatprep.subr.bf16.mxu0 0
  %1154 = vmatpush1.bf16.msra.mxu0 %v921
  %1155 = vmatprep.subr.bf16.mxu0 0
  %1156 = vmatpush1.bf16.msra.mxu0 %v922
  %1157 = vmatprep.subr.bf16.mxu0 0
  %1158 = vmatpush1.bf16.msra.mxu0 %v923
  %1159 = vmatprep.subr.bf16.mxu0 0
  %1160 = vmatpush1.bf16.msra.mxu0 %v924
  %1161 = vmatprep.subr.bf16.mxu0 0
  %1162 = vmatpush1.bf16.msra.mxu0 %v925
  %1163 = vmatprep.subr.bf16.mxu0 0
  %1164 = vmatpush1.bf16.msra.mxu0 %v926
  %1165 = vmatprep.subr.bf16.mxu0 0
  %1166 = vmatpush1.bf16.msra.mxu0 %v927
  %1167 = vmatprep.subr.bf16.mxu0 0
  %1168 = vmatpush1.bf16.msra.mxu0 %v928
  %1169 = vmatprep.subr.bf16.mxu0 0
  %1170 = vmatpush1.bf16.msra.mxu0 %v929
  %1171 = vmatprep.mubr.bf16.mxu0 %v469
  %1172 = vmatmul.mubr.bf16.gmra.mrb[0].mxu0 %v468
  %v1173 = vpop.f32.mrb[0].mxu0
  %v1174 = vadd.f32 %v1077, %v1173
  %v1175 = vpop.f32.mrb[0].mxu0
  %v1176 = vpop.f32.mrb[0].mxu0
  %v1177 = vadd.f32 %v1080, %v1176
  %v1178 = vpop.f32.mrb[0].mxu0
  %1179 = vmatprep.mubr.bf16.mxu0 %v478
  %1180 = vmatmul.mubr.bf16.gmra.mrb[0].mxu0 %v477
  %v1181 = vpop.f32.mrb[0].mxu0
  %v1182 = vadd.f32 %v1085, %v1181
  %v1183 = vpop.f32.mrb[0].mxu0
  %v1184 = vpop.f32.mrb[0].mxu0
  %v1185 = vadd.f32 %v1088, %v1184
  %v1186 = vpop.f32.mrb[0].mxu0
  %1187 = vmatprep.mubr.bf16.mxu0 %v487
  %1188 = vmatmul.mubr.bf16.gmra.mrb[0].mxu0 %v486
  %v1189 = vpop.f32.mrb[0].mxu0
  %v1190 = vadd.f32 %v1093, %v1189
  %v1191 = vpop.f32.mrb[0].mxu0
  %v1192 = vpop.f32.mrb[0].mxu0
  %v1193 = vadd.f32 %v1096, %v1192
  %v1194 = vpop.f32.mrb[0].mxu0
  %1195 = vmatprep.mubr.bf16.mxu0 %v496
  %1196 = vmatmul.mubr.bf16.gmra.mrb[0].mxu0 %v495
  %v1197 = vpop.f32.mrb[0].mxu0
  %v1198 = vadd.f32 %v1101, %v1197
  %v1199 = vpop.f32.mrb[0].mxu0
  %v1200 = vpop.f32.mrb[0].mxu0
  %v1201 = vadd.f32 %v1104, %v1200
  %v1202 = vpop.f32.mrb[0].mxu0
  %1203 = vmatprep.mubr.bf16.mxu0 %v505
  %1204 = vmatmul.mubr.bf16.gmra.mrb[0].mxu0 %v504
  %v1205 = vpop.f32.mrb[0].mxu0
  %v1206 = vadd.f32 %v1109, %v1205
  %v1207 = vpop.f32.mrb[0].mxu0
  %v1208 = vpop.f32.mrb[0].mxu0
  %v1209 = vadd.f32 %v1112, %v1208
  %v1210 = vpop.f32.mrb[0].mxu0
  %1211 = vmatprep.mubr.bf16.mxu0 %v514
  %1212 = vmatmul.mubr.bf16.gmra.mrb[0].mxu0 %v513
  %v1213 = vpop.f32.mrb[0].mxu0
  %v1214 = vadd.f32 %v1117, %v1213
  %v1215 = vpop.f32.mrb[0].mxu0
  %v1216 = vpop.f32.mrb[0].mxu0
  %v1217 = vadd.f32 %v1120, %v1216
  %v1218 = vpop.f32.mrb[0].mxu0
  %1219 = vmatprep.mubr.bf16.mxu0 %v523
  %1220 = vmatmul.mubr.bf16.gmra.mrb[0].mxu0 %v522
  %v1221 = vpop.f32.mrb[0].mxu0
  %v1222 = vadd.f32 %v1125, %v1221
  %v1223 = vpop.f32.mrb[0].mxu0
  %v1224 = vpop.f32.mrb[0].mxu0
  %v1225 = vadd.f32 %v1128, %v1224
  %v1226 = vpop.f32.mrb[0].mxu0
  %1227 = vmatprep.mubr.bf16.mxu0 %v532
  %1228 = vmatmul.mubr.bf16.gmra.mrb[0].mxu0 %v531
  %v1229 = vpop.f32.mrb[0].mxu0
  %v1230 = vadd.f32 %v1133, %v1229
  %v1231 = vpop.f32.mrb[0].mxu0
  %v1232 = vpop.f32.mrb[0].mxu0
  %v1233 = vadd.f32 %v1136, %v1232
  %v1234 = vpop.f32.mrb[0].mxu0
  %1235 = vdwg.mxu0
  %1236 = vmatprep.subr.bf16.mxu0 0
  %1237 = vmatpush1.bf16.msra.mxu0 %v930
  %1238 = vmatprep.subr.bf16.mxu0 0
  %1239 = vmatpush1.bf16.msra.mxu0 %v931
  %1240 = vmatprep.subr.bf16.mxu0 0
  %1241 = vmatpush1.bf16.msra.mxu0 %v932
  %1242 = vmatprep.subr.bf16.mxu0 0
  %1243 = vmatpush1.bf16.msra.mxu0 %v933
  %1244 = vmatprep.subr.bf16.mxu0 0
  %1245 = vmatpush1.bf16.msra.mxu0 %v934
  %1246 = vmatprep.subr.bf16.mxu0 0
  %1247 = vmatpush1.bf16.msra.mxu0 %v935
  %1248 = vmatprep.subr.bf16.mxu0 0
  %1249 = vmatpush1.bf16.msra.mxu0 %v936
  %1250 = vmatprep.subr.bf16.mxu0 0
  %1251 = vmatpush1.bf16.msra.mxu0 %v937
  %1252 = vmatprep.subr.bf16.mxu0 0
  %1253 = vmatpush1.bf16.msra.mxu0 %v938
  %1254 = vmatprep.subr.bf16.mxu0 0
  %1255 = vmatpush1.bf16.msra.mxu0 %v939
  %1256 = vmatprep.subr.bf16.mxu0 0
  %1257 = vmatpush1.bf16.msra.mxu0 %v940
  %1258 = vmatprep.subr.bf16.mxu0 0
  %1259 = vmatpush1.bf16.msra.mxu0 %v941
  %1260 = vmatprep.subr.bf16.mxu0 0
  %1261 = vmatpush1.bf16.msra.mxu0 %v942
  %1262 = vmatprep.subr.bf16.mxu0 0
  %1263 = vmatpush1.bf16.msra.mxu0 %v943
  %1264 = vmatprep.subr.bf16.mxu0 0
  %1265 = vmatpush1.bf16.msra.mxu0 %v944
  %1266 = vmatprep.subr.bf16.mxu0 0
  %1267 = vmatpush1.bf16.msra.mxu0 %v945
  %1268 = vmatprep.mubr.bf16.mxu0 %v471
  %1269 = vmatmul.mubr.bf16.gmra.mrb[0].mxu0 %v470
  %v1270 = vpop.f32.mrb[0].mxu0
  %v1271 = vadd.f32 %v1174, %v1270
  %v1272 = vpop.f32.mrb[0].mxu0
  %v1273 = vpop.f32.mrb[0].mxu0
  %v1274 = vadd.f32 %v1177, %v1273
  %v1275 = vpop.f32.mrb[0].mxu0
  %1276 = vmatprep.mubr.bf16.mxu0 %v480
  %1277 = vmatmul.mubr.bf16.gmra.mrb[0].mxu0 %v479
  %v1278 = vpop.f32.mrb[0].mxu0
  %v1279 = vadd.f32 %v1182, %v1278
  %v1280 = vpop.f32.mrb[0].mxu0
  %v1281 = vpop.f32.mrb[0].mxu0
  %v1282 = vadd.f32 %v1185, %v1281
  %v1283 = vpop.f32.mrb[0].mxu0
  %1284 = vmatprep.mubr.bf16.mxu0 %v489
  %1285 = vmatmul.mubr.bf16.gmra.mrb[0].mxu0 %v488
  %v1286 = vpop.f32.mrb[0].mxu0
  %v1287 = vadd.f32 %v1190, %v1286
  %v1288 = vpop.f32.mrb[0].mxu0
  %v1289 = vpop.f32.mrb[0].mxu0
  %v1290 = vadd.f32 %v1193, %v1289
  %v1291 = vpop.f32.mrb[0].mxu0
  %1292 = vmatprep.mubr.bf16.mxu0 %v498
  %1293 = vmatmul.mubr.bf16.gmra.mrb[0].mxu0 %v497
  %v1294 = vpop.f32.mrb[0].mxu0
  %v1295 = vadd.f32 %v1198, %v1294
  %v1296 = vpop.f32.mrb[0].mxu0
  %v1297 = vpop.f32.mrb[0].mxu0
  %v1298 = vadd.f32 %v1201, %v1297
  %v1299 = vpop.f32.mrb[0].mxu0
  %1300 = vmatprep.mubr.bf16.mxu0 %v507
  %1301 = vmatmul.mubr.bf16.gmra.mrb[0].mxu0 %v506
  %v1302 = vpop.f32.mrb[0].mxu0
  %v1303 = vadd.f32 %v1206, %v1302
  %v1304 = vpop.f32.mrb[0].mxu0
  %v1305 = vpop.f32.mrb[0].mxu0
  %v1306 = vadd.f32 %v1209, %v1305
  %v1307 = vpop.f32.mrb[0].mxu0
  %1308 = vmatprep.mubr.bf16.mxu0 %v516
  %1309 = vmatmul.mubr.bf16.gmra.mrb[0].mxu0 %v515
  %v1310 = vpop.f32.mrb[0].mxu0
  %v1311 = vadd.f32 %v1214, %v1310
  %v1312 = vpop.f32.mrb[0].mxu0
  %v1313 = vpop.f32.mrb[0].mxu0
  %v1314 = vadd.f32 %v1217, %v1313
  %v1315 = vpop.f32.mrb[0].mxu0
  %1316 = vmatprep.mubr.bf16.mxu0 %v525
  %1317 = vmatmul.mubr.bf16.gmra.mrb[0].mxu0 %v524
  %v1318 = vpop.f32.mrb[0].mxu0
  %v1319 = vadd.f32 %v1222, %v1318
  %v1320 = vpop.f32.mrb[0].mxu0
  %v1321 = vpop.f32.mrb[0].mxu0
  %v1322 = vadd.f32 %v1225, %v1321
  %v1323 = vpop.f32.mrb[0].mxu0
  %1324 = vmatprep.mubr.bf16.mxu0 %v534
  %1325 = vmatmul.mubr.bf16.gmra.mrb[0].mxu0 %v533
  %v1326 = vpop.f32.mrb[0].mxu0
  %v1327 = vadd.f32 %v1230, %v1326
  %v1328 = vpop.f32.mrb[0].mxu0
  %v1329 = vpop.f32.mrb[0].mxu0
  %v1330 = vadd.f32 %v1233, %v1329
  %v1331 = vpop.f32.mrb[0].mxu0
  %1332 = vdwg.mxu0
  %1333 = vmatprep.subr.bf16.mxu0 0
  %1334 = vmatpush1.bf16.msra.mxu0 %v946
  %1335 = vmatprep.subr.bf16.mxu0 0
  %1336 = vmatpush1.bf16.msra.mxu0 %v947
  %1337 = vmatprep.subr.bf16.mxu0 0
  %1338 = vmatpush1.bf16.msra.mxu0 %v948
  %1339 = vmatprep.subr.bf16.mxu0 0
  %1340 = vmatpush1.bf16.msra.mxu0 %v949
  %1341 = vmatprep.subr.bf16.mxu0 0
  %1342 = vmatpush1.bf16.msra.mxu0 %v950
  %1343 = vmatprep.subr.bf16.mxu0 0
  %1344 = vmatpush1.bf16.msra.mxu0 %v951
  %1345 = vmatprep.subr.bf16.mxu0 0
  %1346 = vmatpush1.bf16.msra.mxu0 %v952
  %1347 = vmatprep.subr.bf16.mxu0 0
  %1348 = vmatpush1.bf16.msra.mxu0 %v953
  %1349 = vmatprep.subr.bf16.mxu0 0
  %1350 = vmatpush1.bf16.msra.mxu0 %v954
  %1351 = vmatprep.subr.bf16.mxu0 0
  %1352 = vmatpush1.bf16.msra.mxu0 %v955
  %1353 = vmatprep.subr.bf16.mxu0 0
  %1354 = vmatpush1.bf16.msra.mxu0 %v956
  %1355 = vmatprep.subr.bf16.mxu0 0
  %1356 = vmatpush1.bf16.msra.mxu0 %v957
  %1357 = vmatprep.subr.bf16.mxu0 0
  %1358 = vmatpush1.bf16.msra.mxu0 %v958
  %1359 = vmatprep.subr.bf16.mxu0 0
  %1360 = vmatpush1.bf16.msra.mxu0 %v959
  %1361 = vmatprep.subr.bf16.mxu0 0
  %1362 = vmatpush1.bf16.msra.mxu0 %v960
  %1363 = vmatprep.subr.bf16.mxu0 0
  %1364 = vmatpush1.bf16.msra.mxu0 %v961
  %1365 = vmatprep.mubr.bf16.mxu0 %v473
  %1366 = vmatmul.mubr.bf16.gmra.mrb[0].mxu0 %v472
  %v1367 = vpop.f32.mrb[0].mxu0
  %v1368 = vadd.f32 %v1271, %v1367
  %v1369 = vpop.f32.mrb[0].mxu0
  %v1370 = vpop.f32.mrb[0].mxu0
  %v1371 = vadd.f32 %v1274, %v1370
  %v1372 = vpop.f32.mrb[0].mxu0
  %1373 = vmatprep.mubr.bf16.mxu0 %v482
  %1374 = vmatmul.mubr.bf16.gmra.mrb[0].mxu0 %v481
  %v1375 = vpop.f32.mrb[0].mxu0
  %v1376 = vadd.f32 %v1279, %v1375
  %v1377 = vpop.f32.mrb[0].mxu0
  %v1378 = vpop.f32.mrb[0].mxu0
  %v1379 = vadd.f32 %v1282, %v1378
  %v1380 = vpop.f32.mrb[0].mxu0
  %1381 = vmatprep.mubr.bf16.mxu0 %v491
  %1382 = vmatmul.mubr.bf16.gmra.mrb[0].mxu0 %v490
  %v1383 = vpop.f32.mrb[0].mxu0
  %v1384 = vadd.f32 %v1287, %v1383
  %v1385 = vpop.f32.mrb[0].mxu0
  %v1386 = vpop.f32.mrb[0].mxu0
  %v1387 = vadd.f32 %v1290, %v1386
  %v1388 = vpop.f32.mrb[0].mxu0
  %1389 = vmatprep.mubr.bf16.mxu0 %v500
  %1390 = vmatmul.mubr.bf16.gmra.mrb[0].mxu0 %v499
  %v1391 = vpop.f32.mrb[0].mxu0
  %v1392 = vadd.f32 %v1295, %v1391
  %v1393 = vpop.f32.mrb[0].mxu0
  %v1394 = vpop.f32.mrb[0].mxu0
  %v1395 = vadd.f32 %v1298, %v1394
  %v1396 = vpop.f32.mrb[0].mxu0
  %1397 = vmatprep.mubr.bf16.mxu0 %v509
  %1398 = vmatmul.mubr.bf16.gmra.mrb[0].mxu0 %v508
  %v1399 = vpop.f32.mrb[0].mxu0
  %v1400 = vadd.f32 %v1303, %v1399
  %v1401 = vpop.f32.mrb[0].mxu0
  %v1402 = vpop.f32.mrb[0].mxu0
  %v1403 = vadd.f32 %v1306, %v1402
  %v1404 = vpop.f32.mrb[0].mxu0
  %1405 = vmatprep.mubr.bf16.mxu0 %v518
  %1406 = vmatmul.mubr.bf16.gmra.mrb[0].mxu0 %v517
  %v1407 = vpop.f32.mrb[0].mxu0
  %v1408 = vadd.f32 %v1311, %v1407
  %v1409 = vpop.f32.mrb[0].mxu0
  %v1410 = vpop.f32.mrb[0].mxu0
  %v1411 = vadd.f32 %v1314, %v1410
  %v1412 = vpop.f32.mrb[0].mxu0
  %1413 = vmatprep.mubr.bf16.mxu0 %v527
  %1414 = vmatmul.mubr.bf16.gmra.mrb[0].mxu0 %v526
  %v1415 = vpop.f32.mrb[0].mxu0
  %v1416 = vadd.f32 %v1319, %v1415
  %v1417 = vpop.f32.mrb[0].mxu0
  %v1418 = vpop.f32.mrb[0].mxu0
  %v1419 = vadd.f32 %v1322, %v1418
  %v1420 = vpop.f32.mrb[0].mxu0
  %1421 = vmatprep.mubr.bf16.mxu0 %v536
  %1422 = vmatmul.mubr.bf16.gmra.mrb[0].mxu0 %v535
  %v1423 = vpop.f32.mrb[0].mxu0
  %v1424 = vadd.f32 %v1327, %v1423
  %v1425 = vpop.f32.mrb[0].mxu0
  %v1426 = vpop.f32.mrb[0].mxu0
  %v1427 = vadd.f32 %v1330, %v1426
  %v1428 = vpop.f32.mrb[0].mxu0
  %1429 = vdwg.mxu0
  %1430 = vmatprep.subr.bf16.mxu0 0
  %1431 = vmatpush1.bf16.msra.mxu0 %v962
  %1432 = vmatprep.subr.bf16.mxu0 0
  %1433 = vmatpush1.bf16.msra.mxu0 %v963
  %1434 = vmatprep.subr.bf16.mxu0 0
  %1435 = vmatpush1.bf16.msra.mxu0 %v964
  %1436 = vmatprep.subr.bf16.mxu0 0
  %1437 = vmatpush1.bf16.msra.mxu0 %v965
  %1438 = vmatprep.subr.bf16.mxu0 0
  %1439 = vmatpush1.bf16.msra.mxu0 %v966
  %1440 = vmatprep.subr.bf16.mxu0 0
  %1441 = vmatpush1.bf16.msra.mxu0 %v967
  %1442 = vmatprep.subr.bf16.mxu0 0
  %1443 = vmatpush1.bf16.msra.mxu0 %v968
  %1444 = vmatprep.subr.bf16.mxu0 0
  %1445 = vmatpush1.bf16.msra.mxu0 %v969
  %1446 = vmatprep.subr.bf16.mxu0 0
  %1447 = vmatpush1.bf16.msra.mxu0 0
  %1448 = vmatprep.subr.bf16.mxu0 0
  %1449 = vmatpush1.bf16.msra.mxu0 0
  %1450 = vmatprep.subr.bf16.mxu0 0
  %1451 = vmatpush1.bf16.msra.mxu0 0
  %1452 = vmatprep.subr.bf16.mxu0 0
  %1453 = vmatpush1.bf16.msra.mxu0 0
  %1454 = vmatprep.subr.bf16.mxu0 0
  %1455 = vmatpush1.bf16.msra.mxu0 0
  %1456 = vmatprep.subr.bf16.mxu0 0
  %1457 = vmatpush1.bf16.msra.mxu0 0
  %1458 = vmatprep.subr.bf16.mxu0 0
  %1459 = vmatpush1.bf16.msra.mxu0 0
  %1460 = vmatprep.subr.bf16.mxu0 0
  %1461 = vmatpush1.bf16.msra.mxu0 0
  %1462 = vmatprep.mubr.bf16.mxu0 0
  %1463 = vmatmul.mubr.bf16.gmra.mrb[0].mxu0 %v474
  %v1464 = vpop.f32.mrb[0].mxu0
  %v1465 = vadd.f32 %v1368, %v1464
  %v1466 = vpop.f32.mrb[0].mxu0
  %v1467 = vpop.f32.mrb[0].mxu0
  %v1468 = vadd.f32 %v1371, %v1467
  %v1469 = vpop.f32.mrb[0].mxu0
  %1470 = vmatprep.mubr.bf16.mxu0 0
  %1471 = vmatmul.mubr.bf16.gmra.mrb[0].mxu0 %v483
  %v1472 = vpop.f32.mrb[0].mxu0
  %v1473 = vadd.f32 %v1376, %v1472
  %v1474 = vpop.f32.mrb[0].mxu0
  %v1475 = vpop.f32.mrb[0].mxu0
  %v1476 = vadd.f32 %v1379, %v1475
  %v1477 = vpop.f32.mrb[0].mxu0
  %1478 = vmatprep.mubr.bf16.mxu0 0
  %1479 = vmatmul.mubr.bf16.gmra.mrb[0].mxu0 %v492
  %v1480 = vpop.f32.mrb[0].mxu0
  %v1481 = vadd.f32 %v1384, %v1480
  %v1482 = vpop.f32.mrb[0].mxu0
  %v1483 = vpop.f32.mrb[0].mxu0
  %v1484 = vadd.f32 %v1387, %v1483
  %v1485 = vpop.f32.mrb[0].mxu0
  %1486 = vmatprep.mubr.bf16.mxu0 0
  %1487 = vmatmul.mubr.bf16.gmra.mrb[0].mxu0 %v501
  %v1488 = vpop.f32.mrb[0].mxu0
  %v1489 = vadd.f32 %v1392, %v1488
  %v1490 = vpop.f32.mrb[0].mxu0
  %v1491 = vpop.f32.mrb[0].mxu0
  %v1492 = vadd.f32 %v1395, %v1491
  %v1493 = vpop.f32.mrb[0].mxu0
  %1494 = vmatprep.mubr.bf16.mxu0 0
  %1495 = vmatmul.mubr.bf16.gmra.mrb[0].mxu0 %v510
  %v1496 = vpop.f32.mrb[0].mxu0
  %v1497 = vadd.f32 %v1400, %v1496
  %v1498 = vpop.f32.mrb[0].mxu0
  %v1499 = vpop.f32.mrb[0].mxu0
  %v1500 = vadd.f32 %v1403, %v1499
  %v1501 = vpop.f32.mrb[0].mxu0
  %1502 = vmatprep.mubr.bf16.mxu0 0
  %1503 = vmatmul.mubr.bf16.gmra.mrb[0].mxu0 %v519
  %v1504 = vpop.f32.mrb[0].mxu0
  %v1505 = vadd.f32 %v1408, %v1504
  %v1506 = vpop.f32.mrb[0].mxu0
  %v1507 = vpop.f32.mrb[0].mxu0
  %v1508 = vadd.f32 %v1411, %v1507
  %v1509 = vpop.f32.mrb[0].mxu0
  %1510 = vmatprep.mubr.bf16.mxu0 0
  %1511 = vmatmul.mubr.bf16.gmra.mrb[0].mxu0 %v528
  %v1512 = vpop.f32.mrb[0].mxu0
  %v1513 = vadd.f32 %v1416, %v1512
  %v1514 = vpop.f32.mrb[0].mxu0
  %v1515 = vpop.f32.mrb[0].mxu0
  %v1516 = vadd.f32 %v1419, %v1515
  %v1517 = vpop.f32.mrb[0].mxu0
  %1518 = vmatprep.mubr.bf16.mxu0 0
  %1519 = vmatmul.mubr.bf16.gmra.mrb[0].mxu0 %v537
  %v1520 = vpop.f32.mrb[0].mxu0
  %v1521 = vadd.f32 %v1424, %v1520
  %v1522 = vpop.f32.mrb[0].mxu0
  %v1523 = vpop.f32.mrb[0].mxu0
  %v1524 = vadd.f32 %v1427, %v1523
  %v1525 = vpop.f32.mrb[0].mxu0
  %1526 = vdwg.mxu0
  %v1527 = vadd.f32 %v1465, %v1468
  %v1528 = vadd.f32 %v1527, %v1473
  %v1529 = vadd.f32 %v1528, %v1476
  %v1530 = vadd.f32 %v1529, %v1481
  %v1531 = vadd.f32 %v1530, %v1484
  %v1532 = vadd.f32 %v1531, %v1489
  %v1533 = vadd.f32 %v1532, %v1492
  %v1534 = vadd.f32 %v1533, %v1497
  %v1535 = vadd.f32 %v1534, %v1500
  %v1536 = vadd.f32 %v1535, %v1505
  %v1537 = vadd.f32 %v1536, %v1508
  %v1538 = vadd.f32 %v1537, %v1513
  %v1539 = vadd.f32 %v1538, %v1516
  %v1540 = vadd.f32 %v1539, %v1521
  %v1541 = vadd.f32 %v1540, %v1524
  %v1542 = vrot.slane %v1541, 4
  %v1543 = vadd.f32 %v1541, %v1542
  %v1544 = vrot.slane %v1543, 2
  %v1545 = vadd.f32 %v1543, %v1544
  %v1546 = vrot.slane %v1545, 1
  %v1547 = vadd.f32 %v1545, %v1546
  %v1548 = vrcp.pop 128.0
  %v1549 = vmul.f32 %v1547, %v1548
  %v1550 = vsub.f32 %v1465, %v1549
  %v1551 = vsub.f32 %v1468, %v1549
  %v1552 = vsub.f32 %v1473, %v1549
  %v1553 = vsub.f32 %v1476, %v1549
  %v1554 = vsub.f32 %v1481, %v1549
  %v1555 = vsub.f32 %v1484, %v1549
  %v1556 = vsub.f32 %v1489, %v1549
  %v1557 = vsub.f32 %v1492, %v1549
  %v1558 = vsub.f32 %v1497, %v1549
  %v1559 = vsub.f32 %v1500, %v1549
  %v1560 = vsub.f32 %v1505, %v1549
  %v1561 = vsub.f32 %v1508, %v1549
  %v1562 = vsub.f32 %v1513, %v1549
  %v1563 = vsub.f32 %v1516, %v1549
  %v1564 = vsub.f32 %v1521, %v1549
  %v1565 = vsub.f32 %v1524, %v1549
  %v1566 = vmul.f32 %v1550, %v1550
  %v1567 = vmul.f32 %v1551, %v1551
  %v1568 = vmul.f32 %v1552, %v1552
  %v1569 = vmul.f32 %v1553, %v1553
  %v1570 = vmul.f32 %v1554, %v1554
  %v1571 = vmul.f32 %v1555, %v1555
  %v1572 = vmul.f32 %v1556, %v1556
  %v1573 = vmul.f32 %v1557, %v1557
  %v1574 = vmul.f32 %v1558, %v1558
  %v1575 = vmul.f32 %v1559, %v1559
  %v1576 = vmul.f32 %v1560, %v1560
  %v1577 = vmul.f32 %v1561, %v1561
  %v1578 = vmul.f32 %v1562, %v1562
  %v1579 = vmul.f32 %v1563, %v1563
  %v1580 = vmul.f32 %v1564, %v1564
  %v1581 = vmul.f32 %v1565, %v1565
  %v1582 = vadd.f32 %v1566, %v1567
  %v1583 = vadd.f32 %v1582, %v1568
  %v1584 = vadd.f32 %v1583, %v1569
  %v1585 = vadd.f32 %v1584, %v1570
  %v1586 = vadd.f32 %v1585, %v1571
  %v1587 = vadd.f32 %v1586, %v1572
  %v1588 = vadd.f32 %v1587, %v1573
  %v1589 = vadd.f32 %v1588, %v1574
  %v1590 = vadd.f32 %v1589, %v1575
  %v1591 = vadd.f32 %v1590, %v1576
  %v1592 = vadd.f32 %v1591, %v1577
  %v1593 = vadd.f32 %v1592, %v1578
  %v1594 = vadd.f32 %v1593, %v1579
  %v1595 = vadd.f32 %v1594, %v1580
  %v1596 = vadd.f32 %v1595, %v1581
  %v1597 = vrot.slane %v1596, 4
  %v1598 = vadd.f32 %v1596, %v1597
  %v1599 = vrot.slane %v1598, 2
  %v1600 = vadd.f32 %v1598, %v1599
  %v1601 = vrot.slane %v1600, 1
  %v1602 = vadd.f32 %v1600, %v1601
  %v1603 = vmul.f32 %v1602, %v1548
  %v1604 = vld [vmem:[%s2] sm:$0x1]
  %v1605 = vadd.f32 %v1603, 1e-05
  %v1606 = vrsqrt.pop %v1605
  %v1607 = vmul.f32 %v1604, %v1606
  %v1608 = vld [vmem:[%s3] sm:$0x1]
  %v1609 = vmul.f32 %v1549, %v1607
  %v1610 = vsub.f32 %v1608, %v1609
  %v1612 = vlaneseq
  %v1613 = vshrl.u32 %v1612, 7
  %v1614 = vsub.s32 0, %v1613
  %v1615 = vrot.slane %v1607, %v1614
  %v1617 = vmul.f32 %v1465, %v1615
  %v1618 = vmul.f32 %v1468, %v1615
  %v1619 = vmul.f32 %v1473, %v1615
  %v1620 = vmul.f32 %v1476, %v1615
  %v1621 = vmul.f32 %v1481, %v1615
  %v1622 = vmul.f32 %v1484, %v1615
  %v1623 = vmul.f32 %v1489, %v1615
  %v1624 = vmul.f32 %v1492, %v1615
  %v1625 = vmul.f32 %v1497, %v1615
  %v1626 = vmul.f32 %v1500, %v1615
  %v1627 = vmul.f32 %v1505, %v1615
  %v1628 = vmul.f32 %v1508, %v1615
  %v1629 = vmul.f32 %v1513, %v1615
  %v1630 = vmul.f32 %v1516, %v1615
  %v1631 = vmul.f32 %v1521, %v1615
  %v1632 = vmul.f32 %v1524, %v1615
  %v1634 = vlaneseq
  %v1635 = vshrl.u32 %v1634, 7
  %v1636 = vsub.s32 0, %v1635
  %v1637 = vrot.slane %v1610, %v1636
  %v1639 = vadd.f32 %v1617, %v1637
  %v1640 = vadd.f32 %v1618, %v1637
  %v1641 = vadd.f32 %v1619, %v1637
  %v1642 = vadd.f32 %v1620, %v1637
  %v1643 = vadd.f32 %v1621, %v1637
  %v1644 = vadd.f32 %v1622, %v1637
  %v1645 = vadd.f32 %v1623, %v1637
  %v1646 = vadd.f32 %v1624, %v1637
  %v1647 = vadd.f32 %v1625, %v1637
  %v1648 = vadd.f32 %v1626, %v1637
  %v1649 = vadd.f32 %v1627, %v1637
  %v1650 = vadd.f32 %v1628, %v1637
  %v1651 = vadd.f32 %v1629, %v1637
  %v1652 = vadd.f32 %v1630, %v1637
  %v1653 = vadd.f32 %v1631, %v1637
  %v1654 = vadd.f32 %v1632, %v1637
  %vm1655 = vcmp.ge.f32.partialorder %v1639, 0.0
  %vm1656 = vcmp.ge.f32.partialorder %v1640, 0.0
  %vm1657 = vcmp.ge.f32.partialorder %v1641, 0.0
  %vm1658 = vcmp.ge.f32.partialorder %v1642, 0.0
  %vm1659 = vcmp.ge.f32.partialorder %v1643, 0.0
  %vm1660 = vcmp.ge.f32.partialorder %v1644, 0.0
  %vm1661 = vcmp.ge.f32.partialorder %v1645, 0.0
  %vm1662 = vcmp.ge.f32.partialorder %v1646, 0.0
  %vm1663 = vcmp.ge.f32.partialorder %v1647, 0.0
  %vm1664 = vcmp.ge.f32.partialorder %v1648, 0.0
  %vm1665 = vcmp.ge.f32.partialorder %v1649, 0.0
  %vm1666 = vcmp.ge.f32.partialorder %v1650, 0.0
  %vm1667 = vcmp.ge.f32.partialorder %v1651, 0.0
  %vm1668 = vcmp.ge.f32.partialorder %v1652, 0.0
  %vm1669 = vcmp.ge.f32.partialorder %v1653, 0.0
  %vm1670 = vcmp.ge.f32.partialorder %v1654, 0.0
  %v1671 = vmul.f32 %v1639, 0.2
  %v1672 = vmul.f32 %v1640, 0.2
  %v1673 = vmul.f32 %v1641, 0.2
  %v1674 = vmul.f32 %v1642, 0.2
  %v1675 = vmul.f32 %v1643, 0.2
  %v1676 = vmul.f32 %v1644, 0.2
  %v1677 = vmul.f32 %v1645, 0.2
  %v1678 = vmul.f32 %v1646, 0.2
  %v1679 = vmul.f32 %v1647, 0.2
  %v1680 = vmul.f32 %v1648, 0.2
  %v1681 = vmul.f32 %v1649, 0.2
  %v1682 = vmul.f32 %v1650, 0.2
  %v1683 = vmul.f32 %v1651, 0.2
  %v1684 = vmul.f32 %v1652, 0.2
  %v1685 = vmul.f32 %v1653, 0.2
  %v1686 = vmul.f32 %v1654, 0.2
  %v1687 = vsel %vm1655, %v1639, %v1671
  %v1688 = vsel %vm1656, %v1640, %v1672
  %v1689 = vsel %vm1657, %v1641, %v1673
  %v1690 = vsel %vm1658, %v1642, %v1674
  %v1691 = vsel %vm1659, %v1643, %v1675
  %v1692 = vsel %vm1660, %v1644, %v1676
  %v1693 = vsel %vm1661, %v1645, %v1677
  %v1694 = vsel %vm1662, %v1646, %v1678
  %v1695 = vsel %vm1663, %v1647, %v1679
  %v1696 = vsel %vm1664, %v1648, %v1680
  %v1697 = vsel %vm1665, %v1649, %v1681
  %v1698 = vsel %vm1666, %v1650, %v1682
  %v1699 = vsel %vm1667, %v1651, %v1683
  %v1700 = vsel %vm1668, %v1652, %v1684
  %v1701 = vsel %vm1669, %v1653, %v1685
  %v1702 = vsel %vm1670, %v1654, %v1686
  %1703 = vst [vmem:[%s4] sm:$0xff] %v1687
  %1704 = vst [vmem:[%s4 + $0x8] sm:$0xff] %v1688
  %1705 = vst [vmem:[%s4 + $0x10] sm:$0xff] %v1689
  %1706 = vst [vmem:[%s4 + $0x18] sm:$0xff] %v1690
  %1707 = vst [vmem:[%s4 + $0x20] sm:$0xff] %v1691
  %1708 = vst [vmem:[%s4 + $0x28] sm:$0xff] %v1692
  %1709 = vst [vmem:[%s4 + $0x30] sm:$0xff] %v1693
  %1710 = vst [vmem:[%s4 + $0x38] sm:$0xff] %v1694
  %1711 = vst [vmem:[%s4 + $0x40] sm:$0xff] %v1695
  %1712 = vst [vmem:[%s4 + $0x48] sm:$0xff] %v1696
  %1713 = vst [vmem:[%s4 + $0x50] sm:$0xff] %v1697
  %1714 = vst [vmem:[%s4 + $0x58] sm:$0xff] %v1698
  %1715 = vst [vmem:[%s4 + $0x60] sm:$0xff] %v1699
  %1716 = vst [vmem:[%s4 + $0x68] sm:$0xff] %v1700
  %1717 = vst [vmem:[%s4 + $0x70] sm:$0xff] %v1701
  %1718 = vst [vmem:[%s4 + $0x78] sm:$0xff] %v1702
  // Predicated region
  $region18: #{sar_encoder_forward.5} parent=0 // pred_check
    _
  $region19: #{sar_encoder_forward.5} parent=0 // pred_check_branch
    %1720 = sbr.rel (0) target = $region21
  $region20: #{sar_encoder_forward.5} parent=0 // pred_region
    _
  $region21: #{sar_encoder_forward.5} parent=0 // pred_fallthru
    _
  // Predicated region
  $region22: #{sar_encoder_forward.5} parent=0 // pred_check
    _
  $region23: #{sar_encoder_forward.5} parent=0 // pred_check_branch
    %1722 = sbr.rel (0) target = $region25
  $region24: #{sar_encoder_forward.5} parent=0 // pred_region
    _
  $region25: #{sar_encoder_forward.5} parent=0 // pred_fallthru
    _

// kernel: sar_encoder_forward.6
$region0: #{sar_encoder_forward.6}
  #allocation0 [shape = 'u32[]', space=smem, size = 0x4, offset = 0x4, fixed_abs, tag = 'smem constant byte address 0x4 - core index']
  #allocation1 [shape = 'u32[144,128]{1,0:T(1,128)}', space=vmem, size = 0x12000, scoped, tag = 'internal scratch']
  %s0 = inlined_call_operand.vmem [shape: bf16[32,1152], index: 0, kind: input, shape index: {}]
  %s1 = inlined_call_operand.vmem [shape: bf16[1152,256], index: 1, kind: input, shape index: {}]
  %s2 = inlined_call_operand.vmem [shape: f32[1,256], index: 2, kind: input, shape index: {}]
  %s3 = inlined_call_operand.vmem [shape: f32[1,256], index: 3, kind: input, shape index: {}]
  %s4 = inlined_call_operand.vmem [shape: f32[32,256], index: 4, kind: output, shape index: {}]
  %s5 = sld [smem:[#allocation0]]
  $region26: #{sar_encoder_forward.6} parent=0
    _
  %s7 = ssub.s32 1, %s5
  %s8 = scalar_select 0, %s7, %s5
  // Predicated region
  $region2: #{sar_encoder_forward.6} parent=0 // pred_check
    _
  $region3: #{sar_encoder_forward.6} parent=0 // pred_check_branch
    %10 = sbr.rel (0) target = $region5
  $region4: #{sar_encoder_forward.6} parent=0 // pred_region
    _
  $region5: #{sar_encoder_forward.6} parent=0 // pred_fallthru
    _
  // Predicated region
  $region6: #{sar_encoder_forward.6} parent=0 // pred_check
    _
  $region7: #{sar_encoder_forward.6} parent=0 // pred_check_branch
    %12 = sbr.rel (0) target = $region9
  $region8: #{sar_encoder_forward.6} parent=0 // pred_region
    _
  $region9: #{sar_encoder_forward.6} parent=0 // pred_fallthru
    _
  // Predicated region
  $region10: #{sar_encoder_forward.6} parent=0 // pred_check
    _
  $region11: #{sar_encoder_forward.6} parent=0 // pred_check_branch
    %14 = sbr.rel (0) target = $region13
  $region12: #{sar_encoder_forward.6} parent=0 // pred_region
    _
  $region13: #{sar_encoder_forward.6} parent=0 // pred_fallthru
    _
  // Predicated region
  $region14: #{sar_encoder_forward.6} parent=0 // pred_check
    _
  $region15: #{sar_encoder_forward.6} parent=0 // pred_check_branch
    %16 = sbr.rel (0) target = $region17
  $region16: #{sar_encoder_forward.6} parent=0 // pred_region
    _
  $region17: #{sar_encoder_forward.6} parent=0 // pred_fallthru
    _
  %v18 = vld [vmem:[%s0] sm:$0xff]
  %v19 = vld [vmem:[%s0 + $0x8] sm:$0xff]
  %v20 = vld [vmem:[%s0 + $0x10] sm:$0xff]
  %v21 = vld [vmem:[%s0 + $0x18] sm:$0xff]
  %v22 = vld [vmem:[%s0 + $0x20] sm:$0xf]
  %v23 = vld [vmem:[%s0 + $0x24] sm:$0xff]
  %v24 = vld [vmem:[%s0 + $0x2c] sm:$0xff]
  %v25 = vld [vmem:[%s0 + $0x34] sm:$0xff]
  %v26 = vld [vmem:[%s0 + $0x3c] sm:$0xff]
  %v27 = vld [vmem:[%s0 + $0x44] sm:$0xf]
  %v28 = vld [vmem:[%s0 + $0x48] sm:$0xff]
  %v29 = vld [vmem:[%s0 + $0x50] sm:$0xff]
  %v30 = vld [vmem:[%s0 + $0x58] sm:$0xff]
  %v31 = vld [vmem:[%s0 + $0x60] sm:$0xff]
  %v32 = vld [vmem:[%s0 + $0x68] sm:$0xf]
  %v33 = vld [vmem:[%s0 + $0x6c] sm:$0xff]
  %v34 = vld [vmem:[%s0 + $0x74] sm:$0xff]
  %v35 = vld [vmem:[%s0 + $0x7c] sm:$0xff]
  %v36 = vld [vmem:[%s0 + $0x84] sm:$0xff]
  %v37 = vld [vmem:[%s0 + $0x8c] sm:$0xf]
  %v38 = vld [vmem:[%s1] sm:$0xff]
  %v39 = vld [vmem:[%s1 + $0x8] sm:$0xff]
  %v40 = vld [vmem:[%s1 + $0x10] sm:$0xff]
  %v41 = vld [vmem:[%s1 + $0x18] sm:$0xff]
  %v42 = vld [vmem:[%s1 + $0x20] sm:$0xff]
  %v43 = vld [vmem:[%s1 + $0x28] sm:$0xff]
  %v44 = vld [vmem:[%s1 + $0x30] sm:$0xff]
  %v45 = vld [vmem:[%s1 + $0x38] sm:$0xff]
  %v46 = vld [vmem:[%s1 + $0x40] sm:$0xff]
  %v47 = vld [vmem:[%s1 + $0x48] sm:$0xff]
  %v48 = vld [vmem:[%s1 + $0x50] sm:$0xff]
  %v49 = vld [vmem:[%s1 + $0x58] sm:$0xff]
  %v50 = vld [vmem:[%s1 + $0x60] sm:$0xff]
  %v51 = vld [vmem:[%s1 + $0x68] sm:$0xff]
  %v52 = vld [vmem:[%s1 + $0x70] sm:$0xff]
  %v53 = vld [vmem:[%s1 + $0x78] sm:$0xff]
  %v54 = vld [vmem:[%s1 + $0x80] sm:$0xff]
  %v55 = vld [vmem:[%s1 + $0x88] sm:$0xff]
  %v56 = vld [vmem:[%s1 + $0x90] sm:$0xff]
  %v57 = vld [vmem:[%s1 + $0x98] sm:$0xff]
  %v58 = vld [vmem:[%s1 + $0xa0] sm:$0xff]
  %v59 = vld [vmem:[%s1 + $0xa8] sm:$0xff]
  %v60 = vld [vmem:[%s1 + $0xb0] sm:$0xff]
  %v61 = vld [vmem:[%s1 + $0xb8] sm:$0xff]
  %v62 = vld [vmem:[%s1 + $0xc0] sm:$0xff]
  %v63 = vld [vmem:[%s1 + $0xc8] sm:$0xff]
  %v64 = vld [vmem:[%s1 + $0xd0] sm:$0xff]
  %v65 = vld [vmem:[%s1 + $0xd8] sm:$0xff]
  %v66 = vld [vmem:[%s1 + $0xe0] sm:$0xff]
  %v67 = vld [vmem:[%s1 + $0xe8] sm:$0xff]
  %v68 = vld [vmem:[%s1 + $0xf0] sm:$0xff]
  %v69 = vld [vmem:[%s1 + $0xf8] sm:$0xff]
  %v70 = vld [vmem:[%s1 + $0x100] sm:$0xff]
  %v71 = vld [vmem:[%s1 + $0x108] sm:$0xff]
  %v72 = vld [vmem:[%s1 + $0x110] sm:$0xff]
  %v73 = vld [vmem:[%s1 + $0x118] sm:$0xff]
  %v74 = vld [vmem:[%s1 + $0x120] sm:$0xff]
  %v75 = vld [vmem:[%s1 + $0x128] sm:$0xff]
  %v76 = vld [vmem:[%s1 + $0x130] sm:$0xff]
  %v77 = vld [vmem:[%s1 + $0x138] sm:$0xff]
  %v78 = vld [vmem:[%s1 + $0x140] sm:$0xff]
  %v79 = vld [vmem:[%s1 + $0x148] sm:$0xff]
  %v80 = vld [vmem:[%s1 + $0x150] sm:$0xff]
  %v81 = vld [vmem:[%s1 + $0x158] sm:$0xff]
  %v82 = vld [vmem:[%s1 + $0x160] sm:$0xff]
  %v83 = vld [vmem:[%s1 + $0x168] sm:$0xff]
  %v84 = vld [vmem:[%s1 + $0x170] sm:$0xff]
  %v85 = vld [vmem:[%s1 + $0x178] sm:$0xff]
  %v86 = vld [vmem:[%s1 + $0x180] sm:$0xff]
  %v87 = vld [vmem:[%s1 + $0x188] sm:$0xff]
  %v88 = vld [vmem:[%s1 + $0x190] sm:$0xff]
  %v89 = vld [vmem:[%s1 + $0x198] sm:$0xff]
  %v90 = vld [vmem:[%s1 + $0x1a0] sm:$0xff]
  %v91 = vld [vmem:[%s1 + $0x1a8] sm:$0xff]
  %v92 = vld [vmem:[%s1 + $0x1b0] sm:$0xff]
  %v93 = vld [vmem:[%s1 + $0x1b8] sm:$0xff]
  %v94 = vld [vmem:[%s1 + $0x1c0] sm:$0xff]
  %v95 = vld [vmem:[%s1 + $0x1c8] sm:$0xff]
  %v96 = vld [vmem:[%s1 + $0x1d0] sm:$0xff]
  %v97 = vld [vmem:[%s1 + $0x1d8] sm:$0xff]
  %v98 = vld [vmem:[%s1 + $0x1e0] sm:$0xff]
  %v99 = vld [vmem:[%s1 + $0x1e8] sm:$0xff]
  %v100 = vld [vmem:[%s1 + $0x1f0] sm:$0xff]
  %v101 = vld [vmem:[%s1 + $0x1f8] sm:$0xff]
  %v102 = vld [vmem:[%s1 + $0x200] sm:$0xff]
  %v103 = vld [vmem:[%s1 + $0x208] sm:$0xff]
  %v104 = vld [vmem:[%s1 + $0x210] sm:$0xff]
  %v105 = vld [vmem:[%s1 + $0x218] sm:$0xff]
  %v106 = vld [vmem:[%s1 + $0x220] sm:$0xff]
  %v107 = vld [vmem:[%s1 + $0x228] sm:$0xff]
  %v108 = vld [vmem:[%s1 + $0x230] sm:$0xff]
  %v109 = vld [vmem:[%s1 + $0x238] sm:$0xff]
  %v110 = vld [vmem:[%s1 + $0x240] sm:$0xff]
  %v111 = vld [vmem:[%s1 + $0x248] sm:$0xff]
  %v112 = vld [vmem:[%s1 + $0x250] sm:$0xff]
  %v113 = vld [vmem:[%s1 + $0x258] sm:$0xff]
  %v114 = vld [vmem:[%s1 + $0x260] sm:$0xff]
  %v115 = vld [vmem:[%s1 + $0x268] sm:$0xff]
  %v116 = vld [vmem:[%s1 + $0x270] sm:$0xff]
  %v117 = vld [vmem:[%s1 + $0x278] sm:$0xff]
  %v118 = vld [vmem:[%s1 + $0x280] sm:$0xff]
  %v119 = vld [vmem:[%s1 + $0x288] sm:$0xff]
  %v120 = vld [vmem:[%s1 + $0x290] sm:$0xff]
  %v121 = vld [vmem:[%s1 + $0x298] sm:$0xff]
  %v122 = vld [vmem:[%s1 + $0x2a0] sm:$0xff]
  %v123 = vld [vmem:[%s1 + $0x2a8] sm:$0xff]
  %v124 = vld [vmem:[%s1 + $0x2b0] sm:$0xff]
  %v125 = vld [vmem:[%s1 + $0x2b8] sm:$0xff]
  %v126 = vld [vmem:[%s1 + $0x2c0] sm:$0xff]
  %v127 = vld [vmem:[%s1 + $0x2c8] sm:$0xff]
  %v128 = vld [vmem:[%s1 + $0x2d0] sm:$0xff]
  %v129 = vld [vmem:[%s1 + $0x2d8] sm:$0xff]
  %v130 = vld [vmem:[%s1 + $0x2e0] sm:$0xff]
  %v131 = vld [vmem:[%s1 + $0x2e8] sm:$0xff]
  %v132 = vld [vmem:[%s1 + $0x2f0] sm:$0xff]
  %v133 = vld [vmem:[%s1 + $0x2f8] sm:$0xff]
  %v134 = vld [vmem:[%s1 + $0x300] sm:$0xff]
  %v135 = vld [vmem:[%s1 + $0x308] sm:$0xff]
  %v136 = vld [vmem:[%s1 + $0x310] sm:$0xff]
  %v137 = vld [vmem:[%s1 + $0x318] sm:$0xff]
  %v138 = vld [vmem:[%s1 + $0x320] sm:$0xff]
  %v139 = vld [vmem:[%s1 + $0x328] sm:$0xff]
  %v140 = vld [vmem:[%s1 + $0x330] sm:$0xff]
  %v141 = vld [vmem:[%s1 + $0x338] sm:$0xff]
  %v142 = vld [vmem:[%s1 + $0x340] sm:$0xff]
  %v143 = vld [vmem:[%s1 + $0x348] sm:$0xff]
  %v144 = vld [vmem:[%s1 + $0x350] sm:$0xff]
  %v145 = vld [vmem:[%s1 + $0x358] sm:$0xff]
  %v146 = vld [vmem:[%s1 + $0x360] sm:$0xff]
  %v147 = vld [vmem:[%s1 + $0x368] sm:$0xff]
  %v148 = vld [vmem:[%s1 + $0x370] sm:$0xff]
  %v149 = vld [vmem:[%s1 + $0x378] sm:$0xff]
  %v150 = vld [vmem:[%s1 + $0x380] sm:$0xff]
  %v151 = vld [vmem:[%s1 + $0x388] sm:$0xff]
  %v152 = vld [vmem:[%s1 + $0x390] sm:$0xff]
  %v153 = vld [vmem:[%s1 + $0x398] sm:$0xff]
  %v154 = vld [vmem:[%s1 + $0x3a0] sm:$0xff]
  %v155 = vld [vmem:[%s1 + $0x3a8] sm:$0xff]
  %v156 = vld [vmem:[%s1 + $0x3b0] sm:$0xff]
  %v157 = vld [vmem:[%s1 + $0x3b8] sm:$0xff]
  %v158 = vld [vmem:[%s1 + $0x3c0] sm:$0xff]
  %v159 = vld [vmem:[%s1 + $0x3c8] sm:$0xff]
  %v160 = vld [vmem:[%s1 + $0x3d0] sm:$0xff]
  %v161 = vld [vmem:[%s1 + $0x3d8] sm:$0xff]
  %v162 = vld [vmem:[%s1 + $0x3e0] sm:$0xff]
  %v163 = vld [vmem:[%s1 + $0x3e8] sm:$0xff]
  %v164 = vld [vmem:[%s1 + $0x3f0] sm:$0xff]
  %v165 = vld [vmem:[%s1 + $0x3f8] sm:$0xff]
  %v166 = vld [vmem:[%s1 + $0x400] sm:$0xff]
  %v167 = vld [vmem:[%s1 + $0x408] sm:$0xff]
  %v168 = vld [vmem:[%s1 + $0x410] sm:$0xff]
  %v169 = vld [vmem:[%s1 + $0x418] sm:$0xff]
  %v170 = vld [vmem:[%s1 + $0x420] sm:$0xff]
  %v171 = vld [vmem:[%s1 + $0x428] sm:$0xff]
  %v172 = vld [vmem:[%s1 + $0x430] sm:$0xff]
  %v173 = vld [vmem:[%s1 + $0x438] sm:$0xff]
  %v174 = vld [vmem:[%s1 + $0x440] sm:$0xff]
  %v175 = vld [vmem:[%s1 + $0x448] sm:$0xff]
  %v176 = vld [vmem:[%s1 + $0x450] sm:$0xff]
  %v177 = vld [vmem:[%s1 + $0x458] sm:$0xff]
  %v178 = vld [vmem:[%s1 + $0x460] sm:$0xff]
  %v179 = vld [vmem:[%s1 + $0x468] sm:$0xff]
  %v180 = vld [vmem:[%s1 + $0x470] sm:$0xff]
  %v181 = vld [vmem:[%s1 + $0x478] sm:$0xff]
  %v202 = vunpack.c.l.b16 %v18
  %v203 = vunpack.c.h.b16 %v18
  %v204 = vunpack.c.l.b16 %v19
  %v205 = vunpack.c.h.b16 %v19
  %v206 = vunpack.c.l.b16 %v20
  %v207 = vunpack.c.h.b16 %v20
  %v208 = vunpack.c.l.b16 %v21
  %v209 = vunpack.c.h.b16 %v21
  %v210 = vunpack.c.l.b16 %v22
  %v211 = vunpack.c.l.b16 %v23
  %v212 = vunpack.c.h.b16 %v23
  %v213 = vunpack.c.l.b16 %v24
  %v214 = vunpack.c.h.b16 %v24
  %v215 = vunpack.c.l.b16 %v25
  %v216 = vunpack.c.h.b16 %v25
  %v217 = vunpack.c.l.b16 %v26
  %v218 = vunpack.c.h.b16 %v26
  %v219 = vunpack.c.l.b16 %v27
  %v220 = vunpack.c.l.b16 %v28
  %v221 = vunpack.c.h.b16 %v28
  %v222 = vunpack.c.l.b16 %v29
  %v223 = vunpack.c.h.b16 %v29
  %v224 = vunpack.c.l.b16 %v30
  %v225 = vunpack.c.h.b16 %v30
  %v226 = vunpack.c.l.b16 %v31
  %v227 = vunpack.c.h.b16 %v31
  %v228 = vunpack.c.l.b16 %v32
  %v229 = vunpack.c.l.b16 %v33
  %v230 = vunpack.c.h.b16 %v33
  %v231 = vunpack.c.l.b16 %v34
  %v232 = vunpack.c.h.b16 %v34
  %v233 = vunpack.c.l.b16 %v35
  %v234 = vunpack.c.h.b16 %v35
  %v235 = vunpack.c.l.b16 %v36
  %v236 = vunpack.c.h.b16 %v36
  %v237 = vunpack.c.l.b16 %v37
  %v238 = vpack.c.b16 %v211, %v202
  %v239 = vpack.c.b16 %v212, %v203
  %v240 = vpack.c.b16 %v213, %v204
  %v241 = vpack.c.b16 %v214, %v205
  %v242 = vpack.c.b16 %v215, %v206
  %v243 = vpack.c.b16 %v216, %v207
  %v244 = vpack.c.b16 %v217, %v208
  %v245 = vpack.c.b16 %v218, %v209
  %v246 = vpack.c.b16 %v219, %v210
  %v247 = vpack.c.b16 %v229, %v220
  %v248 = vpack.c.b16 %v230, %v221
  %v249 = vpack.c.b16 %v231, %v222
  %v250 = vpack.c.b16 %v232, %v223
  %v251 = vpack.c.b16 %v233, %v224
  %v252 = vpack.c.b16 %v234, %v225
  %v253 = vpack.c.b16 %v235, %v226
  %v254 = vpack.c.b16 %v236, %v227
  %v255 = vpack.c.b16 %v237, %v228
  %v418 = vunpack.c.l.b16 %v38
  %v419 = vunpack.c.h.b16 %v38
  %v420 = vunpack.c.l.b16 %v39
  %v421 = vunpack.c.h.b16 %v39
  %v422 = vunpack.c.l.b16 %v40
  %v423 = vunpack.c.h.b16 %v40
  %v424 = vunpack.c.l.b16 %v41
  %v425 = vunpack.c.h.b16 %v41
  %v426 = vunpack.c.l.b16 %v42
  %v427 = vunpack.c.h.b16 %v42
  %v428 = vunpack.c.l.b16 %v43
  %v429 = vunpack.c.h.b16 %v43
  %v430 = vunpack.c.l.b16 %v44
  %v431 = vunpack.c.h.b16 %v44
  %v432 = vunpack.c.l.b16 %v45
  %v433 = vunpack.c.h.b16 %v45
  %v434 = vunpack.c.l.b16 %v46
  %v435 = vunpack.c.h.b16 %v46
  %v436 = vunpack.c.l.b16 %v47
  %v437 = vunpack.c.h.b16 %v47
  %v438 = vunpack.c.l.b16 %v48
  %v439 = vunpack.c.h.b16 %v48
  %v440 = vunpack.c.l.b16 %v49
  %v441 = vunpack.c.h.b16 %v49
  %v442 = vunpack.c.l.b16 %v50
  %v443 = vunpack.c.h.b16 %v50
  %v444 = vunpack.c.l.b16 %v51
  %v445 = vunpack.c.h.b16 %v51
  %v446 = vunpack.c.l.b16 %v52
  %v447 = vunpack.c.h.b16 %v52
  %v448 = vunpack.c.l.b16 %v53
  %v449 = vunpack.c.h.b16 %v53
  %v450 = vunpack.c.l.b16 %v54
  %v451 = vunpack.c.h.b16 %v54
  %v452 = vunpack.c.l.b16 %v55
  %v453 = vunpack.c.h.b16 %v55
  %v454 = vunpack.c.l.b16 %v56
  %v455 = vunpack.c.h.b16 %v56
  %v456 = vunpack.c.l.b16 %v57
  %v457 = vunpack.c.h.b16 %v57
  %v458 = vunpack.c.l.b16 %v58
  %v459 = vunpack.c.h.b16 %v58
  %v460 = vunpack.c.l.b16 %v59
  %v461 = vunpack.c.h.b16 %v59
  %v462 = vunpack.c.l.b16 %v60
  %v463 = vunpack.c.h.b16 %v60
  %v464 = vunpack.c.l.b16 %v61
  %v465 = vunpack.c.h.b16 %v61
  %v466 = vunpack.c.l.b16 %v62
  %v467 = vunpack.c.h.b16 %v62
  %v468 = vunpack.c.l.b16 %v63
  %v469 = vunpack.c.h.b16 %v63
  %v470 = vunpack.c.l.b16 %v64
  %v471 = vunpack.c.h.b16 %v64
  %v472 = vunpack.c.l.b16 %v65
  %v473 = vunpack.c.h.b16 %v65
  %v474 = vunpack.c.l.b16 %v66
  %v475 = vunpack.c.h.b16 %v66
  %v476 = vunpack.c.l.b16 %v67
  %v477 = vunpack.c.h.b16 %v67
  %v478 = vunpack.c.l.b16 %v68
  %v479 = vunpack.c.h.b16 %v68
  %v480 = vunpack.c.l.b16 %v69
  %v481 = vunpack.c.h.b16 %v69
  %v482 = vunpack.c.l.b16 %v70
  %v483 = vunpack.c.h.b16 %v70
  %v484 = vunpack.c.l.b16 %v71
  %v485 = vunpack.c.h.b16 %v71
  %v486 = vunpack.c.l.b16 %v72
  %v487 = vunpack.c.h.b16 %v72
  %v488 = vunpack.c.l.b16 %v73
  %v489 = vunpack.c.h.b16 %v73
  %v490 = vunpack.c.l.b16 %v74
  %v491 = vunpack.c.h.b16 %v74
  %v492 = vunpack.c.l.b16 %v75
  %v493 = vunpack.c.h.b16 %v75
  %v494 = vunpack.c.l.b16 %v76
  %v495 = vunpack.c.h.b16 %v76
  %v496 = vunpack.c.l.b16 %v77
  %v497 = vunpack.c.h.b16 %v77
  %v498 = vunpack.c.l.b16 %v78
  %v499 = vunpack.c.h.b16 %v78
  %v500 = vunpack.c.l.b16 %v79
  %v501 = vunpack.c.h.b16 %v79
  %v502 = vunpack.c.l.b16 %v80
  %v503 = vunpack.c.h.b16 %v80
  %v504 = vunpack.c.l.b16 %v81
  %v505 = vunpack.c.h.b16 %v81
  %v506 = vunpack.c.l.b16 %v82
  %v507 = vunpack.c.h.b16 %v82
  %v508 = vunpack.c.l.b16 %v83
  %v509 = vunpack.c.h.b16 %v83
  %v510 = vunpack.c.l.b16 %v84
  %v511 = vunpack.c.h.b16 %v84
  %v512 = vunpack.c.l.b16 %v85
  %v513 = vunpack.c.h.b16 %v85
  %v514 = vunpack.c.l.b16 %v86
  %v515 = vunpack.c.h.b16 %v86
  %v516 = vunpack.c.l.b16 %v87
  %v517 = vunpack.c.h.b16 %v87
  %v518 = vunpack.c.l.b16 %v88
  %v519 = vunpack.c.h.b16 %v88
  %v520 = vunpack.c.l.b16 %v89
  %v521 = vunpack.c.h.b16 %v89
  %v522 = vunpack.c.l.b16 %v90
  %v523 = vunpack.c.h.b16 %v90
  %v524 = vunpack.c.l.b16 %v91
  %v525 = vunpack.c.h.b16 %v91
  %v526 = vunpack.c.l.b16 %v92
  %v527 = vunpack.c.h.b16 %v92
  %v528 = vunpack.c.l.b16 %v93
  %v529 = vunpack.c.h.b16 %v93
  %v530 = vunpack.c.l.b16 %v94
  %v531 = vunpack.c.h.b16 %v94
  %v532 = vunpack.c.l.b16 %v95
  %v533 = vunpack.c.h.b16 %v95
  %v534 = vunpack.c.l.b16 %v96
  %v535 = vunpack.c.h.b16 %v96
  %v536 = vunpack.c.l.b16 %v97
  %v537 = vunpack.c.h.b16 %v97
  %v538 = vunpack.c.l.b16 %v98
  %v539 = vunpack.c.h.b16 %v98
  %v540 = vunpack.c.l.b16 %v99
  %v541 = vunpack.c.h.b16 %v99
  %v542 = vunpack.c.l.b16 %v100
  %v543 = vunpack.c.h.b16 %v100
  %v544 = vunpack.c.l.b16 %v101
  %v545 = vunpack.c.h.b16 %v101
  %v546 = vunpack.c.l.b16 %v102
  %v547 = vunpack.c.h.b16 %v102
  %v548 = vunpack.c.l.b16 %v103
  %v549 = vunpack.c.h.b16 %v103
  %v550 = vunpack.c.l.b16 %v104
  %v551 = vunpack.c.h.b16 %v104
  %v552 = vunpack.c.l.b16 %v105
  %v553 = vunpack.c.h.b16 %v105
  %v554 = vunpack.c.l.b16 %v106
  %v555 = vunpack.c.h.b16 %v106
  %v556 = vunpack.c.l.b16 %v107
  %v557 = vunpack.c.h.b16 %v107
  %v558 = vunpack.c.l.b16 %v108
  %v559 = vunpack.c.h.b16 %v108
  %v560 = vunpack.c.l.b16 %v109
  %v561 = vunpack.c.h.b16 %v109
  %v562 = vunpack.c.l.b16 %v110
  %v563 = vunpack.c.h.b16 %v110
  %v564 = vunpack.c.l.b16 %v111
  %v565 = vunpack.c.h.b16 %v111
  %v566 = vunpack.c.l.b16 %v112
  %v567 = vunpack.c.h.b16 %v112
  %v568 = vunpack.c.l.b16 %v113
  %v569 = vunpack.c.h.b16 %v113
  %v570 = vunpack.c.l.b16 %v114
  %v571 = vunpack.c.h.b16 %v114
  %v572 = vunpack.c.l.b16 %v115
  %v573 = vunpack.c.h.b16 %v115
  %v574 = vunpack.c.l.b16 %v116
  %v575 = vunpack.c.h.b16 %v116
  %v576 = vunpack.c.l.b16 %v117
  %v577 = vunpack.c.h.b16 %v117
  %v578 = vunpack.c.l.b16 %v118
  %v579 = vunpack.c.h.b16 %v118
  %v580 = vunpack.c.l.b16 %v119
  %v581 = vunpack.c.h.b16 %v119
  %v582 = vunpack.c.l.b16 %v120
  %v583 = vunpack.c.h.b16 %v120
  %v584 = vunpack.c.l.b16 %v121
  %v585 = vunpack.c.h.b16 %v121
  %v586 = vunpack.c.l.b16 %v122
  %v587 = vunpack.c.h.b16 %v122
  %v588 = vunpack.c.l.b16 %v123
  %v589 = vunpack.c.h.b16 %v123
  %v590 = vunpack.c.l.b16 %v124
  %v591 = vunpack.c.h.b16 %v124
  %v592 = vunpack.c.l.b16 %v125
  %v593 = vunpack.c.h.b16 %v125
  %v594 = vunpack.c.l.b16 %v126
  %v595 = vunpack.c.h.b16 %v126
  %v596 = vunpack.c.l.b16 %v127
  %v597 = vunpack.c.h.b16 %v127
  %v598 = vunpack.c.l.b16 %v128
  %v599 = vunpack.c.h.b16 %v128
  %v600 = vunpack.c.l.b16 %v129
  %v601 = vunpack.c.h.b16 %v129
  %v602 = vunpack.c.l.b16 %v130
  %v603 = vunpack.c.h.b16 %v130
  %v604 = vunpack.c.l.b16 %v131
  %v605 = vunpack.c.h.b16 %v131
  %v606 = vunpack.c.l.b16 %v132
  %v607 = vunpack.c.h.b16 %v132
  %v608 = vunpack.c.l.b16 %v133
  %v609 = vunpack.c.h.b16 %v133
  %v610 = vunpack.c.l.b16 %v134
  %v611 = vunpack.c.h.b16 %v134
  %v612 = vunpack.c.l.b16 %v135
  %v613 = vunpack.c.h.b16 %v135
  %v614 = vunpack.c.l.b16 %v136
  %v615 = vunpack.c.h.b16 %v136
  %v616 = vunpack.c.l.b16 %v137
  %v617 = vunpack.c.h.b16 %v137
  %v618 = vunpack.c.l.b16 %v138
  %v619 = vunpack.c.h.b16 %v138
  %v620 = vunpack.c.l.b16 %v139
  %v621 = vunpack.c.h.b16 %v139
  %v622 = vunpack.c.l.b16 %v140
  %v623 = vunpack.c.h.b16 %v140
  %v624 = vunpack.c.l.b16 %v141
  %v625 = vunpack.c.h.b16 %v141
  %v626 = vunpack.c.l.b16 %v142
  %v627 = vunpack.c.h.b16 %v142
  %v628 = vunpack.c.l.b16 %v143
  %v629 = vunpack.c.h.b16 %v143
  %v630 = vunpack.c.l.b16 %v144
  %v631 = vunpack.c.h.b16 %v144
  %v632 = vunpack.c.l.b16 %v145
  %v633 = vunpack.c.h.b16 %v145
  %v634 = vunpack.c.l.b16 %v146
  %v635 = vunpack.c.h.b16 %v146
  %v636 = vunpack.c.l.b16 %v147
  %v637 = vunpack.c.h.b16 %v147
  %v638 = vunpack.c.l.b16 %v148
  %v639 = vunpack.c.h.b16 %v148
  %v640 = vunpack.c.l.b16 %v149
  %v641 = vunpack.c.h.b16 %v149
  %v642 = vunpack.c.l.b16 %v150
  %v643 = vunpack.c.h.b16 %v150
  %v644 = vunpack.c.l.b16 %v151
  %v645 = vunpack.c.h.b16 %v151
  %v646 = vunpack.c.l.b16 %v152
  %v647 = vunpack.c.h.b16 %v152
  %v648 = vunpack.c.l.b16 %v153
  %v649 = vunpack.c.h.b16 %v153
  %v650 = vunpack.c.l.b16 %v154
  %v651 = vunpack.c.h.b16 %v154
  %v652 = vunpack.c.l.b16 %v155
  %v653 = vunpack.c.h.b16 %v155
  %v654 = vunpack.c.l.b16 %v156
  %v655 = vunpack.c.h.b16 %v156
  %v656 = vunpack.c.l.b16 %v157
  %v657 = vunpack.c.h.b16 %v157
  %v658 = vunpack.c.l.b16 %v158
  %v659 = vunpack.c.h.b16 %v158
  %v660 = vunpack.c.l.b16 %v159
  %v661 = vunpack.c.h.b16 %v159
  %v662 = vunpack.c.l.b16 %v160
  %v663 = vunpack.c.h.b16 %v160
  %v664 = vunpack.c.l.b16 %v161
  %v665 = vunpack.c.h.b16 %v161
  %v666 = vunpack.c.l.b16 %v162
  %v667 = vunpack.c.h.b16 %v162
  %v668 = vunpack.c.l.b16 %v163
  %v669 = vunpack.c.h.b16 %v163
  %v670 = vunpack.c.l.b16 %v164
  %v671 = vunpack.c.h.b16 %v164
  %v672 = vunpack.c.l.b16 %v165
  %v673 = vunpack.c.h.b16 %v165
  %v674 = vunpack.c.l.b16 %v166
  %v675 = vunpack.c.h.b16 %v166
  %v676 = vunpack.c.l.b16 %v167
  %v677 = vunpack.c.h.b16 %v167
  %v678 = vunpack.c.l.b16 %v168
  %v679 = vunpack.c.h.b16 %v168
  %v680 = vunpack.c.l.b16 %v169
  %v681 = vunpack.c.h.b16 %v169
  %v682 = vunpack.c.l.b16 %v170
  %v683 = vunpack.c.h.b16 %v170
  %v684 = vunpack.c.l.b16 %v171
  %v685 = vunpack.c.h.b16 %v171
  %v686 = vunpack.c.l.b16 %v172
  %v687 = vunpack.c.h.b16 %v172
  %v688 = vunpack.c.l.b16 %v173
  %v689 = vunpack.c.h.b16 %v173
  %v690 = vunpack.c.l.b16 %v174
  %v691 = vunpack.c.h.b16 %v174
  %v692 = vunpack.c.l.b16 %v175
  %v693 = vunpack.c.h.b16 %v175
  %v694 = vunpack.c.l.b16 %v176
  %v695 = vunpack.c.h.b16 %v176
  %v696 = vunpack.c.l.b16 %v177
  %v697 = vunpack.c.h.b16 %v177
  %v698 = vunpack.c.l.b16 %v178
  %v699 = vunpack.c.h.b16 %v178
  %v700 = vunpack.c.l.b16 %v179
  %v701 = vunpack.c.h.b16 %v179
  %v702 = vunpack.c.l.b16 %v180
  %v703 = vunpack.c.h.b16 %v180
  %v704 = vunpack.c.l.b16 %v181
  %v705 = vunpack.c.h.b16 %v181
  %v706 = vpack.c.b16 %v420, %v418
  %v707 = vpack.c.b16 %v421, %v419
  %v708 = vpack.c.b16 %v424, %v422
  %v709 = vpack.c.b16 %v425, %v423
  %v710 = vpack.c.b16 %v428, %v426
  %v711 = vpack.c.b16 %v429, %v427
  %v712 = vpack.c.b16 %v432, %v430
  %v713 = vpack.c.b16 %v433, %v431
  %v714 = vpack.c.b16 %v436, %v434
  %v715 = vpack.c.b16 %v437, %v435
  %v716 = vpack.c.b16 %v440, %v438
  %v717 = vpack.c.b16 %v441, %v439
  %v718 = vpack.c.b16 %v444, %v442
  %v719 = vpack.c.b16 %v445, %v443
  %v720 = vpack.c.b16 %v448, %v446
  %v721 = vpack.c.b16 %v449, %v447
  %v722 = vpack.c.b16 %v452, %v450
  %v723 = vpack.c.b16 %v453, %v451
  %v724 = vpack.c.b16 %v456, %v454
  %v725 = vpack.c.b16 %v457, %v455
  %v726 = vpack.c.b16 %v460, %v458
  %v727 = vpack.c.b16 %v461, %v459
  %v728 = vpack.c.b16 %v464, %v462
  %v729 = vpack.c.b16 %v465, %v463
  %v730 = vpack.c.b16 %v468, %v466
  %v731 = vpack.c.b16 %v469, %v467
  %v732 = vpack.c.b16 %v472, %v470
  %v733 = vpack.c.b16 %v473, %v471
  %v734 = vpack.c.b16 %v476, %v474
  %v735 = vpack.c.b16 %v477, %v475
  %v736 = vpack.c.b16 %v480, %v478
  %v737 = vpack.c.b16 %v481, %v479
  %v738 = vpack.c.b16 %v484, %v482
  %v739 = vpack.c.b16 %v485, %v483
  %v740 = vpack.c.b16 %v488, %v486
  %v741 = vpack.c.b16 %v489, %v487
  %v742 = vpack.c.b16 %v492, %v490
  %v743 = vpack.c.b16 %v493, %v491
  %v744 = vpack.c.b16 %v496, %v494
  %v745 = vpack.c.b16 %v497, %v495
  %v746 = vpack.c.b16 %v500, %v498
  %v747 = vpack.c.b16 %v501, %v499
  %v748 = vpack.c.b16 %v504, %v502
  %v749 = vpack.c.b16 %v505, %v503
  %v750 = vpack.c.b16 %v508, %v506
  %v751 = vpack.c.b16 %v509, %v507
  %v752 = vpack.c.b16 %v512, %v510
  %v753 = vpack.c.b16 %v513, %v511
  %v754 = vpack.c.b16 %v516, %v514
  %v755 = vpack.c.b16 %v517, %v515
  %v756 = vpack.c.b16 %v520, %v518
  %v757 = vpack.c.b16 %v521, %v519
  %v758 = vpack.c.b16 %v524, %v522
  %v759 = vpack.c.b16 %v525, %v523
  %v760 = vpack.c.b16 %v528, %v526
  %v761 = vpack.c.b16 %v529, %v527
  %v762 = vpack.c.b16 %v532, %v530
  %v763 = vpack.c.b16 %v533, %v531
  %v764 = vpack.c.b16 %v536, %v534
  %v765 = vpack.c.b16 %v537, %v535
  %v766 = vpack.c.b16 %v540, %v538
  %v767 = vpack.c.b16 %v541, %v539
  %v768 = vpack.c.b16 %v544, %v542
  %v769 = vpack.c.b16 %v545, %v543
  %v770 = vpack.c.b16 %v548, %v546
  %v771 = vpack.c.b16 %v549, %v547
  %v772 = vpack.c.b16 %v552, %v550
  %v773 = vpack.c.b16 %v553, %v551
  %v774 = vpack.c.b16 %v556, %v554
  %v775 = vpack.c.b16 %v557, %v555
  %v776 = vpack.c.b16 %v560, %v558
  %v777 = vpack.c.b16 %v561, %v559
  %v778 = vpack.c.b16 %v564, %v562
  %v779 = vpack.c.b16 %v565, %v563
  %v780 = vpack.c.b16 %v568, %v566
  %v781 = vpack.c.b16 %v569, %v567
  %v782 = vpack.c.b16 %v572, %v570
  %v783 = vpack.c.b16 %v573, %v571
  %v784 = vpack.c.b16 %v576, %v574
  %v785 = vpack.c.b16 %v577, %v575
  %v786 = vpack.c.b16 %v580, %v578
  %v787 = vpack.c.b16 %v581, %v579
  %v788 = vpack.c.b16 %v584, %v582
  %v789 = vpack.c.b16 %v585, %v583
  %v790 = vpack.c.b16 %v588, %v586
  %v791 = vpack.c.b16 %v589, %v587
  %v792 = vpack.c.b16 %v592, %v590
  %v793 = vpack.c.b16 %v593, %v591
  %v794 = vpack.c.b16 %v596, %v594
  %v795 = vpack.c.b16 %v597, %v595
  %v796 = vpack.c.b16 %v600, %v598
  %v797 = vpack.c.b16 %v601, %v599
  %v798 = vpack.c.b16 %v604, %v602
  %v799 = vpack.c.b16 %v605, %v603
  %v800 = vpack.c.b16 %v608, %v606
  %v801 = vpack.c.b16 %v609, %v607
  %v802 = vpack.c.b16 %v612, %v610
  %v803 = vpack.c.b16 %v613, %v611
  %v804 = vpack.c.b16 %v616, %v614
  %v805 = vpack.c.b16 %v617, %v615
  %v806 = vpack.c.b16 %v620, %v618
  %v807 = vpack.c.b16 %v621, %v619
  %v808 = vpack.c.b16 %v624, %v622
  %v809 = vpack.c.b16 %v625, %v623
  %v810 = vpack.c.b16 %v628, %v626
  %v811 = vpack.c.b16 %v629, %v627
  %v812 = vpack.c.b16 %v632, %v630
  %v813 = vpack.c.b16 %v633, %v631
  %v814 = vpack.c.b16 %v636, %v634
  %v815 = vpack.c.b16 %v637, %v635
  %v816 = vpack.c.b16 %v640, %v638
  %v817 = vpack.c.b16 %v641, %v639
  %v818 = vpack.c.b16 %v644, %v642
  %v819 = vpack.c.b16 %v645, %v643
  %v820 = vpack.c.b16 %v648, %v646
  %v821 = vpack.c.b16 %v649, %v647
  %v822 = vpack.c.b16 %v652, %v650
  %v823 = vpack.c.b16 %v653, %v651
  %v824 = vpack.c.b16 %v656, %v654
  %v825 = vpack.c.b16 %v657, %v655
  %v826 = vpack.c.b16 %v660, %v658
  %v827 = vpack.c.b16 %v661, %v659
  %v828 = vpack.c.b16 %v664, %v662
  %v829 = vpack.c.b16 %v665, %v663
  %v830 = vpack.c.b16 %v668, %v666
  %v831 = vpack.c.b16 %v669, %v667
  %v832 = vpack.c.b16 %v672, %v670
  %v833 = vpack.c.b16 %v673, %v671
  %v834 = vpack.c.b16 %v676, %v674
  %v835 = vpack.c.b16 %v677, %v675
  %v836 = vpack.c.b16 %v680, %v678
  %v837 = vpack.c.b16 %v681, %v679
  %v838 = vpack.c.b16 %v684, %v682
  %v839 = vpack.c.b16 %v685, %v683
  %v840 = vpack.c.b16 %v688, %v686
  %v841 = vpack.c.b16 %v689, %v687
  %v842 = vpack.c.b16 %v692, %v690
  %v843 = vpack.c.b16 %v693, %v691
  %v844 = vpack.c.b16 %v696, %v694
  %v845 = vpack.c.b16 %v697, %v695
  %v846 = vpack.c.b16 %v700, %v698
  %v847 = vpack.c.b16 %v701, %v699
  %v848 = vpack.c.b16 %v704, %v702
  %v849 = vpack.c.b16 %v705, %v703
  %994 = vmatprep.subr.bf16.mxu0 %v707
  %995 = vmatpush1.bf16.msra.mxu0 %v706
  %996 = vmatprep.subr.bf16.mxu0 %v709
  %997 = vmatpush1.bf16.msra.mxu0 %v708
  %998 = vmatprep.subr.bf16.mxu0 %v711
  %999 = vmatpush1.bf16.msra.mxu0 %v710
  %1000 = vmatprep.subr.bf16.mxu0 %v713
  %1001 = vmatpush1.bf16.msra.mxu0 %v712
  %1002 = vmatprep.subr.bf16.mxu0 %v715
  %1003 = vmatpush1.bf16.msra.mxu0 %v714
  %1004 = vmatprep.subr.bf16.mxu0 %v717
  %1005 = vmatpush1.bf16.msra.mxu0 %v716
  %1006 = vmatprep.subr.bf16.mxu0 %v719
  %1007 = vmatpush1.bf16.msra.mxu0 %v718
  %1008 = vmatprep.subr.bf16.mxu0 %v721
  %1009 = vmatpush1.bf16.msra.mxu0 %v720
  %1010 = vmatprep.subr.bf16.mxu0 %v723
  %1011 = vmatpush1.bf16.msra.mxu0 %v722
  %1012 = vmatprep.subr.bf16.mxu0 %v725
  %1013 = vmatpush1.bf16.msra.mxu0 %v724
  %1014 = vmatprep.subr.bf16.mxu0 %v727
  %1015 = vmatpush1.bf16.msra.mxu0 %v726
  %1016 = vmatprep.subr.bf16.mxu0 %v729
  %1017 = vmatpush1.bf16.msra.mxu0 %v728
  %1018 = vmatprep.subr.bf16.mxu0 %v731
  %1019 = vmatpush1.bf16.msra.mxu0 %v730
  %1020 = vmatprep.subr.bf16.mxu0 %v733
  %1021 = vmatpush1.bf16.msra.mxu0 %v732
  %1022 = vmatprep.subr.bf16.mxu0 %v735
  %1023 = vmatpush1.bf16.msra.mxu0 %v734
  %1024 = vmatprep.subr.bf16.mxu0 %v737
  %1025 = vmatpush1.bf16.msra.mxu0 %v736
  %1026 = vmatprep.mubr.bf16.mxu0 %v239
  %1027 = vmatmul.mubr.bf16.gmra.mrb[0].mxu0 %v238
  %v1028 = vpop.f32.mrb[0].mxu0
  %v1029 = vadd.f32 0.0, %v1028
  %v1030 = vpop.f32.mrb[0].mxu0
  %v1031 = vadd.f32 0.0, %v1030
  %v1032 = vpop.f32.mrb[0].mxu0
  %v1033 = vadd.f32 0.0, %v1032
  %v1034 = vpop.f32.mrb[0].mxu0
  %v1035 = vadd.f32 0.0, %v1034
  %1036 = vmatprep.mubr.bf16.mxu0 %v248
  %1037 = vmatmul.mubr.bf16.gmra.mrb[0].mxu0 %v247
  %v1038 = vpop.f32.mrb[0].mxu0
  %v1039 = vadd.f32 0.0, %v1038
  %v1040 = vpop.f32.mrb[0].mxu0
  %v1041 = vadd.f32 0.0, %v1040
  %v1042 = vpop.f32.mrb[0].mxu0
  %v1043 = vadd.f32 0.0, %v1042
  %v1044 = vpop.f32.mrb[0].mxu0
  %v1045 = vadd.f32 0.0, %v1044
  %1046 = vdwg.mxu0
  %1047 = vmatprep.subr.bf16.mxu0 %v739
  %1048 = vmatpush1.bf16.msra.mxu0 %v738
  %1049 = vmatprep.subr.bf16.mxu0 %v741
  %1050 = vmatpush1.bf16.msra.mxu0 %v740
  %1051 = vmatprep.subr.bf16.mxu0 %v743
  %1052 = vmatpush1.bf16.msra.mxu0 %v742
  %1053 = vmatprep.subr.bf16.mxu0 %v745
  %1054 = vmatpush1.bf16.msra.mxu0 %v744
  %1055 = vmatprep.subr.bf16.mxu0 %v747
  %1056 = vmatpush1.bf16.msra.mxu0 %v746
  %1057 = vmatprep.subr.bf16.mxu0 %v749
  %1058 = vmatpush1.bf16.msra.mxu0 %v748
  %1059 = vmatprep.subr.bf16.mxu0 %v751
  %1060 = vmatpush1.bf16.msra.mxu0 %v750
  %1061 = vmatprep.subr.bf16.mxu0 %v753
  %1062 = vmatpush1.bf16.msra.mxu0 %v752
  %1063 = vmatprep.subr.bf16.mxu0 %v755
  %1064 = vmatpush1.bf16.msra.mxu0 %v754
  %1065 = vmatprep.subr.bf16.mxu0 %v757
  %1066 = vmatpush1.bf16.msra.mxu0 %v756
  %1067 = vmatprep.subr.bf16.mxu0 %v759
  %1068 = vmatpush1.bf16.msra.mxu0 %v758
  %1069 = vmatprep.subr.bf16.mxu0 %v761
  %1070 = vmatpush1.bf16.msra.mxu0 %v760
  %1071 = vmatprep.subr.bf16.mxu0 %v763
  %1072 = vmatpush1.bf16.msra.mxu0 %v762
  %1073 = vmatprep.subr.bf16.mxu0 %v765
  %1074 = vmatpush1.bf16.msra.mxu0 %v764
  %1075 = vmatprep.subr.bf16.mxu0 %v767
  %1076 = vmatpush1.bf16.msra.mxu0 %v766
  %1077 = vmatprep.subr.bf16.mxu0 %v769
  %1078 = vmatpush1.bf16.msra.mxu0 %v768
  %1079 = vmatprep.mubr.bf16.mxu0 %v241
  %1080 = vmatmul.mubr.bf16.gmra.mrb[0].mxu0 %v240
  %v1081 = vpop.f32.mrb[0].mxu0
  %v1082 = vadd.f32 %v1029, %v1081
  %v1083 = vpop.f32.mrb[0].mxu0
  %v1084 = vadd.f32 %v1031, %v1083
  %v1085 = vpop.f32.mrb[0].mxu0
  %v1086 = vadd.f32 %v1033, %v1085
  %v1087 = vpop.f32.mrb[0].mxu0
  %v1088 = vadd.f32 %v1035, %v1087
  %1089 = vmatprep.mubr.bf16.mxu0 %v250
  %1090 = vmatmul.mubr.bf16.gmra.mrb[0].mxu0 %v249
  %v1091 = vpop.f32.mrb[0].mxu0
  %v1092 = vadd.f32 %v1039, %v1091
  %v1093 = vpop.f32.mrb[0].mxu0
  %v1094 = vadd.f32 %v1041, %v1093
  %v1095 = vpop.f32.mrb[0].mxu0
  %v1096 = vadd.f32 %v1043, %v1095
  %v1097 = vpop.f32.mrb[0].mxu0
  %v1098 = vadd.f32 %v1045, %v1097
  %1099 = vdwg.mxu0
  %1100 = vmatprep.subr.bf16.mxu0 %v771
  %1101 = vmatpush1.bf16.msra.mxu0 %v770
  %1102 = vmatprep.subr.bf16.mxu0 %v773
  %1103 = vmatpush1.bf16.msra.mxu0 %v772
  %1104 = vmatprep.subr.bf16.mxu0 %v775
  %1105 = vmatpush1.bf16.msra.mxu0 %v774
  %1106 = vmatprep.subr.bf16.mxu0 %v777
  %1107 = vmatpush1.bf16.msra.mxu0 %v776
  %1108 = vmatprep.subr.bf16.mxu0 %v779
  %1109 = vmatpush1.bf16.msra.mxu0 %v778
  %1110 = vmatprep.subr.bf16.mxu0 %v781
  %1111 = vmatpush1.bf16.msra.mxu0 %v780
  %1112 = vmatprep.subr.bf16.mxu0 %v783
  %1113 = vmatpush1.bf16.msra.mxu0 %v782
  %1114 = vmatprep.subr.bf16.mxu0 %v785
  %1115 = vmatpush1.bf16.msra.mxu0 %v784
  %1116 = vmatprep.subr.bf16.mxu0 %v787
  %1117 = vmatpush1.bf16.msra.mxu0 %v786
  %1118 = vmatprep.subr.bf16.mxu0 %v789
  %1119 = vmatpush1.bf16.msra.mxu0 %v788
  %1120 = vmatprep.subr.bf16.mxu0 %v791
  %1121 = vmatpush1.bf16.msra.mxu0 %v790
  %1122 = vmatprep.subr.bf16.mxu0 %v793
  %1123 = vmatpush1.bf16.msra.mxu0 %v792
  %1124 = vmatprep.subr.bf16.mxu0 %v795
  %1125 = vmatpush1.bf16.msra.mxu0 %v794
  %1126 = vmatprep.subr.bf16.mxu0 %v797
  %1127 = vmatpush1.bf16.msra.mxu0 %v796
  %1128 = vmatprep.subr.bf16.mxu0 %v799
  %1129 = vmatpush1.bf16.msra.mxu0 %v798
  %1130 = vmatprep.subr.bf16.mxu0 %v801
  %1131 = vmatpush1.bf16.msra.mxu0 %v800
  %1132 = vmatprep.mubr.bf16.mxu0 %v243
  %1133 = vmatmul.mubr.bf16.gmra.mrb[0].mxu0 %v242
  %v1134 = vpop.f32.mrb[0].mxu0
  %v1135 = vadd.f32 %v1082, %v1134
  %v1136 = vpop.f32.mrb[0].mxu0
  %v1137 = vadd.f32 %v1084, %v1136
  %v1138 = vpop.f32.mrb[0].mxu0
  %v1139 = vadd.f32 %v1086, %v1138
  %v1140 = vpop.f32.mrb[0].mxu0
  %v1141 = vadd.f32 %v1088, %v1140
  %1142 = vmatprep.mubr.bf16.mxu0 %v252
  %1143 = vmatmul.mubr.bf16.gmra.mrb[0].mxu0 %v251
  %v1144 = vpop.f32.mrb[0].mxu0
  %v1145 = vadd.f32 %v1092, %v1144
  %v1146 = vpop.f32.mrb[0].mxu0
  %v1147 = vadd.f32 %v1094, %v1146
  %v1148 = vpop.f32.mrb[0].mxu0
  %v1149 = vadd.f32 %v1096, %v1148
  %v1150 = vpop.f32.mrb[0].mxu0
  %v1151 = vadd.f32 %v1098, %v1150
  %1152 = vdwg.mxu0
  %1153 = vmatprep.subr.bf16.mxu0 %v803
  %1154 = vmatpush1.bf16.msra.mxu0 %v802
  %1155 = vmatprep.subr.bf16.mxu0 %v805
  %1156 = vmatpush1.bf16.msra.mxu0 %v804
  %1157 = vmatprep.subr.bf16.mxu0 %v807
  %1158 = vmatpush1.bf16.msra.mxu0 %v806
  %1159 = vmatprep.subr.bf16.mxu0 %v809
  %1160 = vmatpush1.bf16.msra.mxu0 %v808
  %1161 = vmatprep.subr.bf16.mxu0 %v811
  %1162 = vmatpush1.bf16.msra.mxu0 %v810
  %1163 = vmatprep.subr.bf16.mxu0 %v813
  %1164 = vmatpush1.bf16.msra.mxu0 %v812
  %1165 = vmatprep.subr.bf16.mxu0 %v815
  %1166 = vmatpush1.bf16.msra.mxu0 %v814
  %1167 = vmatprep.subr.bf16.mxu0 %v817
  %1168 = vmatpush1.bf16.msra.mxu0 %v816
  %1169 = vmatprep.subr.bf16.mxu0 %v819
  %1170 = vmatpush1.bf16.msra.mxu0 %v818
  %1171 = vmatprep.subr.bf16.mxu0 %v821
  %1172 = vmatpush1.bf16.msra.mxu0 %v820
  %1173 = vmatprep.subr.bf16.mxu0 %v823
  %1174 = vmatpush1.bf16.msra.mxu0 %v822
  %1175 = vmatprep.subr.bf16.mxu0 %v825
  %1176 = vmatpush1.bf16.msra.mxu0 %v824
  %1177 = vmatprep.subr.bf16.mxu0 %v827
  %1178 = vmatpush1.bf16.msra.mxu0 %v826
  %1179 = vmatprep.subr.bf16.mxu0 %v829
  %1180 = vmatpush1.bf16.msra.mxu0 %v828
  %1181 = vmatprep.subr.bf16.mxu0 %v831
  %1182 = vmatpush1.bf16.msra.mxu0 %v830
  %1183 = vmatprep.subr.bf16.mxu0 %v833
  %1184 = vmatpush1.bf16.msra.mxu0 %v832
  %1185 = vmatprep.mubr.bf16.mxu0 %v245
  %1186 = vmatmul.mubr.bf16.gmra.mrb[0].mxu0 %v244
  %v1187 = vpop.f32.mrb[0].mxu0
  %v1188 = vadd.f32 %v1135, %v1187
  %v1189 = vpop.f32.mrb[0].mxu0
  %v1190 = vadd.f32 %v1137, %v1189
  %v1191 = vpop.f32.mrb[0].mxu0
  %v1192 = vadd.f32 %v1139, %v1191
  %v1193 = vpop.f32.mrb[0].mxu0
  %v1194 = vadd.f32 %v1141, %v1193
  %1195 = vmatprep.mubr.bf16.mxu0 %v254
  %1196 = vmatmul.mubr.bf16.gmra.mrb[0].mxu0 %v253
  %v1197 = vpop.f32.mrb[0].mxu0
  %v1198 = vadd.f32 %v1145, %v1197
  %v1199 = vpop.f32.mrb[0].mxu0
  %v1200 = vadd.f32 %v1147, %v1199
  %v1201 = vpop.f32.mrb[0].mxu0
  %v1202 = vadd.f32 %v1149, %v1201
  %v1203 = vpop.f32.mrb[0].mxu0
  %v1204 = vadd.f32 %v1151, %v1203
  %1205 = vdwg.mxu0
  %1206 = vmatprep.subr.bf16.mxu0 %v835
  %1207 = vmatpush1.bf16.msra.mxu0 %v834
  %1208 = vmatprep.subr.bf16.mxu0 %v837
  %1209 = vmatpush1.bf16.msra.mxu0 %v836
  %1210 = vmatprep.subr.bf16.mxu0 %v839
  %1211 = vmatpush1.bf16.msra.mxu0 %v838
  %1212 = vmatprep.subr.bf16.mxu0 %v841
  %1213 = vmatpush1.bf16.msra.mxu0 %v840
  %1214 = vmatprep.subr.bf16.mxu0 %v843
  %1215 = vmatpush1.bf16.msra.mxu0 %v842
  %1216 = vmatprep.subr.bf16.mxu0 %v845
  %1217 = vmatpush1.bf16.msra.mxu0 %v844
  %1218 = vmatprep.subr.bf16.mxu0 %v847
  %1219 = vmatpush1.bf16.msra.mxu0 %v846
  %1220 = vmatprep.subr.bf16.mxu0 %v849
  %1221 = vmatpush1.bf16.msra.mxu0 %v848
  %1222 = vmatprep.subr.bf16.mxu0 0
  %1223 = vmatpush1.bf16.msra.mxu0 0
  %1224 = vmatprep.subr.bf16.mxu0 0
  %1225 = vmatpush1.bf16.msra.mxu0 0
  %1226 = vmatprep.subr.bf16.mxu0 0
  %1227 = vmatpush1.bf16.msra.mxu0 0
  %1228 = vmatprep.subr.bf16.mxu0 0
  %1229 = vmatpush1.bf16.msra.mxu0 0
  %1230 = vmatprep.subr.bf16.mxu0 0
  %1231 = vmatpush1.bf16.msra.mxu0 0
  %1232 = vmatprep.subr.bf16.mxu0 0
  %1233 = vmatpush1.bf16.msra.mxu0 0
  %1234 = vmatprep.subr.bf16.mxu0 0
  %1235 = vmatpush1.bf16.msra.mxu0 0
  %1236 = vmatprep.subr.bf16.mxu0 0
  %1237 = vmatpush1.bf16.msra.mxu0 0
  %1238 = vmatprep.mubr.bf16.mxu0 0
  %1239 = vmatmul.mubr.bf16.gmra.mrb[0].mxu0 %v246
  %v1240 = vpop.f32.mrb[0].mxu0
  %v1241 = vadd.f32 %v1188, %v1240
  %v1242 = vpop.f32.mrb[0].mxu0
  %v1243 = vadd.f32 %v1190, %v1242
  %v1244 = vpop.f32.mrb[0].mxu0
  %v1245 = vadd.f32 %v1192, %v1244
  %v1246 = vpop.f32.mrb[0].mxu0
  %v1247 = vadd.f32 %v1194, %v1246
  %1248 = vmatprep.mubr.bf16.mxu0 0
  %1249 = vmatmul.mubr.bf16.gmra.mrb[0].mxu0 %v255
  %v1250 = vpop.f32.mrb[0].mxu0
  %v1251 = vadd.f32 %v1198, %v1250
  %v1252 = vpop.f32.mrb[0].mxu0
  %v1253 = vadd.f32 %v1200, %v1252
  %v1254 = vpop.f32.mrb[0].mxu0
  %v1255 = vadd.f32 %v1202, %v1254
  %v1256 = vpop.f32.mrb[0].mxu0
  %v1257 = vadd.f32 %v1204, %v1256
  %1258 = vdwg.mxu0
  %v1259 = vadd.f32 %v1241, %v1245
  %v1260 = vadd.f32 %v1259, %v1251
  %v1261 = vadd.f32 %v1260, %v1255
  %v1262 = vrot.slane %v1261, 4
  %v1263 = vadd.f32 %v1261, %v1262
  %v1264 = vrot.slane %v1263, 2
  %v1265 = vadd.f32 %v1263, %v1264
  %v1266 = vrot.slane %v1265, 1
  %v1267 = vadd.f32 %v1265, %v1266
  %v1268 = vadd.f32 %v1243, %v1247
  %v1269 = vadd.f32 %v1268, %v1253
  %v1270 = vadd.f32 %v1269, %v1257
  %v1271 = vrot.slane %v1270, 4
  %v1272 = vadd.f32 %v1270, %v1271
  %v1273 = vrot.slane %v1272, 2
  %v1274 = vadd.f32 %v1272, %v1273
  %v1275 = vrot.slane %v1274, 1
  %v1276 = vadd.f32 %v1274, %v1275
  %v1277 = vrcp.pop 32.0
  %v1278 = vmul.f32 %v1267, %v1277
  %v1279 = vmul.f32 %v1276, %v1277
  %v1280 = vsub.f32 %v1241, %v1278
  %v1281 = vsub.f32 %v1243, %v1279
  %v1282 = vsub.f32 %v1245, %v1278
  %v1283 = vsub.f32 %v1247, %v1279
  %v1284 = vsub.f32 %v1251, %v1278
  %v1285 = vsub.f32 %v1253, %v1279
  %v1286 = vsub.f32 %v1255, %v1278
  %v1287 = vsub.f32 %v1257, %v1279
  %v1288 = vmul.f32 %v1280, %v1280
  %v1289 = vmul.f32 %v1281, %v1281
  %v1290 = vmul.f32 %v1282, %v1282
  %v1291 = vmul.f32 %v1283, %v1283
  %v1292 = vmul.f32 %v1284, %v1284
  %v1293 = vmul.f32 %v1285, %v1285
  %v1294 = vmul.f32 %v1286, %v1286
  %v1295 = vmul.f32 %v1287, %v1287
  %v1296 = vadd.f32 %v1288, %v1290
  %v1297 = vadd.f32 %v1296, %v1292
  %v1298 = vadd.f32 %v1297, %v1294
  %v1299 = vrot.slane %v1298, 4
  %v1300 = vadd.f32 %v1298, %v1299
  %v1301 = vrot.slane %v1300, 2
  %v1302 = vadd.f32 %v1300, %v1301
  %v1303 = vrot.slane %v1302, 1
  %v1304 = vadd.f32 %v1302, %v1303
  %v1305 = vadd.f32 %v1289, %v1291
  %v1306 = vadd.f32 %v1305, %v1293
  %v1307 = vadd.f32 %v1306, %v1295
  %v1308 = vrot.slane %v1307, 4
  %v1309 = vadd.f32 %v1307, %v1308
  %v1310 = vrot.slane %v1309, 2
  %v1311 = vadd.f32 %v1309, %v1310
  %v1312 = vrot.slane %v1311, 1
  %v1313 = vadd.f32 %v1311, %v1312
  %v1314 = vmul.f32 %v1304, %v1277
  %v1315 = vmul.f32 %v1313, %v1277
  %v1316 = vld [vmem:[%s2] sm:$0x3]
  %v1317 = vadd.f32 %v1314, 1e-05
  %v1318 = vadd.f32 %v1315, 1e-05
  %v1319 = vrsqrt.pop %v1317
  %v1320 = vrsqrt.pop %v1318
  %v1323 = vcombine.low %v1319, %v1320
  %v1325 = vunpack.c.l.s4 1966171168
  %v1326 = vunpack.c.0.s8 %v1325
  %v1327 = vlaneseq
  %v1328 = vshrl.u32 %v1327, 7
  %v1329 = vsub.s32 %v1326, %v1328
  %v1330 = vrot.slane %v1323, %v1329
  %v1332 = vunpack.c.l.s4 1966171168
  %v1333 = vunpack.c.0.s8 %v1332
  %v1334 = vlaneseq
  %v1335 = vshrl.u32 %v1334, 7
  %v1336 = vsub.s32 %v1333, %v1335
  %v1337 = vrot.slane %v1330, %v1336
  %v1339 = vmul.f32 %v1316, %v1337
  %v1340 = vld [vmem:[%s3] sm:$0x3]
  %v1342 = vlaneseq
  %v1343 = vshrl.u32 %v1342, 7
  %v1344 = vsub.s32 0, %v1343
  %v1345 = vrot.slane %v1339, %v1344
  %v1346 = vlaneseq
  %v1347 = vshrl.u32 %v1346, 7
  %v1348 = vsub.s32 1, %v1347
  %v1349 = vrot.slane %v1339, %v1348
  %v1352 = vmul.f32 %v1278, %v1345
  %v1353 = vmul.f32 %v1279, %v1349
  %v1356 = vcombine.low %v1352, %v1353
  %v1358 = vunpack.c.l.s4 1966171168
  %v1359 = vunpack.c.0.s8 %v1358
  %v1360 = vlaneseq
  %v1361 = vshrl.u32 %v1360, 7
  %v1362 = vsub.s32 %v1359, %v1361
  %v1363 = vrot.slane %v1356, %v1362
  %v1365 = vunpack.c.l.s4 1966171168
  %v1366 = vunpack.c.0.s8 %v1365
  %v1367 = vlaneseq
  %v1368 = vshrl.u32 %v1367, 7
  %v1369 = vsub.s32 %v1366, %v1368
  %v1370 = vrot.slane %v1363, %v1369
  %v1372 = vsub.f32 %v1340, %v1370
  %v1373 = vmul.f32 %v1241, %v1345
  %v1374 = vmul.f32 %v1243, %v1349
  %v1375 = vmul.f32 %v1245, %v1345
  %v1376 = vmul.f32 %v1247, %v1349
  %v1377 = vmul.f32 %v1251, %v1345
  %v1378 = vmul.f32 %v1253, %v1349
  %v1379 = vmul.f32 %v1255, %v1345
  %v1380 = vmul.f32 %v1257, %v1349
  %v1382 = vlaneseq
  %v1383 = vshrl.u32 %v1382, 7
  %v1384 = vsub.s32 0, %v1383
  %v1385 = vrot.slane %v1372, %v1384
  %v1386 = vlaneseq
  %v1387 = vshrl.u32 %v1386, 7
  %v1388 = vsub.s32 1, %v1387
  %v1389 = vrot.slane %v1372, %v1388
  %v1392 = vadd.f32 %v1373, %v1385
  %v1393 = vadd.f32 %v1374, %v1389
  %v1394 = vadd.f32 %v1375, %v1385
  %v1395 = vadd.f32 %v1376, %v1389
  %v1396 = vadd.f32 %v1377, %v1385
  %v1397 = vadd.f32 %v1378, %v1389
  %v1398 = vadd.f32 %v1379, %v1385
  %v1399 = vadd.f32 %v1380, %v1389
  %vm1400 = vcmp.ge.f32.partialorder %v1392, 0.0
  %vm1401 = vcmp.ge.f32.partialorder %v1393, 0.0
  %vm1402 = vcmp.ge.f32.partialorder %v1394, 0.0
  %vm1403 = vcmp.ge.f32.partialorder %v1395, 0.0
  %vm1404 = vcmp.ge.f32.partialorder %v1396, 0.0
  %vm1405 = vcmp.ge.f32.partialorder %v1397, 0.0
  %vm1406 = vcmp.ge.f32.partialorder %v1398, 0.0
  %vm1407 = vcmp.ge.f32.partialorder %v1399, 0.0
  %v1408 = vmul.f32 %v1392, 0.2
  %v1409 = vmul.f32 %v1393, 0.2
  %v1410 = vmul.f32 %v1394, 0.2
  %v1411 = vmul.f32 %v1395, 0.2
  %v1412 = vmul.f32 %v1396, 0.2
  %v1413 = vmul.f32 %v1397, 0.2
  %v1414 = vmul.f32 %v1398, 0.2
  %v1415 = vmul.f32 %v1399, 0.2
  %v1416 = vsel %vm1400, %v1392, %v1408
  %v1417 = vsel %vm1401, %v1393, %v1409
  %v1418 = vsel %vm1402, %v1394, %v1410
  %v1419 = vsel %vm1403, %v1395, %v1411
  %v1420 = vsel %vm1404, %v1396, %v1412
  %v1421 = vsel %vm1405, %v1397, %v1413
  %v1422 = vsel %vm1406, %v1398, %v1414
  %v1423 = vsel %vm1407, %v1399, %v1415
  %1424 = vst [vmem:[%s4] sm:$0xff] %v1416
  %1425 = vst [vmem:[%s4 + $0x8] sm:$0xff] %v1417
  %1426 = vst [vmem:[%s4 + $0x10] sm:$0xff] %v1418
  %1427 = vst [vmem:[%s4 + $0x18] sm:$0xff] %v1419
  %1428 = vst [vmem:[%s4 + $0x20] sm:$0xff] %v1420
  %1429 = vst [vmem:[%s4 + $0x28] sm:$0xff] %v1421
  %1430 = vst [vmem:[%s4 + $0x30] sm:$0xff] %v1422
  %1431 = vst [vmem:[%s4 + $0x38] sm:$0xff] %v1423
  // Predicated region
  $region18: #{sar_encoder_forward.6} parent=0 // pred_check
    _
  $region19: #{sar_encoder_forward.6} parent=0 // pred_check_branch
    %1433 = sbr.rel (0) target = $region21
  $region20: #{sar_encoder_forward.6} parent=0 // pred_region
    _
  $region21: #{sar_encoder_forward.6} parent=0 // pred_fallthru
    _
  // Predicated region
  $region22: #{sar_encoder_forward.6} parent=0 // pred_check
    _
  $region23: #{sar_encoder_forward.6} parent=0 // pred_check_branch
    %1435 = sbr.rel (0) target = $region25
  $region24: #{sar_encoder_forward.6} parent=0 // pred_region
    _
  $region25: #{sar_encoder_forward.6} parent=0 // pred_fallthru
    _

// kernel: sar_encoder_forward.7
$region0: #{sar_encoder_forward.7}
  #allocation0 [shape = 'u32[]', space=smem, size = 0x4, offset = 0x4, fixed_abs, tag = 'smem constant byte address 0x4 - core index']
  #allocation1 [shape = 'u32[144,128]{1,0:T(1,128)}', space=vmem, size = 0x12000, scoped, tag = 'internal scratch']
  %s0 = inlined_call_operand.vmem [shape: bf16[8,2304], index: 0, kind: input, shape index: {}]
  %s1 = inlined_call_operand.vmem [shape: bf16[2304,384], index: 1, kind: input, shape index: {}]
  %s2 = inlined_call_operand.vmem [shape: f32[1,384], index: 2, kind: input, shape index: {}]
  %s3 = inlined_call_operand.vmem [shape: f32[1,384], index: 3, kind: input, shape index: {}]
  %s4 = inlined_call_operand.vmem [shape: f32[8,384], index: 4, kind: output, shape index: {}]
  %s5 = sld [smem:[#allocation0]]
  $region26: #{sar_encoder_forward.7} parent=0
    _
  %s7 = ssub.s32 1, %s5
  %s8 = scalar_select 0, %s7, %s5
  // Predicated region
  $region2: #{sar_encoder_forward.7} parent=0 // pred_check
    _
  $region3: #{sar_encoder_forward.7} parent=0 // pred_check_branch
    %10 = sbr.rel (0) target = $region5
  $region4: #{sar_encoder_forward.7} parent=0 // pred_region
    _
  $region5: #{sar_encoder_forward.7} parent=0 // pred_fallthru
    _
  // Predicated region
  $region6: #{sar_encoder_forward.7} parent=0 // pred_check
    _
  $region7: #{sar_encoder_forward.7} parent=0 // pred_check_branch
    %12 = sbr.rel (0) target = $region9
  $region8: #{sar_encoder_forward.7} parent=0 // pred_region
    _
  $region9: #{sar_encoder_forward.7} parent=0 // pred_fallthru
    _
  // Predicated region
  $region10: #{sar_encoder_forward.7} parent=0 // pred_check
    _
  $region11: #{sar_encoder_forward.7} parent=0 // pred_check_branch
    %14 = sbr.rel (0) target = $region13
  $region12: #{sar_encoder_forward.7} parent=0 // pred_region
    _
  $region13: #{sar_encoder_forward.7} parent=0 // pred_fallthru
    _
  // Predicated region
  $region14: #{sar_encoder_forward.7} parent=0 // pred_check
    _
  $region15: #{sar_encoder_forward.7} parent=0 // pred_check_branch
    %16 = sbr.rel (0) target = $region17
  $region16: #{sar_encoder_forward.7} parent=0 // pred_region
    _
  $region17: #{sar_encoder_forward.7} parent=0 // pred_fallthru
    _
  %v18 = vld [vmem:[%s0] sm:$0xff]
  %v19 = vld [vmem:[%s0 + $0x8] sm:$0xff]
  %v20 = vld [vmem:[%s0 + $0x10] sm:$0xff]
  %v21 = vld [vmem:[%s0 + $0x18] sm:$0xff]
  %v22 = vld [vmem:[%s0 + $0x20] sm:$0xff]
  %v23 = vld [vmem:[%s0 + $0x28] sm:$0xff]
  %v24 = vld [vmem:[%s0 + $0x30] sm:$0xff]
  %v25 = vld [vmem:[%s0 + $0x38] sm:$0xff]
  %v26 = vld [vmem:[%s0 + $0x40] sm:$0xff]
  %v27 = vld [vmem:[%s1] sm:$0xff]
  %v28 = vld [vmem:[%s1 + $0x8] sm:$0xf]
  %v29 = vld [vmem:[%s1 + $0xc] sm:$0xff]
  %v30 = vld [vmem:[%s1 + $0x14] sm:$0xf]
  %v31 = vld [vmem:[%s1 + $0x18] sm:$0xff]
  %v32 = vld [vmem:[%s1 + $0x20] sm:$0xf]
  %v33 = vld [vmem:[%s1 + $0x24] sm:$0xff]
  %v34 = vld [vmem:[%s1 + $0x2c] sm:$0xf]
  %v35 = vld [vmem:[%s1 + $0x30] sm:$0xff]
  %v36 = vld [vmem:[%s1 + $0x38] sm:$0xf]
  %v37 = vld [vmem:[%s1 + $0x3c] sm:$0xff]
  %v38 = vld [vmem:[%s1 + $0x44] sm:$0xf]
  %v39 = vld [vmem:[%s1 + $0x48] sm:$0xff]
  %v40 = vld [vmem:[%s1 + $0x50] sm:$0xf]
  %v41 = vld [vmem:[%s1 + $0x54] sm:$0xff]
  %v42 = vld [vmem:[%s1 + $0x5c] sm:$0xf]
  %v43 = vld [vmem:[%s1 + $0x60] sm:$0xff]
  %v44 = vld [vmem:[%s1 + $0x68] sm:$0xf]
  %v45 = vld [vmem:[%s1 + $0x6c] sm:$0xff]
  %v46 = vld [vmem:[%s1 + $0x74] sm:$0xf]
  %v47 = vld [vmem:[%s1 + $0x78] sm:$0xff]
  %v48 = vld [vmem:[%s1 + $0x80] sm:$0xf]
  %v49 = vld [vmem:[%s1 + $0x84] sm:$0xff]
  %v50 = vld [vmem:[%s1 + $0x8c] sm:$0xf]
  %v51 = vld [vmem:[%s1 + $0x90] sm:$0xff]
  %v52 = vld [vmem:[%s1 + $0x98] sm:$0xf]
  %v53 = vld [vmem:[%s1 + $0x9c] sm:$0xff]
  %v54 = vld [vmem:[%s1 + $0xa4] sm:$0xf]
  %v55 = vld [vmem:[%s1 + $0xa8] sm:$0xff]
  %v56 = vld [vmem:[%s1 + $0xb0] sm:$0xf]
  %v57 = vld [vmem:[%s1 + $0xb4] sm:$0xff]
  %v58 = vld [vmem:[%s1 + $0xbc] sm:$0xf]
  %v59 = vld [vmem:[%s1 + $0xc0] sm:$0xff]
  %v60 = vld [vmem:[%s1 + $0xc8] sm:$0xf]
  %v61 = vld [vmem:[%s1 + $0xcc] sm:$0xff]
  %v62 = vld [vmem:[%s1 + $0xd4] sm:$0xf]
  %v63 = vld [vmem:[%s1 + $0xd8] sm:$0xff]
  %v64 = vld [vmem:[%s1 + $0xe0] sm:$0xf]
  %v65 = vld [vmem:[%s1 + $0xe4] sm:$0xff]
  %v66 = vld [vmem:[%s1 + $0xec] sm:$0xf]
  %v67 = vld [vmem:[%s1 + $0xf0] sm:$0xff]
  %v68 = vld [vmem:[%s1 + $0xf8] sm:$0xf]
  %v69 = vld [vmem:[%s1 + $0xfc] sm:$0xff]
  %v70 = vld [vmem:[%s1 + $0x104] sm:$0xf]
  %v71 = vld [vmem:[%s1 + $0x108] sm:$0xff]
  %v72 = vld [vmem:[%s1 + $0x110] sm:$0xf]
  %v73 = vld [vmem:[%s1 + $0x114] sm:$0xff]
  %v74 = vld [vmem:[%s1 + $0x11c] sm:$0xf]
  %v75 = vld [vmem:[%s1 + $0x120] sm:$0xff]
  %v76 = vld [vmem:[%s1 + $0x128] sm:$0xf]
  %v77 = vld [vmem:[%s1 + $0x12c] sm:$0xff]
  %v78 = vld [vmem:[%s1 + $0x134] sm:$0xf]
  %v79 = vld [vmem:[%s1 + $0x138] sm:$0xff]
  %v80 = vld [vmem:[%s1 + $0x140] sm:$0xf]
  %v81 = vld [vmem:[%s1 + $0x144] sm:$0xff]
  %v82 = vld [vmem:[%s1 + $0x14c] sm:$0xf]
  %v83 = vld [vmem:[%s1 + $0x150] sm:$0xff]
  %v84 = vld [vmem:[%s1 + $0x158] sm:$0xf]
  %v85 = vld [vmem:[%s1 + $0x15c] sm:$0xff]
  %v86 = vld [vmem:[%s1 + $0x164] sm:$0xf]
  %v87 = vld [vmem:[%s1 + $0x168] sm:$0xff]
  %v88 = vld [vmem:[%s1 + $0x170] sm:$0xf]
  %v89 = vld [vmem:[%s1 + $0x174] sm:$0xff]
  %v90 = vld [vmem:[%s1 + $0x17c] sm:$0xf]
  %v91 = vld [vmem:[%s1 + $0x180] sm:$0xff]
  %v92 = vld [vmem:[%s1 + $0x188] sm:$0xf]
  %v93 = vld [vmem:[%s1 + $0x18c] sm:$0xff]
  %v94 = vld [vmem:[%s1 + $0x194] sm:$0xf]
  %v95 = vld [vmem:[%s1 + $0x198] sm:$0xff]
  %v96 = vld [vmem:[%s1 + $0x1a0] sm:$0xf]
  %v97 = vld [vmem:[%s1 + $0x1a4] sm:$0xff]
  %v98 = vld [vmem:[%s1 + $0x1ac] sm:$0xf]
  %v99 = vld [vmem:[%s1 + $0x1b0] sm:$0xff]
  %v100 = vld [vmem:[%s1 + $0x1b8] sm:$0xf]
  %v101 = vld [vmem:[%s1 + $0x1bc] sm:$0xff]
  %v102 = vld [vmem:[%s1 + $0x1c4] sm:$0xf]
  %v103 = vld [vmem:[%s1 + $0x1c8] sm:$0xff]
  %v104 = vld [vmem:[%s1 + $0x1d0] sm:$0xf]
  %v105 = vld [vmem:[%s1 + $0x1d4] sm:$0xff]
  %v106 = vld [vmem:[%s1 + $0x1dc] sm:$0xf]
  %v107 = vld [vmem:[%s1 + $0x1e0] sm:$0xff]
  %v108 = vld [vmem:[%s1 + $0x1e8] sm:$0xf]
  %v109 = vld [vmem:[%s1 + $0x1ec] sm:$0xff]
  %v110 = vld [vmem:[%s1 + $0x1f4] sm:$0xf]
  %v111 = vld [vmem:[%s1 + $0x1f8] sm:$0xff]
  %v112 = vld [vmem:[%s1 + $0x200] sm:$0xf]
  %v113 = vld [vmem:[%s1 + $0x204] sm:$0xff]
  %v114 = vld [vmem:[%s1 + $0x20c] sm:$0xf]
  %v115 = vld [vmem:[%s1 + $0x210] sm:$0xff]
  %v116 = vld [vmem:[%s1 + $0x218] sm:$0xf]
  %v117 = vld [vmem:[%s1 + $0x21c] sm:$0xff]
  %v118 = vld [vmem:[%s1 + $0x224] sm:$0xf]
  %v119 = vld [vmem:[%s1 + $0x228] sm:$0xff]
  %v120 = vld [vmem:[%s1 + $0x230] sm:$0xf]
  %v121 = vld [vmem:[%s1 + $0x234] sm:$0xff]
  %v122 = vld [vmem:[%s1 + $0x23c] sm:$0xf]
  %v123 = vld [vmem:[%s1 + $0x240] sm:$0xff]
  %v124 = vld [vmem:[%s1 + $0x248] sm:$0xf]
  %v125 = vld [vmem:[%s1 + $0x24c] sm:$0xff]
  %v126 = vld [vmem:[%s1 + $0x254] sm:$0xf]
  %v127 = vld [vmem:[%s1 + $0x258] sm:$0xff]
  %v128 = vld [vmem:[%s1 + $0x260] sm:$0xf]
  %v129 = vld [vmem:[%s1 + $0x264] sm:$0xff]
  %v130 = vld [vmem:[%s1 + $0x26c] sm:$0xf]
  %v131 = vld [vmem:[%s1 + $0x270] sm:$0xff]
  %v132 = vld [vmem:[%s1 + $0x278] sm:$0xf]
  %v133 = vld [vmem:[%s1 + $0x27c] sm:$0xff]
  %v134 = vld [vmem:[%s1 + $0x284] sm:$0xf]
  %v135 = vld [vmem:[%s1 + $0x288] sm:$0xff]
  %v136 = vld [vmem:[%s1 + $0x290] sm:$0xf]
  %v137 = vld [vmem:[%s1 + $0x294] sm:$0xff]
  %v138 = vld [vmem:[%s1 + $0x29c] sm:$0xf]
  %v139 = vld [vmem:[%s1 + $0x2a0] sm:$0xff]
  %v140 = vld [vmem:[%s1 + $0x2a8] sm:$0xf]
  %v141 = vld [vmem:[%s1 + $0x2ac] sm:$0xff]
  %v142 = vld [vmem:[%s1 + $0x2b4] sm:$0xf]
  %v143 = vld [vmem:[%s1 + $0x2b8] sm:$0xff]
  %v144 = vld [vmem:[%s1 + $0x2c0] sm:$0xf]
  %v145 = vld [vmem:[%s1 + $0x2c4] sm:$0xff]
  %v146 = vld [vmem:[%s1 + $0x2cc] sm:$0xf]
  %v147 = vld [vmem:[%s1 + $0x2d0] sm:$0xff]
  %v148 = vld [vmem:[%s1 + $0x2d8] sm:$0xf]
  %v149 = vld [vmem:[%s1 + $0x2dc] sm:$0xff]
  %v150 = vld [vmem:[%s1 + $0x2e4] sm:$0xf]
  %v151 = vld [vmem:[%s1 + $0x2e8] sm:$0xff]
  %v152 = vld [vmem:[%s1 + $0x2f0] sm:$0xf]
  %v153 = vld [vmem:[%s1 + $0x2f4] sm:$0xff]
  %v154 = vld [vmem:[%s1 + $0x2fc] sm:$0xf]
  %v155 = vld [vmem:[%s1 + $0x300] sm:$0xff]
  %v156 = vld [vmem:[%s1 + $0x308] sm:$0xf]
  %v157 = vld [vmem:[%s1 + $0x30c] sm:$0xff]
  %v158 = vld [vmem:[%s1 + $0x314] sm:$0xf]
  %v159 = vld [vmem:[%s1 + $0x318] sm:$0xff]
  %v160 = vld [vmem:[%s1 + $0x320] sm:$0xf]
  %v161 = vld [vmem:[%s1 + $0x324] sm:$0xff]
  %v162 = vld [vmem:[%s1 + $0x32c] sm:$0xf]
  %v163 = vld [vmem:[%s1 + $0x330] sm:$0xff]
  %v164 = vld [vmem:[%s1 + $0x338] sm:$0xf]
  %v165 = vld [vmem:[%s1 + $0x33c] sm:$0xff]
  %v166 = vld [vmem:[%s1 + $0x344] sm:$0xf]
  %v167 = vld [vmem:[%s1 + $0x348] sm:$0xff]
  %v168 = vld [vmem:[%s1 + $0x350] sm:$0xf]
  %v169 = vld [vmem:[%s1 + $0x354] sm:$0xff]
  %v170 = vld [vmem:[%s1 + $0x35c] sm:$0xf]
  %v171 = vld [vmem:[%s1 + $0x360] sm:$0xff]
  %v172 = vld [vmem:[%s1 + $0x368] sm:$0xf]
  %v173 = vld [vmem:[%s1 + $0x36c] sm:$0xff]
  %v174 = vld [vmem:[%s1 + $0x374] sm:$0xf]
  %v175 = vld [vmem:[%s1 + $0x378] sm:$0xff]
  %v176 = vld [vmem:[%s1 + $0x380] sm:$0xf]
  %v177 = vld [vmem:[%s1 + $0x384] sm:$0xff]
  %v178 = vld [vmem:[%s1 + $0x38c] sm:$0xf]
  %v179 = vld [vmem:[%s1 + $0x390] sm:$0xff]
  %v180 = vld [vmem:[%s1 + $0x398] sm:$0xf]
  %v181 = vld [vmem:[%s1 + $0x39c] sm:$0xff]
  %v182 = vld [vmem:[%s1 + $0x3a4] sm:$0xf]
  %v183 = vld [vmem:[%s1 + $0x3a8] sm:$0xff]
  %v184 = vld [vmem:[%s1 + $0x3b0] sm:$0xf]
  %v185 = vld [vmem:[%s1 + $0x3b4] sm:$0xff]
  %v186 = vld [vmem:[%s1 + $0x3bc] sm:$0xf]
  %v187 = vld [vmem:[%s1 + $0x3c0] sm:$0xff]
  %v188 = vld [vmem:[%s1 + $0x3c8] sm:$0xf]
  %v189 = vld [vmem:[%s1 + $0x3cc] sm:$0xff]
  %v190 = vld [vmem:[%s1 + $0x3d4] sm:$0xf]
  %v191 = vld [vmem:[%s1 + $0x3d8] sm:$0xff]
  %v192 = vld [vmem:[%s1 + $0x3e0] sm:$0xf]
  %v193 = vld [vmem:[%s1 + $0x3e4] sm:$0xff]
  %v194 = vld [vmem:[%s1 + $0x3ec] sm:$0xf]
  %v195 = vld [vmem:[%s1 + $0x3f0] sm:$0xff]
  %v196 = vld [vmem:[%s1 + $0x3f8] sm:$0xf]
  %v197 = vld [vmem:[%s1 + $0x3fc] sm:$0xff]
  %v198 = vld [vmem:[%s1 + $0x404] sm:$0xf]
  %v199 = vld [vmem:[%s1 + $0x408] sm:$0xff]
  %v200 = vld [vmem:[%s1 + $0x410] sm:$0xf]
  %v201 = vld [vmem:[%s1 + $0x414] sm:$0xff]
  %v202 = vld [vmem:[%s1 + $0x41c] sm:$0xf]
  %v203 = vld [vmem:[%s1 + $0x420] sm:$0xff]
  %v204 = vld [vmem:[%s1 + $0x428] sm:$0xf]
  %v205 = vld [vmem:[%s1 + $0x42c] sm:$0xff]
  %v206 = vld [vmem:[%s1 + $0x434] sm:$0xf]
  %v207 = vld [vmem:[%s1 + $0x438] sm:$0xff]
  %v208 = vld [vmem:[%s1 + $0x440] sm:$0xf]
  %v209 = vld [vmem:[%s1 + $0x444] sm:$0xff]
  %v210 = vld [vmem:[%s1 + $0x44c] sm:$0xf]
  %v211 = vld [vmem:[%s1 + $0x450] sm:$0xff]
  %v212 = vld [vmem:[%s1 + $0x458] sm:$0xf]
  %v213 = vld [vmem:[%s1 + $0x45c] sm:$0xff]
  %v214 = vld [vmem:[%s1 + $0x464] sm:$0xf]
  %v215 = vld [vmem:[%s1 + $0x468] sm:$0xff]
  %v216 = vld [vmem:[%s1 + $0x470] sm:$0xf]
  %v217 = vld [vmem:[%s1 + $0x474] sm:$0xff]
  %v218 = vld [vmem:[%s1 + $0x47c] sm:$0xf]
  %v219 = vld [vmem:[%s1 + $0x480] sm:$0xff]
  %v220 = vld [vmem:[%s1 + $0x488] sm:$0xf]
  %v221 = vld [vmem:[%s1 + $0x48c] sm:$0xff]
  %v222 = vld [vmem:[%s1 + $0x494] sm:$0xf]
  %v223 = vld [vmem:[%s1 + $0x498] sm:$0xff]
  %v224 = vld [vmem:[%s1 + $0x4a0] sm:$0xf]
  %v225 = vld [vmem:[%s1 + $0x4a4] sm:$0xff]
  %v226 = vld [vmem:[%s1 + $0x4ac] sm:$0xf]
  %v227 = vld [vmem:[%s1 + $0x4b0] sm:$0xff]
  %v228 = vld [vmem:[%s1 + $0x4b8] sm:$0xf]
  %v229 = vld [vmem:[%s1 + $0x4bc] sm:$0xff]
  %v230 = vld [vmem:[%s1 + $0x4c4] sm:$0xf]
  %v231 = vld [vmem:[%s1 + $0x4c8] sm:$0xff]
  %v232 = vld [vmem:[%s1 + $0x4d0] sm:$0xf]
  %v233 = vld [vmem:[%s1 + $0x4d4] sm:$0xff]
  %v234 = vld [vmem:[%s1 + $0x4dc] sm:$0xf]
  %v235 = vld [vmem:[%s1 + $0x4e0] sm:$0xff]
  %v236 = vld [vmem:[%s1 + $0x4e8] sm:$0xf]
  %v237 = vld [vmem:[%s1 + $0x4ec] sm:$0xff]
  %v238 = vld [vmem:[%s1 + $0x4f4] sm:$0xf]
  %v239 = vld [vmem:[%s1 + $0x4f8] sm:$0xff]
  %v240 = vld [vmem:[%s1 + $0x500] sm:$0xf]
  %v241 = vld [vmem:[%s1 + $0x504] sm:$0xff]
  %v242 = vld [vmem:[%s1 + $0x50c] sm:$0xf]
  %v243 = vld [vmem:[%s1 + $0x510] sm:$0xff]
  %v244 = vld [vmem:[%s1 + $0x518] sm:$0xf]
  %v245 = vld [vmem:[%s1 + $0x51c] sm:$0xff]
  %v246 = vld [vmem:[%s1 + $0x524] sm:$0xf]
  %v247 = vld [vmem:[%s1 + $0x528] sm:$0xff]
  %v248 = vld [vmem:[%s1 + $0x530] sm:$0xf]
  %v249 = vld [vmem:[%s1 + $0x534] sm:$0xff]
  %v250 = vld [vmem:[%s1 + $0x53c] sm:$0xf]
  %v251 = vld [vmem:[%s1 + $0x540] sm:$0xff]
  %v252 = vld [vmem:[%s1 + $0x548] sm:$0xf]
  %v253 = vld [vmem:[%s1 + $0x54c] sm:$0xff]
  %v254 = vld [vmem:[%s1 + $0x554] sm:$0xf]
  %v255 = vld [vmem:[%s1 + $0x558] sm:$0xff]
  %v256 = vld [vmem:[%s1 + $0x560] sm:$0xf]
  %v257 = vld [vmem:[%s1 + $0x564] sm:$0xff]
  %v258 = vld [vmem:[%s1 + $0x56c] sm:$0xf]
  %v259 = vld [vmem:[%s1 + $0x570] sm:$0xff]
  %v260 = vld [vmem:[%s1 + $0x578] sm:$0xf]
  %v261 = vld [vmem:[%s1 + $0x57c] sm:$0xff]
  %v262 = vld [vmem:[%s1 + $0x584] sm:$0xf]
  %v263 = vld [vmem:[%s1 + $0x588] sm:$0xff]
  %v264 = vld [vmem:[%s1 + $0x590] sm:$0xf]
  %v265 = vld [vmem:[%s1 + $0x594] sm:$0xff]
  %v266 = vld [vmem:[%s1 + $0x59c] sm:$0xf]
  %v267 = vld [vmem:[%s1 + $0x5a0] sm:$0xff]
  %v268 = vld [vmem:[%s1 + $0x5a8] sm:$0xf]
  %v269 = vld [vmem:[%s1 + $0x5ac] sm:$0xff]
  %v270 = vld [vmem:[%s1 + $0x5b4] sm:$0xf]
  %v271 = vld [vmem:[%s1 + $0x5b8] sm:$0xff]
  %v272 = vld [vmem:[%s1 + $0x5c0] sm:$0xf]
  %v273 = vld [vmem:[%s1 + $0x5c4] sm:$0xff]
  %v274 = vld [vmem:[%s1 + $0x5cc] sm:$0xf]
  %v275 = vld [vmem:[%s1 + $0x5d0] sm:$0xff]
  %v276 = vld [vmem:[%s1 + $0x5d8] sm:$0xf]
  %v277 = vld [vmem:[%s1 + $0x5dc] sm:$0xff]
  %v278 = vld [vmem:[%s1 + $0x5e4] sm:$0xf]
  %v279 = vld [vmem:[%s1 + $0x5e8] sm:$0xff]
  %v280 = vld [vmem:[%s1 + $0x5f0] sm:$0xf]
  %v281 = vld [vmem:[%s1 + $0x5f4] sm:$0xff]
  %v282 = vld [vmem:[%s1 + $0x5fc] sm:$0xf]
  %v283 = vld [vmem:[%s1 + $0x600] sm:$0xff]
  %v284 = vld [vmem:[%s1 + $0x608] sm:$0xf]
  %v285 = vld [vmem:[%s1 + $0x60c] sm:$0xff]
  %v286 = vld [vmem:[%s1 + $0x614] sm:$0xf]
  %v287 = vld [vmem:[%s1 + $0x618] sm:$0xff]
  %v288 = vld [vmem:[%s1 + $0x620] sm:$0xf]
  %v289 = vld [vmem:[%s1 + $0x624] sm:$0xff]
  %v290 = vld [vmem:[%s1 + $0x62c] sm:$0xf]
  %v291 = vld [vmem:[%s1 + $0x630] sm:$0xff]
  %v292 = vld [vmem:[%s1 + $0x638] sm:$0xf]
  %v293 = vld [vmem:[%s1 + $0x63c] sm:$0xff]
  %v294 = vld [vmem:[%s1 + $0x644] sm:$0xf]
  %v295 = vld [vmem:[%s1 + $0x648] sm:$0xff]
  %v296 = vld [vmem:[%s1 + $0x650] sm:$0xf]
  %v297 = vld [vmem:[%s1 + $0x654] sm:$0xff]
  %v298 = vld [vmem:[%s1 + $0x65c] sm:$0xf]
  %v299 = vld [vmem:[%s1 + $0x660] sm:$0xff]
  %v300 = vld [vmem:[%s1 + $0x668] sm:$0xf]
  %v301 = vld [vmem:[%s1 + $0x66c] sm:$0xff]
  %v302 = vld [vmem:[%s1 + $0x674] sm:$0xf]
  %v303 = vld [vmem:[%s1 + $0x678] sm:$0xff]
  %v304 = vld [vmem:[%s1 + $0x680] sm:$0xf]
  %v305 = vld [vmem:[%s1 + $0x684] sm:$0xff]
  %v306 = vld [vmem:[%s1 + $0x68c] sm:$0xf]
  %v307 = vld [vmem:[%s1 + $0x690] sm:$0xff]
  %v308 = vld [vmem:[%s1 + $0x698] sm:$0xf]
  %v309 = vld [vmem:[%s1 + $0x69c] sm:$0xff]
  %v310 = vld [vmem:[%s1 + $0x6a4] sm:$0xf]
  %v311 = vld [vmem:[%s1 + $0x6a8] sm:$0xff]
  %v312 = vld [vmem:[%s1 + $0x6b0] sm:$0xf]
  %v313 = vld [vmem:[%s1 + $0x6b4] sm:$0xff]
  %v314 = vld [vmem:[%s1 + $0x6bc] sm:$0xf]
  %v315 = vld [vmem:[%s1 + $0x6c0] sm:$0xff]
  %v316 = vld [vmem:[%s1 + $0x6c8] sm:$0xf]
  %v317 = vld [vmem:[%s1 + $0x6cc] sm:$0xff]
  %v318 = vld [vmem:[%s1 + $0x6d4] sm:$0xf]
  %v319 = vld [vmem:[%s1 + $0x6d8] sm:$0xff]
  %v320 = vld [vmem:[%s1 + $0x6e0] sm:$0xf]
  %v321 = vld [vmem:[%s1 + $0x6e4] sm:$0xff]
  %v322 = vld [vmem:[%s1 + $0x6ec] sm:$0xf]
  %v323 = vld [vmem:[%s1 + $0x6f0] sm:$0xff]
  %v324 = vld [vmem:[%s1 + $0x6f8] sm:$0xf]
  %v325 = vld [vmem:[%s1 + $0x6fc] sm:$0xff]
  %v326 = vld [vmem:[%s1 + $0x704] sm:$0xf]
  %v327 = vld [vmem:[%s1 + $0x708] sm:$0xff]
  %v328 = vld [vmem:[%s1 + $0x710] sm:$0xf]
  %v329 = vld [vmem:[%s1 + $0x714] sm:$0xff]
  %v330 = vld [vmem:[%s1 + $0x71c] sm:$0xf]
  %v331 = vld [vmem:[%s1 + $0x720] sm:$0xff]
  %v332 = vld [vmem:[%s1 + $0x728] sm:$0xf]
  %v333 = vld [vmem:[%s1 + $0x72c] sm:$0xff]
  %v334 = vld [vmem:[%s1 + $0x734] sm:$0xf]
  %v335 = vld [vmem:[%s1 + $0x738] sm:$0xff]
  %v336 = vld [vmem:[%s1 + $0x740] sm:$0xf]
  %v337 = vld [vmem:[%s1 + $0x744] sm:$0xff]
  %v338 = vld [vmem:[%s1 + $0x74c] sm:$0xf]
  %v339 = vld [vmem:[%s1 + $0x750] sm:$0xff]
  %v340 = vld [vmem:[%s1 + $0x758] sm:$0xf]
  %v341 = vld [vmem:[%s1 + $0x75c] sm:$0xff]
  %v342 = vld [vmem:[%s1 + $0x764] sm:$0xf]
  %v343 = vld [vmem:[%s1 + $0x768] sm:$0xff]
  %v344 = vld [vmem:[%s1 + $0x770] sm:$0xf]
  %v345 = vld [vmem:[%s1 + $0x774] sm:$0xff]
  %v346 = vld [vmem:[%s1 + $0x77c] sm:$0xf]
  %v347 = vld [vmem:[%s1 + $0x780] sm:$0xff]
  %v348 = vld [vmem:[%s1 + $0x788] sm:$0xf]
  %v349 = vld [vmem:[%s1 + $0x78c] sm:$0xff]
  %v350 = vld [vmem:[%s1 + $0x794] sm:$0xf]
  %v351 = vld [vmem:[%s1 + $0x798] sm:$0xff]
  %v352 = vld [vmem:[%s1 + $0x7a0] sm:$0xf]
  %v353 = vld [vmem:[%s1 + $0x7a4] sm:$0xff]
  %v354 = vld [vmem:[%s1 + $0x7ac] sm:$0xf]
  %v355 = vld [vmem:[%s1 + $0x7b0] sm:$0xff]
  %v356 = vld [vmem:[%s1 + $0x7b8] sm:$0xf]
  %v357 = vld [vmem:[%s1 + $0x7bc] sm:$0xff]
  %v358 = vld [vmem:[%s1 + $0x7c4] sm:$0xf]
  %v359 = vld [vmem:[%s1 + $0x7c8] sm:$0xff]
  %v360 = vld [vmem:[%s1 + $0x7d0] sm:$0xf]
  %v361 = vld [vmem:[%s1 + $0x7d4] sm:$0xff]
  %v362 = vld [vmem:[%s1 + $0x7dc] sm:$0xf]
  %v363 = vld [vmem:[%s1 + $0x7e0] sm:$0xff]
  %v364 = vld [vmem:[%s1 + $0x7e8] sm:$0xf]
  %v365 = vld [vmem:[%s1 + $0x7ec] sm:$0xff]
  %v366 = vld [vmem:[%s1 + $0x7f4] sm:$0xf]
  %v367 = vld [vmem:[%s1 + $0x7f8] sm:$0xff]
  %v368 = vld [vmem:[%s1 + $0x800] sm:$0xf]
  %v369 = vld [vmem:[%s1 + $0x804] sm:$0xff]
  %v370 = vld [vmem:[%s1 + $0x80c] sm:$0xf]
  %v371 = vld [vmem:[%s1 + $0x810] sm:$0xff]
  %v372 = vld [vmem:[%s1 + $0x818] sm:$0xf]
  %v373 = vld [vmem:[%s1 + $0x81c] sm:$0xff]
  %v374 = vld [vmem:[%s1 + $0x824] sm:$0xf]
  %v375 = vld [vmem:[%s1 + $0x828] sm:$0xff]
  %v376 = vld [vmem:[%s1 + $0x830] sm:$0xf]
  %v377 = vld [vmem:[%s1 + $0x834] sm:$0xff]
  %v378 = vld [vmem:[%s1 + $0x83c] sm:$0xf]
  %v379 = vld [vmem:[%s1 + $0x840] sm:$0xff]
  %v380 = vld [vmem:[%s1 + $0x848] sm:$0xf]
  %v381 = vld [vmem:[%s1 + $0x84c] sm:$0xff]
  %v382 = vld [vmem:[%s1 + $0x854] sm:$0xf]
  %v383 = vld [vmem:[%s1 + $0x858] sm:$0xff]
  %v384 = vld [vmem:[%s1 + $0x860] sm:$0xf]
  %v385 = vld [vmem:[%s1 + $0x864] sm:$0xff]
  %v386 = vld [vmem:[%s1 + $0x86c] sm:$0xf]
  %v387 = vld [vmem:[%s1 + $0x870] sm:$0xff]
  %v388 = vld [vmem:[%s1 + $0x878] sm:$0xf]
  %v389 = vld [vmem:[%s1 + $0x87c] sm:$0xff]
  %v390 = vld [vmem:[%s1 + $0x884] sm:$0xf]
  %v391 = vld [vmem:[%s1 + $0x888] sm:$0xff]
  %v392 = vld [vmem:[%s1 + $0x890] sm:$0xf]
  %v393 = vld [vmem:[%s1 + $0x894] sm:$0xff]
  %v394 = vld [vmem:[%s1 + $0x89c] sm:$0xf]
  %v395 = vld [vmem:[%s1 + $0x8a0] sm:$0xff]
  %v396 = vld [vmem:[%s1 + $0x8a8] sm:$0xf]
  %v397 = vld [vmem:[%s1 + $0x8ac] sm:$0xff]
  %v398 = vld [vmem:[%s1 + $0x8b4] sm:$0xf]
  %v399 = vld [vmem:[%s1 + $0x8b8] sm:$0xff]
  %v400 = vld [vmem:[%s1 + $0x8c0] sm:$0xf]
  %v401 = vld [vmem:[%s1 + $0x8c4] sm:$0xff]
  %v402 = vld [vmem:[%s1 + $0x8cc] sm:$0xf]
  %v403 = vld [vmem:[%s1 + $0x8d0] sm:$0xff]
  %v404 = vld [vmem:[%s1 + $0x8d8] sm:$0xf]
  %v405 = vld [vmem:[%s1 + $0x8dc] sm:$0xff]
  %v406 = vld [vmem:[%s1 + $0x8e4] sm:$0xf]
  %v407 = vld [vmem:[%s1 + $0x8e8] sm:$0xff]
  %v408 = vld [vmem:[%s1 + $0x8f0] sm:$0xf]
  %v409 = vld [vmem:[%s1 + $0x8f4] sm:$0xff]
  %v410 = vld [vmem:[%s1 + $0x8fc] sm:$0xf]
  %v411 = vld [vmem:[%s1 + $0x900] sm:$0xff]
  %v412 = vld [vmem:[%s1 + $0x908] sm:$0xf]
  %v413 = vld [vmem:[%s1 + $0x90c] sm:$0xff]
  %v414 = vld [vmem:[%s1 + $0x914] sm:$0xf]
  %v415 = vld [vmem:[%s1 + $0x918] sm:$0xff]
  %v416 = vld [vmem:[%s1 + $0x920] sm:$0xf]
  %v417 = vld [vmem:[%s1 + $0x924] sm:$0xff]
  %v418 = vld [vmem:[%s1 + $0x92c] sm:$0xf]
  %v419 = vld [vmem:[%s1 + $0x930] sm:$0xff]
  %v420 = vld [vmem:[%s1 + $0x938] sm:$0xf]
  %v421 = vld [vmem:[%s1 + $0x93c] sm:$0xff]
  %v422 = vld [vmem:[%s1 + $0x944] sm:$0xf]
  %v423 = vld [vmem:[%s1 + $0x948] sm:$0xff]
  %v424 = vld [vmem:[%s1 + $0x950] sm:$0xf]
  %v425 = vld [vmem:[%s1 + $0x954] sm:$0xff]
  %v426 = vld [vmem:[%s1 + $0x95c] sm:$0xf]
  %v427 = vld [vmem:[%s1 + $0x960] sm:$0xff]
  %v428 = vld [vmem:[%s1 + $0x968] sm:$0xf]
  %v429 = vld [vmem:[%s1 + $0x96c] sm:$0xff]
  %v430 = vld [vmem:[%s1 + $0x974] sm:$0xf]
  %v431 = vld [vmem:[%s1 + $0x978] sm:$0xff]
  %v432 = vld [vmem:[%s1 + $0x980] sm:$0xf]
  %v433 = vld [vmem:[%s1 + $0x984] sm:$0xff]
  %v434 = vld [vmem:[%s1 + $0x98c] sm:$0xf]
  %v435 = vld [vmem:[%s1 + $0x990] sm:$0xff]
  %v436 = vld [vmem:[%s1 + $0x998] sm:$0xf]
  %v437 = vld [vmem:[%s1 + $0x99c] sm:$0xff]
  %v438 = vld [vmem:[%s1 + $0x9a4] sm:$0xf]
  %v439 = vld [vmem:[%s1 + $0x9a8] sm:$0xff]
  %v440 = vld [vmem:[%s1 + $0x9b0] sm:$0xf]
  %v441 = vld [vmem:[%s1 + $0x9b4] sm:$0xff]
  %v442 = vld [vmem:[%s1 + $0x9bc] sm:$0xf]
  %v443 = vld [vmem:[%s1 + $0x9c0] sm:$0xff]
  %v444 = vld [vmem:[%s1 + $0x9c8] sm:$0xf]
  %v445 = vld [vmem:[%s1 + $0x9cc] sm:$0xff]
  %v446 = vld [vmem:[%s1 + $0x9d4] sm:$0xf]
  %v447 = vld [vmem:[%s1 + $0x9d8] sm:$0xff]
  %v448 = vld [vmem:[%s1 + $0x9e0] sm:$0xf]
  %v449 = vld [vmem:[%s1 + $0x9e4] sm:$0xff]
  %v450 = vld [vmem:[%s1 + $0x9ec] sm:$0xf]
  %v451 = vld [vmem:[%s1 + $0x9f0] sm:$0xff]
  %v452 = vld [vmem:[%s1 + $0x9f8] sm:$0xf]
  %v453 = vld [vmem:[%s1 + $0x9fc] sm:$0xff]
  %v454 = vld [vmem:[%s1 + $0xa04] sm:$0xf]
  %v455 = vld [vmem:[%s1 + $0xa08] sm:$0xff]
  %v456 = vld [vmem:[%s1 + $0xa10] sm:$0xf]
  %v457 = vld [vmem:[%s1 + $0xa14] sm:$0xff]
  %v458 = vld [vmem:[%s1 + $0xa1c] sm:$0xf]
  %v459 = vld [vmem:[%s1 + $0xa20] sm:$0xff]
  %v460 = vld [vmem:[%s1 + $0xa28] sm:$0xf]
  %v461 = vld [vmem:[%s1 + $0xa2c] sm:$0xff]
  %v462 = vld [vmem:[%s1 + $0xa34] sm:$0xf]
  %v463 = vld [vmem:[%s1 + $0xa38] sm:$0xff]
  %v464 = vld [vmem:[%s1 + $0xa40] sm:$0xf]
  %v465 = vld [vmem:[%s1 + $0xa44] sm:$0xff]
  %v466 = vld [vmem:[%s1 + $0xa4c] sm:$0xf]
  %v467 = vld [vmem:[%s1 + $0xa50] sm:$0xff]
  %v468 = vld [vmem:[%s1 + $0xa58] sm:$0xf]
  %v469 = vld [vmem:[%s1 + $0xa5c] sm:$0xff]
  %v470 = vld [vmem:[%s1 + $0xa64] sm:$0xf]
  %v471 = vld [vmem:[%s1 + $0xa68] sm:$0xff]
  %v472 = vld [vmem:[%s1 + $0xa70] sm:$0xf]
  %v473 = vld [vmem:[%s1 + $0xa74] sm:$0xff]
  %v474 = vld [vmem:[%s1 + $0xa7c] sm:$0xf]
  %v475 = vld [vmem:[%s1 + $0xa80] sm:$0xff]
  %v476 = vld [vmem:[%s1 + $0xa88] sm:$0xf]
  %v477 = vld [vmem:[%s1 + $0xa8c] sm:$0xff]
  %v478 = vld [vmem:[%s1 + $0xa94] sm:$0xf]
  %v479 = vld [vmem:[%s1 + $0xa98] sm:$0xff]
  %v480 = vld [vmem:[%s1 + $0xaa0] sm:$0xf]
  %v481 = vld [vmem:[%s1 + $0xaa4] sm:$0xff]
  %v482 = vld [vmem:[%s1 + $0xaac] sm:$0xf]
  %v483 = vld [vmem:[%s1 + $0xab0] sm:$0xff]
  %v484 = vld [vmem:[%s1 + $0xab8] sm:$0xf]
  %v485 = vld [vmem:[%s1 + $0xabc] sm:$0xff]
  %v486 = vld [vmem:[%s1 + $0xac4] sm:$0xf]
  %v487 = vld [vmem:[%s1 + $0xac8] sm:$0xff]
  %v488 = vld [vmem:[%s1 + $0xad0] sm:$0xf]
  %v489 = vld [vmem:[%s1 + $0xad4] sm:$0xff]
  %v490 = vld [vmem:[%s1 + $0xadc] sm:$0xf]
  %v491 = vld [vmem:[%s1 + $0xae0] sm:$0xff]
  %v492 = vld [vmem:[%s1 + $0xae8] sm:$0xf]
  %v493 = vld [vmem:[%s1 + $0xaec] sm:$0xff]
  %v494 = vld [vmem:[%s1 + $0xaf4] sm:$0xf]
  %v495 = vld [vmem:[%s1 + $0xaf8] sm:$0xff]
  %v496 = vld [vmem:[%s1 + $0xb00] sm:$0xf]
  %v497 = vld [vmem:[%s1 + $0xb04] sm:$0xff]
  %v498 = vld [vmem:[%s1 + $0xb0c] sm:$0xf]
  %v499 = vld [vmem:[%s1 + $0xb10] sm:$0xff]
  %v500 = vld [vmem:[%s1 + $0xb18] sm:$0xf]
  %v501 = vld [vmem:[%s1 + $0xb1c] sm:$0xff]
  %v502 = vld [vmem:[%s1 + $0xb24] sm:$0xf]
  %v503 = vld [vmem:[%s1 + $0xb28] sm:$0xff]
  %v504 = vld [vmem:[%s1 + $0xb30] sm:$0xf]
  %v505 = vld [vmem:[%s1 + $0xb34] sm:$0xff]
  %v506 = vld [vmem:[%s1 + $0xb3c] sm:$0xf]
  %v507 = vld [vmem:[%s1 + $0xb40] sm:$0xff]
  %v508 = vld [vmem:[%s1 + $0xb48] sm:$0xf]
  %v509 = vld [vmem:[%s1 + $0xb4c] sm:$0xff]
  %v510 = vld [vmem:[%s1 + $0xb54] sm:$0xf]
  %v511 = vld [vmem:[%s1 + $0xb58] sm:$0xff]
  %v512 = vld [vmem:[%s1 + $0xb60] sm:$0xf]
  %v513 = vld [vmem:[%s1 + $0xb64] sm:$0xff]
  %v514 = vld [vmem:[%s1 + $0xb6c] sm:$0xf]
  %v515 = vld [vmem:[%s1 + $0xb70] sm:$0xff]
  %v516 = vld [vmem:[%s1 + $0xb78] sm:$0xf]
  %v517 = vld [vmem:[%s1 + $0xb7c] sm:$0xff]
  %v518 = vld [vmem:[%s1 + $0xb84] sm:$0xf]
  %v519 = vld [vmem:[%s1 + $0xb88] sm:$0xff]
  %v520 = vld [vmem:[%s1 + $0xb90] sm:$0xf]
  %v521 = vld [vmem:[%s1 + $0xb94] sm:$0xff]
  %v522 = vld [vmem:[%s1 + $0xb9c] sm:$0xf]
  %v523 = vld [vmem:[%s1 + $0xba0] sm:$0xff]
  %v524 = vld [vmem:[%s1 + $0xba8] sm:$0xf]
  %v525 = vld [vmem:[%s1 + $0xbac] sm:$0xff]
  %v526 = vld [vmem:[%s1 + $0xbb4] sm:$0xf]
  %v527 = vld [vmem:[%s1 + $0xbb8] sm:$0xff]
  %v528 = vld [vmem:[%s1 + $0xbc0] sm:$0xf]
  %v529 = vld [vmem:[%s1 + $0xbc4] sm:$0xff]
  %v530 = vld [vmem:[%s1 + $0xbcc] sm:$0xf]
  %v531 = vld [vmem:[%s1 + $0xbd0] sm:$0xff]
  %v532 = vld [vmem:[%s1 + $0xbd8] sm:$0xf]
  %v533 = vld [vmem:[%s1 + $0xbdc] sm:$0xff]
  %v534 = vld [vmem:[%s1 + $0xbe4] sm:$0xf]
  %v535 = vld [vmem:[%s1 + $0xbe8] sm:$0xff]
  %v536 = vld [vmem:[%s1 + $0xbf0] sm:$0xf]
  %v537 = vld [vmem:[%s1 + $0xbf4] sm:$0xff]
  %v538 = vld [vmem:[%s1 + $0xbfc] sm:$0xf]
  %v539 = vld [vmem:[%s1 + $0xc00] sm:$0xff]
  %v540 = vld [vmem:[%s1 + $0xc08] sm:$0xf]
  %v541 = vld [vmem:[%s1 + $0xc0c] sm:$0xff]
  %v542 = vld [vmem:[%s1 + $0xc14] sm:$0xf]
  %v543 = vld [vmem:[%s1 + $0xc18] sm:$0xff]
  %v544 = vld [vmem:[%s1 + $0xc20] sm:$0xf]
  %v545 = vld [vmem:[%s1 + $0xc24] sm:$0xff]
  %v546 = vld [vmem:[%s1 + $0xc2c] sm:$0xf]
  %v547 = vld [vmem:[%s1 + $0xc30] sm:$0xff]
  %v548 = vld [vmem:[%s1 + $0xc38] sm:$0xf]
  %v549 = vld [vmem:[%s1 + $0xc3c] sm:$0xff]
  %v550 = vld [vmem:[%s1 + $0xc44] sm:$0xf]
  %v551 = vld [vmem:[%s1 + $0xc48] sm:$0xff]
  %v552 = vld [vmem:[%s1 + $0xc50] sm:$0xf]
  %v553 = vld [vmem:[%s1 + $0xc54] sm:$0xff]
  %v554 = vld [vmem:[%s1 + $0xc5c] sm:$0xf]
  %v555 = vld [vmem:[%s1 + $0xc60] sm:$0xff]
  %v556 = vld [vmem:[%s1 + $0xc68] sm:$0xf]
  %v557 = vld [vmem:[%s1 + $0xc6c] sm:$0xff]
  %v558 = vld [vmem:[%s1 + $0xc74] sm:$0xf]
  %v559 = vld [vmem:[%s1 + $0xc78] sm:$0xff]
  %v560 = vld [vmem:[%s1 + $0xc80] sm:$0xf]
  %v561 = vld [vmem:[%s1 + $0xc84] sm:$0xff]
  %v562 = vld [vmem:[%s1 + $0xc8c] sm:$0xf]
  %v563 = vld [vmem:[%s1 + $0xc90] sm:$0xff]
  %v564 = vld [vmem:[%s1 + $0xc98] sm:$0xf]
  %v565 = vld [vmem:[%s1 + $0xc9c] sm:$0xff]
  %v566 = vld [vmem:[%s1 + $0xca4] sm:$0xf]
  %v567 = vld [vmem:[%s1 + $0xca8] sm:$0xff]
  %v568 = vld [vmem:[%s1 + $0xcb0] sm:$0xf]
  %v569 = vld [vmem:[%s1 + $0xcb4] sm:$0xff]
  %v570 = vld [vmem:[%s1 + $0xcbc] sm:$0xf]
  %v571 = vld [vmem:[%s1 + $0xcc0] sm:$0xff]
  %v572 = vld [vmem:[%s1 + $0xcc8] sm:$0xf]
  %v573 = vld [vmem:[%s1 + $0xccc] sm:$0xff]
  %v574 = vld [vmem:[%s1 + $0xcd4] sm:$0xf]
  %v575 = vld [vmem:[%s1 + $0xcd8] sm:$0xff]
  %v576 = vld [vmem:[%s1 + $0xce0] sm:$0xf]
  %v577 = vld [vmem:[%s1 + $0xce4] sm:$0xff]
  %v578 = vld [vmem:[%s1 + $0xcec] sm:$0xf]
  %v579 = vld [vmem:[%s1 + $0xcf0] sm:$0xff]
  %v580 = vld [vmem:[%s1 + $0xcf8] sm:$0xf]
  %v581 = vld [vmem:[%s1 + $0xcfc] sm:$0xff]
  %v582 = vld [vmem:[%s1 + $0xd04] sm:$0xf]
  %v583 = vld [vmem:[%s1 + $0xd08] sm:$0xff]
  %v584 = vld [vmem:[%s1 + $0xd10] sm:$0xf]
  %v585 = vld [vmem:[%s1 + $0xd14] sm:$0xff]
  %v586 = vld [vmem:[%s1 + $0xd1c] sm:$0xf]
  %v587 = vld [vmem:[%s1 + $0xd20] sm:$0xff]
  %v588 = vld [vmem:[%s1 + $0xd28] sm:$0xf]
  %v589 = vld [vmem:[%s1 + $0xd2c] sm:$0xff]
  %v590 = vld [vmem:[%s1 + $0xd34] sm:$0xf]
  %v591 = vld [vmem:[%s1 + $0xd38] sm:$0xff]
  %v592 = vld [vmem:[%s1 + $0xd40] sm:$0xf]
  %v593 = vld [vmem:[%s1 + $0xd44] sm:$0xff]
  %v594 = vld [vmem:[%s1 + $0xd4c] sm:$0xf]
  %v595 = vld [vmem:[%s1 + $0xd50] sm:$0xff]
  %v596 = vld [vmem:[%s1 + $0xd58] sm:$0xf]
  %v597 = vld [vmem:[%s1 + $0xd5c] sm:$0xff]
  %v598 = vld [vmem:[%s1 + $0xd64] sm:$0xf]
  %v599 = vld [vmem:[%s1 + $0xd68] sm:$0xff]
  %v600 = vld [vmem:[%s1 + $0xd70] sm:$0xf]
  %v601 = vld [vmem:[%s1 + $0xd74] sm:$0xff]
  %v602 = vld [vmem:[%s1 + $0xd7c] sm:$0xf]
  %v612 = vunpack.c.l.b16 %v18
  %v613 = vunpack.c.h.b16 %v18
  %v614 = vunpack.c.l.b16 %v19
  %v615 = vunpack.c.h.b16 %v19
  %v616 = vunpack.c.l.b16 %v20
  %v617 = vunpack.c.h.b16 %v20
  %v618 = vunpack.c.l.b16 %v21
  %v619 = vunpack.c.h.b16 %v21
  %v620 = vunpack.c.l.b16 %v22
  %v621 = vunpack.c.h.b16 %v22
  %v622 = vunpack.c.l.b16 %v23
  %v623 = vunpack.c.h.b16 %v23
  %v624 = vunpack.c.l.b16 %v24
  %v625 = vunpack.c.h.b16 %v24
  %v626 = vunpack.c.l.b16 %v25
  %v627 = vunpack.c.h.b16 %v25
  %v628 = vunpack.c.l.b16 %v26
  %v629 = vunpack.c.h.b16 %v26
  %v630 = vpack.c.b16 %v612, %v612
  %v631 = vpack.c.b16 %v613, %v613
  %v632 = vpack.c.b16 %v614, %v614
  %v633 = vpack.c.b16 %v615, %v615
  %v634 = vpack.c.b16 %v616, %v616
  %v635 = vpack.c.b16 %v617, %v617
  %v636 = vpack.c.b16 %v618, %v618
  %v637 = vpack.c.b16 %v619, %v619
  %v638 = vpack.c.b16 %v620, %v620
  %v639 = vpack.c.b16 %v621, %v621
  %v640 = vpack.c.b16 %v622, %v622
  %v641 = vpack.c.b16 %v623, %v623
  %v642 = vpack.c.b16 %v624, %v624
  %v643 = vpack.c.b16 %v625, %v625
  %v644 = vpack.c.b16 %v626, %v626
  %v645 = vpack.c.b16 %v627, %v627
  %v646 = vpack.c.b16 %v628, %v628
  %v647 = vpack.c.b16 %v629, %v629
  %v1242 = vunpack.c.l.b16 %v27
  %v1243 = vunpack.c.h.b16 %v27
  %v1244 = vunpack.c.l.b16 %v28
  %v1245 = vunpack.c.l.b16 %v29
  %v1246 = vunpack.c.h.b16 %v29
  %v1247 = vunpack.c.l.b16 %v30
  %v1248 = vunpack.c.l.b16 %v31
  %v1249 = vunpack.c.h.b16 %v31
  %v1250 = vunpack.c.l.b16 %v32
  %v1251 = vunpack.c.l.b16 %v33
  %v1252 = vunpack.c.h.b16 %v33
  %v1253 = vunpack.c.l.b16 %v34
  %v1254 = vunpack.c.l.b16 %v35
  %v1255 = vunpack.c.h.b16 %v35
  %v1256 = vunpack.c.l.b16 %v36
  %v1257 = vunpack.c.l.b16 %v37
  %v1258 = vunpack.c.h.b16 %v37
  %v1259 = vunpack.c.l.b16 %v38
  %v1260 = vunpack.c.l.b16 %v39
  %v1261 = vunpack.c.h.b16 %v39
  %v1262 = vunpack.c.l.b16 %v40
  %v1263 = vunpack.c.l.b16 %v41
  %v1264 = vunpack.c.h.b16 %v41
  %v1265 = vunpack.c.l.b16 %v42
  %v1266 = vunpack.c.l.b16 %v43
  %v1267 = vunpack.c.h.b16 %v43
  %v1268 = vunpack.c.l.b16 %v44
  %v1269 = vunpack.c.l.b16 %v45
  %v1270 = vunpack.c.h.b16 %v45
  %v1271 = vunpack.c.l.b16 %v46
  %v1272 = vunpack.c.l.b16 %v47
  %v1273 = vunpack.c.h.b16 %v47
  %v1274 = vunpack.c.l.b16 %v48
  %v1275 = vunpack.c.l.b16 %v49
  %v1276 = vunpack.c.h.b16 %v49
  %v1277 = vunpack.c.l.b16 %v50
  %v1278 = vunpack.c.l.b16 %v51
  %v1279 = vunpack.c.h.b16 %v51
  %v1280 = vunpack.c.l.b16 %v52
  %v1281 = vunpack.c.l.b16 %v53
  %v1282 = vunpack.c.h.b16 %v53
  %v1283 = vunpack.c.l.b16 %v54
  %v1284 = vunpack.c.l.b16 %v55
  %v1285 = vunpack.c.h.b16 %v55
  %v1286 = vunpack.c.l.b16 %v56
  %v1287 = vunpack.c.l.b16 %v57
  %v1288 = vunpack.c.h.b16 %v57
  %v1289 = vunpack.c.l.b16 %v58
  %v1290 = vunpack.c.l.b16 %v59
  %v1291 = vunpack.c.h.b16 %v59
  %v1292 = vunpack.c.l.b16 %v60
  %v1293 = vunpack.c.l.b16 %v61
  %v1294 = vunpack.c.h.b16 %v61
  %v1295 = vunpack.c.l.b16 %v62
  %v1296 = vunpack.c.l.b16 %v63
  %v1297 = vunpack.c.h.b16 %v63
  %v1298 = vunpack.c.l.b16 %v64
  %v1299 = vunpack.c.l.b16 %v65
  %v1300 = vunpack.c.h.b16 %v65
  %v1301 = vunpack.c.l.b16 %v66
  %v1302 = vunpack.c.l.b16 %v67
  %v1303 = vunpack.c.h.b16 %v67
  %v1304 = vunpack.c.l.b16 %v68
  %v1305 = vunpack.c.l.b16 %v69
  %v1306 = vunpack.c.h.b16 %v69
  %v1307 = vunpack.c.l.b16 %v70
  %v1308 = vunpack.c.l.b16 %v71
  %v1309 = vunpack.c.h.b16 %v71
  %v1310 = vunpack.c.l.b16 %v72
  %v1311 = vunpack.c.l.b16 %v73
  %v1312 = vunpack.c.h.b16 %v73
  %v1313 = vunpack.c.l.b16 %v74
  %v1314 = vunpack.c.l.b16 %v75
  %v1315 = vunpack.c.h.b16 %v75
  %v1316 = vunpack.c.l.b16 %v76
  %v1317 = vunpack.c.l.b16 %v77
  %v1318 = vunpack.c.h.b16 %v77
  %v1319 = vunpack.c.l.b16 %v78
  %v1320 = vunpack.c.l.b16 %v79
  %v1321 = vunpack.c.h.b16 %v79
  %v1322 = vunpack.c.l.b16 %v80
  %v1323 = vunpack.c.l.b16 %v81
  %v1324 = vunpack.c.h.b16 %v81
  %v1325 = vunpack.c.l.b16 %v82
  %v1326 = vunpack.c.l.b16 %v83
  %v1327 = vunpack.c.h.b16 %v83
  %v1328 = vunpack.c.l.b16 %v84
  %v1329 = vunpack.c.l.b16 %v85
  %v1330 = vunpack.c.h.b16 %v85
  %v1331 = vunpack.c.l.b16 %v86
  %v1332 = vunpack.c.l.b16 %v87
  %v1333 = vunpack.c.h.b16 %v87
  %v1334 = vunpack.c.l.b16 %v88
  %v1335 = vunpack.c.l.b16 %v89
  %v1336 = vunpack.c.h.b16 %v89
  %v1337 = vunpack.c.l.b16 %v90
  %v1338 = vunpack.c.l.b16 %v91
  %v1339 = vunpack.c.h.b16 %v91
  %v1340 = vunpack.c.l.b16 %v92
  %v1341 = vunpack.c.l.b16 %v93
  %v1342 = vunpack.c.h.b16 %v93
  %v1343 = vunpack.c.l.b16 %v94
  %v1344 = vunpack.c.l.b16 %v95
  %v1345 = vunpack.c.h.b16 %v95
  %v1346 = vunpack.c.l.b16 %v96
  %v1347 = vunpack.c.l.b16 %v97
  %v1348 = vunpack.c.h.b16 %v97
  %v1349 = vunpack.c.l.b16 %v98
  %v1350 = vunpack.c.l.b16 %v99
  %v1351 = vunpack.c.h.b16 %v99
  %v1352 = vunpack.c.l.b16 %v100
  %v1353 = vunpack.c.l.b16 %v101
  %v1354 = vunpack.c.h.b16 %v101
  %v1355 = vunpack.c.l.b16 %v102
  %v1356 = vunpack.c.l.b16 %v103
  %v1357 = vunpack.c.h.b16 %v103
  %v1358 = vunpack.c.l.b16 %v104
  %v1359 = vunpack.c.l.b16 %v105
  %v1360 = vunpack.c.h.b16 %v105
  %v1361 = vunpack.c.l.b16 %v106
  %v1362 = vunpack.c.l.b16 %v107
  %v1363 = vunpack.c.h.b16 %v107
  %v1364 = vunpack.c.l.b16 %v108
  %v1365 = vunpack.c.l.b16 %v109
  %v1366 = vunpack.c.h.b16 %v109
  %v1367 = vunpack.c.l.b16 %v110
  %v1368 = vunpack.c.l.b16 %v111
  %v1369 = vunpack.c.h.b16 %v111
  %v1370 = vunpack.c.l.b16 %v112
  %v1371 = vunpack.c.l.b16 %v113
  %v1372 = vunpack.c.h.b16 %v113
  %v1373 = vunpack.c.l.b16 %v114
  %v1374 = vunpack.c.l.b16 %v115
  %v1375 = vunpack.c.h.b16 %v115
  %v1376 = vunpack.c.l.b16 %v116
  %v1377 = vunpack.c.l.b16 %v117
  %v1378 = vunpack.c.h.b16 %v117
  %v1379 = vunpack.c.l.b16 %v118
  %v1380 = vunpack.c.l.b16 %v119
  %v1381 = vunpack.c.h.b16 %v119
  %v1382 = vunpack.c.l.b16 %v120
  %v1383 = vunpack.c.l.b16 %v121
  %v1384 = vunpack.c.h.b16 %v121
  %v1385 = vunpack.c.l.b16 %v122
  %v1386 = vunpack.c.l.b16 %v123
  %v1387 = vunpack.c.h.b16 %v123
  %v1388 = vunpack.c.l.b16 %v124
  %v1389 = vunpack.c.l.b16 %v125
  %v1390 = vunpack.c.h.b16 %v125
  %v1391 = vunpack.c.l.b16 %v126
  %v1392 = vunpack.c.l.b16 %v127
  %v1393 = vunpack.c.h.b16 %v127
  %v1394 = vunpack.c.l.b16 %v128
  %v1395 = vunpack.c.l.b16 %v129
  %v1396 = vunpack.c.h.b16 %v129
  %v1397 = vunpack.c.l.b16 %v130
  %v1398 = vunpack.c.l.b16 %v131
  %v1399 = vunpack.c.h.b16 %v131
  %v1400 = vunpack.c.l.b16 %v132
  %v1401 = vunpack.c.l.b16 %v133
  %v1402 = vunpack.c.h.b16 %v133
  %v1403 = vunpack.c.l.b16 %v134
  %v1404 = vunpack.c.l.b16 %v135
  %v1405 = vunpack.c.h.b16 %v135
  %v1406 = vunpack.c.l.b16 %v136
  %v1407 = vunpack.c.l.b16 %v137
  %v1408 = vunpack.c.h.b16 %v137
  %v1409 = vunpack.c.l.b16 %v138
  %v1410 = vunpack.c.l.b16 %v139
  %v1411 = vunpack.c.h.b16 %v139
  %v1412 = vunpack.c.l.b16 %v140
  %v1413 = vunpack.c.l.b16 %v141
  %v1414 = vunpack.c.h.b16 %v141
  %v1415 = vunpack.c.l.b16 %v142
  %v1416 = vunpack.c.l.b16 %v143
  %v1417 = vunpack.c.h.b16 %v143
  %v1418 = vunpack.c.l.b16 %v144
  %v1419 = vunpack.c.l.b16 %v145
  %v1420 = vunpack.c.h.b16 %v145
  %v1421 = vunpack.c.l.b16 %v146
  %v1422 = vunpack.c.l.b16 %v147
  %v1423 = vunpack.c.h.b16 %v147
  %v1424 = vunpack.c.l.b16 %v148
  %v1425 = vunpack.c.l.b16 %v149
  %v1426 = vunpack.c.h.b16 %v149
  %v1427 = vunpack.c.l.b16 %v150
  %v1428 = vunpack.c.l.b16 %v151
  %v1429 = vunpack.c.h.b16 %v151
  %v1430 = vunpack.c.l.b16 %v152
  %v1431 = vunpack.c.l.b16 %v153
  %v1432 = vunpack.c.h.b16 %v153
  %v1433 = vunpack.c.l.b16 %v154
  %v1434 = vunpack.c.l.b16 %v155
  %v1435 = vunpack.c.h.b16 %v155
  %v1436 = vunpack.c.l.b16 %v156
  %v1437 = vunpack.c.l.b16 %v157
  %v1438 = vunpack.c.h.b16 %v157
  %v1439 = vunpack.c.l.b16 %v158
  %v1440 = vunpack.c.l.b16 %v159
  %v1441 = vunpack.c.h.b16 %v159
  %v1442 = vunpack.c.l.b16 %v160
  %v1443 = vunpack.c.l.b16 %v161
  %v1444 = vunpack.c.h.b16 %v161
  %v1445 = vunpack.c.l.b16 %v162
  %v1446 = vunpack.c.l.b16 %v163
  %v1447 = vunpack.c.h.b16 %v163
  %v1448 = vunpack.c.l.b16 %v164
  %v1449 = vunpack.c.l.b16 %v165
  %v1450 = vunpack.c.h.b16 %v165
  %v1451 = vunpack.c.l.b16 %v166
  %v1452 = vunpack.c.l.b16 %v167
  %v1453 = vunpack.c.h.b16 %v167
  %v1454 = vunpack.c.l.b16 %v168
  %v1455 = vunpack.c.l.b16 %v169
  %v1456 = vunpack.c.h.b16 %v169
  %v1457 = vunpack.c.l.b16 %v170
  %v1458 = vunpack.c.l.b16 %v171
  %v1459 = vunpack.c.h.b16 %v171
  %v1460 = vunpack.c.l.b16 %v172
  %v1461 = vunpack.c.l.b16 %v173
  %v1462 = vunpack.c.h.b16 %v173
  %v1463 = vunpack.c.l.b16 %v174
  %v1464 = vunpack.c.l.b16 %v175
  %v1465 = vunpack.c.h.b16 %v175
  %v1466 = vunpack.c.l.b16 %v176
  %v1467 = vunpack.c.l.b16 %v177
  %v1468 = vunpack.c.h.b16 %v177
  %v1469 = vunpack.c.l.b16 %v178
  %v1470 = vunpack.c.l.b16 %v179
  %v1471 = vunpack.c.h.b16 %v179
  %v1472 = vunpack.c.l.b16 %v180
  %v1473 = vunpack.c.l.b16 %v181
  %v1474 = vunpack.c.h.b16 %v181
  %v1475 = vunpack.c.l.b16 %v182
  %v1476 = vunpack.c.l.b16 %v183
  %v1477 = vunpack.c.h.b16 %v183
  %v1478 = vunpack.c.l.b16 %v184
  %v1479 = vunpack.c.l.b16 %v185
  %v1480 = vunpack.c.h.b16 %v185
  %v1481 = vunpack.c.l.b16 %v186
  %v1482 = vunpack.c.l.b16 %v187
  %v1483 = vunpack.c.h.b16 %v187
  %v1484 = vunpack.c.l.b16 %v188
  %v1485 = vunpack.c.l.b16 %v189
  %v1486 = vunpack.c.h.b16 %v189
  %v1487 = vunpack.c.l.b16 %v190
  %v1488 = vunpack.c.l.b16 %v191
  %v1489 = vunpack.c.h.b16 %v191
  %v1490 = vunpack.c.l.b16 %v192
  %v1491 = vunpack.c.l.b16 %v193
  %v1492 = vunpack.c.h.b16 %v193
  %v1493 = vunpack.c.l.b16 %v194
  %v1494 = vunpack.c.l.b16 %v195
  %v1495 = vunpack.c.h.b16 %v195
  %v1496 = vunpack.c.l.b16 %v196
  %v1497 = vunpack.c.l.b16 %v197
  %v1498 = vunpack.c.h.b16 %v197
  %v1499 = vunpack.c.l.b16 %v198
  %v1500 = vunpack.c.l.b16 %v199
  %v1501 = vunpack.c.h.b16 %v199
  %v1502 = vunpack.c.l.b16 %v200
  %v1503 = vunpack.c.l.b16 %v201
  %v1504 = vunpack.c.h.b16 %v201
  %v1505 = vunpack.c.l.b16 %v202
  %v1506 = vunpack.c.l.b16 %v203
  %v1507 = vunpack.c.h.b16 %v203
  %v1508 = vunpack.c.l.b16 %v204
  %v1509 = vunpack.c.l.b16 %v205
  %v1510 = vunpack.c.h.b16 %v205
  %v1511 = vunpack.c.l.b16 %v206
  %v1512 = vunpack.c.l.b16 %v207
  %v1513 = vunpack.c.h.b16 %v207
  %v1514 = vunpack.c.l.b16 %v208
  %v1515 = vunpack.c.l.b16 %v209
  %v1516 = vunpack.c.h.b16 %v209
  %v1517 = vunpack.c.l.b16 %v210
  %v1518 = vunpack.c.l.b16 %v211
  %v1519 = vunpack.c.h.b16 %v211
  %v1520 = vunpack.c.l.b16 %v212
  %v1521 = vunpack.c.l.b16 %v213
  %v1522 = vunpack.c.h.b16 %v213
  %v1523 = vunpack.c.l.b16 %v214
  %v1524 = vunpack.c.l.b16 %v215
  %v1525 = vunpack.c.h.b16 %v215
  %v1526 = vunpack.c.l.b16 %v216
  %v1527 = vunpack.c.l.b16 %v217
  %v1528 = vunpack.c.h.b16 %v217
  %v1529 = vunpack.c.l.b16 %v218
  %v1530 = vunpack.c.l.b16 %v219
  %v1531 = vunpack.c.h.b16 %v219
  %v1532 = vunpack.c.l.b16 %v220
  %v1533 = vunpack.c.l.b16 %v221
  %v1534 = vunpack.c.h.b16 %v221
  %v1535 = vunpack.c.l.b16 %v222
  %v1536 = vunpack.c.l.b16 %v223
  %v1537 = vunpack.c.h.b16 %v223
  %v1538 = vunpack.c.l.b16 %v224
  %v1539 = vunpack.c.l.b16 %v225
  %v1540 = vunpack.c.h.b16 %v225
  %v1541 = vunpack.c.l.b16 %v226
  %v1542 = vunpack.c.l.b16 %v227
  %v1543 = vunpack.c.h.b16 %v227
  %v1544 = vunpack.c.l.b16 %v228
  %v1545 = vunpack.c.l.b16 %v229
  %v1546 = vunpack.c.h.b16 %v229
  %v1547 = vunpack.c.l.b16 %v230
  %v1548 = vunpack.c.l.b16 %v231
  %v1549 = vunpack.c.h.b16 %v231
  %v1550 = vunpack.c.l.b16 %v232
  %v1551 = vunpack.c.l.b16 %v233
  %v1552 = vunpack.c.h.b16 %v233
  %v1553 = vunpack.c.l.b16 %v234
  %v1554 = vunpack.c.l.b16 %v235
  %v1555 = vunpack.c.h.b16 %v235
  %v1556 = vunpack.c.l.b16 %v236
  %v1557 = vunpack.c.l.b16 %v237
  %v1558 = vunpack.c.h.b16 %v237
  %v1559 = vunpack.c.l.b16 %v238
  %v1560 = vunpack.c.l.b16 %v239
  %v1561 = vunpack.c.h.b16 %v239
  %v1562 = vunpack.c.l.b16 %v240
  %v1563 = vunpack.c.l.b16 %v241
  %v1564 = vunpack.c.h.b16 %v241
  %v1565 = vunpack.c.l.b16 %v242
  %v1566 = vunpack.c.l.b16 %v243
  %v1567 = vunpack.c.h.b16 %v243
  %v1568 = vunpack.c.l.b16 %v244
  %v1569 = vunpack.c.l.b16 %v245
  %v1570 = vunpack.c.h.b16 %v245
  %v1571 = vunpack.c.l.b16 %v246
  %v1572 = vunpack.c.l.b16 %v247
  %v1573 = vunpack.c.h.b16 %v247
  %v1574 = vunpack.c.l.b16 %v248
  %v1575 = vunpack.c.l.b16 %v249
  %v1576 = vunpack.c.h.b16 %v249
  %v1577 = vunpack.c.l.b16 %v250
  %v1578 = vunpack.c.l.b16 %v251
  %v1579 = vunpack.c.h.b16 %v251
  %v1580 = vunpack.c.l.b16 %v252
  %v1581 = vunpack.c.l.b16 %v253
  %v1582 = vunpack.c.h.b16 %v253
  %v1583 = vunpack.c.l.b16 %v254
  %v1584 = vunpack.c.l.b16 %v255
  %v1585 = vunpack.c.h.b16 %v255
  %v1586 = vunpack.c.l.b16 %v256
  %v1587 = vunpack.c.l.b16 %v257
  %v1588 = vunpack.c.h.b16 %v257
  %v1589 = vunpack.c.l.b16 %v258
  %v1590 = vunpack.c.l.b16 %v259
  %v1591 = vunpack.c.h.b16 %v259
  %v1592 = vunpack.c.l.b16 %v260
  %v1593 = vunpack.c.l.b16 %v261
  %v1594 = vunpack.c.h.b16 %v261
  %v1595 = vunpack.c.l.b16 %v262
  %v1596 = vunpack.c.l.b16 %v263
  %v1597 = vunpack.c.h.b16 %v263
  %v1598 = vunpack.c.l.b16 %v264
  %v1599 = vunpack.c.l.b16 %v265
  %v1600 = vunpack.c.h.b16 %v265
  %v1601 = vunpack.c.l.b16 %v266
  %v1602 = vunpack.c.l.b16 %v267
  %v1603 = vunpack.c.h.b16 %v267
  %v1604 = vunpack.c.l.b16 %v268
  %v1605 = vunpack.c.l.b16 %v269
  %v1606 = vunpack.c.h.b16 %v269
  %v1607 = vunpack.c.l.b16 %v270
  %v1608 = vunpack.c.l.b16 %v271
  %v1609 = vunpack.c.h.b16 %v271
  %v1610 = vunpack.c.l.b16 %v272
  %v1611 = vunpack.c.l.b16 %v273
  %v1612 = vunpack.c.h.b16 %v273
  %v1613 = vunpack.c.l.b16 %v274
  %v1614 = vunpack.c.l.b16 %v275
  %v1615 = vunpack.c.h.b16 %v275
  %v1616 = vunpack.c.l.b16 %v276
  %v1617 = vunpack.c.l.b16 %v277
  %v1618 = vunpack.c.h.b16 %v277
  %v1619 = vunpack.c.l.b16 %v278
  %v1620 = vunpack.c.l.b16 %v279
  %v1621 = vunpack.c.h.b16 %v279
  %v1622 = vunpack.c.l.b16 %v280
  %v1623 = vunpack.c.l.b16 %v281
  %v1624 = vunpack.c.h.b16 %v281
  %v1625 = vunpack.c.l.b16 %v282
  %v1626 = vunpack.c.l.b16 %v283
  %v1627 = vunpack.c.h.b16 %v283
  %v1628 = vunpack.c.l.b16 %v284
  %v1629 = vunpack.c.l.b16 %v285
  %v1630 = vunpack.c.h.b16 %v285
  %v1631 = vunpack.c.l.b16 %v286
  %v1632 = vunpack.c.l.b16 %v287
  %v1633 = vunpack.c.h.b16 %v287
  %v1634 = vunpack.c.l.b16 %v288
  %v1635 = vunpack.c.l.b16 %v289
  %v1636 = vunpack.c.h.b16 %v289
  %v1637 = vunpack.c.l.b16 %v290
  %v1638 = vunpack.c.l.b16 %v291
  %v1639 = vunpack.c.h.b16 %v291
  %v1640 = vunpack.c.l.b16 %v292
  %v1641 = vunpack.c.l.b16 %v293
  %v1642 = vunpack.c.h.b16 %v293
  %v1643 = vunpack.c.l.b16 %v294
  %v1644 = vunpack.c.l.b16 %v295
  %v1645 = vunpack.c.h.b16 %v295
  %v1646 = vunpack.c.l.b16 %v296
  %v1647 = vunpack.c.l.b16 %v297
  %v1648 = vunpack.c.h.b16 %v297
  %v1649 = vunpack.c.l.b16 %v298
  %v1650 = vunpack.c.l.b16 %v299
  %v1651 = vunpack.c.h.b16 %v299
  %v1652 = vunpack.c.l.b16 %v300
  %v1653 = vunpack.c.l.b16 %v301
  %v1654 = vunpack.c.h.b16 %v301
  %v1655 = vunpack.c.l.b16 %v302
  %v1656 = vunpack.c.l.b16 %v303
  %v1657 = vunpack.c.h.b16 %v303
  %v1658 = vunpack.c.l.b16 %v304
  %v1659 = vunpack.c.l.b16 %v305
  %v1660 = vunpack.c.h.b16 %v305
  %v1661 = vunpack.c.l.b16 %v306
  %v1662 = vunpack.c.l.b16 %v307
  %v1663 = vunpack.c.h.b16 %v307
  %v1664 = vunpack.c.l.b16 %v308
  %v1665 = vunpack.c.l.b16 %v309
  %v1666 = vunpack.c.h.b16 %v309
  %v1667 = vunpack.c.l.b16 %v310
  %v1668 = vunpack.c.l.b16 %v311
  %v1669 = vunpack.c.h.b16 %v311
  %v1670 = vunpack.c.l.b16 %v312
  %v1671 = vunpack.c.l.b16 %v313
  %v1672 = vunpack.c.h.b16 %v313
  %v1673 = vunpack.c.l.b16 %v314
  %v1674 = vunpack.c.l.b16 %v315
  %v1675 = vunpack.c.h.b16 %v315
  %v1676 = vunpack.c.l.b16 %v316
  %v1677 = vunpack.c.l.b16 %v317
  %v1678 = vunpack.c.h.b16 %v317
  %v1679 = vunpack.c.l.b16 %v318
  %v1680 = vunpack.c.l.b16 %v319
  %v1681 = vunpack.c.h.b16 %v319
  %v1682 = vunpack.c.l.b16 %v320
  %v1683 = vunpack.c.l.b16 %v321
  %v1684 = vunpack.c.h.b16 %v321
  %v1685 = vunpack.c.l.b16 %v322
  %v1686 = vunpack.c.l.b16 %v323
  %v1687 = vunpack.c.h.b16 %v323
  %v1688 = vunpack.c.l.b16 %v324
  %v1689 = vunpack.c.l.b16 %v325
  %v1690 = vunpack.c.h.b16 %v325
  %v1691 = vunpack.c.l.b16 %v326
  %v1692 = vunpack.c.l.b16 %v327
  %v1693 = vunpack.c.h.b16 %v327
  %v1694 = vunpack.c.l.b16 %v328
  %v1695 = vunpack.c.l.b16 %v329
  %v1696 = vunpack.c.h.b16 %v329
  %v1697 = vunpack.c.l.b16 %v330
  %v1698 = vunpack.c.l.b16 %v331
  %v1699 = vunpack.c.h.b16 %v331
  %v1700 = vunpack.c.l.b16 %v332
  %v1701 = vunpack.c.l.b16 %v333
  %v1702 = vunpack.c.h.b16 %v333
  %v1703 = vunpack.c.l.b16 %v334
  %v1704 = vunpack.c.l.b16 %v335
  %v1705 = vunpack.c.h.b16 %v335
  %v1706 = vunpack.c.l.b16 %v336
  %v1707 = vunpack.c.l.b16 %v337
  %v1708 = vunpack.c.h.b16 %v337
  %v1709 = vunpack.c.l.b16 %v338
  %v1710 = vunpack.c.l.b16 %v339
  %v1711 = vunpack.c.h.b16 %v339
  %v1712 = vunpack.c.l.b16 %v340
  %v1713 = vunpack.c.l.b16 %v341
  %v1714 = vunpack.c.h.b16 %v341
  %v1715 = vunpack.c.l.b16 %v342
  %v1716 = vunpack.c.l.b16 %v343
  %v1717 = vunpack.c.h.b16 %v343
  %v1718 = vunpack.c.l.b16 %v344
  %v1719 = vunpack.c.l.b16 %v345
  %v1720 = vunpack.c.h.b16 %v345
  %v1721 = vunpack.c.l.b16 %v346
  %v1722 = vunpack.c.l.b16 %v347
  %v1723 = vunpack.c.h.b16 %v347
  %v1724 = vunpack.c.l.b16 %v348
  %v1725 = vunpack.c.l.b16 %v349
  %v1726 = vunpack.c.h.b16 %v349
  %v1727 = vunpack.c.l.b16 %v350
  %v1728 = vunpack.c.l.b16 %v351
  %v1729 = vunpack.c.h.b16 %v351
  %v1730 = vunpack.c.l.b16 %v352
  %v1731 = vunpack.c.l.b16 %v353
  %v1732 = vunpack.c.h.b16 %v353
  %v1733 = vunpack.c.l.b16 %v354
  %v1734 = vunpack.c.l.b16 %v355
  %v1735 = vunpack.c.h.b16 %v355
  %v1736 = vunpack.c.l.b16 %v356
  %v1737 = vunpack.c.l.b16 %v357
  %v1738 = vunpack.c.h.b16 %v357
  %v1739 = vunpack.c.l.b16 %v358
  %v1740 = vunpack.c.l.b16 %v359
  %v1741 = vunpack.c.h.b16 %v359
  %v1742 = vunpack.c.l.b16 %v360
  %v1743 = vunpack.c.l.b16 %v361
  %v1744 = vunpack.c.h.b16 %v361
  %v1745 = vunpack.c.l.b16 %v362
  %v1746 = vunpack.c.l.b16 %v363
  %v1747 = vunpack.c.h.b16 %v363
  %v1748 = vunpack.c.l.b16 %v364
  %v1749 = vunpack.c.l.b16 %v365
  %v1750 = vunpack.c.h.b16 %v365
  %v1751 = vunpack.c.l.b16 %v366
  %v1752 = vunpack.c.l.b16 %v367
  %v1753 = vunpack.c.h.b16 %v367
  %v1754 = vunpack.c.l.b16 %v368
  %v1755 = vunpack.c.l.b16 %v369
  %v1756 = vunpack.c.h.b16 %v369
  %v1757 = vunpack.c.l.b16 %v370
  %v1758 = vunpack.c.l.b16 %v371
  %v1759 = vunpack.c.h.b16 %v371
  %v1760 = vunpack.c.l.b16 %v372
  %v1761 = vunpack.c.l.b16 %v373
  %v1762 = vunpack.c.h.b16 %v373
  %v1763 = vunpack.c.l.b16 %v374
  %v1764 = vunpack.c.l.b16 %v375
  %v1765 = vunpack.c.h.b16 %v375
  %v1766 = vunpack.c.l.b16 %v376
  %v1767 = vunpack.c.l.b16 %v377
  %v1768 = vunpack.c.h.b16 %v377
  %v1769 = vunpack.c.l.b16 %v378
  %v1770 = vunpack.c.l.b16 %v379
  %v1771 = vunpack.c.h.b16 %v379
  %v1772 = vunpack.c.l.b16 %v380
  %v1773 = vunpack.c.l.b16 %v381
  %v1774 = vunpack.c.h.b16 %v381
  %v1775 = vunpack.c.l.b16 %v382
  %v1776 = vunpack.c.l.b16 %v383
  %v1777 = vunpack.c.h.b16 %v383
  %v1778 = vunpack.c.l.b16 %v384
  %v1779 = vunpack.c.l.b16 %v385
  %v1780 = vunpack.c.h.b16 %v385
  %v1781 = vunpack.c.l.b16 %v386
  %v1782 = vunpack.c.l.b16 %v387
  %v1783 = vunpack.c.h.b16 %v387
  %v1784 = vunpack.c.l.b16 %v388
  %v1785 = vunpack.c.l.b16 %v389
  %v1786 = vunpack.c.h.b16 %v389
  %v1787 = vunpack.c.l.b16 %v390
  %v1788 = vunpack.c.l.b16 %v391
  %v1789 = vunpack.c.h.b16 %v391
  %v1790 = vunpack.c.l.b16 %v392
  %v1791 = vunpack.c.l.b16 %v393
  %v1792 = vunpack.c.h.b16 %v393
  %v1793 = vunpack.c.l.b16 %v394
  %v1794 = vunpack.c.l.b16 %v395
  %v1795 = vunpack.c.h.b16 %v395
  %v1796 = vunpack.c.l.b16 %v396
  %v1797 = vunpack.c.l.b16 %v397
  %v1798 = vunpack.c.h.b16 %v397
  %v1799 = vunpack.c.l.b16 %v398
  %v1800 = vunpack.c.l.b16 %v399
  %v1801 = vunpack.c.h.b16 %v399
  %v1802 = vunpack.c.l.b16 %v400
  %v1803 = vunpack.c.l.b16 %v401
  %v1804 = vunpack.c.h.b16 %v401
  %v1805 = vunpack.c.l.b16 %v402
  %v1806 = vunpack.c.l.b16 %v403
  %v1807 = vunpack.c.h.b16 %v403
  %v1808 = vunpack.c.l.b16 %v404
  %v1809 = vunpack.c.l.b16 %v405
  %v1810 = vunpack.c.h.b16 %v405
  %v1811 = vunpack.c.l.b16 %v406
  %v1812 = vunpack.c.l.b16 %v407
  %v1813 = vunpack.c.h.b16 %v407
  %v1814 = vunpack.c.l.b16 %v408
  %v1815 = vunpack.c.l.b16 %v409
  %v1816 = vunpack.c.h.b16 %v409
  %v1817 = vunpack.c.l.b16 %v410
  %v1818 = vunpack.c.l.b16 %v411
  %v1819 = vunpack.c.h.b16 %v411
  %v1820 = vunpack.c.l.b16 %v412
  %v1821 = vunpack.c.l.b16 %v413
  %v1822 = vunpack.c.h.b16 %v413
  %v1823 = vunpack.c.l.b16 %v414
  %v1824 = vunpack.c.l.b16 %v415
  %v1825 = vunpack.c.h.b16 %v415
  %v1826 = vunpack.c.l.b16 %v416
  %v1827 = vunpack.c.l.b16 %v417
  %v1828 = vunpack.c.h.b16 %v417
  %v1829 = vunpack.c.l.b16 %v418
  %v1830 = vunpack.c.l.b16 %v419
  %v1831 = vunpack.c.h.b16 %v419
  %v1832 = vunpack.c.l.b16 %v420
  %v1833 = vunpack.c.l.b16 %v421
  %v1834 = vunpack.c.h.b16 %v421
  %v1835 = vunpack.c.l.b16 %v422
  %v1836 = vunpack.c.l.b16 %v423
  %v1837 = vunpack.c.h.b16 %v423
  %v1838 = vunpack.c.l.b16 %v424
  %v1839 = vunpack.c.l.b16 %v425
  %v1840 = vunpack.c.h.b16 %v425
  %v1841 = vunpack.c.l.b16 %v426
  %v1842 = vunpack.c.l.b16 %v427
  %v1843 = vunpack.c.h.b16 %v427
  %v1844 = vunpack.c.l.b16 %v428
  %v1845 = vunpack.c.l.b16 %v429
  %v1846 = vunpack.c.h.b16 %v429
  %v1847 = vunpack.c.l.b16 %v430
  %v1848 = vunpack.c.l.b16 %v431
  %v1849 = vunpack.c.h.b16 %v431
  %v1850 = vunpack.c.l.b16 %v432
  %v1851 = vunpack.c.l.b16 %v433
  %v1852 = vunpack.c.h.b16 %v433
  %v1853 = vunpack.c.l.b16 %v434
  %v1854 = vunpack.c.l.b16 %v435
  %v1855 = vunpack.c.h.b16 %v435
  %v1856 = vunpack.c.l.b16 %v436
  %v1857 = vunpack.c.l.b16 %v437
  %v1858 = vunpack.c.h.b16 %v437
  %v1859 = vunpack.c.l.b16 %v438
  %v1860 = vunpack.c.l.b16 %v439
  %v1861 = vunpack.c.h.b16 %v439
  %v1862 = vunpack.c.l.b16 %v440
  %v1863 = vunpack.c.l.b16 %v441
  %v1864 = vunpack.c.h.b16 %v441
  %v1865 = vunpack.c.l.b16 %v442
  %v1866 = vunpack.c.l.b16 %v443
  %v1867 = vunpack.c.h.b16 %v443
  %v1868 = vunpack.c.l.b16 %v444
  %v1869 = vunpack.c.l.b16 %v445
  %v1870 = vunpack.c.h.b16 %v445
  %v1871 = vunpack.c.l.b16 %v446
  %v1872 = vunpack.c.l.b16 %v447
  %v1873 = vunpack.c.h.b16 %v447
  %v1874 = vunpack.c.l.b16 %v448
  %v1875 = vunpack.c.l.b16 %v449
  %v1876 = vunpack.c.h.b16 %v449
  %v1877 = vunpack.c.l.b16 %v450
  %v1878 = vunpack.c.l.b16 %v451
  %v1879 = vunpack.c.h.b16 %v451
  %v1880 = vunpack.c.l.b16 %v452
  %v1881 = vunpack.c.l.b16 %v453
  %v1882 = vunpack.c.h.b16 %v453
  %v1883 = vunpack.c.l.b16 %v454
  %v1884 = vunpack.c.l.b16 %v455
  %v1885 = vunpack.c.h.b16 %v455
  %v1886 = vunpack.c.l.b16 %v456
  %v1887 = vunpack.c.l.b16 %v457
  %v1888 = vunpack.c.h.b16 %v457
  %v1889 = vunpack.c.l.b16 %v458
  %v1890 = vunpack.c.l.b16 %v459
  %v1891 = vunpack.c.h.b16 %v459
  %v1892 = vunpack.c.l.b16 %v460
  %v1893 = vunpack.c.l.b16 %v461
  %v1894 = vunpack.c.h.b16 %v461
  %v1895 = vunpack.c.l.b16 %v462
  %v1896 = vunpack.c.l.b16 %v463
  %v1897 = vunpack.c.h.b16 %v463
  %v1898 = vunpack.c.l.b16 %v464
  %v1899 = vunpack.c.l.b16 %v465
  %v1900 = vunpack.c.h.b16 %v465
  %v1901 = vunpack.c.l.b16 %v466
  %v1902 = vunpack.c.l.b16 %v467
  %v1903 = vunpack.c.h.b16 %v467
  %v1904 = vunpack.c.l.b16 %v468
  %v1905 = vunpack.c.l.b16 %v469
  %v1906 = vunpack.c.h.b16 %v469
  %v1907 = vunpack.c.l.b16 %v470
  %v1908 = vunpack.c.l.b16 %v471
  %v1909 = vunpack.c.h.b16 %v471
  %v1910 = vunpack.c.l.b16 %v472
  %v1911 = vunpack.c.l.b16 %v473
  %v1912 = vunpack.c.h.b16 %v473
  %v1913 = vunpack.c.l.b16 %v474
  %v1914 = vunpack.c.l.b16 %v475
  %v1915 = vunpack.c.h.b16 %v475
  %v1916 = vunpack.c.l.b16 %v476
  %v1917 = vunpack.c.l.b16 %v477
  %v1918 = vunpack.c.h.b16 %v477
  %v1919 = vunpack.c.l.b16 %v478
  %v1920 = vunpack.c.l.b16 %v479
  %v1921 = vunpack.c.h.b16 %v479
  %v1922 = vunpack.c.l.b16 %v480
  %v1923 = vunpack.c.l.b16 %v481
  %v1924 = vunpack.c.h.b16 %v481
  %v1925 = vunpack.c.l.b16 %v482
  %v1926 = vunpack.c.l.b16 %v483
  %v1927 = vunpack.c.h.b16 %v483
  %v1928 = vunpack.c.l.b16 %v484
  %v1929 = vunpack.c.l.b16 %v485
  %v1930 = vunpack.c.h.b16 %v485
  %v1931 = vunpack.c.l.b16 %v486
  %v1932 = vunpack.c.l.b16 %v487
  %v1933 = vunpack.c.h.b16 %v487
  %v1934 = vunpack.c.l.b16 %v488
  %v1935 = vunpack.c.l.b16 %v489
  %v1936 = vunpack.c.h.b16 %v489
  %v1937 = vunpack.c.l.b16 %v490
  %v1938 = vunpack.c.l.b16 %v491
  %v1939 = vunpack.c.h.b16 %v491
  %v1940 = vunpack.c.l.b16 %v492
  %v1941 = vunpack.c.l.b16 %v493
  %v1942 = vunpack.c.h.b16 %v493
  %v1943 = vunpack.c.l.b16 %v494
  %v1944 = vunpack.c.l.b16 %v495
  %v1945 = vunpack.c.h.b16 %v495
  %v1946 = vunpack.c.l.b16 %v496
  %v1947 = vunpack.c.l.b16 %v497
  %v1948 = vunpack.c.h.b16 %v497
  %v1949 = vunpack.c.l.b16 %v498
  %v1950 = vunpack.c.l.b16 %v499
  %v1951 = vunpack.c.h.b16 %v499
  %v1952 = vunpack.c.l.b16 %v500
  %v1953 = vunpack.c.l.b16 %v501
  %v1954 = vunpack.c.h.b16 %v501
  %v1955 = vunpack.c.l.b16 %v502
  %v1956 = vunpack.c.l.b16 %v503
  %v1957 = vunpack.c.h.b16 %v503
  %v1958 = vunpack.c.l.b16 %v504
  %v1959 = vunpack.c.l.b16 %v505
  %v1960 = vunpack.c.h.b16 %v505
  %v1961 = vunpack.c.l.b16 %v506
  %v1962 = vunpack.c.l.b16 %v507
  %v1963 = vunpack.c.h.b16 %v507
  %v1964 = vunpack.c.l.b16 %v508
  %v1965 = vunpack.c.l.b16 %v509
  %v1966 = vunpack.c.h.b16 %v509
  %v1967 = vunpack.c.l.b16 %v510
  %v1968 = vunpack.c.l.b16 %v511
  %v1969 = vunpack.c.h.b16 %v511
  %v1970 = vunpack.c.l.b16 %v512
  %v1971 = vunpack.c.l.b16 %v513
  %v1972 = vunpack.c.h.b16 %v513
  %v1973 = vunpack.c.l.b16 %v514
  %v1974 = vunpack.c.l.b16 %v515
  %v1975 = vunpack.c.h.b16 %v515
  %v1976 = vunpack.c.l.b16 %v516
  %v1977 = vunpack.c.l.b16 %v517
  %v1978 = vunpack.c.h.b16 %v517
  %v1979 = vunpack.c.l.b16 %v518
  %v1980 = vunpack.c.l.b16 %v519
  %v1981 = vunpack.c.h.b16 %v519
  %v1982 = vunpack.c.l.b16 %v520
  %v1983 = vunpack.c.l.b16 %v521
  %v1984 = vunpack.c.h.b16 %v521
  %v1985 = vunpack.c.l.b16 %v522
  %v1986 = vunpack.c.l.b16 %v523
  %v1987 = vunpack.c.h.b16 %v523
  %v1988 = vunpack.c.l.b16 %v524
  %v1989 = vunpack.c.l.b16 %v525
  %v1990 = vunpack.c.h.b16 %v525
  %v1991 = vunpack.c.l.b16 %v526
  %v1992 = vunpack.c.l.b16 %v527
  %v1993 = vunpack.c.h.b16 %v527
  %v1994 = vunpack.c.l.b16 %v528
  %v1995 = vunpack.c.l.b16 %v529
  %v1996 = vunpack.c.h.b16 %v529
  %v1997 = vunpack.c.l.b16 %v530
  %v1998 = vunpack.c.l.b16 %v531
  %v1999 = vunpack.c.h.b16 %v531
  %v2000 = vunpack.c.l.b16 %v532
  %v2001 = vunpack.c.l.b16 %v533
  %v2002 = vunpack.c.h.b16 %v533
  %v2003 = vunpack.c.l.b16 %v534
  %v2004 = vunpack.c.l.b16 %v535
  %v2005 = vunpack.c.h.b16 %v535
  %v2006 = vunpack.c.l.b16 %v536
  %v2007 = vunpack.c.l.b16 %v537
  %v2008 = vunpack.c.h.b16 %v537
  %v2009 = vunpack.c.l.b16 %v538
  %v2010 = vunpack.c.l.b16 %v539
  %v2011 = vunpack.c.h.b16 %v539
  %v2012 = vunpack.c.l.b16 %v540
  %v2013 = vunpack.c.l.b16 %v541
  %v2014 = vunpack.c.h.b16 %v541
  %v2015 = vunpack.c.l.b16 %v542
  %v2016 = vunpack.c.l.b16 %v543
  %v2017 = vunpack.c.h.b16 %v543
  %v2018 = vunpack.c.l.b16 %v544
  %v2019 = vunpack.c.l.b16 %v545
  %v2020 = vunpack.c.h.b16 %v545
  %v2021 = vunpack.c.l.b16 %v546
  %v2022 = vunpack.c.l.b16 %v547
  %v2023 = vunpack.c.h.b16 %v547
  %v2024 = vunpack.c.l.b16 %v548
  %v2025 = vunpack.c.l.b16 %v549
  %v2026 = vunpack.c.h.b16 %v549
  %v2027 = vunpack.c.l.b16 %v550
  %v2028 = vunpack.c.l.b16 %v551
  %v2029 = vunpack.c.h.b16 %v551
  %v2030 = vunpack.c.l.b16 %v552
  %v2031 = vunpack.c.l.b16 %v553
  %v2032 = vunpack.c.h.b16 %v553
  %v2033 = vunpack.c.l.b16 %v554
  %v2034 = vunpack.c.l.b16 %v555
  %v2035 = vunpack.c.h.b16 %v555
  %v2036 = vunpack.c.l.b16 %v556
  %v2037 = vunpack.c.l.b16 %v557
  %v2038 = vunpack.c.h.b16 %v557
  %v2039 = vunpack.c.l.b16 %v558
  %v2040 = vunpack.c.l.b16 %v559
  %v2041 = vunpack.c.h.b16 %v559
  %v2042 = vunpack.c.l.b16 %v560
  %v2043 = vunpack.c.l.b16 %v561
  %v2044 = vunpack.c.h.b16 %v561
  %v2045 = vunpack.c.l.b16 %v562
  %v2046 = vunpack.c.l.b16 %v563
  %v2047 = vunpack.c.h.b16 %v563
  %v2048 = vunpack.c.l.b16 %v564
  %v2049 = vunpack.c.l.b16 %v565
  %v2050 = vunpack.c.h.b16 %v565
  %v2051 = vunpack.c.l.b16 %v566
  %v2052 = vunpack.c.l.b16 %v567
  %v2053 = vunpack.c.h.b16 %v567
  %v2054 = vunpack.c.l.b16 %v568
  %v2055 = vunpack.c.l.b16 %v569
  %v2056 = vunpack.c.h.b16 %v569
  %v2057 = vunpack.c.l.b16 %v570
  %v2058 = vunpack.c.l.b16 %v571
  %v2059 = vunpack.c.h.b16 %v571
  %v2060 = vunpack.c.l.b16 %v572
  %v2061 = vunpack.c.l.b16 %v573
  %v2062 = vunpack.c.h.b16 %v573
  %v2063 = vunpack.c.l.b16 %v574
  %v2064 = vunpack.c.l.b16 %v575
  %v2065 = vunpack.c.h.b16 %v575
  %v2066 = vunpack.c.l.b16 %v576
  %v2067 = vunpack.c.l.b16 %v577
  %v2068 = vunpack.c.h.b16 %v577
  %v2069 = vunpack.c.l.b16 %v578
  %v2070 = vunpack.c.l.b16 %v579
  %v2071 = vunpack.c.h.b16 %v579
  %v2072 = vunpack.c.l.b16 %v580
  %v2073 = vunpack.c.l.b16 %v581
  %v2074 = vunpack.c.h.b16 %v581
  %v2075 = vunpack.c.l.b16 %v582
  %v2076 = vunpack.c.l.b16 %v583
  %v2077 = vunpack.c.h.b16 %v583
  %v2078 = vunpack.c.l.b16 %v584
  %v2079 = vunpack.c.l.b16 %v585
  %v2080 = vunpack.c.h.b16 %v585
  %v2081 = vunpack.c.l.b16 %v586
  %v2082 = vunpack.c.l.b16 %v587
  %v2083 = vunpack.c.h.b16 %v587
  %v2084 = vunpack.c.l.b16 %v588
  %v2085 = vunpack.c.l.b16 %v589
  %v2086 = vunpack.c.h.b16 %v589
  %v2087 = vunpack.c.l.b16 %v590
  %v2088 = vunpack.c.l.b16 %v591
  %v2089 = vunpack.c.h.b16 %v591
  %v2090 = vunpack.c.l.b16 %v592
  %v2091 = vunpack.c.l.b16 %v593
  %v2092 = vunpack.c.h.b16 %v593
  %v2093 = vunpack.c.l.b16 %v594
  %v2094 = vunpack.c.l.b16 %v595
  %v2095 = vunpack.c.h.b16 %v595
  %v2096 = vunpack.c.l.b16 %v596
  %v2097 = vunpack.c.l.b16 %v597
  %v2098 = vunpack.c.h.b16 %v597
  %v2099 = vunpack.c.l.b16 %v598
  %v2100 = vunpack.c.l.b16 %v599
  %v2101 = vunpack.c.h.b16 %v599
  %v2102 = vunpack.c.l.b16 %v600
  %v2103 = vunpack.c.l.b16 %v601
  %v2104 = vunpack.c.h.b16 %v601
  %v2105 = vunpack.c.l.b16 %v602
  %v2106 = vpack.c.b16 %v1245, %v1242
  %v2107 = vpack.c.b16 %v1246, %v1243
  %v2108 = vpack.c.b16 %v1247, %v1244
  %v2109 = vpack.c.b16 %v1251, %v1248
  %v2110 = vpack.c.b16 %v1252, %v1249
  %v2111 = vpack.c.b16 %v1253, %v1250
  %v2112 = vpack.c.b16 %v1257, %v1254
  %v2113 = vpack.c.b16 %v1258, %v1255
  %v2114 = vpack.c.b16 %v1259, %v1256
  %v2115 = vpack.c.b16 %v1263, %v1260
  %v2116 = vpack.c.b16 %v1264, %v1261
  %v2117 = vpack.c.b16 %v1265, %v1262
  %v2118 = vpack.c.b16 %v1269, %v1266
  %v2119 = vpack.c.b16 %v1270, %v1267
  %v2120 = vpack.c.b16 %v1271, %v1268
  %v2121 = vpack.c.b16 %v1275, %v1272
  %v2122 = vpack.c.b16 %v1276, %v1273
  %v2123 = vpack.c.b16 %v1277, %v1274
  %v2124 = vpack.c.b16 %v1281, %v1278
  %v2125 = vpack.c.b16 %v1282, %v1279
  %v2126 = vpack.c.b16 %v1283, %v1280
  %v2127 = vpack.c.b16 %v1287, %v1284
  %v2128 = vpack.c.b16 %v1288, %v1285
  %v2129 = vpack.c.b16 %v1289, %v1286
  %v2130 = vpack.c.b16 %v1293, %v1290
  %v2131 = vpack.c.b16 %v1294, %v1291
  %v2132 = vpack.c.b16 %v1295, %v1292
  %v2133 = vpack.c.b16 %v1299, %v1296
  %v2134 = vpack.c.b16 %v1300, %v1297
  %v2135 = vpack.c.b16 %v1301, %v1298
  %v2136 = vpack.c.b16 %v1305, %v1302
  %v2137 = vpack.c.b16 %v1306, %v1303
  %v2138 = vpack.c.b16 %v1307, %v1304
  %v2139 = vpack.c.b16 %v1311, %v1308
  %v2140 = vpack.c.b16 %v1312, %v1309
  %v2141 = vpack.c.b16 %v1313, %v1310
  %v2142 = vpack.c.b16 %v1317, %v1314
  %v2143 = vpack.c.b16 %v1318, %v1315
  %v2144 = vpack.c.b16 %v1319, %v1316
  %v2145 = vpack.c.b16 %v1323, %v1320
  %v2146 = vpack.c.b16 %v1324, %v1321
  %v2147 = vpack.c.b16 %v1325, %v1322
  %v2148 = vpack.c.b16 %v1329, %v1326
  %v2149 = vpack.c.b16 %v1330, %v1327
  %v2150 = vpack.c.b16 %v1331, %v1328
  %v2151 = vpack.c.b16 %v1335, %v1332
  %v2152 = vpack.c.b16 %v1336, %v1333
  %v2153 = vpack.c.b16 %v1337, %v1334
  %v2154 = vpack.c.b16 %v1341, %v1338
  %v2155 = vpack.c.b16 %v1342, %v1339
  %v2156 = vpack.c.b16 %v1343, %v1340
  %v2157 = vpack.c.b16 %v1347, %v1344
  %v2158 = vpack.c.b16 %v1348, %v1345
  %v2159 = vpack.c.b16 %v1349, %v1346
  %v2160 = vpack.c.b16 %v1353, %v1350
  %v2161 = vpack.c.b16 %v1354, %v1351
  %v2162 = vpack.c.b16 %v1355, %v1352
  %v2163 = vpack.c.b16 %v1359, %v1356
  %v2164 = vpack.c.b16 %v1360, %v1357
  %v2165 = vpack.c.b16 %v1361, %v1358
  %v2166 = vpack.c.b16 %v1365, %v1362
  %v2167 = vpack.c.b16 %v1366, %v1363
  %v2168 = vpack.c.b16 %v1367, %v1364
  %v2169 = vpack.c.b16 %v1371, %v1368
  %v2170 = vpack.c.b16 %v1372, %v1369
  %v2171 = vpack.c.b16 %v1373, %v1370
  %v2172 = vpack.c.b16 %v1377, %v1374
  %v2173 = vpack.c.b16 %v1378, %v1375
  %v2174 = vpack.c.b16 %v1379, %v1376
  %v2175 = vpack.c.b16 %v1383, %v1380
  %v2176 = vpack.c.b16 %v1384, %v1381
  %v2177 = vpack.c.b16 %v1385, %v1382
  %v2178 = vpack.c.b16 %v1389, %v1386
  %v2179 = vpack.c.b16 %v1390, %v1387
  %v2180 = vpack.c.b16 %v1391, %v1388
  %v2181 = vpack.c.b16 %v1395, %v1392
  %v2182 = vpack.c.b16 %v1396, %v1393
  %v2183 = vpack.c.b16 %v1397, %v1394
  %v2184 = vpack.c.b16 %v1401, %v1398
  %v2185 = vpack.c.b16 %v1402, %v1399
  %v2186 = vpack.c.b16 %v1403, %v1400
  %v2187 = vpack.c.b16 %v1407, %v1404
  %v2188 = vpack.c.b16 %v1408, %v1405
  %v2189 = vpack.c.b16 %v1409, %v1406
  %v2190 = vpack.c.b16 %v1413, %v1410
  %v2191 = vpack.c.b16 %v1414, %v1411
  %v2192 = vpack.c.b16 %v1415, %v1412
  %v2193 = vpack.c.b16 %v1419, %v1416
  %v2194 = vpack.c.b16 %v1420, %v1417
  %v2195 = vpack.c.b16 %v1421, %v1418
  %v2196 = vpack.c.b16 %v1425, %v1422
  %v2197 = vpack.c.b16 %v1426, %v1423
  %v2198 = vpack.c.b16 %v1427, %v1424
  %v2199 = vpack.c.b16 %v1431, %v1428
  %v2200 = vpack.c.b16 %v1432, %v1429
  %v2201 = vpack.c.b16 %v1433, %v1430
  %v2202 = vpack.c.b16 %v1437, %v1434
  %v2203 = vpack.c.b16 %v1438, %v1435
  %v2204 = vpack.c.b16 %v1439, %v1436
  %v2205 = vpack.c.b16 %v1443, %v1440
  %v2206 = vpack.c.b16 %v1444, %v1441
  %v2207 = vpack.c.b16 %v1445, %v1442
  %v2208 = vpack.c.b16 %v1449, %v1446
  %v2209 = vpack.c.b16 %v1450, %v1447
  %v2210 = vpack.c.b16 %v1451, %v1448
  %v2211 = vpack.c.b16 %v1455, %v1452
  %v2212 = vpack.c.b16 %v1456, %v1453
  %v2213 = vpack.c.b16 %v1457, %v1454
  %v2214 = vpack.c.b16 %v1461, %v1458
  %v2215 = vpack.c.b16 %v1462, %v1459
  %v2216 = vpack.c.b16 %v1463, %v1460
  %v2217 = vpack.c.b16 %v1467, %v1464
  %v2218 = vpack.c.b16 %v1468, %v1465
  %v2219 = vpack.c.b16 %v1469, %v1466
  %v2220 = vpack.c.b16 %v1473, %v1470
  %v2221 = vpack.c.b16 %v1474, %v1471
  %v2222 = vpack.c.b16 %v1475, %v1472
  %v2223 = vpack.c.b16 %v1479, %v1476
  %v2224 = vpack.c.b16 %v1480, %v1477
  %v2225 = vpack.c.b16 %v1481, %v1478
  %v2226 = vpack.c.b16 %v1485, %v1482
  %v2227 = vpack.c.b16 %v1486, %v1483
  %v2228 = vpack.c.b16 %v1487, %v1484
  %v2229 = vpack.c.b16 %v1491, %v1488
  %v2230 = vpack.c.b16 %v1492, %v1489
  %v2231 = vpack.c.b16 %v1493, %v1490
  %v2232 = vpack.c.b16 %v1497, %v1494
  %v2233 = vpack.c.b16 %v1498, %v1495
  %v2234 = vpack.c.b16 %v1499, %v1496
  %v2235 = vpack.c.b16 %v1503, %v1500
  %v2236 = vpack.c.b16 %v1504, %v1501
  %v2237 = vpack.c.b16 %v1505, %v1502
  %v2238 = vpack.c.b16 %v1509, %v1506
  %v2239 = vpack.c.b16 %v1510, %v1507
  %v2240 = vpack.c.b16 %v1511, %v1508
  %v2241 = vpack.c.b16 %v1515, %v1512
  %v2242 = vpack.c.b16 %v1516, %v1513
  %v2243 = vpack.c.b16 %v1517, %v1514
  %v2244 = vpack.c.b16 %v1521, %v1518
  %v2245 = vpack.c.b16 %v1522, %v1519
  %v2246 = vpack.c.b16 %v1523, %v1520
  %v2247 = vpack.c.b16 %v1527, %v1524
  %v2248 = vpack.c.b16 %v1528, %v1525
  %v2249 = vpack.c.b16 %v1529, %v1526
  %v2250 = vpack.c.b16 %v1533, %v1530
  %v2251 = vpack.c.b16 %v1534, %v1531
  %v2252 = vpack.c.b16 %v1535, %v1532
  %v2253 = vpack.c.b16 %v1539, %v1536
  %v2254 = vpack.c.b16 %v1540, %v1537
  %v2255 = vpack.c.b16 %v1541, %v1538
  %v2256 = vpack.c.b16 %v1545, %v1542
  %v2257 = vpack.c.b16 %v1546, %v1543
  %v2258 = vpack.c.b16 %v1547, %v1544
  %v2259 = vpack.c.b16 %v1551, %v1548
  %v2260 = vpack.c.b16 %v1552, %v1549
  %v2261 = vpack.c.b16 %v1553, %v1550
  %v2262 = vpack.c.b16 %v1557, %v1554
  %v2263 = vpack.c.b16 %v1558, %v1555
  %v2264 = vpack.c.b16 %v1559, %v1556
  %v2265 = vpack.c.b16 %v1563, %v1560
  %v2266 = vpack.c.b16 %v1564, %v1561
  %v2267 = vpack.c.b16 %v1565, %v1562
  %v2268 = vpack.c.b16 %v1569, %v1566
  %v2269 = vpack.c.b16 %v1570, %v1567
  %v2270 = vpack.c.b16 %v1571, %v1568
  %v2271 = vpack.c.b16 %v1575, %v1572
  %v2272 = vpack.c.b16 %v1576, %v1573
  %v2273 = vpack.c.b16 %v1577, %v1574
  %v2274 = vpack.c.b16 %v1581, %v1578
  %v2275 = vpack.c.b16 %v1582, %v1579
  %v2276 = vpack.c.b16 %v1583, %v1580
  %v2277 = vpack.c.b16 %v1587, %v1584
  %v2278 = vpack.c.b16 %v1588, %v1585
  %v2279 = vpack.c.b16 %v1589, %v1586
  %v2280 = vpack.c.b16 %v1593, %v1590
  %v2281 = vpack.c.b16 %v1594, %v1591
  %v2282 = vpack.c.b16 %v1595, %v1592
  %v2283 = vpack.c.b16 %v1599, %v1596
  %v2284 = vpack.c.b16 %v1600, %v1597
  %v2285 = vpack.c.b16 %v1601, %v1598
  %v2286 = vpack.c.b16 %v1605, %v1602
  %v2287 = vpack.c.b16 %v1606, %v1603
  %v2288 = vpack.c.b16 %v1607, %v1604
  %v2289 = vpack.c.b16 %v1611, %v1608
  %v2290 = vpack.c.b16 %v1612, %v1609
  %v2291 = vpack.c.b16 %v1613, %v1610
  %v2292 = vpack.c.b16 %v1617, %v1614
  %v2293 = vpack.c.b16 %v1618, %v1615
  %v2294 = vpack.c.b16 %v1619, %v1616
  %v2295 = vpack.c.b16 %v1623, %v1620
  %v2296 = vpack.c.b16 %v1624, %v1621
  %v2297 = vpack.c.b16 %v1625, %v1622
  %v2298 = vpack.c.b16 %v1629, %v1626
  %v2299 = vpack.c.b16 %v1630, %v1627
  %v2300 = vpack.c.b16 %v1631, %v1628
  %v2301 = vpack.c.b16 %v1635, %v1632
  %v2302 = vpack.c.b16 %v1636, %v1633
  %v2303 = vpack.c.b16 %v1637, %v1634
  %v2304 = vpack.c.b16 %v1641, %v1638
  %v2305 = vpack.c.b16 %v1642, %v1639
  %v2306 = vpack.c.b16 %v1643, %v1640
  %v2307 = vpack.c.b16 %v1647, %v1644
  %v2308 = vpack.c.b16 %v1648, %v1645
  %v2309 = vpack.c.b16 %v1649, %v1646
  %v2310 = vpack.c.b16 %v1653, %v1650
  %v2311 = vpack.c.b16 %v1654, %v1651
  %v2312 = vpack.c.b16 %v1655, %v1652
  %v2313 = vpack.c.b16 %v1659, %v1656
  %v2314 = vpack.c.b16 %v1660, %v1657
  %v2315 = vpack.c.b16 %v1661, %v1658
  %v2316 = vpack.c.b16 %v1665, %v1662
  %v2317 = vpack.c.b16 %v1666, %v1663
  %v2318 = vpack.c.b16 %v1667, %v1664
  %v2319 = vpack.c.b16 %v1671, %v1668
  %v2320 = vpack.c.b16 %v1672, %v1669
  %v2321 = vpack.c.b16 %v1673, %v1670
  %v2322 = vpack.c.b16 %v1677, %v1674
  %v2323 = vpack.c.b16 %v1678, %v1675
  %v2324 = vpack.c.b16 %v1679, %v1676
  %v2325 = vpack.c.b16 %v1683, %v1680
  %v2326 = vpack.c.b16 %v1684, %v1681
  %v2327 = vpack.c.b16 %v1685, %v1682
  %v2328 = vpack.c.b16 %v1689, %v1686
  %v2329 = vpack.c.b16 %v1690, %v1687
  %v2330 = vpack.c.b16 %v1691, %v1688
  %v2331 = vpack.c.b16 %v1695, %v1692
  %v2332 = vpack.c.b16 %v1696, %v1693
  %v2333 = vpack.c.b16 %v1697, %v1694
  %v2334 = vpack.c.b16 %v1701, %v1698
  %v2335 = vpack.c.b16 %v1702, %v1699
  %v2336 = vpack.c.b16 %v1703, %v1700
  %v2337 = vpack.c.b16 %v1707, %v1704
  %v2338 = vpack.c.b16 %v1708, %v1705
  %v2339 = vpack.c.b16 %v1709, %v1706
  %v2340 = vpack.c.b16 %v1713, %v1710
  %v2341 = vpack.c.b16 %v1714, %v1711
  %v2342 = vpack.c.b16 %v1715, %v1712
  %v2343 = vpack.c.b16 %v1719, %v1716
  %v2344 = vpack.c.b16 %v1720, %v1717
  %v2345 = vpack.c.b16 %v1721, %v1718
  %v2346 = vpack.c.b16 %v1725, %v1722
  %v2347 = vpack.c.b16 %v1726, %v1723
  %v2348 = vpack.c.b16 %v1727, %v1724
  %v2349 = vpack.c.b16 %v1731, %v1728
  %v2350 = vpack.c.b16 %v1732, %v1729
  %v2351 = vpack.c.b16 %v1733, %v1730
  %v2352 = vpack.c.b16 %v1737, %v1734
  %v2353 = vpack.c.b16 %v1738, %v1735
  %v2354 = vpack.c.b16 %v1739, %v1736
  %v2355 = vpack.c.b16 %v1743, %v1740
  %v2356 = vpack.c.b16 %v1744, %v1741
  %v2357 = vpack.c.b16 %v1745, %v1742
  %v2358 = vpack.c.b16 %v1749, %v1746
  %v2359 = vpack.c.b16 %v1750, %v1747
  %v2360 = vpack.c.b16 %v1751, %v1748
  %v2361 = vpack.c.b16 %v1755, %v1752
  %v2362 = vpack.c.b16 %v1756, %v1753
  %v2363 = vpack.c.b16 %v1757, %v1754
  %v2364 = vpack.c.b16 %v1761, %v1758
  %v2365 = vpack.c.b16 %v1762, %v1759
  %v2366 = vpack.c.b16 %v1763, %v1760
  %v2367 = vpack.c.b16 %v1767, %v1764
  %v2368 = vpack.c.b16 %v1768, %v1765
  %v2369 = vpack.c.b16 %v1769, %v1766
  %v2370 = vpack.c.b16 %v1773, %v1770
  %v2371 = vpack.c.b16 %v1774, %v1771
  %v2372 = vpack.c.b16 %v1775, %v1772
  %v2373 = vpack.c.b16 %v1779, %v1776
  %v2374 = vpack.c.b16 %v1780, %v1777
  %v2375 = vpack.c.b16 %v1781, %v1778
  %v2376 = vpack.c.b16 %v1785, %v1782
  %v2377 = vpack.c.b16 %v1786, %v1783
  %v2378 = vpack.c.b16 %v1787, %v1784
  %v2379 = vpack.c.b16 %v1791, %v1788
  %v2380 = vpack.c.b16 %v1792, %v1789
  %v2381 = vpack.c.b16 %v1793, %v1790
  %v2382 = vpack.c.b16 %v1797, %v1794
  %v2383 = vpack.c.b16 %v1798, %v1795
  %v2384 = vpack.c.b16 %v1799, %v1796
  %v2385 = vpack.c.b16 %v1803, %v1800
  %v2386 = vpack.c.b16 %v1804, %v1801
  %v2387 = vpack.c.b16 %v1805, %v1802
  %v2388 = vpack.c.b16 %v1809, %v1806
  %v2389 = vpack.c.b16 %v1810, %v1807
  %v2390 = vpack.c.b16 %v1811, %v1808
  %v2391 = vpack.c.b16 %v1815, %v1812
  %v2392 = vpack.c.b16 %v1816, %v1813
  %v2393 = vpack.c.b16 %v1817, %v1814
  %v2394 = vpack.c.b16 %v1821, %v1818
  %v2395 = vpack.c.b16 %v1822, %v1819
  %v2396 = vpack.c.b16 %v1823, %v1820
  %v2397 = vpack.c.b16 %v1827, %v1824
  %v2398 = vpack.c.b16 %v1828, %v1825
  %v2399 = vpack.c.b16 %v1829, %v1826
  %v2400 = vpack.c.b16 %v1833, %v1830
  %v2401 = vpack.c.b16 %v1834, %v1831
  %v2402 = vpack.c.b16 %v1835, %v1832
  %v2403 = vpack.c.b16 %v1839, %v1836
  %v2404 = vpack.c.b16 %v1840, %v1837
  %v2405 = vpack.c.b16 %v1841, %v1838
  %v2406 = vpack.c.b16 %v1845, %v1842
  %v2407 = vpack.c.b16 %v1846, %v1843
  %v2408 = vpack.c.b16 %v1847, %v1844
  %v2409 = vpack.c.b16 %v1851, %v1848
  %v2410 = vpack.c.b16 %v1852, %v1849
  %v2411 = vpack.c.b16 %v1853, %v1850
  %v2412 = vpack.c.b16 %v1857, %v1854
  %v2413 = vpack.c.b16 %v1858, %v1855
  %v2414 = vpack.c.b16 %v1859, %v1856
  %v2415 = vpack.c.b16 %v1863, %v1860
  %v2416 = vpack.c.b16 %v1864, %v1861
  %v2417 = vpack.c.b16 %v1865, %v1862
  %v2418 = vpack.c.b16 %v1869, %v1866
  %v2419 = vpack.c.b16 %v1870, %v1867
  %v2420 = vpack.c.b16 %v1871, %v1868
  %v2421 = vpack.c.b16 %v1875, %v1872
  %v2422 = vpack.c.b16 %v1876, %v1873
  %v2423 = vpack.c.b16 %v1877, %v1874
  %v2424 = vpack.c.b16 %v1881, %v1878
  %v2425 = vpack.c.b16 %v1882, %v1879
  %v2426 = vpack.c.b16 %v1883, %v1880
  %v2427 = vpack.c.b16 %v1887, %v1884
  %v2428 = vpack.c.b16 %v1888, %v1885
  %v2429 = vpack.c.b16 %v1889, %v1886
  %v2430 = vpack.c.b16 %v1893, %v1890
  %v2431 = vpack.c.b16 %v1894, %v1891
  %v2432 = vpack.c.b16 %v1895, %v1892
  %v2433 = vpack.c.b16 %v1899, %v1896
  %v2434 = vpack.c.b16 %v1900, %v1897
  %v2435 = vpack.c.b16 %v1901, %v1898
  %v2436 = vpack.c.b16 %v1905, %v1902
  %v2437 = vpack.c.b16 %v1906, %v1903
  %v2438 = vpack.c.b16 %v1907, %v1904
  %v2439 = vpack.c.b16 %v1911, %v1908
  %v2440 = vpack.c.b16 %v1912, %v1909
  %v2441 = vpack.c.b16 %v1913, %v1910
  %v2442 = vpack.c.b16 %v1917, %v1914
  %v2443 = vpack.c.b16 %v1918, %v1915
  %v2444 = vpack.c.b16 %v1919, %v1916
  %v2445 = vpack.c.b16 %v1923, %v1920
  %v2446 = vpack.c.b16 %v1924, %v1921
  %v2447 = vpack.c.b16 %v1925, %v1922
  %v2448 = vpack.c.b16 %v1929, %v1926
  %v2449 = vpack.c.b16 %v1930, %v1927
  %v2450 = vpack.c.b16 %v1931, %v1928
  %v2451 = vpack.c.b16 %v1935, %v1932
  %v2452 = vpack.c.b16 %v1936, %v1933
  %v2453 = vpack.c.b16 %v1937, %v1934
  %v2454 = vpack.c.b16 %v1941, %v1938
  %v2455 = vpack.c.b16 %v1942, %v1939
  %v2456 = vpack.c.b16 %v1943, %v1940
  %v2457 = vpack.c.b16 %v1947, %v1944
  %v2458 = vpack.c.b16 %v1948, %v1945
  %v2459 = vpack.c.b16 %v1949, %v1946
  %v2460 = vpack.c.b16 %v1953, %v1950
  %v2461 = vpack.c.b16 %v1954, %v1951
  %v2462 = vpack.c.b16 %v1955, %v1952
  %v2463 = vpack.c.b16 %v1959, %v1956
  %v2464 = vpack.c.b16 %v1960, %v1957
  %v2465 = vpack.c.b16 %v1961, %v1958
  %v2466 = vpack.c.b16 %v1965, %v1962
  %v2467 = vpack.c.b16 %v1966, %v1963
  %v2468 = vpack.c.b16 %v1967, %v1964
  %v2469 = vpack.c.b16 %v1971, %v1968
  %v2470 = vpack.c.b16 %v1972, %v1969
  %v2471 = vpack.c.b16 %v1973, %v1970
  %v2472 = vpack.c.b16 %v1977, %v1974
  %v2473 = vpack.c.b16 %v1978, %v1975
  %v2474 = vpack.c.b16 %v1979, %v1976
  %v2475 = vpack.c.b16 %v1983, %v1980
  %v2476 = vpack.c.b16 %v1984, %v1981
  %v2477 = vpack.c.b16 %v1985, %v1982
  %v2478 = vpack.c.b16 %v1989, %v1986
  %v2479 = vpack.c.b16 %v1990, %v1987
  %v2480 = vpack.c.b16 %v1991, %v1988
  %v2481 = vpack.c.b16 %v1995, %v1992
  %v2482 = vpack.c.b16 %v1996, %v1993
  %v2483 = vpack.c.b16 %v1997, %v1994
  %v2484 = vpack.c.b16 %v2001, %v1998
  %v2485 = vpack.c.b16 %v2002, %v1999
  %v2486 = vpack.c.b16 %v2003, %v2000
  %v2487 = vpack.c.b16 %v2007, %v2004
  %v2488 = vpack.c.b16 %v2008, %v2005
  %v2489 = vpack.c.b16 %v2009, %v2006
  %v2490 = vpack.c.b16 %v2013, %v2010
  %v2491 = vpack.c.b16 %v2014, %v2011
  %v2492 = vpack.c.b16 %v2015, %v2012
  %v2493 = vpack.c.b16 %v2019, %v2016
  %v2494 = vpack.c.b16 %v2020, %v2017
  %v2495 = vpack.c.b16 %v2021, %v2018
  %v2496 = vpack.c.b16 %v2025, %v2022
  %v2497 = vpack.c.b16 %v2026, %v2023
  %v2498 = vpack.c.b16 %v2027, %v2024
  %v2499 = vpack.c.b16 %v2031, %v2028
  %v2500 = vpack.c.b16 %v2032, %v2029
  %v2501 = vpack.c.b16 %v2033, %v2030
  %v2502 = vpack.c.b16 %v2037, %v2034
  %v2503 = vpack.c.b16 %v2038, %v2035
  %v2504 = vpack.c.b16 %v2039, %v2036
  %v2505 = vpack.c.b16 %v2043, %v2040
  %v2506 = vpack.c.b16 %v2044, %v2041
  %v2507 = vpack.c.b16 %v2045, %v2042
  %v2508 = vpack.c.b16 %v2049, %v2046
  %v2509 = vpack.c.b16 %v2050, %v2047
  %v2510 = vpack.c.b16 %v2051, %v2048
  %v2511 = vpack.c.b16 %v2055, %v2052
  %v2512 = vpack.c.b16 %v2056, %v2053
  %v2513 = vpack.c.b16 %v2057, %v2054
  %v2514 = vpack.c.b16 %v2061, %v2058
  %v2515 = vpack.c.b16 %v2062, %v2059
  %v2516 = vpack.c.b16 %v2063, %v2060
  %v2517 = vpack.c.b16 %v2067, %v2064
  %v2518 = vpack.c.b16 %v2068, %v2065
  %v2519 = vpack.c.b16 %v2069, %v2066
  %v2520 = vpack.c.b16 %v2073, %v2070
  %v2521 = vpack.c.b16 %v2074, %v2071
  %v2522 = vpack.c.b16 %v2075, %v2072
  %v2523 = vpack.c.b16 %v2079, %v2076
  %v2524 = vpack.c.b16 %v2080, %v2077
  %v2525 = vpack.c.b16 %v2081, %v2078
  %v2526 = vpack.c.b16 %v2085, %v2082
  %v2527 = vpack.c.b16 %v2086, %v2083
  %v2528 = vpack.c.b16 %v2087, %v2084
  %v2529 = vpack.c.b16 %v2091, %v2088
  %v2530 = vpack.c.b16 %v2092, %v2089
  %v2531 = vpack.c.b16 %v2093, %v2090
  %v2532 = vpack.c.b16 %v2097, %v2094
  %v2533 = vpack.c.b16 %v2098, %v2095
  %v2534 = vpack.c.b16 %v2099, %v2096
  %v2535 = vpack.c.b16 %v2103, %v2100
  %v2536 = vpack.c.b16 %v2104, %v2101
  %v2537 = vpack.c.b16 %v2105, %v2102
  %2970 = vmatprep.subr.bf16.mxu0 %v2107
  %2971 = vmatpush1.bf16.msra.mxu0 %v2106
  %2972 = vmatprep.subr.bf16.mxu0 %v2110
  %2973 = vmatpush1.bf16.msra.mxu0 %v2109
  %2974 = vmatprep.subr.bf16.mxu0 %v2113
  %2975 = vmatpush1.bf16.msra.mxu0 %v2112
  %2976 = vmatprep.subr.bf16.mxu0 %v2116
  %2977 = vmatpush1.bf16.msra.mxu0 %v2115
  %2978 = vmatprep.subr.bf16.mxu0 %v2119
  %2979 = vmatpush1.bf16.msra.mxu0 %v2118
  %2980 = vmatprep.subr.bf16.mxu0 %v2122
  %2981 = vmatpush1.bf16.msra.mxu0 %v2121
  %2982 = vmatprep.subr.bf16.mxu0 %v2125
  %2983 = vmatpush1.bf16.msra.mxu0 %v2124
  %2984 = vmatprep.subr.bf16.mxu0 %v2128
  %2985 = vmatpush1.bf16.msra.mxu0 %v2127
  %2986 = vmatprep.subr.bf16.mxu0 %v2131
  %2987 = vmatpush1.bf16.msra.mxu0 %v2130
  %2988 = vmatprep.subr.bf16.mxu0 %v2134
  %2989 = vmatpush1.bf16.msra.mxu0 %v2133
  %2990 = vmatprep.subr.bf16.mxu0 %v2137
  %2991 = vmatpush1.bf16.msra.mxu0 %v2136
  %2992 = vmatprep.subr.bf16.mxu0 %v2140
  %2993 = vmatpush1.bf16.msra.mxu0 %v2139
  %2994 = vmatprep.subr.bf16.mxu0 %v2143
  %2995 = vmatpush1.bf16.msra.mxu0 %v2142
  %2996 = vmatprep.subr.bf16.mxu0 %v2146
  %2997 = vmatpush1.bf16.msra.mxu0 %v2145
  %2998 = vmatprep.subr.bf16.mxu0 %v2149
  %2999 = vmatpush1.bf16.msra.mxu0 %v2148
  %3000 = vmatprep.subr.bf16.mxu0 %v2152
  %3001 = vmatpush1.bf16.msra.mxu0 %v2151
  %3002 = vmatprep.mubr.bf16.mxu0 %v631
  %3003 = vmatmul.mubr.bf16.gmra.mrb[0].mxu0 %v630
  %v3004 = vpop.f32.mrb[0].mxu0
  %v3005 = vadd.f32 0.0, %v3004
  %v3006 = vpop.f32.mrb[0].mxu0
  %v3007 = vadd.f32 0.0, %v3006
  %v3008 = vpop.f32.mrb[0].mxu0
  %v3009 = vpop.f32.mrb[0].mxu0
  %3010 = vdwg.mxu0
  %3011 = vmatprep.subr.bf16.mxu0 %v2155
  %3012 = vmatpush1.bf16.msra.mxu0 %v2154
  %3013 = vmatprep.subr.bf16.mxu0 %v2158
  %3014 = vmatpush1.bf16.msra.mxu0 %v2157
  %3015 = vmatprep.subr.bf16.mxu0 %v2161
  %3016 = vmatpush1.bf16.msra.mxu0 %v2160
  %3017 = vmatprep.subr.bf16.mxu0 %v2164
  %3018 = vmatpush1.bf16.msra.mxu0 %v2163
  %3019 = vmatprep.subr.bf16.mxu0 %v2167
  %3020 = vmatpush1.bf16.msra.mxu0 %v2166
  %3021 = vmatprep.subr.bf16.mxu0 %v2170
  %3022 = vmatpush1.bf16.msra.mxu0 %v2169
  %3023 = vmatprep.subr.bf16.mxu0 %v2173
  %3024 = vmatpush1.bf16.msra.mxu0 %v2172
  %3025 = vmatprep.subr.bf16.mxu0 %v2176
  %3026 = vmatpush1.bf16.msra.mxu0 %v2175
  %3027 = vmatprep.subr.bf16.mxu0 %v2179
  %3028 = vmatpush1.bf16.msra.mxu0 %v2178
  %3029 = vmatprep.subr.bf16.mxu0 %v2182
  %3030 = vmatpush1.bf16.msra.mxu0 %v2181
  %3031 = vmatprep.subr.bf16.mxu0 %v2185
  %3032 = vmatpush1.bf16.msra.mxu0 %v2184
  %3033 = vmatprep.subr.bf16.mxu0 %v2188
  %3034 = vmatpush1.bf16.msra.mxu0 %v2187
  %3035 = vmatprep.subr.bf16.mxu0 %v2191
  %3036 = vmatpush1.bf16.msra.mxu0 %v2190
  %3037 = vmatprep.subr.bf16.mxu0 %v2194
  %3038 = vmatpush1.bf16.msra.mxu0 %v2193
  %3039 = vmatprep.subr.bf16.mxu0 %v2197
  %3040 = vmatpush1.bf16.msra.mxu0 %v2196
  %3041 = vmatprep.subr.bf16.mxu0 %v2200
  %3042 = vmatpush1.bf16.msra.mxu0 %v2199
  %3043 = vmatprep.mubr.bf16.mxu0 %v633
  %3044 = vmatmul.mubr.bf16.gmra.mrb[0].mxu0 %v632
  %v3045 = vpop.f32.mrb[0].mxu0
  %v3046 = vadd.f32 %v3005, %v3045
  %v3047 = vpop.f32.mrb[0].mxu0
  %v3048 = vadd.f32 %v3007, %v3047
  %v3049 = vpop.f32.mrb[0].mxu0
  %v3050 = vpop.f32.mrb[0].mxu0
  %3051 = vdwg.mxu0
  %3052 = vmatprep.subr.bf16.mxu0 %v2203
  %3053 = vmatpush1.bf16.msra.mxu0 %v2202
  %3054 = vmatprep.subr.bf16.mxu0 %v2206
  %3055 = vmatpush1.bf16.msra.mxu0 %v2205
  %3056 = vmatprep.subr.bf16.mxu0 %v2209
  %3057 = vmatpush1.bf16.msra.mxu0 %v2208
  %3058 = vmatprep.subr.bf16.mxu0 %v2212
  %3059 = vmatpush1.bf16.msra.mxu0 %v2211
  %3060 = vmatprep.subr.bf16.mxu0 %v2215
  %3061 = vmatpush1.bf16.msra.mxu0 %v2214
  %3062 = vmatprep.subr.bf16.mxu0 %v2218
  %3063 = vmatpush1.bf16.msra.mxu0 %v2217
  %3064 = vmatprep.subr.bf16.mxu0 %v2221
  %3065 = vmatpush1.bf16.msra.mxu0 %v2220
  %3066 = vmatprep.subr.bf16.mxu0 %v2224
  %3067 = vmatpush1.bf16.msra.mxu0 %v2223
  %3068 = vmatprep.subr.bf16.mxu0 %v2227
  %3069 = vmatpush1.bf16.msra.mxu0 %v2226
  %3070 = vmatprep.subr.bf16.mxu0 %v2230
  %3071 = vmatpush1.bf16.msra.mxu0 %v2229
  %3072 = vmatprep.subr.bf16.mxu0 %v2233
  %3073 = vmatpush1.bf16.msra.mxu0 %v2232
  %3074 = vmatprep.subr.bf16.mxu0 %v2236
  %3075 = vmatpush1.bf16.msra.mxu0 %v2235
  %3076 = vmatprep.subr.bf16.mxu0 %v2239
  %3077 = vmatpush1.bf16.msra.mxu0 %v2238
  %3078 = vmatprep.subr.bf16.mxu0 %v2242
  %3079 = vmatpush1.bf16.msra.mxu0 %v2241
  %3080 = vmatprep.subr.bf16.mxu0 %v2245
  %3081 = vmatpush1.bf16.msra.mxu0 %v2244
  %3082 = vmatprep.subr.bf16.mxu0 %v2248
  %3083 = vmatpush1.bf16.msra.mxu0 %v2247
  %3084 = vmatprep.mubr.bf16.mxu0 %v635
  %3085 = vmatmul.mubr.bf16.gmra.mrb[0].mxu0 %v634
  %v3086 = vpop.f32.mrb[0].mxu0
  %v3087 = vadd.f32 %v3046, %v3086
  %v3088 = vpop.f32.mrb[0].mxu0
  %v3089 = vadd.f32 %v3048, %v3088
  %v3090 = vpop.f32.mrb[0].mxu0
  %v3091 = vpop.f32.mrb[0].mxu0
  %3092 = vdwg.mxu0
  %3093 = vmatprep.subr.bf16.mxu0 %v2251
  %3094 = vmatpush1.bf16.msra.mxu0 %v2250
  %3095 = vmatprep.subr.bf16.mxu0 %v2254
  %3096 = vmatpush1.bf16.msra.mxu0 %v2253
  %3097 = vmatprep.subr.bf16.mxu0 %v2257
  %3098 = vmatpush1.bf16.msra.mxu0 %v2256
  %3099 = vmatprep.subr.bf16.mxu0 %v2260
  %3100 = vmatpush1.bf16.msra.mxu0 %v2259
  %3101 = vmatprep.subr.bf16.mxu0 %v2263
  %3102 = vmatpush1.bf16.msra.mxu0 %v2262
  %3103 = vmatprep.subr.bf16.mxu0 %v2266
  %3104 = vmatpush1.bf16.msra.mxu0 %v2265
  %3105 = vmatprep.subr.bf16.mxu0 %v2269
  %3106 = vmatpush1.bf16.msra.mxu0 %v2268
  %3107 = vmatprep.subr.bf16.mxu0 %v2272
  %3108 = vmatpush1.bf16.msra.mxu0 %v2271
  %3109 = vmatprep.subr.bf16.mxu0 %v2275
  %3110 = vmatpush1.bf16.msra.mxu0 %v2274
  %3111 = vmatprep.subr.bf16.mxu0 %v2278
  %3112 = vmatpush1.bf16.msra.mxu0 %v2277
  %3113 = vmatprep.subr.bf16.mxu0 %v2281
  %3114 = vmatpush1.bf16.msra.mxu0 %v2280
  %3115 = vmatprep.subr.bf16.mxu0 %v2284
  %3116 = vmatpush1.bf16.msra.mxu0 %v2283
  %3117 = vmatprep.subr.bf16.mxu0 %v2287
  %3118 = vmatpush1.bf16.msra.mxu0 %v2286
  %3119 = vmatprep.subr.bf16.mxu0 %v2290
  %3120 = vmatpush1.bf16.msra.mxu0 %v2289
  %3121 = vmatprep.subr.bf16.mxu0 %v2293
  %3122 = vmatpush1.bf16.msra.mxu0 %v2292
  %3123 = vmatprep.subr.bf16.mxu0 %v2296
  %3124 = vmatpush1.bf16.msra.mxu0 %v2295
  %3125 = vmatprep.mubr.bf16.mxu0 %v637
  %3126 = vmatmul.mubr.bf16.gmra.mrb[0].mxu0 %v636
  %v3127 = vpop.f32.mrb[0].mxu0
  %v3128 = vadd.f32 %v3087, %v3127
  %v3129 = vpop.f32.mrb[0].mxu0
  %v3130 = vadd.f32 %v3089, %v3129
  %v3131 = vpop.f32.mrb[0].mxu0
  %v3132 = vpop.f32.mrb[0].mxu0
  %3133 = vdwg.mxu0
  %3134 = vmatprep.subr.bf16.mxu0 %v2299
  %3135 = vmatpush1.bf16.msra.mxu0 %v2298
  %3136 = vmatprep.subr.bf16.mxu0 %v2302
  %3137 = vmatpush1.bf16.msra.mxu0 %v2301
  %3138 = vmatprep.subr.bf16.mxu0 %v2305
  %3139 = vmatpush1.bf16.msra.mxu0 %v2304
  %3140 = vmatprep.subr.bf16.mxu0 %v2308
  %3141 = vmatpush1.bf16.msra.mxu0 %v2307
  %3142 = vmatprep.subr.bf16.mxu0 %v2311
  %3143 = vmatpush1.bf16.msra.mxu0 %v2310
  %3144 = vmatprep.subr.bf16.mxu0 %v2314
  %3145 = vmatpush1.bf16.msra.mxu0 %v2313
  %3146 = vmatprep.subr.bf16.mxu0 %v2317
  %3147 = vmatpush1.bf16.msra.mxu0 %v2316
  %3148 = vmatprep.subr.bf16.mxu0 %v2320
  %3149 = vmatpush1.bf16.msra.mxu0 %v2319
  %3150 = vmatprep.subr.bf16.mxu0 %v2323
  %3151 = vmatpush1.bf16.msra.mxu0 %v2322
  %3152 = vmatprep.subr.bf16.mxu0 %v2326
  %3153 = vmatpush1.bf16.msra.mxu0 %v2325
  %3154 = vmatprep.subr.bf16.mxu0 %v2329
  %3155 = vmatpush1.bf16.msra.mxu0 %v2328
  %3156 = vmatprep.subr.bf16.mxu0 %v2332
  %3157 = vmatpush1.bf16.msra.mxu0 %v2331
  %3158 = vmatprep.subr.bf16.mxu0 %v2335
  %3159 = vmatpush1.bf16.msra.mxu0 %v2334
  %3160 = vmatprep.subr.bf16.mxu0 %v2338
  %3161 = vmatpush1.bf16.msra.mxu0 %v2337
  %3162 = vmatprep.subr.bf16.mxu0 %v2341
  %3163 = vmatpush1.bf16.msra.mxu0 %v2340
  %3164 = vmatprep.subr.bf16.mxu0 %v2344
  %3165 = vmatpush1.bf16.msra.mxu0 %v2343
  %3166 = vmatprep.mubr.bf16.mxu0 %v639
  %3167 = vmatmul.mubr.bf16.gmra.mrb[0].mxu0 %v638
  %v3168 = vpop.f32.mrb[0].mxu0
  %v3169 = vadd.f32 %v3128, %v3168
  %v3170 = vpop.f32.mrb[0].mxu0
  %v3171 = vadd.f32 %v3130, %v3170
  %v3172 = vpop.f32.mrb[0].mxu0
  %v3173 = vpop.f32.mrb[0].mxu0
  %3174 = vdwg.mxu0
  %3175 = vmatprep.subr.bf16.mxu0 %v2347
  %3176 = vmatpush1.bf16.msra.mxu0 %v2346
  %3177 = vmatprep.subr.bf16.mxu0 %v2350
  %3178 = vmatpush1.bf16.msra.mxu0 %v2349
  %3179 = vmatprep.subr.bf16.mxu0 %v2353
  %3180 = vmatpush1.bf16.msra.mxu0 %v2352
  %3181 = vmatprep.subr.bf16.mxu0 %v2356
  %3182 = vmatpush1.bf16.msra.mxu0 %v2355
  %3183 = vmatprep.subr.bf16.mxu0 %v2359
  %3184 = vmatpush1.bf16.msra.mxu0 %v2358
  %3185 = vmatprep.subr.bf16.mxu0 %v2362
  %3186 = vmatpush1.bf16.msra.mxu0 %v2361
  %3187 = vmatprep.subr.bf16.mxu0 %v2365
  %3188 = vmatpush1.bf16.msra.mxu0 %v2364
  %3189 = vmatprep.subr.bf16.mxu0 %v2368
  %3190 = vmatpush1.bf16.msra.mxu0 %v2367
  %3191 = vmatprep.subr.bf16.mxu0 %v2371
  %3192 = vmatpush1.bf16.msra.mxu0 %v2370
  %3193 = vmatprep.subr.bf16.mxu0 %v2374
  %3194 = vmatpush1.bf16.msra.mxu0 %v2373
  %3195 = vmatprep.subr.bf16.mxu0 %v2377
  %3196 = vmatpush1.bf16.msra.mxu0 %v2376
  %3197 = vmatprep.subr.bf16.mxu0 %v2380
  %3198 = vmatpush1.bf16.msra.mxu0 %v2379
  %3199 = vmatprep.subr.bf16.mxu0 %v2383
  %3200 = vmatpush1.bf16.msra.mxu0 %v2382
  %3201 = vmatprep.subr.bf16.mxu0 %v2386
  %3202 = vmatpush1.bf16.msra.mxu0 %v2385
  %3203 = vmatprep.subr.bf16.mxu0 %v2389
  %3204 = vmatpush1.bf16.msra.mxu0 %v2388
  %3205 = vmatprep.subr.bf16.mxu0 %v2392
  %3206 = vmatpush1.bf16.msra.mxu0 %v2391
  %3207 = vmatprep.mubr.bf16.mxu0 %v641
  %3208 = vmatmul.mubr.bf16.gmra.mrb[0].mxu0 %v640
  %v3209 = vpop.f32.mrb[0].mxu0
  %v3210 = vadd.f32 %v3169, %v3209
  %v3211 = vpop.f32.mrb[0].mxu0
  %v3212 = vadd.f32 %v3171, %v3211
  %v3213 = vpop.f32.mrb[0].mxu0
  %v3214 = vpop.f32.mrb[0].mxu0
  %3215 = vdwg.mxu0
  %3216 = vmatprep.subr.bf16.mxu0 %v2395
  %3217 = vmatpush1.bf16.msra.mxu0 %v2394
  %3218 = vmatprep.subr.bf16.mxu0 %v2398
  %3219 = vmatpush1.bf16.msra.mxu0 %v2397
  %3220 = vmatprep.subr.bf16.mxu0 %v2401
  %3221 = vmatpush1.bf16.msra.mxu0 %v2400
  %3222 = vmatprep.subr.bf16.mxu0 %v2404
  %3223 = vmatpush1.bf16.msra.mxu0 %v2403
  %3224 = vmatprep.subr.bf16.mxu0 %v2407
  %3225 = vmatpush1.bf16.msra.mxu0 %v2406
  %3226 = vmatprep.subr.bf16.mxu0 %v2410
  %3227 = vmatpush1.bf16.msra.mxu0 %v2409
  %3228 = vmatprep.subr.bf16.mxu0 %v2413
  %3229 = vmatpush1.bf16.msra.mxu0 %v2412
  %3230 = vmatprep.subr.bf16.mxu0 %v2416
  %3231 = vmatpush1.bf16.msra.mxu0 %v2415
  %3232 = vmatprep.subr.bf16.mxu0 %v2419
  %3233 = vmatpush1.bf16.msra.mxu0 %v2418
  %3234 = vmatprep.subr.bf16.mxu0 %v2422
  %3235 = vmatpush1.bf16.msra.mxu0 %v2421
  %3236 = vmatprep.subr.bf16.mxu0 %v2425
  %3237 = vmatpush1.bf16.msra.mxu0 %v2424
  %3238 = vmatprep.subr.bf16.mxu0 %v2428
  %3239 = vmatpush1.bf16.msra.mxu0 %v2427
  %3240 = vmatprep.subr.bf16.mxu0 %v2431
  %3241 = vmatpush1.bf16.msra.mxu0 %v2430
  %3242 = vmatprep.subr.bf16.mxu0 %v2434
  %3243 = vmatpush1.bf16.msra.mxu0 %v2433
  %3244 = vmatprep.subr.bf16.mxu0 %v2437
  %3245 = vmatpush1.bf16.msra.mxu0 %v2436
  %3246 = vmatprep.subr.bf16.mxu0 %v2440
  %3247 = vmatpush1.bf16.msra.mxu0 %v2439
  %3248 = vmatprep.mubr.bf16.mxu0 %v643
  %3249 = vmatmul.mubr.bf16.gmra.mrb[0].mxu0 %v642
  %v3250 = vpop.f32.mrb[0].mxu0
  %v3251 = vadd.f32 %v3210, %v3250
  %v3252 = vpop.f32.mrb[0].mxu0
  %v3253 = vadd.f32 %v3212, %v3252
  %v3254 = vpop.f32.mrb[0].mxu0
  %v3255 = vpop.f32.mrb[0].mxu0
  %3256 = vdwg.mxu0
  %3257 = vmatprep.subr.bf16.mxu0 %v2443
  %3258 = vmatpush1.bf16.msra.mxu0 %v2442
  %3259 = vmatprep.subr.bf16.mxu0 %v2446
  %3260 = vmatpush1.bf16.msra.mxu0 %v2445
  %3261 = vmatprep.subr.bf16.mxu0 %v2449
  %3262 = vmatpush1.bf16.msra.mxu0 %v2448
  %3263 = vmatprep.subr.bf16.mxu0 %v2452
  %3264 = vmatpush1.bf16.msra.mxu0 %v2451
  %3265 = vmatprep.subr.bf16.mxu0 %v2455
  %3266 = vmatpush1.bf16.msra.mxu0 %v2454
  %3267 = vmatprep.subr.bf16.mxu0 %v2458
  %3268 = vmatpush1.bf16.msra.mxu0 %v2457
  %3269 = vmatprep.subr.bf16.mxu0 %v2461
  %3270 = vmatpush1.bf16.msra.mxu0 %v2460
  %3271 = vmatprep.subr.bf16.mxu0 %v2464
  %3272 = vmatpush1.bf16.msra.mxu0 %v2463
  %3273 = vmatprep.subr.bf16.mxu0 %v2467
  %3274 = vmatpush1.bf16.msra.mxu0 %v2466
  %3275 = vmatprep.subr.bf16.mxu0 %v2470
  %3276 = vmatpush1.bf16.msra.mxu0 %v2469
  %3277 = vmatprep.subr.bf16.mxu0 %v2473
  %3278 = vmatpush1.bf16.msra.mxu0 %v2472
  %3279 = vmatprep.subr.bf16.mxu0 %v2476
  %3280 = vmatpush1.bf16.msra.mxu0 %v2475
  %3281 = vmatprep.subr.bf16.mxu0 %v2479
  %3282 = vmatpush1.bf16.msra.mxu0 %v2478
  %3283 = vmatprep.subr.bf16.mxu0 %v2482
  %3284 = vmatpush1.bf16.msra.mxu0 %v2481
  %3285 = vmatprep.subr.bf16.mxu0 %v2485
  %3286 = vmatpush1.bf16.msra.mxu0 %v2484
  %3287 = vmatprep.subr.bf16.mxu0 %v2488
  %3288 = vmatpush1.bf16.msra.mxu0 %v2487
  %3289 = vmatprep.mubr.bf16.mxu0 %v645
  %3290 = vmatmul.mubr.bf16.gmra.mrb[0].mxu0 %v644
  %v3291 = vpop.f32.mrb[0].mxu0
  %v3292 = vadd.f32 %v3251, %v3291
  %v3293 = vpop.f32.mrb[0].mxu0
  %v3294 = vadd.f32 %v3253, %v3293
  %v3295 = vpop.f32.mrb[0].mxu0
  %v3296 = vpop.f32.mrb[0].mxu0
  %3297 = vdwg.mxu0
  %3298 = vmatprep.subr.bf16.mxu0 %v2491
  %3299 = vmatpush1.bf16.msra.mxu0 %v2490
  %3300 = vmatprep.subr.bf16.mxu0 %v2494
  %3301 = vmatpush1.bf16.msra.mxu0 %v2493
  %3302 = vmatprep.subr.bf16.mxu0 %v2497
  %3303 = vmatpush1.bf16.msra.mxu0 %v2496
  %3304 = vmatprep.subr.bf16.mxu0 %v2500
  %3305 = vmatpush1.bf16.msra.mxu0 %v2499
  %3306 = vmatprep.subr.bf16.mxu0 %v2503
  %3307 = vmatpush1.bf16.msra.mxu0 %v2502
  %3308 = vmatprep.subr.bf16.mxu0 %v2506
  %3309 = vmatpush1.bf16.msra.mxu0 %v2505
  %3310 = vmatprep.subr.bf16.mxu0 %v2509
  %3311 = vmatpush1.bf16.msra.mxu0 %v2508
  %3312 = vmatprep.subr.bf16.mxu0 %v2512
  %3313 = vmatpush1.bf16.msra.mxu0 %v2511
  %3314 = vmatprep.subr.bf16.mxu0 %v2515
  %3315 = vmatpush1.bf16.msra.mxu0 %v2514
  %3316 = vmatprep.subr.bf16.mxu0 %v2518
  %3317 = vmatpush1.bf16.msra.mxu0 %v2517
  %3318 = vmatprep.subr.bf16.mxu0 %v2521
  %3319 = vmatpush1.bf16.msra.mxu0 %v2520
  %3320 = vmatprep.subr.bf16.mxu0 %v2524
  %3321 = vmatpush1.bf16.msra.mxu0 %v2523
  %3322 = vmatprep.subr.bf16.mxu0 %v2527
  %3323 = vmatpush1.bf16.msra.mxu0 %v2526
  %3324 = vmatprep.subr.bf16.mxu0 %v2530
  %3325 = vmatpush1.bf16.msra.mxu0 %v2529
  %3326 = vmatprep.subr.bf16.mxu0 %v2533
  %3327 = vmatpush1.bf16.msra.mxu0 %v2532
  %3328 = vmatprep.subr.bf16.mxu0 %v2536
  %3329 = vmatpush1.bf16.msra.mxu0 %v2535
  %3330 = vmatprep.mubr.bf16.mxu0 %v647
  %3331 = vmatmul.mubr.bf16.gmra.mrb[0].mxu0 %v646
  %v3332 = vpop.f32.mrb[0].mxu0
  %v3333 = vadd.f32 %v3292, %v3332
  %v3334 = vpop.f32.mrb[0].mxu0
  %v3335 = vadd.f32 %v3294, %v3334
  %v3336 = vpop.f32.mrb[0].mxu0
  %v3337 = vpop.f32.mrb[0].mxu0
  %3338 = vdwg.mxu0
  %3339 = vmatprep.subr.bf16.mxu0 0
  %3340 = vmatpush1.bf16.msra.mxu0 %v2108
  %3341 = vmatprep.subr.bf16.mxu0 0
  %3342 = vmatpush1.bf16.msra.mxu0 %v2111
  %3343 = vmatprep.subr.bf16.mxu0 0
  %3344 = vmatpush1.bf16.msra.mxu0 %v2114
  %3345 = vmatprep.subr.bf16.mxu0 0
  %3346 = vmatpush1.bf16.msra.mxu0 %v2117
  %3347 = vmatprep.subr.bf16.mxu0 0
  %3348 = vmatpush1.bf16.msra.mxu0 %v2120
  %3349 = vmatprep.subr.bf16.mxu0 0
  %3350 = vmatpush1.bf16.msra.mxu0 %v2123
  %3351 = vmatprep.subr.bf16.mxu0 0
  %3352 = vmatpush1.bf16.msra.mxu0 %v2126
  %3353 = vmatprep.subr.bf16.mxu0 0
  %3354 = vmatpush1.bf16.msra.mxu0 %v2129
  %3355 = vmatprep.subr.bf16.mxu0 0
  %3356 = vmatpush1.bf16.msra.mxu0 %v2132
  %3357 = vmatprep.subr.bf16.mxu0 0
  %3358 = vmatpush1.bf16.msra.mxu0 %v2135
  %3359 = vmatprep.subr.bf16.mxu0 0
  %3360 = vmatpush1.bf16.msra.mxu0 %v2138
  %3361 = vmatprep.subr.bf16.mxu0 0
  %3362 = vmatpush1.bf16.msra.mxu0 %v2141
  %3363 = vmatprep.subr.bf16.mxu0 0
  %3364 = vmatpush1.bf16.msra.mxu0 %v2144
  %3365 = vmatprep.subr.bf16.mxu0 0
  %3366 = vmatpush1.bf16.msra.mxu0 %v2147
  %3367 = vmatprep.subr.bf16.mxu0 0
  %3368 = vmatpush1.bf16.msra.mxu0 %v2150
  %3369 = vmatprep.subr.bf16.mxu0 0
  %3370 = vmatpush1.bf16.msra.mxu0 %v2153
  %3371 = vmatprep.mubr.bf16.mxu0 %v631
  %3372 = vmatmul.mubr.bf16.gmra.mrb[0].mxu0 %v630
  %v3373 = vpop.f32.mrb[0].mxu0
  %v3374 = vadd.f32 0.0, %v3373
  %v3375 = vpop.f32.mrb[0].mxu0
  %v3376 = vpop.f32.mrb[0].mxu0
  %v3377 = vpop.f32.mrb[0].mxu0
  %3378 = vdwg.mxu0
  %3379 = vmatprep.subr.bf16.mxu0 0
  %3380 = vmatpush1.bf16.msra.mxu0 %v2156
  %3381 = vmatprep.subr.bf16.mxu0 0
  %3382 = vmatpush1.bf16.msra.mxu0 %v2159
  %3383 = vmatprep.subr.bf16.mxu0 0
  %3384 = vmatpush1.bf16.msra.mxu0 %v2162
  %3385 = vmatprep.subr.bf16.mxu0 0
  %3386 = vmatpush1.bf16.msra.mxu0 %v2165
  %3387 = vmatprep.subr.bf16.mxu0 0
  %3388 = vmatpush1.bf16.msra.mxu0 %v2168
  %3389 = vmatprep.subr.bf16.mxu0 0
  %3390 = vmatpush1.bf16.msra.mxu0 %v2171
  %3391 = vmatprep.subr.bf16.mxu0 0
  %3392 = vmatpush1.bf16.msra.mxu0 %v2174
  %3393 = vmatprep.subr.bf16.mxu0 0
  %3394 = vmatpush1.bf16.msra.mxu0 %v2177
  %3395 = vmatprep.subr.bf16.mxu0 0
  %3396 = vmatpush1.bf16.msra.mxu0 %v2180
  %3397 = vmatprep.subr.bf16.mxu0 0
  %3398 = vmatpush1.bf16.msra.mxu0 %v2183
  %3399 = vmatprep.subr.bf16.mxu0 0
  %3400 = vmatpush1.bf16.msra.mxu0 %v2186
  %3401 = vmatprep.subr.bf16.mxu0 0
  %3402 = vmatpush1.bf16.msra.mxu0 %v2189
  %3403 = vmatprep.subr.bf16.mxu0 0
  %3404 = vmatpush1.bf16.msra.mxu0 %v2192
  %3405 = vmatprep.subr.bf16.mxu0 0
  %3406 = vmatpush1.bf16.msra.mxu0 %v2195
  %3407 = vmatprep.subr.bf16.mxu0 0
  %3408 = vmatpush1.bf16.msra.mxu0 %v2198
  %3409 = vmatprep.subr.bf16.mxu0 0
  %3410 = vmatpush1.bf16.msra.mxu0 %v2201
  %3411 = vmatprep.mubr.bf16.mxu0 %v633
  %3412 = vmatmul.mubr.bf16.gmra.mrb[0].mxu0 %v632
  %v3413 = vpop.f32.mrb[0].mxu0
  %v3414 = vadd.f32 %v3374, %v3413
  %v3415 = vpop.f32.mrb[0].mxu0
  %v3416 = vpop.f32.mrb[0].mxu0
  %v3417 = vpop.f32.mrb[0].mxu0
  %3418 = vdwg.mxu0
  %3419 = vmatprep.subr.bf16.mxu0 0
  %3420 = vmatpush1.bf16.msra.mxu0 %v2204
  %3421 = vmatprep.subr.bf16.mxu0 0
  %3422 = vmatpush1.bf16.msra.mxu0 %v2207
  %3423 = vmatprep.subr.bf16.mxu0 0
  %3424 = vmatpush1.bf16.msra.mxu0 %v2210
  %3425 = vmatprep.subr.bf16.mxu0 0
  %3426 = vmatpush1.bf16.msra.mxu0 %v2213
  %3427 = vmatprep.subr.bf16.mxu0 0
  %3428 = vmatpush1.bf16.msra.mxu0 %v2216
  %3429 = vmatprep.subr.bf16.mxu0 0
  %3430 = vmatpush1.bf16.msra.mxu0 %v2219
  %3431 = vmatprep.subr.bf16.mxu0 0
  %3432 = vmatpush1.bf16.msra.mxu0 %v2222
  %3433 = vmatprep.subr.bf16.mxu0 0
  %3434 = vmatpush1.bf16.msra.mxu0 %v2225
  %3435 = vmatprep.subr.bf16.mxu0 0
  %3436 = vmatpush1.bf16.msra.mxu0 %v2228
  %3437 = vmatprep.subr.bf16.mxu0 0
  %3438 = vmatpush1.bf16.msra.mxu0 %v2231
  %3439 = vmatprep.subr.bf16.mxu0 0
  %3440 = vmatpush1.bf16.msra.mxu0 %v2234
  %3441 = vmatprep.subr.bf16.mxu0 0
  %3442 = vmatpush1.bf16.msra.mxu0 %v2237
  %3443 = vmatprep.subr.bf16.mxu0 0
  %3444 = vmatpush1.bf16.msra.mxu0 %v2240
  %3445 = vmatprep.subr.bf16.mxu0 0
  %3446 = vmatpush1.bf16.msra.mxu0 %v2243
  %3447 = vmatprep.subr.bf16.mxu0 0
  %3448 = vmatpush1.bf16.msra.mxu0 %v2246
  %3449 = vmatprep.subr.bf16.mxu0 0
  %3450 = vmatpush1.bf16.msra.mxu0 %v2249
  %3451 = vmatprep.mubr.bf16.mxu0 %v635
  %3452 = vmatmul.mubr.bf16.gmra.mrb[0].mxu0 %v634
  %v3453 = vpop.f32.mrb[0].mxu0
  %v3454 = vadd.f32 %v3414, %v3453
  %v3455 = vpop.f32.mrb[0].mxu0
  %v3456 = vpop.f32.mrb[0].mxu0
  %v3457 = vpop.f32.mrb[0].mxu0
  %3458 = vdwg.mxu0
  %3459 = vmatprep.subr.bf16.mxu0 0
  %3460 = vmatpush1.bf16.msra.mxu0 %v2252
  %3461 = vmatprep.subr.bf16.mxu0 0
  %3462 = vmatpush1.bf16.msra.mxu0 %v2255
  %3463 = vmatprep.subr.bf16.mxu0 0
  %3464 = vmatpush1.bf16.msra.mxu0 %v2258
  %3465 = vmatprep.subr.bf16.mxu0 0
  %3466 = vmatpush1.bf16.msra.mxu0 %v2261
  %3467 = vmatprep.subr.bf16.mxu0 0
  %3468 = vmatpush1.bf16.msra.mxu0 %v2264
  %3469 = vmatprep.subr.bf16.mxu0 0
  %3470 = vmatpush1.bf16.msra.mxu0 %v2267
  %3471 = vmatprep.subr.bf16.mxu0 0
  %3472 = vmatpush1.bf16.msra.mxu0 %v2270
  %3473 = vmatprep.subr.bf16.mxu0 0
  %3474 = vmatpush1.bf16.msra.mxu0 %v2273
  %3475 = vmatprep.subr.bf16.mxu0 0
  %3476 = vmatpush1.bf16.msra.mxu0 %v2276
  %3477 = vmatprep.subr.bf16.mxu0 0
  %3478 = vmatpush1.bf16.msra.mxu0 %v2279
  %3479 = vmatprep.subr.bf16.mxu0 0
  %3480 = vmatpush1.bf16.msra.mxu0 %v2282
  %3481 = vmatprep.subr.bf16.mxu0 0
  %3482 = vmatpush1.bf16.msra.mxu0 %v2285
  %3483 = vmatprep.subr.bf16.mxu0 0
  %3484 = vmatpush1.bf16.msra.mxu0 %v2288
  %3485 = vmatprep.subr.bf16.mxu0 0
  %3486 = vmatpush1.bf16.msra.mxu0 %v2291
  %3487 = vmatprep.subr.bf16.mxu0 0
  %3488 = vmatpush1.bf16.msra.mxu0 %v2294
  %3489 = vmatprep.subr.bf16.mxu0 0
  %3490 = vmatpush1.bf16.msra.mxu0 %v2297
  %3491 = vmatprep.mubr.bf16.mxu0 %v637
  %3492 = vmatmul.mubr.bf16.gmra.mrb[0].mxu0 %v636
  %v3493 = vpop.f32.mrb[0].mxu0
  %v3494 = vadd.f32 %v3454, %v3493
  %v3495 = vpop.f32.mrb[0].mxu0
  %v3496 = vpop.f32.mrb[0].mxu0
  %v3497 = vpop.f32.mrb[0].mxu0
  %3498 = vdwg.mxu0
  %3499 = vmatprep.subr.bf16.mxu0 0
  %3500 = vmatpush1.bf16.msra.mxu0 %v2300
  %3501 = vmatprep.subr.bf16.mxu0 0
  %3502 = vmatpush1.bf16.msra.mxu0 %v2303
  %3503 = vmatprep.subr.bf16.mxu0 0
  %3504 = vmatpush1.bf16.msra.mxu0 %v2306
  %3505 = vmatprep.subr.bf16.mxu0 0
  %3506 = vmatpush1.bf16.msra.mxu0 %v2309
  %3507 = vmatprep.subr.bf16.mxu0 0
  %3508 = vmatpush1.bf16.msra.mxu0 %v2312
  %3509 = vmatprep.subr.bf16.mxu0 0
  %3510 = vmatpush1.bf16.msra.mxu0 %v2315
  %3511 = vmatprep.subr.bf16.mxu0 0
  %3512 = vmatpush1.bf16.msra.mxu0 %v2318
  %3513 = vmatprep.subr.bf16.mxu0 0
  %3514 = vmatpush1.bf16.msra.mxu0 %v2321
  %3515 = vmatprep.subr.bf16.mxu0 0
  %3516 = vmatpush1.bf16.msra.mxu0 %v2324
  %3517 = vmatprep.subr.bf16.mxu0 0
  %3518 = vmatpush1.bf16.msra.mxu0 %v2327
  %3519 = vmatprep.subr.bf16.mxu0 0
  %3520 = vmatpush1.bf16.msra.mxu0 %v2330
  %3521 = vmatprep.subr.bf16.mxu0 0
  %3522 = vmatpush1.bf16.msra.mxu0 %v2333
  %3523 = vmatprep.subr.bf16.mxu0 0
  %3524 = vmatpush1.bf16.msra.mxu0 %v2336
  %3525 = vmatprep.subr.bf16.mxu0 0
  %3526 = vmatpush1.bf16.msra.mxu0 %v2339
  %3527 = vmatprep.subr.bf16.mxu0 0
  %3528 = vmatpush1.bf16.msra.mxu0 %v2342
  %3529 = vmatprep.subr.bf16.mxu0 0
  %3530 = vmatpush1.bf16.msra.mxu0 %v2345
  %3531 = vmatprep.mubr.bf16.mxu0 %v639
  %3532 = vmatmul.mubr.bf16.gmra.mrb[0].mxu0 %v638
  %v3533 = vpop.f32.mrb[0].mxu0
  %v3534 = vadd.f32 %v3494, %v3533
  %v3535 = vpop.f32.mrb[0].mxu0
  %v3536 = vpop.f32.mrb[0].mxu0
  %v3537 = vpop.f32.mrb[0].mxu0
  %3538 = vdwg.mxu0
  %3539 = vmatprep.subr.bf16.mxu0 0
  %3540 = vmatpush1.bf16.msra.mxu0 %v2348
  %3541 = vmatprep.subr.bf16.mxu0 0
  %3542 = vmatpush1.bf16.msra.mxu0 %v2351
  %3543 = vmatprep.subr.bf16.mxu0 0
  %3544 = vmatpush1.bf16.msra.mxu0 %v2354
  %3545 = vmatprep.subr.bf16.mxu0 0
  %3546 = vmatpush1.bf16.msra.mxu0 %v2357
  %3547 = vmatprep.subr.bf16.mxu0 0
  %3548 = vmatpush1.bf16.msra.mxu0 %v2360
  %3549 = vmatprep.subr.bf16.mxu0 0
  %3550 = vmatpush1.bf16.msra.mxu0 %v2363
  %3551 = vmatprep.subr.bf16.mxu0 0
  %3552 = vmatpush1.bf16.msra.mxu0 %v2366
  %3553 = vmatprep.subr.bf16.mxu0 0
  %3554 = vmatpush1.bf16.msra.mxu0 %v2369
  %3555 = vmatprep.subr.bf16.mxu0 0
  %3556 = vmatpush1.bf16.msra.mxu0 %v2372
  %3557 = vmatprep.subr.bf16.mxu0 0
  %3558 = vmatpush1.bf16.msra.mxu0 %v2375
  %3559 = vmatprep.subr.bf16.mxu0 0
  %3560 = vmatpush1.bf16.msra.mxu0 %v2378
  %3561 = vmatprep.subr.bf16.mxu0 0
  %3562 = vmatpush1.bf16.msra.mxu0 %v2381
  %3563 = vmatprep.subr.bf16.mxu0 0
  %3564 = vmatpush1.bf16.msra.mxu0 %v2384
  %3565 = vmatprep.subr.bf16.mxu0 0
  %3566 = vmatpush1.bf16.msra.mxu0 %v2387
  %3567 = vmatprep.subr.bf16.mxu0 0
  %3568 = vmatpush1.bf16.msra.mxu0 %v2390
  %3569 = vmatprep.subr.bf16.mxu0 0
  %3570 = vmatpush1.bf16.msra.mxu0 %v2393
  %3571 = vmatprep.mubr.bf16.mxu0 %v641
  %3572 = vmatmul.mubr.bf16.gmra.mrb[0].mxu0 %v640
  %v3573 = vpop.f32.mrb[0].mxu0
  %v3574 = vadd.f32 %v3534, %v3573
  %v3575 = vpop.f32.mrb[0].mxu0
  %v3576 = vpop.f32.mrb[0].mxu0
  %v3577 = vpop.f32.mrb[0].mxu0
  %3578 = vdwg.mxu0
  %3579 = vmatprep.subr.bf16.mxu0 0
  %3580 = vmatpush1.bf16.msra.mxu0 %v2396
  %3581 = vmatprep.subr.bf16.mxu0 0
  %3582 = vmatpush1.bf16.msra.mxu0 %v2399
  %3583 = vmatprep.subr.bf16.mxu0 0
  %3584 = vmatpush1.bf16.msra.mxu0 %v2402
  %3585 = vmatprep.subr.bf16.mxu0 0
  %3586 = vmatpush1.bf16.msra.mxu0 %v2405
  %3587 = vmatprep.subr.bf16.mxu0 0
  %3588 = vmatpush1.bf16.msra.mxu0 %v2408
  %3589 = vmatprep.subr.bf16.mxu0 0
  %3590 = vmatpush1.bf16.msra.mxu0 %v2411
  %3591 = vmatprep.subr.bf16.mxu0 0
  %3592 = vmatpush1.bf16.msra.mxu0 %v2414
  %3593 = vmatprep.subr.bf16.mxu0 0
  %3594 = vmatpush1.bf16.msra.mxu0 %v2417
  %3595 = vmatprep.subr.bf16.mxu0 0
  %3596 = vmatpush1.bf16.msra.mxu0 %v2420
  %3597 = vmatprep.subr.bf16.mxu0 0
  %3598 = vmatpush1.bf16.msra.mxu0 %v2423
  %3599 = vmatprep.subr.bf16.mxu0 0
  %3600 = vmatpush1.bf16.msra.mxu0 %v2426
  %3601 = vmatprep.subr.bf16.mxu0 0
  %3602 = vmatpush1.bf16.msra.mxu0 %v2429
  %3603 = vmatprep.subr.bf16.mxu0 0
  %3604 = vmatpush1.bf16.msra.mxu0 %v2432
  %3605 = vmatprep.subr.bf16.mxu0 0
  %3606 = vmatpush1.bf16.msra.mxu0 %v2435
  %3607 = vmatprep.subr.bf16.mxu0 0
  %3608 = vmatpush1.bf16.msra.mxu0 %v2438
  %3609 = vmatprep.subr.bf16.mxu0 0
  %3610 = vmatpush1.bf16.msra.mxu0 %v2441
  %3611 = vmatprep.mubr.bf16.mxu0 %v643
  %3612 = vmatmul.mubr.bf16.gmra.mrb[0].mxu0 %v642
  %v3613 = vpop.f32.mrb[0].mxu0
  %v3614 = vadd.f32 %v3574, %v3613
  %v3615 = vpop.f32.mrb[0].mxu0
  %v3616 = vpop.f32.mrb[0].mxu0
  %v3617 = vpop.f32.mrb[0].mxu0
  %3618 = vdwg.mxu0
  %3619 = vmatprep.subr.bf16.mxu0 0
  %3620 = vmatpush1.bf16.msra.mxu0 %v2444
  %3621 = vmatprep.subr.bf16.mxu0 0
  %3622 = vmatpush1.bf16.msra.mxu0 %v2447
  %3623 = vmatprep.subr.bf16.mxu0 0
  %3624 = vmatpush1.bf16.msra.mxu0 %v2450
  %3625 = vmatprep.subr.bf16.mxu0 0
  %3626 = vmatpush1.bf16.msra.mxu0 %v2453
  %3627 = vmatprep.subr.bf16.mxu0 0
  %3628 = vmatpush1.bf16.msra.mxu0 %v2456
  %3629 = vmatprep.subr.bf16.mxu0 0
  %3630 = vmatpush1.bf16.msra.mxu0 %v2459
  %3631 = vmatprep.subr.bf16.mxu0 0
  %3632 = vmatpush1.bf16.msra.mxu0 %v2462
  %3633 = vmatprep.subr.bf16.mxu0 0
  %3634 = vmatpush1.bf16.msra.mxu0 %v2465
  %3635 = vmatprep.subr.bf16.mxu0 0
  %3636 = vmatpush1.bf16.msra.mxu0 %v2468
  %3637 = vmatprep.subr.bf16.mxu0 0
  %3638 = vmatpush1.bf16.msra.mxu0 %v2471
  %3639 = vmatprep.subr.bf16.mxu0 0
  %3640 = vmatpush1.bf16.msra.mxu0 %v2474
  %3641 = vmatprep.subr.bf16.mxu0 0
  %3642 = vmatpush1.bf16.msra.mxu0 %v2477
  %3643 = vmatprep.subr.bf16.mxu0 0
  %3644 = vmatpush1.bf16.msra.mxu0 %v2480
  %3645 = vmatprep.subr.bf16.mxu0 0
  %3646 = vmatpush1.bf16.msra.mxu0 %v2483
  %3647 = vmatprep.subr.bf16.mxu0 0
  %3648 = vmatpush1.bf16.msra.mxu0 %v2486
  %3649 = vmatprep.subr.bf16.mxu0 0
  %3650 = vmatpush1.bf16.msra.mxu0 %v2489
  %3651 = vmatprep.mubr.bf16.mxu0 %v645
  %3652 = vmatmul.mubr.bf16.gmra.mrb[0].mxu0 %v644
  %v3653 = vpop.f32.mrb[0].mxu0
  %v3654 = vadd.f32 %v3614, %v3653
  %v3655 = vpop.f32.mrb[0].mxu0
  %v3656 = vpop.f32.mrb[0].mxu0
  %v3657 = vpop.f32.mrb[0].mxu0
  %3658 = vdwg.mxu0
  %3659 = vmatprep.subr.bf16.mxu0 0
  %3660 = vmatpush1.bf16.msra.mxu0 %v2492
  %3661 = vmatprep.subr.bf16.mxu0 0
  %3662 = vmatpush1.bf16.msra.mxu0 %v2495
  %3663 = vmatprep.subr.bf16.mxu0 0
  %3664 = vmatpush1.bf16.msra.mxu0 %v2498
  %3665 = vmatprep.subr.bf16.mxu0 0
  %3666 = vmatpush1.bf16.msra.mxu0 %v2501
  %3667 = vmatprep.subr.bf16.mxu0 0
  %3668 = vmatpush1.bf16.msra.mxu0 %v2504
  %3669 = vmatprep.subr.bf16.mxu0 0
  %3670 = vmatpush1.bf16.msra.mxu0 %v2507
  %3671 = vmatprep.subr.bf16.mxu0 0
  %3672 = vmatpush1.bf16.msra.mxu0 %v2510
  %3673 = vmatprep.subr.bf16.mxu0 0
  %3674 = vmatpush1.bf16.msra.mxu0 %v2513
  %3675 = vmatprep.subr.bf16.mxu0 0
  %3676 = vmatpush1.bf16.msra.mxu0 %v2516
  %3677 = vmatprep.subr.bf16.mxu0 0
  %3678 = vmatpush1.bf16.msra.mxu0 %v2519
  %3679 = vmatprep.subr.bf16.mxu0 0
  %3680 = vmatpush1.bf16.msra.mxu0 %v2522
  %3681 = vmatprep.subr.bf16.mxu0 0
  %3682 = vmatpush1.bf16.msra.mxu0 %v2525
  %3683 = vmatprep.subr.bf16.mxu0 0
  %3684 = vmatpush1.bf16.msra.mxu0 %v2528
  %3685 = vmatprep.subr.bf16.mxu0 0
  %3686 = vmatpush1.bf16.msra.mxu0 %v2531
  %3687 = vmatprep.subr.bf16.mxu0 0
  %3688 = vmatpush1.bf16.msra.mxu0 %v2534
  %3689 = vmatprep.subr.bf16.mxu0 0
  %3690 = vmatpush1.bf16.msra.mxu0 %v2537
  %3691 = vmatprep.mubr.bf16.mxu0 %v647
  %3692 = vmatmul.mubr.bf16.gmra.mrb[0].mxu0 %v646
  %v3693 = vpop.f32.mrb[0].mxu0
  %v3694 = vadd.f32 %v3654, %v3693
  %v3695 = vpop.f32.mrb[0].mxu0
  %v3696 = vpop.f32.mrb[0].mxu0
  %v3697 = vpop.f32.mrb[0].mxu0
  %3698 = vdwg.mxu0
  %v3699 = vrot.slane %v3333, 4
  %v3700 = vadd.f32 %v3333, %v3699
  %v3701 = vrot.slane %v3700, 2
  %v3702 = vadd.f32 %v3700, %v3701
  %v3703 = vrot.slane %v3702, 1
  %v3704 = vadd.f32 %v3702, %v3703
  %v3705 = vrot.slane %v3335, 4
  %v3706 = vadd.f32 %v3335, %v3705
  %v3707 = vrot.slane %v3706, 2
  %v3708 = vadd.f32 %v3706, %v3707
  %v3709 = vrot.slane %v3708, 1
  %v3710 = vadd.f32 %v3708, %v3709
  %v3711 = vrot.slane %v3694, 4
  %v3712 = vadd.f32 %v3694, %v3711
  %v3713 = vrot.slane %v3712, 2
  %v3714 = vadd.f32 %v3712, %v3713
  %v3715 = vrot.slane %v3714, 1
  %v3716 = vadd.f32 %v3714, %v3715
  %v3717 = vrcp.pop 8.0
  %v3718 = vmul.f32 %v3704, %v3717
  %v3719 = vmul.f32 %v3710, %v3717
  %v3720 = vmul.f32 %v3716, %v3717
  %v3721 = vsub.f32 %v3333, %v3718
  %v3722 = vsub.f32 %v3335, %v3719
  %v3723 = vsub.f32 %v3694, %v3720
  %v3724 = vmul.f32 %v3721, %v3721
  %v3725 = vmul.f32 %v3722, %v3722
  %v3726 = vmul.f32 %v3723, %v3723
  %v3727 = vrot.slane %v3724, 4
  %v3728 = vadd.f32 %v3724, %v3727
  %v3729 = vrot.slane %v3728, 2
  %v3730 = vadd.f32 %v3728, %v3729
  %v3731 = vrot.slane %v3730, 1
  %v3732 = vadd.f32 %v3730, %v3731
  %v3733 = vrot.slane %v3725, 4
  %v3734 = vadd.f32 %v3725, %v3733
  %v3735 = vrot.slane %v3734, 2
  %v3736 = vadd.f32 %v3734, %v3735
  %v3737 = vrot.slane %v3736, 1
  %v3738 = vadd.f32 %v3736, %v3737
  %v3739 = vrot.slane %v3726, 4
  %v3740 = vadd.f32 %v3726, %v3739
  %v3741 = vrot.slane %v3740, 2
  %v3742 = vadd.f32 %v3740, %v3741
  %v3743 = vrot.slane %v3742, 1
  %v3744 = vadd.f32 %v3742, %v3743
  %v3745 = vmul.f32 %v3732, %v3717
  %v3746 = vmul.f32 %v3738, %v3717
  %v3747 = vmul.f32 %v3744, %v3717
  %v3748 = vld [vmem:[%s2] sm:$0x7]
  %v3749 = vadd.f32 %v3745, 1e-05
  %v3750 = vadd.f32 %v3746, 1e-05
  %v3751 = vadd.f32 %v3747, 1e-05
  %v3752 = vrsqrt.pop %v3749
  %v3753 = vrsqrt.pop %v3750
  %v3754 = vrsqrt.pop %v3751
  %v3758 = vcombine.low %v3752, %v3753
  %v3760 = vunpack.c.l.s4 1966171168
  %v3761 = vunpack.c.0.s8 %v3760
  %v3762 = vlaneseq
  %v3763 = vshrl.u32 %v3762, 7
  %v3764 = vsub.s32 %v3761, %v3763
  %v3765 = vrot.slane %v3758, %v3764
  %v3767 = vunpack.c.l.s4 1966171168
  %v3768 = vunpack.c.0.s8 %v3767
  %v3769 = vlaneseq
  %v3770 = vshrl.u32 %v3769, 7
  %v3771 = vsub.s32 %v3768, %v3770
  %v3772 = vrot.slane %v3754, %v3771
  %v3773 = vcombine.low %v3765, %v3772
  %v3775 = vunpack.c.l.s4 1966171168
  %v3776 = vunpack.c.0.s8 %v3775
  %v3777 = vlaneseq
  %v3778 = vshrl.u32 %v3777, 7
  %v3779 = vsub.s32 %v3776, %v3778
  %v3780 = vrot.slane %v3773, %v3779
  %v3782 = vmul.f32 %v3748, %v3780
  %v3783 = vld [vmem:[%s3] sm:$0x7]
  %v3785 = vlaneseq
  %v3786 = vshrl.u32 %v3785, 7
  %v3787 = vsub.s32 0, %v3786
  %v3788 = vrot.slane %v3782, %v3787
  %v3789 = vlaneseq
  %v3790 = vshrl.u32 %v3789, 7
  %v3791 = vsub.s32 1, %v3790
  %v3792 = vrot.slane %v3782, %v3791
  %v3793 = vlaneseq
  %v3794 = vshrl.u32 %v3793, 7
  %v3795 = vsub.s32 2, %v3794
  %v3796 = vrot.slane %v3782, %v3795
  %v3800 = vmul.f32 %v3718, %v3788
  %v3801 = vmul.f32 %v3719, %v3792
  %v3802 = vmul.f32 %v3720, %v3796
  %v3806 = vcombine.low %v3800, %v3801
  %v3808 = vunpack.c.l.s4 1966171168
  %v3809 = vunpack.c.0.s8 %v3808
  %v3810 = vlaneseq
  %v3811 = vshrl.u32 %v3810, 7
  %v3812 = vsub.s32 %v3809, %v3811
  %v3813 = vrot.slane %v3806, %v3812
  %v3815 = vunpack.c.l.s4 1966171168
  %v3816 = vunpack.c.0.s8 %v3815
  %v3817 = vlaneseq
  %v3818 = vshrl.u32 %v3817, 7
  %v3819 = vsub.s32 %v3816, %v3818
  %v3820 = vrot.slane %v3802, %v3819
  %v3821 = vcombine.low %v3813, %v3820
  %v3823 = vunpack.c.l.s4 1966171168
  %v3824 = vunpack.c.0.s8 %v3823
  %v3825 = vlaneseq
  %v3826 = vshrl.u32 %v3825, 7
  %v3827 = vsub.s32 %v3824, %v3826
  %v3828 = vrot.slane %v3821, %v3827
  %v3830 = vsub.f32 %v3783, %v3828
  %v3831 = vmul.f32 %v3333, %v3788
  %v3832 = vmul.f32 %v3335, %v3792
  %v3833 = vmul.f32 %v3694, %v3796
  %v3835 = vlaneseq
  %v3836 = vshrl.u32 %v3835, 7
  %v3837 = vsub.s32 0, %v3836
  %v3838 = vrot.slane %v3830, %v3837
  %v3839 = vlaneseq
  %v3840 = vshrl.u32 %v3839, 7
  %v3841 = vsub.s32 1, %v3840
  %v3842 = vrot.slane %v3830, %v3841
  %v3843 = vlaneseq
  %v3844 = vshrl.u32 %v3843, 7
  %v3845 = vsub.s32 2, %v3844
  %v3846 = vrot.slane %v3830, %v3845
  %v3850 = vadd.f32 %v3831, %v3838
  %v3851 = vadd.f32 %v3832, %v3842
  %v3852 = vadd.f32 %v3833, %v3846
  %vm3853 = vcmp.ge.f32.partialorder %v3850, 0.0
  %vm3854 = vcmp.ge.f32.partialorder %v3851, 0.0
  %vm3855 = vcmp.ge.f32.partialorder %v3852, 0.0
  %v3856 = vmul.f32 %v3850, 0.2
  %v3857 = vmul.f32 %v3851, 0.2
  %v3858 = vmul.f32 %v3852, 0.2
  %v3859 = vsel %vm3853, %v3850, %v3856
  %v3860 = vsel %vm3854, %v3851, %v3857
  %v3861 = vsel %vm3855, %v3852, %v3858
  %3862 = vst [vmem:[%s4] sm:$0xff] %v3859
  %3863 = vst [vmem:[%s4 + $0x8] sm:$0xff] %v3860
  %3864 = vst [vmem:[%s4 + $0x10] sm:$0xff] %v3861
  // Predicated region
  $region18: #{sar_encoder_forward.7} parent=0 // pred_check
    _
  $region19: #{sar_encoder_forward.7} parent=0 // pred_check_branch
    %3866 = sbr.rel (0) target = $region21
  $region20: #{sar_encoder_forward.7} parent=0 // pred_region
    _
  $region21: #{sar_encoder_forward.7} parent=0 // pred_fallthru
    _
  // Predicated region
  $region22: #{sar_encoder_forward.7} parent=0 // pred_check
    _
  $region23: #{sar_encoder_forward.7} parent=0 // pred_check_branch
    %3868 = sbr.rel (0) target = $region25
  $region24: #{sar_encoder_forward.7} parent=0 // pred_region
    _
  $region25: #{sar_encoder_forward.7} parent=0 // pred_fallthru
    _

</llo_original>
